<compile_context>
chip_gen: v7x
topology: tpu7x:2x2x1
jax: 0.10.0
libtpu: 0.0.40
codegen_flags: <defaults>
</compile_context>

<pallas_src>
import numpy as np
import jax
import jax.numpy as jnp
from jax.experimental import pallas as pl
from jax.experimental.pallas import tpu as pltpu

EPS = 1e-5               # nn.BatchNorm2d default eps
NEG_SLOPE = 0.01         # nn.LeakyReLU default negative_slope
_MANUAL_DMA_BYTES = 64 * 1024   # later-layer weights at/above this size stream manually


def _nbytes(a):
    return int(np.prod(a.shape)) * a.dtype.itemsize


def _leaky_relu(x):
    return jnp.where(x > 0, x, NEG_SLOPE * x)


# ----------------------------- fused Pallas kernel ---------------------------

def make_fused_kernel(n_conv, n_fc, manual_flags):
    """Whole ExoClassifier forward in a single kernel.

    input ref layout: x, [B, mc, mct, gb] * n_conv, [W, b] * n_fc, W_final, b_final
    outputs:          log-probabilities (N, 2)
    scratch:          one VMEM buffer per manually-DMA'd weight + one DMA semaphore array
    """
    n_in = 1 + 4 * n_conv + 2 * n_fc + 2
    n_manual = sum(manual_flags)

    def kernel(*refs):
        in_refs = refs[:n_in]
        o_ref = refs[n_in]
        scratch_refs = refs[n_in + 1:n_in + 1 + n_manual]
        sem = refs[n_in + 1 + n_manual] if n_manual else None

        # ---- kick off manual DMAs for the big later-layer weights ----------------
        # These inputs live in HBM (memory_space=pl.ANY): they stream into VMEM
        # scratch behind the conv-0 compute and are waited on right before first use.
        pending = {}
        si = 0
        for idx, m in enumerate(manual_flags):
            if m:
                cp = pltpu.make_async_copy(in_refs[idx], scratch_refs[si], sem.at[si])
                cp.start()
                pending[idx] = (cp, scratch_refs[si])
                si += 1

        def read(idx):
            if idx in pending:
                cp, buf = pending[idx]
                cp.wait()                     # reached right before first use
                return buf[...]
            return in_refs[idx][...]

        # Activations stay sample-major: (N, C*H*W) in NCHW flatten order throughout,
        # so the pre-FC `result.view(N, -1)` is already the column order (no transpose).
        a = read(0).astype(jnp.bfloat16)

        # ---------- encoder: conv (dense matmul) + training-mode BN + LeakyReLU -----
        for l in range(n_conv):
            base = 1 + 4 * l
            B = read(base)           # (Fin, Fout) bf16 dense conv matrix
            mc = read(base + 1)      # (F, C)  bf16 one-hot channel membership
            mct = read(base + 2)     # (C, F)  bf16 transpose (precomputed)
            gb = read(base + 3)      # (2, C)  f32  [gamma; beta]

            y = jnp.dot(a, B, preferred_element_type=jnp.float32)        # (N, F) f32

            f, c = mc.shape
            hw = f // c
            inv_count = 1.0 / float(y.shape[0] * hw)   # biased stats over (N, H, W)
            # NOTE: per-block inv_count is only valid while the batch axis is un-tiled.

            # per-channel sum / sum-of-squares with ONE tiny matmul
            stats = jnp.concatenate(
                [jnp.sum(y, axis=0, keepdims=True),
                 jnp.sum(y * y, axis=0, keepdims=True)], axis=0)          # (2, F) f32
            stats_c = jnp.dot(stats.astype(jnp.bfloat16), mc,
                              preferred_element_type=jnp.float32) * inv_count  # (2, C)
            mean_c = stats_c[0:1, :]
            var_c = jnp.maximum(stats_c[1:2, :] - mean_c * mean_c, 0.0)   # E[y^2]-mean^2

            gamma = gb[0:1, :]
            beta = gb[1:2, :]
            scale_c = gamma * jax.lax.rsqrt(var_c + EPS)                  # (1, C)
            shift_c = beta - mean_c * scale_c                             # (1, C)

            # broadcast scale & shift back to columns with ONE tiny matmul
            ss_col = jnp.dot(
                jnp.concatenate([scale_c, shift_c], axis=0).astype(jnp.bfloat16),
                mct, preferred_element_type=jnp.float32)                  # (2, F)

            z = y * ss_col[0:1, :] + ss_col[1:2, :]
            a = _leaky_relu(z).astype(jnp.bfloat16)

        # ---------- FC stack (Linear + LeakyReLU); columns already NCHW-flat order ---
        base_fc = 1 + 4 * n_conv
        for l in range(n_fc):
            w = read(base_fc + 2 * l)
            b = read(base_fc + 2 * l + 1)
            z = jnp.dot(a, w, preferred_element_type=jnp.float32) + b
            a = _leaky_relu(z).astype(jnp.bfloat16)

        # ---------- final Linear + log_softmax (dim=1) --------------------------------
        logits = (jnp.dot(a, read(n_in - 2), preferred_element_type=jnp.float32)
                  + read(n_in - 1))
        s = logits - jnp.max(logits, axis=-1, keepdims=True)
        o_ref[...] = s - jnp.log(jnp.sum(jnp.exp(s), axis=-1, keepdims=True))

    return kernel


# ----------------------------- pallas_call wrapper ---------------------------

def _full_spec(shape):
    nd = len(shape)
    return pl.BlockSpec(shape, lambda i, _nd=nd: (0,) * _nd)


def exo_classifier_forward(params, x_nchw):
    n = x_nchw.shape[0]
    # PyTorch flattens NCHW with .view(N, -1); with the dense-conv column ordering this
    # reshape is the only host-side op and it is free (no transpose).
    x_flat = x_nchw.reshape(n, -1)

    inputs, manual = [x_flat], [False]
    for li, (B, mc, mct, gb) in enumerate(params["conv"]):
        inputs += [B, mc, mct, gb]
        # Layer-0 B is needed immediately -> auto VMEM; later conv matrices stream.
        manual += [li > 0 and _nbytes(B) >= _MANUAL_DMA_BYTES, False, False, False]
    for (w, b) in params["fc"]:
        inputs += [w, b]
        manual += [_nbytes(w) >= _MANUAL_DMA_BYTES, False]
    inputs += [params["final"][0], params["final"][1]]
    manual += [False, False]

    in_specs = [pl.BlockSpec(memory_space=pl.ANY) if m else _full_spec(a.shape)
                for a, m in zip(inputs, manual)]

    scratch_shapes = [pltpu.VMEM(a.shape, a.dtype)
                      for a, m in zip(inputs, manual) if m]
    n_manual = len(scratch_shapes)
    if n_manual:
        scratch_shapes.append(pltpu.SemaphoreType.DMA((n_manual,)))

    kernel = make_fused_kernel(len(params["conv"]), len(params["fc"]), tuple(manual))

    # grid=(1,): total work is tiny (N=2) and BN statistics must span the whole batch,
    # so splitting across a parallel grid axis would be pure per-step overhead here.
    return pl.pallas_call(
        kernel,
        out_shape=jax.ShapeDtypeStruct((n, 2), jnp.float32),
        grid=(1,),
        in_specs=in_specs,
        out_specs=_full_spec((n, 2)),
        scratch_shapes=scratch_shapes,
        compiler_params=pltpu.CompilerParams(
            dimension_semantics=("arbitrary",)),
    )(*inputs)


# ----------------------------- parameter construction ------------------------

def conv_to_dense(w_conv, h, w, stride, pad):
    """Lower Conv2d(kernel, stride, pad) to a dense (Cin*H*W, Cout*HO*WO) matrix.

    Row index = NCHW flatten of the layer input, column index = NCHW flatten of the
    layer output, so `x.reshape(N, -1) @ B` equals the flattened conv output exactly.
    """
    cout, cin, kh_, kw_ = w_conv.shape
    ho = (h + 2 * pad - kh_) // stride + 1
    wo = (w + 2 * pad - kw_) // stride + 1
    wn = np.asarray(jax.device_get(w_conv), dtype=np.float32)
    B = np.zeros((cin * h * w, cout * ho * wo), np.float32)
    ci = np.arange(cin)
    co = np.arange(cout)
    for kh in range(kh_):
        for kw in range(kw_):
            wk = wn[:, :, kh, kw].T                     # (Cin, Cout)
            for oh in range(ho):
                ih = oh * stride + kh - pad
                if not (0 <= ih < h):
                    continue
                for ow in range(wo):
                    iw = ow * stride + kw - pad
                    if not (0 <= iw < w):
                        continue
                    rows = ci * (h * w) + ih * w + iw
                    cols = co * (ho * wo) + oh * wo + ow
                    B[np.ix_(rows, cols)] += wk
    return jnp.asarray(B), ho, wo


def channel_mask(c, hw):
    """(F, C) one-hot channel membership for NCHW-flattened columns, F = C*HW.

    Stored bf16 (exact for one-hot) so the BN helper matmuls are native bf16 MXU ops
    on v5e/v6e and the mc/mct DMA is halved.
    """
    f = np.arange(c * hw)
    m = (f[:, None] // hw == np.arange(c)[None, :]).astype(np.float32)
    return (jnp.asarray(m, dtype=jnp.bfloat16),
            jnp.asarray(m.T.copy(), dtype=jnp.bfloat16))


def init_params(key, in_channels, kernels, strides, hidden_dims, spatial):
    keys = iter(jax.random.split(key, 2 * len(hidden_dims) + 2 * 4))
    params = {"conv": [], "fc": []}

    cin, h, w = in_channels, spatial, spatial
    for idx, cout in enumerate(hidden_dims):
        k, s = kernels[idx], strides[idx]
        w_conv = 0.05 * jax.random.normal(next(keys), (cout, cin, k, k), jnp.float32)
        # NOTE: Conv2d bias is intentionally omitted — with training-mode BatchNorm2d
        # right after, a per-channel bias is exactly cancelled by the batch-mean
        # subtraction and never reaches the forward output.
        B, ho, wo = conv_to_dense(w_conv, h, w, stride=s, pad=1)
        mc, mct = channel_mask(cout, ho * wo)
        gb = jnp.concatenate([jnp.ones((1, cout), jnp.float32),    # BN weight (gamma)
                              jnp.zeros((1, cout), jnp.float32)],  # BN bias   (beta)
                             axis=0)
        params["conv"].append((B.astype(jnp.bfloat16), mc, mct, gb))
        cin, h, w = cout, ho, wo

    # fc_nodes = [2**(i*2) for i in reversed(range(1, 6, 2))] = [1024, 64, 4]
    fc_nodes = [2 ** (i * 2) for i in reversed(range(1, 6, 2))]
    nodes = cin * h * w                                  # = hidden_dims[-1] * convdim[-1]**2
    for n_out in fc_nodes:
        wfc = 0.05 * jax.random.normal(next(keys), (nodes, n_out), jnp.float32)
        bfc = 0.05 * jax.random.normal(next(keys), (1, n_out), jnp.float32)
        params["fc"].append((wfc.astype(jnp.bfloat16), bfc))
        nodes = n_out

    params["final"] = (
        (0.05 * jax.random.normal(next(keys), (nodes, 2), jnp.float32)).astype(jnp.bfloat16),
        0.05 * jax.random.normal(next(keys), (1, 2), jnp.float32),
    )
    return params


# ------------------------------------ main ------------------------------------

if __name__ == "__main__":
    # Module hyperparameters (consistent with the PyTorch __init__ defaults):
    in_channels = 4
    kernels = [3, 3]
    strides = [2, 2]
    # hidden_dims default = [2**(i+4) for i in range(len(kernels))] = [16, 32]
    hidden_dims = [2 ** (i + 4) for i in range(len(kernels))]
    spatial = 16            # 16x16 input: k=3, s=2, p=1 -> 8 -> 4 (convdim_enc = [8, 4])

    key = jax.random.PRNGKey(0)
    k_param, k_x = jax.random.split(key)
    params = init_params(k_param, in_channels, kernels, strides, hidden_dims, spatial)

    x = jax.random.normal(k_x, (2, in_channels, spatial, spatial), jnp.float32)

    fwd = jax.jit(exo_classifier_forward)
    out = jax.block_until_ready(fwd(params, x))

    assert out.shape == (2, 2)
    # log_softmax rows must exponentiate-sum to 1
    assert jnp.allclose(jnp.sum(jnp.exp(out), axis=-1), 1.0, atol=1e-4)
    print("KERNEL_OK")
</pallas_src>

<mosaic_0001>
module attributes {stable_mosaic.version = 11 : i64} {
  func.func @kernel(%arg0: i32, %arg1: memref<2x1024xf32, #tpu.memory_space<vmem>>, %arg2: memref<1024x1024xbf16, #tpu.memory_space<vmem>>, %arg3: memref<1024x16xbf16, #tpu.memory_space<vmem>>, %arg4: memref<16x1024xbf16, #tpu.memory_space<vmem>>, %arg5: memref<2x16xf32, #tpu.memory_space<vmem>>, %arg6: memref<1024x512xbf16, #tpu.memory_space<any>>, %arg7: memref<512x32xbf16, #tpu.memory_space<vmem>>, %arg8: memref<32x512xbf16, #tpu.memory_space<vmem>>, %arg9: memref<2x32xf32, #tpu.memory_space<vmem>>, %arg10: memref<512x1024xbf16, #tpu.memory_space<any>>, %arg11: memref<1x1024xf32, #tpu.memory_space<vmem>>, %arg12: memref<1024x64xbf16, #tpu.memory_space<any>>, %arg13: memref<1x64xf32, #tpu.memory_space<vmem>>, %arg14: memref<64x4xbf16, #tpu.memory_space<vmem>>, %arg15: memref<1x4xf32, #tpu.memory_space<vmem>>, %arg16: memref<4x2xbf16, #tpu.memory_space<vmem>>, %arg17: memref<1x2xf32, #tpu.memory_space<vmem>>, %arg18: memref<2x2xf32, #tpu.memory_space<vmem>>, %arg19: memref<1024x512xbf16, #tpu.memory_space<vmem>>, %arg20: memref<512x1024xbf16, #tpu.memory_space<vmem>>, %arg21: memref<1024x64xbf16, #tpu.memory_space<vmem>>, %arg22: memref<3x!tpu.dma_semaphore, #tpu.memory_space<semaphore_mem>>) attributes {dimension_semantics = [#tpu.dimension_semantics<arbitrary>], iteration_bounds = array<i64: 1>, scalar_prefetch = 0 : i64, scratch_operands = 4 : i64, tpu.core_type = #tpu.core_type<tc>, window_params = [{pipeline_mode = #tpu.pipeline_mode<synchronous>, transform_indices = @transform_0, window_bounds = array<i64: 2, 1024>}, {pipeline_mode = #tpu.pipeline_mode<synchronous>, transform_indices = @transform_1, window_bounds = array<i64: 1024, 1024>}, {pipeline_mode = #tpu.pipeline_mode<synchronous>, transform_indices = @transform_2, window_bounds = array<i64: 1024, 16>}, {pipeline_mode = #tpu.pipeline_mode<synchronous>, transform_indices = @transform_3, window_bounds = array<i64: 16, 1024>}, {pipeline_mode = #tpu.pipeline_mode<synchronous>, transform_indices = @transform_4, window_bounds = array<i64: 2, 16>}, {}, {pipeline_mode = #tpu.pipeline_mode<synchronous>, transform_indices = @transform_6, window_bounds = array<i64: 512, 32>}, {pipeline_mode = #tpu.pipeline_mode<synchronous>, transform_indices = @transform_7, window_bounds = array<i64: 32, 512>}, {pipeline_mode = #tpu.pipeline_mode<synchronous>, transform_indices = @transform_8, window_bounds = array<i64: 2, 32>}, {}, {pipeline_mode = #tpu.pipeline_mode<synchronous>, transform_indices = @transform_10, window_bounds = array<i64: 1, 1024>}, {}, {pipeline_mode = #tpu.pipeline_mode<synchronous>, transform_indices = @transform_12, window_bounds = array<i64: 1, 64>}, {pipeline_mode = #tpu.pipeline_mode<synchronous>, transform_indices = @transform_13, window_bounds = array<i64: 64, 4>}, {pipeline_mode = #tpu.pipeline_mode<synchronous>, transform_indices = @transform_14, window_bounds = array<i64: 1, 4>}, {pipeline_mode = #tpu.pipeline_mode<synchronous>, transform_indices = @transform_15, window_bounds = array<i64: 4, 2>}, {pipeline_mode = #tpu.pipeline_mode<synchronous>, transform_indices = @transform_16, window_bounds = array<i64: 1, 2>}, {pipeline_mode = #tpu.pipeline_mode<synchronous>, transform_indices = @transform_17, window_bounds = array<i64: 2, 2>}]} {
    %c0_i32 = arith.constant 0 : i32
    %0 = tpu.memref_slice %arg22[%c0_i32] : memref<3x!tpu.dma_semaphore, #tpu.memory_space<semaphore_mem>> -> memref<1x!tpu.dma_semaphore, #tpu.memory_space<semaphore_mem>>
    %1 = tpu.memref_squeeze %0 : memref<1x!tpu.dma_semaphore, #tpu.memory_space<semaphore_mem>> -> memref<!tpu.dma_semaphore, #tpu.memory_space<semaphore_mem>>
    tpu.enqueue_dma source(%arg6 : memref<1024x512xbf16, #tpu.memory_space<any>>) target(%arg19 : memref<1024x512xbf16, #tpu.memory_space<vmem>>) target_semaphore(%1 : memref<!tpu.dma_semaphore, #tpu.memory_space<semaphore_mem>>)
    %c1_i32 = arith.constant 1 : i32
    %2 = tpu.memref_slice %arg22[%c1_i32] : memref<3x!tpu.dma_semaphore, #tpu.memory_space<semaphore_mem>> -> memref<1x!tpu.dma_semaphore, #tpu.memory_space<semaphore_mem>>
    %3 = tpu.memref_squeeze %2 : memref<1x!tpu.dma_semaphore, #tpu.memory_space<semaphore_mem>> -> memref<!tpu.dma_semaphore, #tpu.memory_space<semaphore_mem>>
    tpu.enqueue_dma source(%arg10 : memref<512x1024xbf16, #tpu.memory_space<any>>) target(%arg20 : memref<512x1024xbf16, #tpu.memory_space<vmem>>) target_semaphore(%3 : memref<!tpu.dma_semaphore, #tpu.memory_space<semaphore_mem>>)
    %c2_i32 = arith.constant 2 : i32
    %4 = tpu.memref_slice %arg22[%c2_i32] : memref<3x!tpu.dma_semaphore, #tpu.memory_space<semaphore_mem>> -> memref<1x!tpu.dma_semaphore, #tpu.memory_space<semaphore_mem>>
    %5 = tpu.memref_squeeze %4 : memref<1x!tpu.dma_semaphore, #tpu.memory_space<semaphore_mem>> -> memref<!tpu.dma_semaphore, #tpu.memory_space<semaphore_mem>>
    tpu.enqueue_dma source(%arg12 : memref<1024x64xbf16, #tpu.memory_space<any>>) target(%arg21 : memref<1024x64xbf16, #tpu.memory_space<vmem>>) target_semaphore(%5 : memref<!tpu.dma_semaphore, #tpu.memory_space<semaphore_mem>>)
    %c0 = arith.constant 0 : index
    %c0_0 = arith.constant 0 : index
    %6 = vector.load %arg1[%c0, %c0_0] : memref<2x1024xf32, #tpu.memory_space<vmem>>, vector<2x1024xf32>
    %7 = arith.truncf %6 : vector<2x1024xf32> to vector<2x1024xbf16>
    %c0_1 = arith.constant 0 : index
    %c0_2 = arith.constant 0 : index
    %8 = vector.load %arg2[%c0_1, %c0_2] : memref<1024x1024xbf16, #tpu.memory_space<vmem>>, vector<1024x1024xbf16>
    %c0_3 = arith.constant 0 : index
    %c0_4 = arith.constant 0 : index
    %9 = vector.load %arg3[%c0_3, %c0_4] : memref<1024x16xbf16, #tpu.memory_space<vmem>>, vector<1024x16xbf16>
    %c0_5 = arith.constant 0 : index
    %c0_6 = arith.constant 0 : index
    %10 = vector.load %arg4[%c0_5, %c0_6] : memref<16x1024xbf16, #tpu.memory_space<vmem>>, vector<16x1024xbf16>
    %c0_7 = arith.constant 0 : index
    %c0_8 = arith.constant 0 : index
    %11 = vector.load %arg5[%c0_7, %c0_8] : memref<2x16xf32, #tpu.memory_space<vmem>>, vector<2x16xf32>
    %cst = arith.constant dense<0.000000e+00> : vector<2x1024xf32>
    %12 = tpu.matmul %7, %8, %cst {dimension_numbers = #tpu.dot_dimension_numbers<[1], [0], [0], [1], [0, 0, 1, 1], [], []>} : vector<2x1024xbf16>, vector<1024x1024xbf16>, vector<2x1024xf32> -> vector<2x1024xf32>
    %cst_9 = arith.constant dense<0.000000e+00> : vector<1024xf32>
    %13 = vector.multi_reduction <add>, %12, %cst_9 [0] : vector<2x1024xf32> to vector<1024xf32>
    %14 = vector.shape_cast %13 : vector<1024xf32> to vector<1x1024xf32>
    %15 = arith.mulf %12, %12 : vector<2x1024xf32>
    %cst_10 = arith.constant dense<0.000000e+00> : vector<1024xf32>
    %16 = vector.multi_reduction <add>, %15, %cst_10 [0] : vector<2x1024xf32> to vector<1024xf32>
    %17 = vector.shape_cast %16 : vector<1024xf32> to vector<1x1024xf32>
    %18 = tpu.concatenate %14, %17 in 0 : vector<1x1024xf32>, vector<1x1024xf32> -> vector<2x1024xf32>
    %19 = arith.truncf %18 : vector<2x1024xf32> to vector<2x1024xbf16>
    %cst_11 = arith.constant dense<0.000000e+00> : vector<2x16xf32>
    %20 = tpu.matmul %19, %9, %cst_11 {dimension_numbers = #tpu.dot_dimension_numbers<[1], [0], [0], [1], [0, 0, 1, 1], [], []>} : vector<2x1024xbf16>, vector<1024x16xbf16>, vector<2x16xf32> -> vector<2x16xf32>
    %cst_12 = arith.constant 7.812500e-03 : f32
    %21 = vector.broadcast %cst_12 : f32 to vector<2x16xf32>
    %22 = arith.mulf %20, %21 : vector<2x16xf32>
    %23 = vector.extract_strided_slice %22 {offsets = [0, 0], sizes = [1, 16], strides = [1, 1]} : vector<2x16xf32> to vector<1x16xf32>
    %24 = vector.extract_strided_slice %22 {offsets = [1, 0], sizes = [1, 16], strides = [1, 1]} : vector<2x16xf32> to vector<1x16xf32>
    %25 = arith.mulf %23, %23 : vector<1x16xf32>
    %26 = arith.subf %24, %25 : vector<1x16xf32>
    %cst_13 = arith.constant 0.000000e+00 : f32
    %27 = vector.broadcast %cst_13 : f32 to vector<1x16xf32>
    %28 = arith.maximumf %26, %27 : vector<1x16xf32>
    %29 = vector.extract_strided_slice %11 {offsets = [0, 0], sizes = [1, 16], strides = [1, 1]} : vector<2x16xf32> to vector<1x16xf32>
    %30 = vector.extract_strided_slice %11 {offsets = [1, 0], sizes = [1, 16], strides = [1, 1]} : vector<2x16xf32> to vector<1x16xf32>
    %cst_14 = arith.constant 9.99999974E-6 : f32
    %31 = vector.broadcast %cst_14 : f32 to vector<1x16xf32>
    %32 = arith.addf %28, %31 : vector<1x16xf32>
    %33 = math.rsqrt %32 : vector<1x16xf32>
    %34 = arith.mulf %29, %33 : vector<1x16xf32>
    %35 = arith.mulf %23, %34 : vector<1x16xf32>
    %36 = arith.subf %30, %35 : vector<1x16xf32>
    %37 = tpu.concatenate %34, %36 in 0 : vector<1x16xf32>, vector<1x16xf32> -> vector<2x16xf32>
    %38 = arith.truncf %37 : vector<2x16xf32> to vector<2x16xbf16>
    %cst_15 = arith.constant dense<0.000000e+00> : vector<2x1024xf32>
    %39 = tpu.matmul %38, %10, %cst_15 {dimension_numbers = #tpu.dot_dimension_numbers<[1], [0], [0], [1], [0, 0, 1, 1], [], []>} : vector<2x16xbf16>, vector<16x1024xbf16>, vector<2x1024xf32> -> vector<2x1024xf32>
    %40 = vector.extract_strided_slice %39 {offsets = [0, 0], sizes = [1, 1024], strides = [1, 1]} : vector<2x1024xf32> to vector<1x1024xf32>
    %41 = vector.broadcast %40 : vector<1x1024xf32> to vector<2x1024xf32>
    %42 = arith.mulf %12, %41 : vector<2x1024xf32>
    %43 = vector.extract_strided_slice %39 {offsets = [1, 0], sizes = [1, 1024], strides = [1, 1]} : vector<2x1024xf32> to vector<1x1024xf32>
    %44 = vector.broadcast %43 : vector<1x1024xf32> to vector<2x1024xf32>
    %45 = arith.addf %42, %44 : vector<2x1024xf32>
    %cst_16 = arith.constant 0.000000e+00 : f32
    %46 = vector.broadcast %cst_16 : f32 to vector<2x1024xf32>
    %47 = arith.cmpf ogt, %45, %46 : vector<2x1024xf32>
    %cst_17 = arith.constant 0.00999999977 : f32
    %48 = vector.broadcast %cst_17 : f32 to vector<2x1024xf32>
    %49 = arith.mulf %48, %45 : vector<2x1024xf32>
    %50 = arith.select %47, %45, %49 : vector<2x1024xi1>, vector<2x1024xf32>
    %51 = arith.truncf %50 : vector<2x1024xf32> to vector<2x1024xbf16>
    %c0_i32_18 = arith.constant 0 : i32
    %52 = tpu.memref_slice %arg22[%c0_i32_18] : memref<3x!tpu.dma_semaphore, #tpu.memory_space<semaphore_mem>> -> memref<1x!tpu.dma_semaphore, #tpu.memory_space<semaphore_mem>>
    %53 = tpu.memref_squeeze %52 : memref<1x!tpu.dma_semaphore, #tpu.memory_space<semaphore_mem>> -> memref<!tpu.dma_semaphore, #tpu.memory_space<semaphore_mem>>
    tpu.wait_dma2 semaphore(%53 : memref<!tpu.dma_semaphore, #tpu.memory_space<semaphore_mem>>) src(%arg6 : memref<1024x512xbf16, #tpu.memory_space<any>>) dst(%arg19 : memref<1024x512xbf16, #tpu.memory_space<vmem>>)
    %c0_19 = arith.constant 0 : index
    %c0_20 = arith.constant 0 : index
    %54 = vector.load %arg19[%c0_19, %c0_20] : memref<1024x512xbf16, #tpu.memory_space<vmem>>, vector<1024x512xbf16>
    %c0_21 = arith.constant 0 : index
    %c0_22 = arith.constant 0 : index
    %55 = vector.load %arg7[%c0_21, %c0_22] : memref<512x32xbf16, #tpu.memory_space<vmem>>, vector<512x32xbf16>
    %c0_23 = arith.constant 0 : index
    %c0_24 = arith.constant 0 : index
    %56 = vector.load %arg8[%c0_23, %c0_24] : memref<32x512xbf16, #tpu.memory_space<vmem>>, vector<32x512xbf16>
    %c0_25 = arith.constant 0 : index
    %c0_26 = arith.constant 0 : index
    %57 = vector.load %arg9[%c0_25, %c0_26] : memref<2x32xf32, #tpu.memory_space<vmem>>, vector<2x32xf32>
    %cst_27 = arith.constant dense<0.000000e+00> : vector<2x512xf32>
    %58 = tpu.matmul %51, %54, %cst_27 {dimension_numbers = #tpu.dot_dimension_numbers<[1], [0], [0], [1], [0, 0, 1, 1], [], []>} : vector<2x1024xbf16>, vector<1024x512xbf16>, vector<2x512xf32> -> vector<2x512xf32>
    %cst_28 = arith.constant dense<0.000000e+00> : vector<512xf32>
    %59 = vector.multi_reduction <add>, %58, %cst_28 [0] : vector<2x512xf32> to vector<512xf32>
    %60 = vector.shape_cast %59 : vector<512xf32> to vector<1x512xf32>
    %61 = arith.mulf %58, %58 : vector<2x512xf32>
    %cst_29 = arith.constant dense<0.000000e+00> : vector<512xf32>
    %62 = vector.multi_reduction <add>, %61, %cst_29 [0] : vector<2x512xf32> to vector<512xf32>
    %63 = vector.shape_cast %62 : vector<512xf32> to vector<1x512xf32>
    %64 = tpu.concatenate %60, %63 in 0 : vector<1x512xf32>, vector<1x512xf32> -> vector<2x512xf32>
    %65 = arith.truncf %64 : vector<2x512xf32> to vector<2x512xbf16>
    %cst_30 = arith.constant dense<0.000000e+00> : vector<2x32xf32>
    %66 = tpu.matmul %65, %55, %cst_30 {dimension_numbers = #tpu.dot_dimension_numbers<[1], [0], [0], [1], [0, 0, 1, 1], [], []>} : vector<2x512xbf16>, vector<512x32xbf16>, vector<2x32xf32> -> vector<2x32xf32>
    %cst_31 = arith.constant 3.125000e-02 : f32
    %67 = vector.broadcast %cst_31 : f32 to vector<2x32xf32>
    %68 = arith.mulf %66, %67 : vector<2x32xf32>
    %69 = vector.extract_strided_slice %68 {offsets = [0, 0], sizes = [1, 32], strides = [1, 1]} : vector<2x32xf32> to vector<1x32xf32>
    %70 = vector.extract_strided_slice %68 {offsets = [1, 0], sizes = [1, 32], strides = [1, 1]} : vector<2x32xf32> to vector<1x32xf32>
    %71 = arith.mulf %69, %69 : vector<1x32xf32>
    %72 = arith.subf %70, %71 : vector<1x32xf32>
    %cst_32 = arith.constant 0.000000e+00 : f32
    %73 = vector.broadcast %cst_32 : f32 to vector<1x32xf32>
    %74 = arith.maximumf %72, %73 : vector<1x32xf32>
    %75 = vector.extract_strided_slice %57 {offsets = [0, 0], sizes = [1, 32], strides = [1, 1]} : vector<2x32xf32> to vector<1x32xf32>
    %76 = vector.extract_strided_slice %57 {offsets = [1, 0], sizes = [1, 32], strides = [1, 1]} : vector<2x32xf32> to vector<1x32xf32>
    %cst_33 = arith.constant 9.99999974E-6 : f32
    %77 = vector.broadcast %cst_33 : f32 to vector<1x32xf32>
    %78 = arith.addf %74, %77 : vector<1x32xf32>
    %79 = math.rsqrt %78 : vector<1x32xf32>
    %80 = arith.mulf %75, %79 : vector<1x32xf32>
    %81 = arith.mulf %69, %80 : vector<1x32xf32>
    %82 = arith.subf %76, %81 : vector<1x32xf32>
    %83 = tpu.concatenate %80, %82 in 0 : vector<1x32xf32>, vector<1x32xf32> -> vector<2x32xf32>
    %84 = arith.truncf %83 : vector<2x32xf32> to vector<2x32xbf16>
    %cst_34 = arith.constant dense<0.000000e+00> : vector<2x512xf32>
    %85 = tpu.matmul %84, %56, %cst_34 {dimension_numbers = #tpu.dot_dimension_numbers<[1], [0], [0], [1], [0, 0, 1, 1], [], []>} : vector<2x32xbf16>, vector<32x512xbf16>, vector<2x512xf32> -> vector<2x512xf32>
    %86 = vector.extract_strided_slice %85 {offsets = [0, 0], sizes = [1, 512], strides = [1, 1]} : vector<2x512xf32> to vector<1x512xf32>
    %87 = vector.broadcast %86 : vector<1x512xf32> to vector<2x512xf32>
    %88 = arith.mulf %58, %87 : vector<2x512xf32>
    %89 = vector.extract_strided_slice %85 {offsets = [1, 0], sizes = [1, 512], strides = [1, 1]} : vector<2x512xf32> to vector<1x512xf32>
    %90 = vector.broadcast %89 : vector<1x512xf32> to vector<2x512xf32>
    %91 = arith.addf %88, %90 : vector<2x512xf32>
    %cst_35 = arith.constant 0.000000e+00 : f32
    %92 = vector.broadcast %cst_35 : f32 to vector<2x512xf32>
    %93 = arith.cmpf ogt, %91, %92 : vector<2x512xf32>
    %cst_36 = arith.constant 0.00999999977 : f32
    %94 = vector.broadcast %cst_36 : f32 to vector<2x512xf32>
    %95 = arith.mulf %94, %91 : vector<2x512xf32>
    %96 = arith.select %93, %91, %95 : vector<2x512xi1>, vector<2x512xf32>
    %97 = arith.truncf %96 : vector<2x512xf32> to vector<2x512xbf16>
    %c1_i32_37 = arith.constant 1 : i32
    %98 = tpu.memref_slice %arg22[%c1_i32_37] : memref<3x!tpu.dma_semaphore, #tpu.memory_space<semaphore_mem>> -> memref<1x!tpu.dma_semaphore, #tpu.memory_space<semaphore_mem>>
    %99 = tpu.memref_squeeze %98 : memref<1x!tpu.dma_semaphore, #tpu.memory_space<semaphore_mem>> -> memref<!tpu.dma_semaphore, #tpu.memory_space<semaphore_mem>>
    tpu.wait_dma2 semaphore(%99 : memref<!tpu.dma_semaphore, #tpu.memory_space<semaphore_mem>>) src(%arg10 : memref<512x1024xbf16, #tpu.memory_space<any>>) dst(%arg20 : memref<512x1024xbf16, #tpu.memory_space<vmem>>)
    %c0_38 = arith.constant 0 : index
    %c0_39 = arith.constant 0 : index
    %100 = vector.load %arg20[%c0_38, %c0_39] : memref<512x1024xbf16, #tpu.memory_space<vmem>>, vector<512x1024xbf16>
    %c0_40 = arith.constant 0 : index
    %c0_41 = arith.constant 0 : index
    %101 = vector.load %arg11[%c0_40, %c0_41] : memref<1x1024xf32, #tpu.memory_space<vmem>>, vector<1x1024xf32>
    %cst_42 = arith.constant dense<0.000000e+00> : vector<2x1024xf32>
    %102 = tpu.matmul %97, %100, %cst_42 {dimension_numbers = #tpu.dot_dimension_numbers<[1], [0], [0], [1], [0, 0, 1, 1], [], []>} : vector<2x512xbf16>, vector<512x1024xbf16>, vector<2x1024xf32> -> vector<2x1024xf32>
    %103 = vector.broadcast %101 : vector<1x1024xf32> to vector<2x1024xf32>
    %104 = arith.addf %102, %103 : vector<2x1024xf32>
    %cst_43 = arith.constant 0.000000e+00 : f32
    %105 = vector.broadcast %cst_43 : f32 to vector<2x1024xf32>
    %106 = arith.cmpf ogt, %104, %105 : vector<2x1024xf32>
    %cst_44 = arith.constant 0.00999999977 : f32
    %107 = vector.broadcast %cst_44 : f32 to vector<2x1024xf32>
    %108 = arith.mulf %107, %104 : vector<2x1024xf32>
    %109 = arith.select %106, %104, %108 : vector<2x1024xi1>, vector<2x1024xf32>
    %110 = arith.truncf %109 : vector<2x1024xf32> to vector<2x1024xbf16>
    %c2_i32_45 = arith.constant 2 : i32
    %111 = tpu.memref_slice %arg22[%c2_i32_45] : memref<3x!tpu.dma_semaphore, #tpu.memory_space<semaphore_mem>> -> memref<1x!tpu.dma_semaphore, #tpu.memory_space<semaphore_mem>>
    %112 = tpu.memref_squeeze %111 : memref<1x!tpu.dma_semaphore, #tpu.memory_space<semaphore_mem>> -> memref<!tpu.dma_semaphore, #tpu.memory_space<semaphore_mem>>
    tpu.wait_dma2 semaphore(%112 : memref<!tpu.dma_semaphore, #tpu.memory_space<semaphore_mem>>) src(%arg12 : memref<1024x64xbf16, #tpu.memory_space<any>>) dst(%arg21 : memref<1024x64xbf16, #tpu.memory_space<vmem>>)
    %c0_46 = arith.constant 0 : index
    %c0_47 = arith.constant 0 : index
    %113 = vector.load %arg21[%c0_46, %c0_47] : memref<1024x64xbf16, #tpu.memory_space<vmem>>, vector<1024x64xbf16>
    %c0_48 = arith.constant 0 : index
    %c0_49 = arith.constant 0 : index
    %114 = vector.load %arg13[%c0_48, %c0_49] : memref<1x64xf32, #tpu.memory_space<vmem>>, vector<1x64xf32>
    %cst_50 = arith.constant dense<0.000000e+00> : vector<2x64xf32>
    %115 = tpu.matmul %110, %113, %cst_50 {dimension_numbers = #tpu.dot_dimension_numbers<[1], [0], [0], [1], [0, 0, 1, 1], [], []>} : vector<2x1024xbf16>, vector<1024x64xbf16>, vector<2x64xf32> -> vector<2x64xf32>
    %116 = vector.broadcast %114 : vector<1x64xf32> to vector<2x64xf32>
    %117 = arith.addf %115, %116 : vector<2x64xf32>
    %cst_51 = arith.constant 0.000000e+00 : f32
    %118 = vector.broadcast %cst_51 : f32 to vector<2x64xf32>
    %119 = arith.cmpf ogt, %117, %118 : vector<2x64xf32>
    %cst_52 = arith.constant 0.00999999977 : f32
    %120 = vector.broadcast %cst_52 : f32 to vector<2x64xf32>
    %121 = arith.mulf %120, %117 : vector<2x64xf32>
    %122 = arith.select %119, %117, %121 : vector<2x64xi1>, vector<2x64xf32>
    %123 = arith.truncf %122 : vector<2x64xf32> to vector<2x64xbf16>
    %c0_53 = arith.constant 0 : index
    %c0_54 = arith.constant 0 : index
    %124 = vector.load %arg14[%c0_53, %c0_54] : memref<64x4xbf16, #tpu.memory_space<vmem>>, vector<64x4xbf16>
    %c0_55 = arith.constant 0 : index
    %c0_56 = arith.constant 0 : index
    %125 = vector.load %arg15[%c0_55, %c0_56] : memref<1x4xf32, #tpu.memory_space<vmem>>, vector<1x4xf32>
    %cst_57 = arith.constant dense<0.000000e+00> : vector<2x4xf32>
    %126 = tpu.matmul %123, %124, %cst_57 {dimension_numbers = #tpu.dot_dimension_numbers<[1], [0], [0], [1], [0, 0, 1, 1], [], []>} : vector<2x64xbf16>, vector<64x4xbf16>, vector<2x4xf32> -> vector<2x4xf32>
    %127 = vector.broadcast %125 : vector<1x4xf32> to vector<2x4xf32>
    %128 = arith.addf %126, %127 : vector<2x4xf32>
    %cst_58 = arith.constant 0.000000e+00 : f32
    %129 = vector.broadcast %cst_58 : f32 to vector<2x4xf32>
    %130 = arith.cmpf ogt, %128, %129 : vector<2x4xf32>
    %cst_59 = arith.constant 0.00999999977 : f32
    %131 = vector.broadcast %cst_59 : f32 to vector<2x4xf32>
    %132 = arith.mulf %131, %128 : vector<2x4xf32>
    %133 = arith.select %130, %128, %132 : vector<2x4xi1>, vector<2x4xf32>
    %134 = arith.truncf %133 : vector<2x4xf32> to vector<2x4xbf16>
    %c0_60 = arith.constant 0 : index
    %c0_61 = arith.constant 0 : index
    %135 = vector.load %arg16[%c0_60, %c0_61] : memref<4x2xbf16, #tpu.memory_space<vmem>>, vector<4x2xbf16>
    %cst_62 = arith.constant dense<0.000000e+00> : vector<2x2xf32>
    %136 = tpu.matmul %134, %135, %cst_62 {dimension_numbers = #tpu.dot_dimension_numbers<[1], [0], [0], [1], [0, 0, 1, 1], [], []>} : vector<2x4xbf16>, vector<4x2xbf16>, vector<2x2xf32> -> vector<2x2xf32>
    %c0_63 = arith.constant 0 : index
    %c0_64 = arith.constant 0 : index
    %137 = vector.load %arg17[%c0_63, %c0_64] : memref<1x2xf32, #tpu.memory_space<vmem>>, vector<1x2xf32>
    %138 = vector.broadcast %137 : vector<1x2xf32> to vector<2x2xf32>
    %139 = arith.addf %136, %138 : vector<2x2xf32>
    %cst_65 = arith.constant dense<0xFF800000> : vector<2xf32>
    %140 = vector.multi_reduction <maximumf>, %139, %cst_65 [1] : vector<2x2xf32> to vector<2xf32>
    %141 = vector.shape_cast %140 : vector<2xf32> to vector<2x1xf32>
    %142 = vector.broadcast %141 : vector<2x1xf32> to vector<2x2xf32>
    %143 = arith.subf %139, %142 : vector<2x2xf32>
    %144 = math.exp %143 : vector<2x2xf32>
    %cst_66 = arith.constant dense<0.000000e+00> : vector<2xf32>
    %145 = vector.multi_reduction <add>, %144, %cst_66 [1] : vector<2x2xf32> to vector<2xf32>
    %146 = vector.shape_cast %145 : vector<2xf32> to vector<2x1xf32>
    %147 = math.log %146 : vector<2x1xf32>
    %148 = vector.broadcast %147 : vector<2x1xf32> to vector<2x2xf32>
    %149 = arith.subf %143, %148 : vector<2x2xf32>
    %c0_67 = arith.constant 0 : index
    %c0_68 = arith.constant 0 : index
    %150 = vector.load %arg18[%c0_67, %c0_68] : memref<2x2xf32, #tpu.memory_space<vmem>>, vector<2x2xf32>
    tpu.vector_store %arg18[%c0_67, %c0_68], %149 {strides = array<i32>} : memref<2x2xf32, #tpu.memory_space<vmem>>, vector<2x2xf32>,
    return
  }
  func.func @transform_0(%arg0: i32) -> (i32, i32) {
    %c0_i32 = arith.constant 0 : i32
    %c0_i32_0 = arith.constant 0 : i32
    %c0_i32_1 = arith.constant 0 : i32
    return %c0_i32, %c0_i32_0 : i32, i32
  }
  func.func @transform_1(%arg0: i32) -> (i32, i32) {
    %c0_i32 = arith.constant 0 : i32
    %c0_i32_0 = arith.constant 0 : i32
    %c0_i32_1 = arith.constant 0 : i32
    return %c0_i32, %c0_i32_0 : i32, i32
  }
  func.func @transform_2(%arg0: i32) -> (i32, i32) {
    %c0_i32 = arith.constant 0 : i32
    %c0_i32_0 = arith.constant 0 : i32
    %c0_i32_1 = arith.constant 0 : i32
    return %c0_i32, %c0_i32_0 : i32, i32
  }
  func.func @transform_3(%arg0: i32) -> (i32, i32) {
    %c0_i32 = arith.constant 0 : i32
    %c0_i32_0 = arith.constant 0 : i32
    %c0_i32_1 = arith.constant 0 : i32
    return %c0_i32, %c0_i32_0 : i32, i32
  }
  func.func @transform_4(%arg0: i32) -> (i32, i32) {
    %c0_i32 = arith.constant 0 : i32
    %c0_i32_0 = arith.constant 0 : i32
    %c0_i32_1 = arith.constant 0 : i32
    return %c0_i32, %c0_i32_0 : i32, i32
  }
  func.func @transform_6(%arg0: i32) -> (i32, i32) {
    %c0_i32 = arith.constant 0 : i32
    %c0_i32_0 = arith.constant 0 : i32
    %c0_i32_1 = arith.constant 0 : i32
    return %c0_i32, %c0_i32_0 : i32, i32
  }
  func.func @transform_7(%arg0: i32) -> (i32, i32) {
    %c0_i32 = arith.constant 0 : i32
    %c0_i32_0 = arith.constant 0 : i32
    %c0_i32_1 = arith.constant 0 : i32
    return %c0_i32, %c0_i32_0 : i32, i32
  }
  func.func @transform_8(%arg0: i32) -> (i32, i32) {
    %c0_i32 = arith.constant 0 : i32
    %c0_i32_0 = arith.constant 0 : i32
    %c0_i32_1 = arith.constant 0 : i32
    return %c0_i32, %c0_i32_0 : i32, i32
  }
  func.func @transform_10(%arg0: i32) -> (i32, i32) {
    %c0_i32 = arith.constant 0 : i32
    %c0_i32_0 = arith.constant 0 : i32
    %c0_i32_1 = arith.constant 0 : i32
    return %c0_i32, %c0_i32_0 : i32, i32
  }
  func.func @transform_12(%arg0: i32) -> (i32, i32) {
    %c0_i32 = arith.constant 0 : i32
    %c0_i32_0 = arith.constant 0 : i32
    %c0_i32_1 = arith.constant 0 : i32
    return %c0_i32, %c0_i32_0 : i32, i32
  }
  func.func @transform_13(%arg0: i32) -> (i32, i32) {
    %c0_i32 = arith.constant 0 : i32
    %c0_i32_0 = arith.constant 0 : i32
    %c0_i32_1 = arith.constant 0 : i32
    return %c0_i32, %c0_i32_0 : i32, i32
  }
  func.func @transform_14(%arg0: i32) -> (i32, i32) {
    %c0_i32 = arith.constant 0 : i32
    %c0_i32_0 = arith.constant 0 : i32
    %c0_i32_1 = arith.constant 0 : i32
    return %c0_i32, %c0_i32_0 : i32, i32
  }
  func.func @transform_15(%arg0: i32) -> (i32, i32) {
    %c0_i32 = arith.constant 0 : i32
    %c0_i32_0 = arith.constant 0 : i32
    %c0_i32_1 = arith.constant 0 : i32
    return %c0_i32, %c0_i32_0 : i32, i32
  }
  func.func @transform_16(%arg0: i32) -> (i32, i32) {
    %c0_i32 = arith.constant 0 : i32
    %c0_i32_0 = arith.constant 0 : i32
    %c0_i32_1 = arith.constant 0 : i32
    return %c0_i32, %c0_i32_0 : i32, i32
  }
  func.func @transform_17(%arg0: i32) -> (i32, i32) {
    %c0_i32 = arith.constant 0 : i32
    %c0_i32_0 = arith.constant 0 : i32
    %c0_i32_1 = arith.constant 0 : i32
    return %c0_i32, %c0_i32_0 : i32, i32
  }
}

</mosaic_0001>

<llo_original>
// kernel: exo_classifier_forward.1
$region0: #{exo_classifier_forward.1}
  #allocation0 [shape = 'u32[]', space=smem, size = 0x4, offset = 0x4, fixed_abs, tag = 'smem constant byte address 0x4 - core index']
  #allocation1 [shape = 'u32[144,128]{1,0:T(1,128)}', space=vmem, size = 0x12000, scoped, tag = 'internal scratch']
  #allocation2 [shape = 'bf16[1024,512]{1,0:T(16,128)(2,1)}', space=vmem, size = 0x100000, scoped, tag = 'scratch operand']
  #allocation3 [shape = 'bf16[512,1024]{1,0:T(16,128)(2,1)}', space=vmem, size = 0x100000, scoped, tag = 'scratch operand']
  #allocation4 [shape = 'bf16[1024,64]{1,0:T(16,128)(2,1)}', space=vmem, size = 0x40000, scoped, tag = 'scratch operand']
  #allocation5 [shape = 's32[3]{0}', space=sflag, size = 0xc, scoped, tag = 'scratch operand']
  #allocation22 [shape = 's32[]', space=sflag, size = 0x4, offset = 0, fixed_abs, tag = 'sflag constant byte address 0x0 - dummy sync flag']
  #allocation24 [shape = 's32[]', space=sflag, size = 0x4, offset = 0, fixed_abs, tag = 'sflag constant byte address 0x0 - dummy sync flag']
  #allocation26 [shape = 's32[]', space=sflag, size = 0x4, offset = 0, fixed_abs, tag = 'sflag constant byte address 0x0 - dummy sync flag']
  %s0 = inlined_call_operand.vmem [shape: f32[2,1024], index: 0, kind: input, shape index: {}]
  %s1 = inlined_call_operand.hbm [shape: bf16[1024,1024], index: 1, kind: input, shape index: {}]
  %s2 = inlined_call_operand.vmem [shape: bf16[1024,16], index: 2, kind: input, shape index: {}]
  %s3 = inlined_call_operand.hbm [shape: bf16[16,1024], index: 3, kind: input, shape index: {}]
  %s4 = inlined_call_operand.hbm [shape: f32[2,16], index: 4, kind: input, shape index: {}]
  %s5 = inlined_call_operand.hbm [shape: bf16[1024,512], index: 5, kind: input, shape index: {}]
  %s6 = inlined_call_operand.vmem [shape: bf16[512,32], index: 6, kind: input, shape index: {}]
  %s7 = inlined_call_operand.hbm [shape: bf16[32,512], index: 7, kind: input, shape index: {}]
  %s8 = inlined_call_operand.hbm [shape: f32[2,32], index: 8, kind: input, shape index: {}]
  %s9 = inlined_call_operand.hbm [shape: bf16[512,1024], index: 9, kind: input, shape index: {}]
  %s10 = inlined_call_operand.hbm [shape: f32[1,1024], index: 10, kind: input, shape index: {}]
  %s11 = inlined_call_operand.vmem [shape: bf16[1024,64], index: 11, kind: input, shape index: {}]
  %s12 = inlined_call_operand.hbm [shape: f32[1,64], index: 12, kind: input, shape index: {}]
  %s13 = inlined_call_operand.vmem [shape: bf16[64,4], index: 13, kind: input, shape index: {}]
  %s14 = inlined_call_operand.hbm [shape: f32[1,4], index: 14, kind: input, shape index: {}]
  %s15 = inlined_call_operand.vmem [shape: bf16[4,2], index: 15, kind: input, shape index: {}]
  %s16 = inlined_call_operand.hbm [shape: f32[1,2], index: 16, kind: input, shape index: {}]
  %s17 = inlined_call_operand.hbm [shape: f32[2,2], index: 17, kind: output, shape index: {}]
  %s18 = sld [smem:[#allocation0]]
  $region136: #{exo_classifier_forward.1} parent=0
    _
  %s20 = ssub.s32 1, %s18
  %s21 = scalar_select 0, %s20, %s18
  $region1: #{exo_classifier_forward.1} parent=0
    #allocation6 [shape = 'u8[2097152]{0}', space=vmem, size = 0x200000, scoped, tag = 'input window, operand 1, single buffered']
    #allocation7 [shape = 's32[1]{0}', space=sflag, size = 0x4, scoped, tag = 'scoped memory for exo_classifier_forward.1']
    #allocation8 [shape = 's32[1]{0}', space=sflag, size = 0x4, scoped, tag = 'scoped memory for exo_classifier_forward.1']
    #allocation9 [shape = 'u8[32768]{0}', space=vmem, size = 0x8000, scoped, tag = 'input window, operand 3, single buffered']
    #allocation10 [shape = 's32[1]{0}', space=sflag, size = 0x4, scoped, tag = 'scoped memory for exo_classifier_forward.1']
    #allocation11 [shape = 'u8[1024]{0}', space=vmem, size = 0x400, scoped, tag = 'input window, operand 4, single buffered']
    #allocation12 [shape = 'u8[32768]{0}', space=vmem, size = 0x8000, scoped, tag = 'input window, operand 7, single buffered']
    #allocation13 [shape = 's32[1]{0}', space=sflag, size = 0x4, scoped, tag = 'scoped memory for exo_classifier_forward.1']
    #allocation14 [shape = 'u8[1024]{0}', space=vmem, size = 0x400, scoped, tag = 'input window, operand 8, single buffered']
    #allocation15 [shape = 'u8[4096]{0}', space=vmem, size = 0x1000, scoped, tag = 'input window, operand 10, single buffered']
    #allocation16 [shape = 's32[1]{0}', space=sflag, size = 0x4, scoped, tag = 'scoped memory for exo_classifier_forward.1']
    #allocation17 [shape = 'u8[512]{0}', space=vmem, size = 0x400, scoped, tag = 'input window, operand 12, single buffered']
    #allocation18 [shape = 'u8[512]{0}', space=vmem, size = 0x400, scoped, tag = 'input window, operand 14, single buffered']
    #allocation19 [shape = 's32[1]{0}', space=sflag, size = 0x4, scoped, tag = 'scoped memory for exo_classifier_forward.1']
    #allocation20 [shape = 'u8[512]{0}', space=vmem, size = 0x400, scoped, tag = 'input window, operand 16, single buffered']
    #allocation21 [shape = 'u8[1024]{0}', space=vmem, size = 0x400, scoped, tag = 'output window, operand 0, single buffered']
    #allocation23 [shape = 'u32[9]{0}', space=smem, size = 0x24, scoped, tag = 'DMA stride descriptor']
    #allocation25 [shape = 'u32[9]{0}', space=smem, size = 0x24, scoped, tag = 'DMA stride descriptor']
    %22 = vsyncpa [#allocation7], 0
    %23 = vsyncpa [#allocation10], 0
    %24 = vsyncpa [#allocation13], 0
    %25 = vsyncpa [#allocation16], 0
    %26 = vsyncpa [#allocation19], 0
    %27 = vsyncpa [#allocation8], 0
    // Predicated region
    $region2: #{exo_classifier_forward.1} parent=1 // pred_check
      _
    $region3: #{exo_classifier_forward.1} parent=1 // pred_check_branch
      %29 = sbr.rel (0) target = $region5
    $region4: #{exo_classifier_forward.1} parent=1 // pred_region
      _
    $region5: #{exo_classifier_forward.1} parent=1 // pred_fallthru
      _
    // Predicated region
    $region6: #{exo_classifier_forward.1} parent=1 // pred_check
      _
    $region7: #{exo_classifier_forward.1} parent=1 // pred_check_branch
      %31 = sbr.rel (0) target = $region9
    $region8: #{exo_classifier_forward.1} parent=1 // pred_region
      %s33 = ssub.s32 65536, 65536
      %34 = vsyncadd [#allocation7], %s33
      %s35 = sshll.u32 [#allocation6], 4
      %s36 = int_to_ptr.vmem [resolvable:$true] %s35
      %41 = dma.hbm_to_vmem [thread:$0]  %s1, 65536, %s36, [#allocation7], 512, 512, 32
    $region9: #{exo_classifier_forward.1} parent=1 // pred_fallthru
      _
    // Predicated region
    $region10: #{exo_classifier_forward.1} parent=1 // pred_check
      _
    $region11: #{exo_classifier_forward.1} parent=1 // pred_check_branch
      %43 = sbr.rel (0) target = $region13
    $region12: #{exo_classifier_forward.1} parent=1 // pred_region
      _
    $region13: #{exo_classifier_forward.1} parent=1 // pred_fallthru
      _
    // Predicated region
    $region14: #{exo_classifier_forward.1} parent=1 // pred_check
      _
    $region15: #{exo_classifier_forward.1} parent=1 // pred_check_branch
      %45 = sbr.rel (0) target = $region17
    $region16: #{exo_classifier_forward.1} parent=1 // pred_region
      %s47 = ssub.s32 1024, 1024
      %48 = vsyncadd [#allocation10], %s47
      %s49 = sshll.u32 [#allocation9], 4
      %s50 = int_to_ptr.vmem [resolvable:$true] %s49
      %55 = dma.hbm_to_vmem [thread:$0]  %s3, 1024, %s50, [#allocation10], 512, 512, 32
    $region17: #{exo_classifier_forward.1} parent=1 // pred_fallthru
      _
    // Predicated region
    $region18: #{exo_classifier_forward.1} parent=1 // pred_check
      _
    $region19: #{exo_classifier_forward.1} parent=1 // pred_check_branch
      %57 = sbr.rel (0) target = $region21
    $region20: #{exo_classifier_forward.1} parent=1 // pred_region
      %s59 = ssub.s32 32, 32
      %60 = vsyncadd [#allocation10], %s59
      %s62 = sshll.u32 [#allocation11], 4
      %s63 = int_to_ptr.vmem [resolvable:$true] %s62
      %65 = dma.hbm_to_vmem [thread:$0]  %s4, 32, %s63, [#allocation10]
    $region21: #{exo_classifier_forward.1} parent=1 // pred_fallthru
      _
    // Predicated region
    $region22: #{exo_classifier_forward.1} parent=1 // pred_check
      _
    $region23: #{exo_classifier_forward.1} parent=1 // pred_check_branch
      %67 = sbr.rel (0) target = $region25
    $region24: #{exo_classifier_forward.1} parent=1 // pred_region
      _
    $region25: #{exo_classifier_forward.1} parent=1 // pred_fallthru
      _
    // Predicated region
    $region26: #{exo_classifier_forward.1} parent=1 // pred_check
      _
    $region27: #{exo_classifier_forward.1} parent=1 // pred_check_branch
      %69 = sbr.rel (0) target = $region29
    $region28: #{exo_classifier_forward.1} parent=1 // pred_region
      %s71 = ssub.s32 1024, 1024
      %72 = vsyncadd [#allocation13], %s71
      %s73 = sshll.u32 [#allocation12], 4
      %s74 = int_to_ptr.vmem [resolvable:$true] %s73
      %79 = dma.hbm_to_vmem [thread:$0]  %s7, 1024, %s74, [#allocation13], 256, 256, 16
    $region29: #{exo_classifier_forward.1} parent=1 // pred_fallthru
      _
    // Predicated region
    $region30: #{exo_classifier_forward.1} parent=1 // pred_check
      _
    $region31: #{exo_classifier_forward.1} parent=1 // pred_check_branch
      %81 = sbr.rel (0) target = $region33
    $region32: #{exo_classifier_forward.1} parent=1 // pred_region
      %s83 = ssub.s32 32, 32
      %84 = vsyncadd [#allocation13], %s83
      %s86 = sshll.u32 [#allocation14], 4
      %s87 = int_to_ptr.vmem [resolvable:$true] %s86
      %89 = dma.hbm_to_vmem [thread:$0]  %s8, 32, %s87, [#allocation13]
    $region33: #{exo_classifier_forward.1} parent=1 // pred_fallthru
      _
    // Predicated region
    $region34: #{exo_classifier_forward.1} parent=1 // pred_check
      _
    $region35: #{exo_classifier_forward.1} parent=1 // pred_check_branch
      %91 = sbr.rel (0) target = $region37
    $region36: #{exo_classifier_forward.1} parent=1 // pred_region
      %s93 = ssub.s32 128, 128
      %94 = vsyncadd [#allocation16], %s93
      %s96 = sshll.u32 [#allocation15], 4
      %s97 = int_to_ptr.vmem [resolvable:$true] %s96
      %99 = dma.hbm_to_vmem [thread:$0]  %s10, 128, %s97, [#allocation16]
    $region37: #{exo_classifier_forward.1} parent=1 // pred_fallthru
      _
    // Predicated region
    $region38: #{exo_classifier_forward.1} parent=1 // pred_check
      _
    $region39: #{exo_classifier_forward.1} parent=1 // pred_check_branch
      %101 = sbr.rel (0) target = $region41
    $region40: #{exo_classifier_forward.1} parent=1 // pred_region
      %s103 = ssub.s32 16, 16
      %104 = vsyncadd [#allocation16], %s103
      %s106 = sshll.u32 [#allocation17], 4
      %s107 = int_to_ptr.vmem [resolvable:$true] %s106
      %109 = dma.hbm_to_vmem [thread:$0]  %s12, 16, %s107, [#allocation16]
    $region41: #{exo_classifier_forward.1} parent=1 // pred_fallthru
      _
    // Predicated region
    $region42: #{exo_classifier_forward.1} parent=1 // pred_check
      _
    $region43: #{exo_classifier_forward.1} parent=1 // pred_check_branch
      %111 = sbr.rel (0) target = $region45
    $region44: #{exo_classifier_forward.1} parent=1 // pred_region
      _
    $region45: #{exo_classifier_forward.1} parent=1 // pred_fallthru
      _
    // Predicated region
    $region46: #{exo_classifier_forward.1} parent=1 // pred_check
      _
    $region47: #{exo_classifier_forward.1} parent=1 // pred_check_branch
      %113 = sbr.rel (0) target = $region49
    $region48: #{exo_classifier_forward.1} parent=1 // pred_region
      %s115 = ssub.s32 16, 16
      %116 = vsyncadd [#allocation19], %s115
      %s118 = sshll.u32 [#allocation18], 4
      %s119 = int_to_ptr.vmem [resolvable:$true] %s118
      %121 = dma.hbm_to_vmem [thread:$0]  %s14, 16, %s119, [#allocation19]
    $region49: #{exo_classifier_forward.1} parent=1 // pred_fallthru
      _
    // Predicated region
    $region50: #{exo_classifier_forward.1} parent=1 // pred_check
      _
    $region51: #{exo_classifier_forward.1} parent=1 // pred_check_branch
      %123 = sbr.rel (0) target = $region53
    $region52: #{exo_classifier_forward.1} parent=1 // pred_region
      _
    $region53: #{exo_classifier_forward.1} parent=1 // pred_fallthru
      _
    // Predicated region
    $region54: #{exo_classifier_forward.1} parent=1 // pred_check
      _
    $region55: #{exo_classifier_forward.1} parent=1 // pred_check_branch
      %125 = sbr.rel (0) target = $region57
    $region56: #{exo_classifier_forward.1} parent=1 // pred_region
      %s127 = ssub.s32 16, 16
      %128 = vsyncadd [#allocation19], %s127
      %s130 = sshll.u32 [#allocation20], 4
      %s131 = int_to_ptr.vmem [resolvable:$true] %s130
      %133 = dma.hbm_to_vmem [thread:$0]  %s16, 16, %s131, [#allocation19]
    $region57: #{exo_classifier_forward.1} parent=1 // pred_fallthru
      _
    // Predicated region
    $region58: #{exo_classifier_forward.1} parent=1 // pred_check
      _
    $region59: #{exo_classifier_forward.1} parent=1 // pred_check_branch
      %135 = sbr.rel (0) target = $region61
    $region60: #{exo_classifier_forward.1} parent=1 // pred_region
      %136 = dma.done [#allocation7], 65536
    $region61: #{exo_classifier_forward.1} parent=1 // pred_fallthru
      _
    // Predicated region
    $region62: #{exo_classifier_forward.1} parent=1 // pred_check
      _
    $region63: #{exo_classifier_forward.1} parent=1 // pred_check_branch
      %138 = sbr.rel (0) target = $region65
    $region64: #{exo_classifier_forward.1} parent=1 // pred_region
      %139 = dma.done [#allocation10], 1024
    $region65: #{exo_classifier_forward.1} parent=1 // pred_fallthru
      _
    // Predicated region
    $region66: #{exo_classifier_forward.1} parent=1 // pred_check
      _
    $region67: #{exo_classifier_forward.1} parent=1 // pred_check_branch
      %141 = sbr.rel (0) target = $region69
    $region68: #{exo_classifier_forward.1} parent=1 // pred_region
      %142 = dma.done [#allocation10], 32
    $region69: #{exo_classifier_forward.1} parent=1 // pred_fallthru
      _
    // Predicated region
    $region70: #{exo_classifier_forward.1} parent=1 // pred_check
      _
    $region71: #{exo_classifier_forward.1} parent=1 // pred_check_branch
      %144 = sbr.rel (0) target = $region73
    $region72: #{exo_classifier_forward.1} parent=1 // pred_region
      %145 = dma.done [#allocation13], 1024
    $region73: #{exo_classifier_forward.1} parent=1 // pred_fallthru
      _
    // Predicated region
    $region74: #{exo_classifier_forward.1} parent=1 // pred_check
      _
    $region75: #{exo_classifier_forward.1} parent=1 // pred_check_branch
      %147 = sbr.rel (0) target = $region77
    $region76: #{exo_classifier_forward.1} parent=1 // pred_region
      %148 = dma.done [#allocation13], 32
    $region77: #{exo_classifier_forward.1} parent=1 // pred_fallthru
      _
    // Predicated region
    $region78: #{exo_classifier_forward.1} parent=1 // pred_check
      _
    $region79: #{exo_classifier_forward.1} parent=1 // pred_check_branch
      %150 = sbr.rel (0) target = $region81
    $region80: #{exo_classifier_forward.1} parent=1 // pred_region
      %151 = dma.done [#allocation16], 128
    $region81: #{exo_classifier_forward.1} parent=1 // pred_fallthru
      _
    // Predicated region
    $region82: #{exo_classifier_forward.1} parent=1 // pred_check
      _
    $region83: #{exo_classifier_forward.1} parent=1 // pred_check_branch
      %153 = sbr.rel (0) target = $region85
    $region84: #{exo_classifier_forward.1} parent=1 // pred_region
      %154 = dma.done [#allocation16], 16
    $region85: #{exo_classifier_forward.1} parent=1 // pred_fallthru
      _
    // Predicated region
    $region86: #{exo_classifier_forward.1} parent=1 // pred_check
      _
    $region87: #{exo_classifier_forward.1} parent=1 // pred_check_branch
      %156 = sbr.rel (0) target = $region89
    $region88: #{exo_classifier_forward.1} parent=1 // pred_region
      %157 = dma.done [#allocation19], 16
    $region89: #{exo_classifier_forward.1} parent=1 // pred_fallthru
      _
    // Predicated region
    $region90: #{exo_classifier_forward.1} parent=1 // pred_check
      _
    $region91: #{exo_classifier_forward.1} parent=1 // pred_check_branch
      %159 = sbr.rel (0) target = $region93
    $region92: #{exo_classifier_forward.1} parent=1 // pred_region
      %160 = dma.done [#allocation19], 16
    $region93: #{exo_classifier_forward.1} parent=1 // pred_fallthru
      _
    %s163 = sshll.u32 1, 14
    %s164 = sxor.u32 4294967295, %s163
    %s166 = sld [smem:[#allocation0]]
    %s167 = sadd.s32 2, %s166
    %s169 = sshll.u32 7, 26
    %s170 = sxor.u32 4294967295, %s169
    %s171 = sand.u32 0, %s170
    %s172 = sshll.u32 %s167, 26
    %s173 = sor.u32 %s171, %s172
    %s174 = sshll.u32 [#allocation2], 4
    %s175 = int_to_ptr.vmem [resolvable:$true] %s174
    %178 = sst [smem:[#allocation23]] 512
    %s179 = scalar_lea.smem [#allocation23], 1
    %180 = sst [smem:[%s179]] 512
    %s181 = scalar_lea.smem [#allocation23], 2
    %182 = sst [smem:[%s181]] 4
    %s183 = scalar_lea.smem [#allocation23], 3
    %184 = sst [smem:[%s183]] 64
    %s185 = scalar_lea.smem [#allocation23], 4
    %186 = sst [smem:[%s185]] 128
    %s187 = scalar_lea.smem [#allocation23], 5
    %188 = sst [smem:[%s187]] 2
    %s189 = scalar_lea.smem [#allocation23], 6
    %190 = sst [smem:[%s189]] 256
    %s191 = scalar_lea.smem [#allocation23], 7
    %192 = sst [smem:[%s191]] 64
    %s193 = scalar_lea.smem [#allocation23], 8
    %194 = sst [smem:[%s193]] 4
    %196 = dma.general %s5, 32768, %s175, [#allocation5], [#allocation22], [#allocation23], %s173, 0
    %s197 = scalar_lea.sflag [#allocation5], 1
    %s199 = sshll.u32 1, 14
    %s200 = sxor.u32 4294967295, %s199
    %s202 = sadd.s32 2, %s166
    %s204 = sshll.u32 7, 26
    %s205 = sxor.u32 4294967295, %s204
    %s206 = sand.u32 0, %s205
    %s207 = sshll.u32 %s202, 26
    %s208 = sor.u32 %s206, %s207
    %s209 = sshll.u32 [#allocation3], 4
    %s210 = int_to_ptr.vmem [resolvable:$true] %s209
    %213 = sst [smem:[#allocation25]] 1024
    %s214 = scalar_lea.smem [#allocation25], 1
    %215 = sst [smem:[%s214]] 1024
    %s216 = scalar_lea.smem [#allocation25], 2
    %217 = sst [smem:[%s216]] 8
    %s218 = scalar_lea.smem [#allocation25], 3
    %219 = sst [smem:[%s218]] 64
    %s220 = scalar_lea.smem [#allocation25], 4
    %221 = sst [smem:[%s220]] 128
    %s222 = scalar_lea.smem [#allocation25], 5
    %223 = sst [smem:[%s222]] 2
    %s224 = scalar_lea.smem [#allocation25], 6
    %225 = sst [smem:[%s224]] 512
    %s226 = scalar_lea.smem [#allocation25], 7
    %227 = sst [smem:[%s226]] 64
    %s228 = scalar_lea.smem [#allocation25], 8
    %229 = sst [smem:[%s228]] 4
    %231 = dma.general %s9, 32768, %s210, %s197, [#allocation24], [#allocation25], %s208, 0
    %s232 = scalar_lea.sflag [#allocation5], 2
    %p234 = scmp.lt.u32.totalorder 512, 8
    %p235 = pneg %p234
    // Predicated region
    $region94: #{exo_classifier_forward.1} parent=1 // pred_check
      _
    $region95: #{exo_classifier_forward.1} parent=1 // pred_check_branch
      %237 = sbr.rel (%p234) target = $region97
    $region96: #{exo_classifier_forward.1} parent=1 // pred_region
      %s252 = sand.u32 512, 7
      %p253 = scmp.eq.s32.totalorder %s252, 0
      // Predicated region
      $region109: #{exo_classifier_forward.1} parent=96 // pred_check
        %p254 = pneg %p253
      $region110: #{exo_classifier_forward.1} parent=96 // pred_check_branch
        %256 = sbr.rel (%p254) target = $region112
      $region111: #{exo_classifier_forward.1} parent=96 // pred_region
        loop: start=0, step=1, limit=1
        $region113: #{exo_classifier_forward.1} parent=111 // loop_pre_header
          _
        $region114: #{exo_classifier_forward.1} parent=111 // loop_header
          %s258 = sphi 0, %s262
          %p259 = scmp.ge.s32.totalorder %s258, 1
          %s263 = sphi %s11, %s11
          %s264 = sphi [#allocation4], [#allocation4]
        $region115: #{exo_classifier_forward.1} parent=111 // loop_header_branch
          %261 = sbr.rel (%p259) target = $region119
        $region116: #{exo_classifier_forward.1} parent=111 // loop_body
          %v265 = vld [vmem:[%s263] sm:$0xff]
          %266 = vst [vmem:[%s264] sm:$0xff] %v265
          %v267 = vld [vmem:[%s263 + $0x8] sm:$0xff]
          %268 = vst [vmem:[%s264 + $0x8] sm:$0xff] %v267
          %v269 = vld [vmem:[%s263 + $0x10] sm:$0xff]
          %270 = vst [vmem:[%s264 + $0x10] sm:$0xff] %v269
          %v271 = vld [vmem:[%s263 + $0x18] sm:$0xff]
          %272 = vst [vmem:[%s264 + $0x18] sm:$0xff] %v271
          %v273 = vld [vmem:[%s263 + $0x20] sm:$0xff]
          %274 = vst [vmem:[%s264 + $0x20] sm:$0xff] %v273
          %v275 = vld [vmem:[%s263 + $0x28] sm:$0xff]
          %276 = vst [vmem:[%s264 + $0x28] sm:$0xff] %v275
          %v277 = vld [vmem:[%s263 + $0x30] sm:$0xff]
          %278 = vst [vmem:[%s264 + $0x30] sm:$0xff] %v277
          %v279 = vld [vmem:[%s263 + $0x38] sm:$0xff]
          %280 = vst [vmem:[%s264 + $0x38] sm:$0xff] %v279
          %v281 = vld [vmem:[%s263 + $0x40] sm:$0xff]
          %282 = vst [vmem:[%s264 + $0x40] sm:$0xff] %v281
          %v283 = vld [vmem:[%s263 + $0x48] sm:$0xff]
          %284 = vst [vmem:[%s264 + $0x48] sm:$0xff] %v283
          %v285 = vld [vmem:[%s263 + $0x50] sm:$0xff]
          %286 = vst [vmem:[%s264 + $0x50] sm:$0xff] %v285
          %v287 = vld [vmem:[%s263 + $0x58] sm:$0xff]
          %288 = vst [vmem:[%s264 + $0x58] sm:$0xff] %v287
          %v289 = vld [vmem:[%s263 + $0x60] sm:$0xff]
          %290 = vst [vmem:[%s264 + $0x60] sm:$0xff] %v289
          %v291 = vld [vmem:[%s263 + $0x68] sm:$0xff]
          %292 = vst [vmem:[%s264 + $0x68] sm:$0xff] %v291
          %v293 = vld [vmem:[%s263 + $0x70] sm:$0xff]
          %294 = vst [vmem:[%s264 + $0x70] sm:$0xff] %v293
          %v295 = vld [vmem:[%s263 + $0x78] sm:$0xff]
          %296 = vst [vmem:[%s264 + $0x78] sm:$0xff] %v295
          %v297 = vld [vmem:[%s263 + $0x80] sm:$0xff]
          %298 = vst [vmem:[%s264 + $0x80] sm:$0xff] %v297
          %v299 = vld [vmem:[%s263 + $0x88] sm:$0xff]
          %300 = vst [vmem:[%s264 + $0x88] sm:$0xff] %v299
          %v301 = vld [vmem:[%s263 + $0x90] sm:$0xff]
          %302 = vst [vmem:[%s264 + $0x90] sm:$0xff] %v301
          %v303 = vld [vmem:[%s263 + $0x98] sm:$0xff]
          %304 = vst [vmem:[%s264 + $0x98] sm:$0xff] %v303
          %v305 = vld [vmem:[%s263 + $0xa0] sm:$0xff]
          %306 = vst [vmem:[%s264 + $0xa0] sm:$0xff] %v305
          %v307 = vld [vmem:[%s263 + $0xa8] sm:$0xff]
          %308 = vst [vmem:[%s264 + $0xa8] sm:$0xff] %v307
          %v309 = vld [vmem:[%s263 + $0xb0] sm:$0xff]
          %310 = vst [vmem:[%s264 + $0xb0] sm:$0xff] %v309
          %v311 = vld [vmem:[%s263 + $0xb8] sm:$0xff]
          %312 = vst [vmem:[%s264 + $0xb8] sm:$0xff] %v311
          %v313 = vld [vmem:[%s263 + $0xc0] sm:$0xff]
          %314 = vst [vmem:[%s264 + $0xc0] sm:$0xff] %v313
          %v315 = vld [vmem:[%s263 + $0xc8] sm:$0xff]
          %316 = vst [vmem:[%s264 + $0xc8] sm:$0xff] %v315
          %v317 = vld [vmem:[%s263 + $0xd0] sm:$0xff]
          %318 = vst [vmem:[%s264 + $0xd0] sm:$0xff] %v317
          %v319 = vld [vmem:[%s263 + $0xd8] sm:$0xff]
          %320 = vst [vmem:[%s264 + $0xd8] sm:$0xff] %v319
          %v321 = vld [vmem:[%s263 + $0xe0] sm:$0xff]
          %322 = vst [vmem:[%s264 + $0xe0] sm:$0xff] %v321
          %v323 = vld [vmem:[%s263 + $0xe8] sm:$0xff]
          %324 = vst [vmem:[%s264 + $0xe8] sm:$0xff] %v323
          %v325 = vld [vmem:[%s263 + $0xf0] sm:$0xff]
          %326 = vst [vmem:[%s264 + $0xf0] sm:$0xff] %v325
          %v327 = vld [vmem:[%s263 + $0xf8] sm:$0xff]
          %328 = vst [vmem:[%s264 + $0xf8] sm:$0xff] %v327
          %v329 = vld [vmem:[%s263 + $0x100] sm:$0xff]
          %330 = vst [vmem:[%s264 + $0x100] sm:$0xff] %v329
          %v331 = vld [vmem:[%s263 + $0x108] sm:$0xff]
          %332 = vst [vmem:[%s264 + $0x108] sm:$0xff] %v331
          %v333 = vld [vmem:[%s263 + $0x110] sm:$0xff]
          %334 = vst [vmem:[%s264 + $0x110] sm:$0xff] %v333
          %v335 = vld [vmem:[%s263 + $0x118] sm:$0xff]
          %336 = vst [vmem:[%s264 + $0x118] sm:$0xff] %v335
          %v337 = vld [vmem:[%s263 + $0x120] sm:$0xff]
          %338 = vst [vmem:[%s264 + $0x120] sm:$0xff] %v337
          %v339 = vld [vmem:[%s263 + $0x128] sm:$0xff]
          %340 = vst [vmem:[%s264 + $0x128] sm:$0xff] %v339
          %v341 = vld [vmem:[%s263 + $0x130] sm:$0xff]
          %342 = vst [vmem:[%s264 + $0x130] sm:$0xff] %v341
          %v343 = vld [vmem:[%s263 + $0x138] sm:$0xff]
          %344 = vst [vmem:[%s264 + $0x138] sm:$0xff] %v343
          %v345 = vld [vmem:[%s263 + $0x140] sm:$0xff]
          %346 = vst [vmem:[%s264 + $0x140] sm:$0xff] %v345
          %v347 = vld [vmem:[%s263 + $0x148] sm:$0xff]
          %348 = vst [vmem:[%s264 + $0x148] sm:$0xff] %v347
          %v349 = vld [vmem:[%s263 + $0x150] sm:$0xff]
          %350 = vst [vmem:[%s264 + $0x150] sm:$0xff] %v349
          %v351 = vld [vmem:[%s263 + $0x158] sm:$0xff]
          %352 = vst [vmem:[%s264 + $0x158] sm:$0xff] %v351
          %v353 = vld [vmem:[%s263 + $0x160] sm:$0xff]
          %354 = vst [vmem:[%s264 + $0x160] sm:$0xff] %v353
          %v355 = vld [vmem:[%s263 + $0x168] sm:$0xff]
          %356 = vst [vmem:[%s264 + $0x168] sm:$0xff] %v355
          %v357 = vld [vmem:[%s263 + $0x170] sm:$0xff]
          %358 = vst [vmem:[%s264 + $0x170] sm:$0xff] %v357
          %v359 = vld [vmem:[%s263 + $0x178] sm:$0xff]
          %360 = vst [vmem:[%s264 + $0x178] sm:$0xff] %v359
          %v361 = vld [vmem:[%s263 + $0x180] sm:$0xff]
          %362 = vst [vmem:[%s264 + $0x180] sm:$0xff] %v361
          %v363 = vld [vmem:[%s263 + $0x188] sm:$0xff]
          %364 = vst [vmem:[%s264 + $0x188] sm:$0xff] %v363
          %v365 = vld [vmem:[%s263 + $0x190] sm:$0xff]
          %366 = vst [vmem:[%s264 + $0x190] sm:$0xff] %v365
          %v367 = vld [vmem:[%s263 + $0x198] sm:$0xff]
          %368 = vst [vmem:[%s264 + $0x198] sm:$0xff] %v367
          %v369 = vld [vmem:[%s263 + $0x1a0] sm:$0xff]
          %370 = vst [vmem:[%s264 + $0x1a0] sm:$0xff] %v369
          %v371 = vld [vmem:[%s263 + $0x1a8] sm:$0xff]
          %372 = vst [vmem:[%s264 + $0x1a8] sm:$0xff] %v371
          %v373 = vld [vmem:[%s263 + $0x1b0] sm:$0xff]
          %374 = vst [vmem:[%s264 + $0x1b0] sm:$0xff] %v373
          %v375 = vld [vmem:[%s263 + $0x1b8] sm:$0xff]
          %376 = vst [vmem:[%s264 + $0x1b8] sm:$0xff] %v375
          %v377 = vld [vmem:[%s263 + $0x1c0] sm:$0xff]
          %378 = vst [vmem:[%s264 + $0x1c0] sm:$0xff] %v377
          %v379 = vld [vmem:[%s263 + $0x1c8] sm:$0xff]
          %380 = vst [vmem:[%s264 + $0x1c8] sm:$0xff] %v379
          %v381 = vld [vmem:[%s263 + $0x1d0] sm:$0xff]
          %382 = vst [vmem:[%s264 + $0x1d0] sm:$0xff] %v381
          %v383 = vld [vmem:[%s263 + $0x1d8] sm:$0xff]
          %384 = vst [vmem:[%s264 + $0x1d8] sm:$0xff] %v383
          %v385 = vld [vmem:[%s263 + $0x1e0] sm:$0xff]
          %386 = vst [vmem:[%s264 + $0x1e0] sm:$0xff] %v385
          %v387 = vld [vmem:[%s263 + $0x1e8] sm:$0xff]
          %388 = vst [vmem:[%s264 + $0x1e8] sm:$0xff] %v387
          %v389 = vld [vmem:[%s263 + $0x1f0] sm:$0xff]
          %390 = vst [vmem:[%s264 + $0x1f0] sm:$0xff] %v389
          %v391 = vld [vmem:[%s263 + $0x1f8] sm:$0xff]
          %392 = vst [vmem:[%s264 + $0x1f8] sm:$0xff] %v391
        $region117: #{exo_classifier_forward.1} parent=111 // loop_footer
          %s262 = sadd.s32 1, %s258
        $region118: #{exo_classifier_forward.1} parent=111 // loop_footer_branch
          %257 = sbr.rel target = $region114
        $region119: #{exo_classifier_forward.1} parent=111 // loop_exit
          _
      $region112: #{exo_classifier_forward.1} parent=96 // pred_fallthru
        _
      %p393 = pneg %p253
      // Predicated region
      $region120: #{exo_classifier_forward.1} parent=96 // pred_check
        _
      $region121: #{exo_classifier_forward.1} parent=96 // pred_check_branch
        %395 = sbr.rel (%p253) target = $region123
      $region122: #{exo_classifier_forward.1} parent=96 // pred_region
        %s396 = sand.u32 512, 7
      $region123: #{exo_classifier_forward.1} parent=96 // pred_fallthru
        _
    $region97: #{exo_classifier_forward.1} parent=1 // pred_fallthru
      _
    // Predicated region
    $region98: #{exo_classifier_forward.1} parent=1 // pred_check
      %p238 = pneg %p234
    $region99: #{exo_classifier_forward.1} parent=1 // pred_check_branch
      %240 = sbr.rel (%p238) target = $region101
    $region100: #{exo_classifier_forward.1} parent=1 // pred_region
      %s241 = sshllo.u32 0, 512
      loop: start=0, step=1, limit=1
      $region102: #{exo_classifier_forward.1} parent=100 // loop_pre_header
        _
      $region103: #{exo_classifier_forward.1} parent=100 // loop_header
        %s243 = sphi 0, %s247
        %p244 = scmp.ge.s32.totalorder %s243, 1
        %s248 = sphi %s11, %s11
        %s249 = sphi [#allocation4], [#allocation4]
      $region104: #{exo_classifier_forward.1} parent=100 // loop_header_branch
        %246 = sbr.rel (%p244) target = $region108
      $region105: #{exo_classifier_forward.1} parent=100 // loop_body
        %v250 = vld [vmem:[%s248] sm:%s241]
        %251 = vst [vmem:[%s249] sm:%s241] %v250
      $region106: #{exo_classifier_forward.1} parent=100 // loop_footer
        %s247 = sadd.s32 1, %s243
      $region107: #{exo_classifier_forward.1} parent=100 // loop_footer_branch
        %242 = sbr.rel target = $region103
      $region108: #{exo_classifier_forward.1} parent=100 // loop_exit
        _
    $region101: #{exo_classifier_forward.1} parent=1 // pred_fallthru
      _
    // Predicated region
    $region124: #{exo_classifier_forward.1} parent=1 // pred_check
      _
    $region125: #{exo_classifier_forward.1} parent=1 // pred_check_branch
      %399 = sbr.rel (0) target = $region127
    $region126: #{exo_classifier_forward.1} parent=1 // pred_region
      %400 = vsyncadd %s232, 8192
    $region127: #{exo_classifier_forward.1} parent=1 // pred_fallthru
      _
    %v401 = vld [vmem:[%s0] sm:$0xff]
    %v402 = vld [vmem:[%s0 + $0x8] sm:$0xff]
    %v405 = vcombine.high %v401, %v401
    %v407 = vunpack.c.l.s4 1983009808
    %v408 = vunpack.c.0.s8 %v407
    %v409 = vlaneseq
    %v410 = vshrl.u32 %v409, 7
    %v411 = vsub.s32 %v408, %v410
    %v412 = vrot.slane %v401, %v411
    %v414 = vunpack.c.l.s4 1983009808
    %v415 = vunpack.c.0.s8 %v414
    %v416 = vlaneseq
    %v417 = vshrl.u32 %v416, 7
    %v418 = vsub.s32 %v415, %v417
    %v419 = vrot.slane %v405, %v418
    %v420 = vcombine.high %v412, %v412
    %v421 = vcombine.high %v419, %v419
    %v422 = vcombine.high %v402, %v402
    %v424 = vunpack.c.l.s4 1983009808
    %v425 = vunpack.c.0.s8 %v424
    %v426 = vlaneseq
    %v427 = vshrl.u32 %v426, 7
    %v428 = vsub.s32 %v425, %v427
    %v429 = vrot.slane %v402, %v428
    %v431 = vunpack.c.l.s4 1983009808
    %v432 = vunpack.c.0.s8 %v431
    %v433 = vlaneseq
    %v434 = vshrl.u32 %v433, 7
    %v435 = vsub.s32 %v432, %v434
    %v436 = vrot.slane %v422, %v435
    %v437 = vcombine.high %v429, %v429
    %v438 = vcombine.high %v436, %v436
    %v447 = vpack.c.bf16 %v412, %v412
    %v448 = vpack.c.bf16 %v420, %v420
    %v449 = vpack.c.bf16 %v419, %v419
    %v450 = vpack.c.bf16 %v421, %v421
    %v451 = vpack.c.bf16 %v429, %v429
    %v452 = vpack.c.bf16 %v437, %v437
    %v453 = vpack.c.bf16 %v436, %v436
    %v454 = vpack.c.bf16 %v438, %v438
    %v455 = vld [vmem:[#allocation6] sm:$0xff]
    %v456 = vld [vmem:[#allocation6 + $0x8] sm:$0xff]
    %v457 = vld [vmem:[#allocation6 + $0x10] sm:$0xff]
    %v458 = vld [vmem:[#allocation6 + $0x18] sm:$0xff]
    %v459 = vld [vmem:[#allocation6 + $0x20] sm:$0xff]
    %v460 = vld [vmem:[#allocation6 + $0x28] sm:$0xff]
    %v461 = vld [vmem:[#allocation6 + $0x30] sm:$0xff]
    %v462 = vld [vmem:[#allocation6 + $0x38] sm:$0xff]
    %v463 = vld [vmem:[#allocation6 + $0x40] sm:$0xff]
    %v464 = vld [vmem:[#allocation6 + $0x48] sm:$0xff]
    %v465 = vld [vmem:[#allocation6 + $0x50] sm:$0xff]
    %v466 = vld [vmem:[#allocation6 + $0x58] sm:$0xff]
    %v467 = vld [vmem:[#allocation6 + $0x60] sm:$0xff]
    %v468 = vld [vmem:[#allocation6 + $0x68] sm:$0xff]
    %v469 = vld [vmem:[#allocation6 + $0x70] sm:$0xff]
    %v470 = vld [vmem:[#allocation6 + $0x78] sm:$0xff]
    %v471 = vld [vmem:[#allocation6 + $0x80] sm:$0xff]
    %v472 = vld [vmem:[#allocation6 + $0x88] sm:$0xff]
    %v473 = vld [vmem:[#allocation6 + $0x90] sm:$0xff]
    %v474 = vld [vmem:[#allocation6 + $0x98] sm:$0xff]
    %v475 = vld [vmem:[#allocation6 + $0xa0] sm:$0xff]
    %v476 = vld [vmem:[#allocation6 + $0xa8] sm:$0xff]
    %v477 = vld [vmem:[#allocation6 + $0xb0] sm:$0xff]
    %v478 = vld [vmem:[#allocation6 + $0xb8] sm:$0xff]
    %v479 = vld [vmem:[#allocation6 + $0xc0] sm:$0xff]
    %v480 = vld [vmem:[#allocation6 + $0xc8] sm:$0xff]
    %v481 = vld [vmem:[#allocation6 + $0xd0] sm:$0xff]
    %v482 = vld [vmem:[#allocation6 + $0xd8] sm:$0xff]
    %v483 = vld [vmem:[#allocation6 + $0xe0] sm:$0xff]
    %v484 = vld [vmem:[#allocation6 + $0xe8] sm:$0xff]
    %v485 = vld [vmem:[#allocation6 + $0xf0] sm:$0xff]
    %v486 = vld [vmem:[#allocation6 + $0xf8] sm:$0xff]
    %v487 = vld [vmem:[#allocation6 + $0x100] sm:$0xff]
    %v488 = vld [vmem:[#allocation6 + $0x108] sm:$0xff]
    %v489 = vld [vmem:[#allocation6 + $0x110] sm:$0xff]
    %v490 = vld [vmem:[#allocation6 + $0x118] sm:$0xff]
    %v491 = vld [vmem:[#allocation6 + $0x120] sm:$0xff]
    %v492 = vld [vmem:[#allocation6 + $0x128] sm:$0xff]
    %v493 = vld [vmem:[#allocation6 + $0x130] sm:$0xff]
    %v494 = vld [vmem:[#allocation6 + $0x138] sm:$0xff]
    %v495 = vld [vmem:[#allocation6 + $0x140] sm:$0xff]
    %v496 = vld [vmem:[#allocation6 + $0x148] sm:$0xff]
    %v497 = vld [vmem:[#allocation6 + $0x150] sm:$0xff]
    %v498 = vld [vmem:[#allocation6 + $0x158] sm:$0xff]
    %v499 = vld [vmem:[#allocation6 + $0x160] sm:$0xff]
    %v500 = vld [vmem:[#allocation6 + $0x168] sm:$0xff]
    %v501 = vld [vmem:[#allocation6 + $0x170] sm:$0xff]
    %v502 = vld [vmem:[#allocation6 + $0x178] sm:$0xff]
    %v503 = vld [vmem:[#allocation6 + $0x180] sm:$0xff]
    %v504 = vld [vmem:[#allocation6 + $0x188] sm:$0xff]
    %v505 = vld [vmem:[#allocation6 + $0x190] sm:$0xff]
    %v506 = vld [vmem:[#allocation6 + $0x198] sm:$0xff]
    %v507 = vld [vmem:[#allocation6 + $0x1a0] sm:$0xff]
    %v508 = vld [vmem:[#allocation6 + $0x1a8] sm:$0xff]
    %v509 = vld [vmem:[#allocation6 + $0x1b0] sm:$0xff]
    %v510 = vld [vmem:[#allocation6 + $0x1b8] sm:$0xff]
    %v511 = vld [vmem:[#allocation6 + $0x1c0] sm:$0xff]
    %v512 = vld [vmem:[#allocation6 + $0x1c8] sm:$0xff]
    %v513 = vld [vmem:[#allocation6 + $0x1d0] sm:$0xff]
    %v514 = vld [vmem:[#allocation6 + $0x1d8] sm:$0xff]
    %v515 = vld [vmem:[#allocation6 + $0x1e0] sm:$0xff]
    %v516 = vld [vmem:[#allocation6 + $0x1e8] sm:$0xff]
    %v517 = vld [vmem:[#allocation6 + $0x1f0] sm:$0xff]
    %v518 = vld [vmem:[#allocation6 + $0x1f8] sm:$0xff]
    %v519 = vld [vmem:[#allocation6 + $0x200] sm:$0xff]
    %v520 = vld [vmem:[#allocation6 + $0x208] sm:$0xff]
    %v521 = vld [vmem:[#allocation6 + $0x210] sm:$0xff]
    %v522 = vld [vmem:[#allocation6 + $0x218] sm:$0xff]
    %v523 = vld [vmem:[#allocation6 + $0x220] sm:$0xff]
    %v524 = vld [vmem:[#allocation6 + $0x228] sm:$0xff]
    %v525 = vld [vmem:[#allocation6 + $0x230] sm:$0xff]
    %v526 = vld [vmem:[#allocation6 + $0x238] sm:$0xff]
    %v527 = vld [vmem:[#allocation6 + $0x240] sm:$0xff]
    %v528 = vld [vmem:[#allocation6 + $0x248] sm:$0xff]
    %v529 = vld [vmem:[#allocation6 + $0x250] sm:$0xff]
    %v530 = vld [vmem:[#allocation6 + $0x258] sm:$0xff]
    %v531 = vld [vmem:[#allocation6 + $0x260] sm:$0xff]
    %v532 = vld [vmem:[#allocation6 + $0x268] sm:$0xff]
    %v533 = vld [vmem:[#allocation6 + $0x270] sm:$0xff]
    %v534 = vld [vmem:[#allocation6 + $0x278] sm:$0xff]
    %v535 = vld [vmem:[#allocation6 + $0x280] sm:$0xff]
    %v536 = vld [vmem:[#allocation6 + $0x288] sm:$0xff]
    %v537 = vld [vmem:[#allocation6 + $0x290] sm:$0xff]
    %v538 = vld [vmem:[#allocation6 + $0x298] sm:$0xff]
    %v539 = vld [vmem:[#allocation6 + $0x2a0] sm:$0xff]
    %v540 = vld [vmem:[#allocation6 + $0x2a8] sm:$0xff]
    %v541 = vld [vmem:[#allocation6 + $0x2b0] sm:$0xff]
    %v542 = vld [vmem:[#allocation6 + $0x2b8] sm:$0xff]
    %v543 = vld [vmem:[#allocation6 + $0x2c0] sm:$0xff]
    %v544 = vld [vmem:[#allocation6 + $0x2c8] sm:$0xff]
    %v545 = vld [vmem:[#allocation6 + $0x2d0] sm:$0xff]
    %v546 = vld [vmem:[#allocation6 + $0x2d8] sm:$0xff]
    %v547 = vld [vmem:[#allocation6 + $0x2e0] sm:$0xff]
    %v548 = vld [vmem:[#allocation6 + $0x2e8] sm:$0xff]
    %v549 = vld [vmem:[#allocation6 + $0x2f0] sm:$0xff]
    %v550 = vld [vmem:[#allocation6 + $0x2f8] sm:$0xff]
    %v551 = vld [vmem:[#allocation6 + $0x300] sm:$0xff]
    %v552 = vld [vmem:[#allocation6 + $0x308] sm:$0xff]
    %v553 = vld [vmem:[#allocation6 + $0x310] sm:$0xff]
    %v554 = vld [vmem:[#allocation6 + $0x318] sm:$0xff]
    %v555 = vld [vmem:[#allocation6 + $0x320] sm:$0xff]
    %v556 = vld [vmem:[#allocation6 + $0x328] sm:$0xff]
    %v557 = vld [vmem:[#allocation6 + $0x330] sm:$0xff]
    %v558 = vld [vmem:[#allocation6 + $0x338] sm:$0xff]
    %v559 = vld [vmem:[#allocation6 + $0x340] sm:$0xff]
    %v560 = vld [vmem:[#allocation6 + $0x348] sm:$0xff]
    %v561 = vld [vmem:[#allocation6 + $0x350] sm:$0xff]
    %v562 = vld [vmem:[#allocation6 + $0x358] sm:$0xff]
    %v563 = vld [vmem:[#allocation6 + $0x360] sm:$0xff]
    %v564 = vld [vmem:[#allocation6 + $0x368] sm:$0xff]
    %v565 = vld [vmem:[#allocation6 + $0x370] sm:$0xff]
    %v566 = vld [vmem:[#allocation6 + $0x378] sm:$0xff]
    %v567 = vld [vmem:[#allocation6 + $0x380] sm:$0xff]
    %v568 = vld [vmem:[#allocation6 + $0x388] sm:$0xff]
    %v569 = vld [vmem:[#allocation6 + $0x390] sm:$0xff]
    %v570 = vld [vmem:[#allocation6 + $0x398] sm:$0xff]
    %v571 = vld [vmem:[#allocation6 + $0x3a0] sm:$0xff]
    %v572 = vld [vmem:[#allocation6 + $0x3a8] sm:$0xff]
    %v573 = vld [vmem:[#allocation6 + $0x3b0] sm:$0xff]
    %v574 = vld [vmem:[#allocation6 + $0x3b8] sm:$0xff]
    %v575 = vld [vmem:[#allocation6 + $0x3c0] sm:$0xff]
    %v576 = vld [vmem:[#allocation6 + $0x3c8] sm:$0xff]
    %v577 = vld [vmem:[#allocation6 + $0x3d0] sm:$0xff]
    %v578 = vld [vmem:[#allocation6 + $0x3d8] sm:$0xff]
    %v579 = vld [vmem:[#allocation6 + $0x3e0] sm:$0xff]
    %v580 = vld [vmem:[#allocation6 + $0x3e8] sm:$0xff]
    %v581 = vld [vmem:[#allocation6 + $0x3f0] sm:$0xff]
    %v582 = vld [vmem:[#allocation6 + $0x3f8] sm:$0xff]
    %v583 = vld [vmem:[#allocation6 + $0x400] sm:$0xff]
    %v584 = vld [vmem:[#allocation6 + $0x408] sm:$0xff]
    %v585 = vld [vmem:[#allocation6 + $0x410] sm:$0xff]
    %v586 = vld [vmem:[#allocation6 + $0x418] sm:$0xff]
    %v587 = vld [vmem:[#allocation6 + $0x420] sm:$0xff]
    %v588 = vld [vmem:[#allocation6 + $0x428] sm:$0xff]
    %v589 = vld [vmem:[#allocation6 + $0x430] sm:$0xff]
    %v590 = vld [vmem:[#allocation6 + $0x438] sm:$0xff]
    %v591 = vld [vmem:[#allocation6 + $0x440] sm:$0xff]
    %v592 = vld [vmem:[#allocation6 + $0x448] sm:$0xff]
    %v593 = vld [vmem:[#allocation6 + $0x450] sm:$0xff]
    %v594 = vld [vmem:[#allocation6 + $0x458] sm:$0xff]
    %v595 = vld [vmem:[#allocation6 + $0x460] sm:$0xff]
    %v596 = vld [vmem:[#allocation6 + $0x468] sm:$0xff]
    %v597 = vld [vmem:[#allocation6 + $0x470] sm:$0xff]
    %v598 = vld [vmem:[#allocation6 + $0x478] sm:$0xff]
    %v599 = vld [vmem:[#allocation6 + $0x480] sm:$0xff]
    %v600 = vld [vmem:[#allocation6 + $0x488] sm:$0xff]
    %v601 = vld [vmem:[#allocation6 + $0x490] sm:$0xff]
    %v602 = vld [vmem:[#allocation6 + $0x498] sm:$0xff]
    %v603 = vld [vmem:[#allocation6 + $0x4a0] sm:$0xff]
    %v604 = vld [vmem:[#allocation6 + $0x4a8] sm:$0xff]
    %v605 = vld [vmem:[#allocation6 + $0x4b0] sm:$0xff]
    %v606 = vld [vmem:[#allocation6 + $0x4b8] sm:$0xff]
    %v607 = vld [vmem:[#allocation6 + $0x4c0] sm:$0xff]
    %v608 = vld [vmem:[#allocation6 + $0x4c8] sm:$0xff]
    %v609 = vld [vmem:[#allocation6 + $0x4d0] sm:$0xff]
    %v610 = vld [vmem:[#allocation6 + $0x4d8] sm:$0xff]
    %v611 = vld [vmem:[#allocation6 + $0x4e0] sm:$0xff]
    %v612 = vld [vmem:[#allocation6 + $0x4e8] sm:$0xff]
    %v613 = vld [vmem:[#allocation6 + $0x4f0] sm:$0xff]
    %v614 = vld [vmem:[#allocation6 + $0x4f8] sm:$0xff]
    %v615 = vld [vmem:[#allocation6 + $0x500] sm:$0xff]
    %v616 = vld [vmem:[#allocation6 + $0x508] sm:$0xff]
    %v617 = vld [vmem:[#allocation6 + $0x510] sm:$0xff]
    %v618 = vld [vmem:[#allocation6 + $0x518] sm:$0xff]
    %v619 = vld [vmem:[#allocation6 + $0x520] sm:$0xff]
    %v620 = vld [vmem:[#allocation6 + $0x528] sm:$0xff]
    %v621 = vld [vmem:[#allocation6 + $0x530] sm:$0xff]
    %v622 = vld [vmem:[#allocation6 + $0x538] sm:$0xff]
    %v623 = vld [vmem:[#allocation6 + $0x540] sm:$0xff]
    %v624 = vld [vmem:[#allocation6 + $0x548] sm:$0xff]
    %v625 = vld [vmem:[#allocation6 + $0x550] sm:$0xff]
    %v626 = vld [vmem:[#allocation6 + $0x558] sm:$0xff]
    %v627 = vld [vmem:[#allocation6 + $0x560] sm:$0xff]
    %v628 = vld [vmem:[#allocation6 + $0x568] sm:$0xff]
    %v629 = vld [vmem:[#allocation6 + $0x570] sm:$0xff]
    %v630 = vld [vmem:[#allocation6 + $0x578] sm:$0xff]
    %v631 = vld [vmem:[#allocation6 + $0x580] sm:$0xff]
    %v632 = vld [vmem:[#allocation6 + $0x588] sm:$0xff]
    %v633 = vld [vmem:[#allocation6 + $0x590] sm:$0xff]
    %v634 = vld [vmem:[#allocation6 + $0x598] sm:$0xff]
    %v635 = vld [vmem:[#allocation6 + $0x5a0] sm:$0xff]
    %v636 = vld [vmem:[#allocation6 + $0x5a8] sm:$0xff]
    %v637 = vld [vmem:[#allocation6 + $0x5b0] sm:$0xff]
    %v638 = vld [vmem:[#allocation6 + $0x5b8] sm:$0xff]
    %v639 = vld [vmem:[#allocation6 + $0x5c0] sm:$0xff]
    %v640 = vld [vmem:[#allocation6 + $0x5c8] sm:$0xff]
    %v641 = vld [vmem:[#allocation6 + $0x5d0] sm:$0xff]
    %v642 = vld [vmem:[#allocation6 + $0x5d8] sm:$0xff]
    %v643 = vld [vmem:[#allocation6 + $0x5e0] sm:$0xff]
    %v644 = vld [vmem:[#allocation6 + $0x5e8] sm:$0xff]
    %v645 = vld [vmem:[#allocation6 + $0x5f0] sm:$0xff]
    %v646 = vld [vmem:[#allocation6 + $0x5f8] sm:$0xff]
    %v647 = vld [vmem:[#allocation6 + $0x600] sm:$0xff]
    %v648 = vld [vmem:[#allocation6 + $0x608] sm:$0xff]
    %v649 = vld [vmem:[#allocation6 + $0x610] sm:$0xff]
    %v650 = vld [vmem:[#allocation6 + $0x618] sm:$0xff]
    %v651 = vld [vmem:[#allocation6 + $0x620] sm:$0xff]
    %v652 = vld [vmem:[#allocation6 + $0x628] sm:$0xff]
    %v653 = vld [vmem:[#allocation6 + $0x630] sm:$0xff]
    %v654 = vld [vmem:[#allocation6 + $0x638] sm:$0xff]
    %v655 = vld [vmem:[#allocation6 + $0x640] sm:$0xff]
    %v656 = vld [vmem:[#allocation6 + $0x648] sm:$0xff]
    %v657 = vld [vmem:[#allocation6 + $0x650] sm:$0xff]
    %v658 = vld [vmem:[#allocation6 + $0x658] sm:$0xff]
    %v659 = vld [vmem:[#allocation6 + $0x660] sm:$0xff]
    %v660 = vld [vmem:[#allocation6 + $0x668] sm:$0xff]
    %v661 = vld [vmem:[#allocation6 + $0x670] sm:$0xff]
    %v662 = vld [vmem:[#allocation6 + $0x678] sm:$0xff]
    %v663 = vld [vmem:[#allocation6 + $0x680] sm:$0xff]
    %v664 = vld [vmem:[#allocation6 + $0x688] sm:$0xff]
    %v665 = vld [vmem:[#allocation6 + $0x690] sm:$0xff]
    %v666 = vld [vmem:[#allocation6 + $0x698] sm:$0xff]
    %v667 = vld [vmem:[#allocation6 + $0x6a0] sm:$0xff]
    %v668 = vld [vmem:[#allocation6 + $0x6a8] sm:$0xff]
    %v669 = vld [vmem:[#allocation6 + $0x6b0] sm:$0xff]
    %v670 = vld [vmem:[#allocation6 + $0x6b8] sm:$0xff]
    %v671 = vld [vmem:[#allocation6 + $0x6c0] sm:$0xff]
    %v672 = vld [vmem:[#allocation6 + $0x6c8] sm:$0xff]
    %v673 = vld [vmem:[#allocation6 + $0x6d0] sm:$0xff]
    %v674 = vld [vmem:[#allocation6 + $0x6d8] sm:$0xff]
    %v675 = vld [vmem:[#allocation6 + $0x6e0] sm:$0xff]
    %v676 = vld [vmem:[#allocation6 + $0x6e8] sm:$0xff]
    %v677 = vld [vmem:[#allocation6 + $0x6f0] sm:$0xff]
    %v678 = vld [vmem:[#allocation6 + $0x6f8] sm:$0xff]
    %v679 = vld [vmem:[#allocation6 + $0x700] sm:$0xff]
    %v680 = vld [vmem:[#allocation6 + $0x708] sm:$0xff]
    %v681 = vld [vmem:[#allocation6 + $0x710] sm:$0xff]
    %v682 = vld [vmem:[#allocation6 + $0x718] sm:$0xff]
    %v683 = vld [vmem:[#allocation6 + $0x720] sm:$0xff]
    %v684 = vld [vmem:[#allocation6 + $0x728] sm:$0xff]
    %v685 = vld [vmem:[#allocation6 + $0x730] sm:$0xff]
    %v686 = vld [vmem:[#allocation6 + $0x738] sm:$0xff]
    %v687 = vld [vmem:[#allocation6 + $0x740] sm:$0xff]
    %v688 = vld [vmem:[#allocation6 + $0x748] sm:$0xff]
    %v689 = vld [vmem:[#allocation6 + $0x750] sm:$0xff]
    %v690 = vld [vmem:[#allocation6 + $0x758] sm:$0xff]
    %v691 = vld [vmem:[#allocation6 + $0x760] sm:$0xff]
    %v692 = vld [vmem:[#allocation6 + $0x768] sm:$0xff]
    %v693 = vld [vmem:[#allocation6 + $0x770] sm:$0xff]
    %v694 = vld [vmem:[#allocation6 + $0x778] sm:$0xff]
    %v695 = vld [vmem:[#allocation6 + $0x780] sm:$0xff]
    %v696 = vld [vmem:[#allocation6 + $0x788] sm:$0xff]
    %v697 = vld [vmem:[#allocation6 + $0x790] sm:$0xff]
    %v698 = vld [vmem:[#allocation6 + $0x798] sm:$0xff]
    %v699 = vld [vmem:[#allocation6 + $0x7a0] sm:$0xff]
    %v700 = vld [vmem:[#allocation6 + $0x7a8] sm:$0xff]
    %v701 = vld [vmem:[#allocation6 + $0x7b0] sm:$0xff]
    %v702 = vld [vmem:[#allocation6 + $0x7b8] sm:$0xff]
    %v703 = vld [vmem:[#allocation6 + $0x7c0] sm:$0xff]
    %v704 = vld [vmem:[#allocation6 + $0x7c8] sm:$0xff]
    %v705 = vld [vmem:[#allocation6 + $0x7d0] sm:$0xff]
    %v706 = vld [vmem:[#allocation6 + $0x7d8] sm:$0xff]
    %v707 = vld [vmem:[#allocation6 + $0x7e0] sm:$0xff]
    %v708 = vld [vmem:[#allocation6 + $0x7e8] sm:$0xff]
    %v709 = vld [vmem:[#allocation6 + $0x7f0] sm:$0xff]
    %v710 = vld [vmem:[#allocation6 + $0x7f8] sm:$0xff]
    %v711 = vld [vmem:[#allocation6 + $0x800] sm:$0xff]
    %v712 = vld [vmem:[#allocation6 + $0x808] sm:$0xff]
    %v713 = vld [vmem:[#allocation6 + $0x810] sm:$0xff]
    %v714 = vld [vmem:[#allocation6 + $0x818] sm:$0xff]
    %v715 = vld [vmem:[#allocation6 + $0x820] sm:$0xff]
    %v716 = vld [vmem:[#allocation6 + $0x828] sm:$0xff]
    %v717 = vld [vmem:[#allocation6 + $0x830] sm:$0xff]
    %v718 = vld [vmem:[#allocation6 + $0x838] sm:$0xff]
    %v719 = vld [vmem:[#allocation6 + $0x840] sm:$0xff]
    %v720 = vld [vmem:[#allocation6 + $0x848] sm:$0xff]
    %v721 = vld [vmem:[#allocation6 + $0x850] sm:$0xff]
    %v722 = vld [vmem:[#allocation6 + $0x858] sm:$0xff]
    %v723 = vld [vmem:[#allocation6 + $0x860] sm:$0xff]
    %v724 = vld [vmem:[#allocation6 + $0x868] sm:$0xff]
    %v725 = vld [vmem:[#allocation6 + $0x870] sm:$0xff]
    %v726 = vld [vmem:[#allocation6 + $0x878] sm:$0xff]
    %v727 = vld [vmem:[#allocation6 + $0x880] sm:$0xff]
    %v728 = vld [vmem:[#allocation6 + $0x888] sm:$0xff]
    %v729 = vld [vmem:[#allocation6 + $0x890] sm:$0xff]
    %v730 = vld [vmem:[#allocation6 + $0x898] sm:$0xff]
    %v731 = vld [vmem:[#allocation6 + $0x8a0] sm:$0xff]
    %v732 = vld [vmem:[#allocation6 + $0x8a8] sm:$0xff]
    %v733 = vld [vmem:[#allocation6 + $0x8b0] sm:$0xff]
    %v734 = vld [vmem:[#allocation6 + $0x8b8] sm:$0xff]
    %v735 = vld [vmem:[#allocation6 + $0x8c0] sm:$0xff]
    %v736 = vld [vmem:[#allocation6 + $0x8c8] sm:$0xff]
    %v737 = vld [vmem:[#allocation6 + $0x8d0] sm:$0xff]
    %v738 = vld [vmem:[#allocation6 + $0x8d8] sm:$0xff]
    %v739 = vld [vmem:[#allocation6 + $0x8e0] sm:$0xff]
    %v740 = vld [vmem:[#allocation6 + $0x8e8] sm:$0xff]
    %v741 = vld [vmem:[#allocation6 + $0x8f0] sm:$0xff]
    %v742 = vld [vmem:[#allocation6 + $0x8f8] sm:$0xff]
    %v743 = vld [vmem:[#allocation6 + $0x900] sm:$0xff]
    %v744 = vld [vmem:[#allocation6 + $0x908] sm:$0xff]
    %v745 = vld [vmem:[#allocation6 + $0x910] sm:$0xff]
    %v746 = vld [vmem:[#allocation6 + $0x918] sm:$0xff]
    %v747 = vld [vmem:[#allocation6 + $0x920] sm:$0xff]
    %v748 = vld [vmem:[#allocation6 + $0x928] sm:$0xff]
    %v749 = vld [vmem:[#allocation6 + $0x930] sm:$0xff]
    %v750 = vld [vmem:[#allocation6 + $0x938] sm:$0xff]
    %v751 = vld [vmem:[#allocation6 + $0x940] sm:$0xff]
    %v752 = vld [vmem:[#allocation6 + $0x948] sm:$0xff]
    %v753 = vld [vmem:[#allocation6 + $0x950] sm:$0xff]
    %v754 = vld [vmem:[#allocation6 + $0x958] sm:$0xff]
    %v755 = vld [vmem:[#allocation6 + $0x960] sm:$0xff]
    %v756 = vld [vmem:[#allocation6 + $0x968] sm:$0xff]
    %v757 = vld [vmem:[#allocation6 + $0x970] sm:$0xff]
    %v758 = vld [vmem:[#allocation6 + $0x978] sm:$0xff]
    %v759 = vld [vmem:[#allocation6 + $0x980] sm:$0xff]
    %v760 = vld [vmem:[#allocation6 + $0x988] sm:$0xff]
    %v761 = vld [vmem:[#allocation6 + $0x990] sm:$0xff]
    %v762 = vld [vmem:[#allocation6 + $0x998] sm:$0xff]
    %v763 = vld [vmem:[#allocation6 + $0x9a0] sm:$0xff]
    %v764 = vld [vmem:[#allocation6 + $0x9a8] sm:$0xff]
    %v765 = vld [vmem:[#allocation6 + $0x9b0] sm:$0xff]
    %v766 = vld [vmem:[#allocation6 + $0x9b8] sm:$0xff]
    %v767 = vld [vmem:[#allocation6 + $0x9c0] sm:$0xff]
    %v768 = vld [vmem:[#allocation6 + $0x9c8] sm:$0xff]
    %v769 = vld [vmem:[#allocation6 + $0x9d0] sm:$0xff]
    %v770 = vld [vmem:[#allocation6 + $0x9d8] sm:$0xff]
    %v771 = vld [vmem:[#allocation6 + $0x9e0] sm:$0xff]
    %v772 = vld [vmem:[#allocation6 + $0x9e8] sm:$0xff]
    %v773 = vld [vmem:[#allocation6 + $0x9f0] sm:$0xff]
    %v774 = vld [vmem:[#allocation6 + $0x9f8] sm:$0xff]
    %v775 = vld [vmem:[#allocation6 + $0xa00] sm:$0xff]
    %v776 = vld [vmem:[#allocation6 + $0xa08] sm:$0xff]
    %v777 = vld [vmem:[#allocation6 + $0xa10] sm:$0xff]
    %v778 = vld [vmem:[#allocation6 + $0xa18] sm:$0xff]
    %v779 = vld [vmem:[#allocation6 + $0xa20] sm:$0xff]
    %v780 = vld [vmem:[#allocation6 + $0xa28] sm:$0xff]
    %v781 = vld [vmem:[#allocation6 + $0xa30] sm:$0xff]
    %v782 = vld [vmem:[#allocation6 + $0xa38] sm:$0xff]
    %v783 = vld [vmem:[#allocation6 + $0xa40] sm:$0xff]
    %v784 = vld [vmem:[#allocation6 + $0xa48] sm:$0xff]
    %v785 = vld [vmem:[#allocation6 + $0xa50] sm:$0xff]
    %v786 = vld [vmem:[#allocation6 + $0xa58] sm:$0xff]
    %v787 = vld [vmem:[#allocation6 + $0xa60] sm:$0xff]
    %v788 = vld [vmem:[#allocation6 + $0xa68] sm:$0xff]
    %v789 = vld [vmem:[#allocation6 + $0xa70] sm:$0xff]
    %v790 = vld [vmem:[#allocation6 + $0xa78] sm:$0xff]
    %v791 = vld [vmem:[#allocation6 + $0xa80] sm:$0xff]
    %v792 = vld [vmem:[#allocation6 + $0xa88] sm:$0xff]
    %v793 = vld [vmem:[#allocation6 + $0xa90] sm:$0xff]
    %v794 = vld [vmem:[#allocation6 + $0xa98] sm:$0xff]
    %v795 = vld [vmem:[#allocation6 + $0xaa0] sm:$0xff]
    %v796 = vld [vmem:[#allocation6 + $0xaa8] sm:$0xff]
    %v797 = vld [vmem:[#allocation6 + $0xab0] sm:$0xff]
    %v798 = vld [vmem:[#allocation6 + $0xab8] sm:$0xff]
    %v799 = vld [vmem:[#allocation6 + $0xac0] sm:$0xff]
    %v800 = vld [vmem:[#allocation6 + $0xac8] sm:$0xff]
    %v801 = vld [vmem:[#allocation6 + $0xad0] sm:$0xff]
    %v802 = vld [vmem:[#allocation6 + $0xad8] sm:$0xff]
    %v803 = vld [vmem:[#allocation6 + $0xae0] sm:$0xff]
    %v804 = vld [vmem:[#allocation6 + $0xae8] sm:$0xff]
    %v805 = vld [vmem:[#allocation6 + $0xaf0] sm:$0xff]
    %v806 = vld [vmem:[#allocation6 + $0xaf8] sm:$0xff]
    %v807 = vld [vmem:[#allocation6 + $0xb00] sm:$0xff]
    %v808 = vld [vmem:[#allocation6 + $0xb08] sm:$0xff]
    %v809 = vld [vmem:[#allocation6 + $0xb10] sm:$0xff]
    %v810 = vld [vmem:[#allocation6 + $0xb18] sm:$0xff]
    %v811 = vld [vmem:[#allocation6 + $0xb20] sm:$0xff]
    %v812 = vld [vmem:[#allocation6 + $0xb28] sm:$0xff]
    %v813 = vld [vmem:[#allocation6 + $0xb30] sm:$0xff]
    %v814 = vld [vmem:[#allocation6 + $0xb38] sm:$0xff]
    %v815 = vld [vmem:[#allocation6 + $0xb40] sm:$0xff]
    %v816 = vld [vmem:[#allocation6 + $0xb48] sm:$0xff]
    %v817 = vld [vmem:[#allocation6 + $0xb50] sm:$0xff]
    %v818 = vld [vmem:[#allocation6 + $0xb58] sm:$0xff]
    %v819 = vld [vmem:[#allocation6 + $0xb60] sm:$0xff]
    %v820 = vld [vmem:[#allocation6 + $0xb68] sm:$0xff]
    %v821 = vld [vmem:[#allocation6 + $0xb70] sm:$0xff]
    %v822 = vld [vmem:[#allocation6 + $0xb78] sm:$0xff]
    %v823 = vld [vmem:[#allocation6 + $0xb80] sm:$0xff]
    %v824 = vld [vmem:[#allocation6 + $0xb88] sm:$0xff]
    %v825 = vld [vmem:[#allocation6 + $0xb90] sm:$0xff]
    %v826 = vld [vmem:[#allocation6 + $0xb98] sm:$0xff]
    %v827 = vld [vmem:[#allocation6 + $0xba0] sm:$0xff]
    %v828 = vld [vmem:[#allocation6 + $0xba8] sm:$0xff]
    %v829 = vld [vmem:[#allocation6 + $0xbb0] sm:$0xff]
    %v830 = vld [vmem:[#allocation6 + $0xbb8] sm:$0xff]
    %v831 = vld [vmem:[#allocation6 + $0xbc0] sm:$0xff]
    %v832 = vld [vmem:[#allocation6 + $0xbc8] sm:$0xff]
    %v833 = vld [vmem:[#allocation6 + $0xbd0] sm:$0xff]
    %v834 = vld [vmem:[#allocation6 + $0xbd8] sm:$0xff]
    %v835 = vld [vmem:[#allocation6 + $0xbe0] sm:$0xff]
    %v836 = vld [vmem:[#allocation6 + $0xbe8] sm:$0xff]
    %v837 = vld [vmem:[#allocation6 + $0xbf0] sm:$0xff]
    %v838 = vld [vmem:[#allocation6 + $0xbf8] sm:$0xff]
    %v839 = vld [vmem:[#allocation6 + $0xc00] sm:$0xff]
    %v840 = vld [vmem:[#allocation6 + $0xc08] sm:$0xff]
    %v841 = vld [vmem:[#allocation6 + $0xc10] sm:$0xff]
    %v842 = vld [vmem:[#allocation6 + $0xc18] sm:$0xff]
    %v843 = vld [vmem:[#allocation6 + $0xc20] sm:$0xff]
    %v844 = vld [vmem:[#allocation6 + $0xc28] sm:$0xff]
    %v845 = vld [vmem:[#allocation6 + $0xc30] sm:$0xff]
    %v846 = vld [vmem:[#allocation6 + $0xc38] sm:$0xff]
    %v847 = vld [vmem:[#allocation6 + $0xc40] sm:$0xff]
    %v848 = vld [vmem:[#allocation6 + $0xc48] sm:$0xff]
    %v849 = vld [vmem:[#allocation6 + $0xc50] sm:$0xff]
    %v850 = vld [vmem:[#allocation6 + $0xc58] sm:$0xff]
    %v851 = vld [vmem:[#allocation6 + $0xc60] sm:$0xff]
    %v852 = vld [vmem:[#allocation6 + $0xc68] sm:$0xff]
    %v853 = vld [vmem:[#allocation6 + $0xc70] sm:$0xff]
    %v854 = vld [vmem:[#allocation6 + $0xc78] sm:$0xff]
    %v855 = vld [vmem:[#allocation6 + $0xc80] sm:$0xff]
    %v856 = vld [vmem:[#allocation6 + $0xc88] sm:$0xff]
    %v857 = vld [vmem:[#allocation6 + $0xc90] sm:$0xff]
    %v858 = vld [vmem:[#allocation6 + $0xc98] sm:$0xff]
    %v859 = vld [vmem:[#allocation6 + $0xca0] sm:$0xff]
    %v860 = vld [vmem:[#allocation6 + $0xca8] sm:$0xff]
    %v861 = vld [vmem:[#allocation6 + $0xcb0] sm:$0xff]
    %v862 = vld [vmem:[#allocation6 + $0xcb8] sm:$0xff]
    %v863 = vld [vmem:[#allocation6 + $0xcc0] sm:$0xff]
    %v864 = vld [vmem:[#allocation6 + $0xcc8] sm:$0xff]
    %v865 = vld [vmem:[#allocation6 + $0xcd0] sm:$0xff]
    %v866 = vld [vmem:[#allocation6 + $0xcd8] sm:$0xff]
    %v867 = vld [vmem:[#allocation6 + $0xce0] sm:$0xff]
    %v868 = vld [vmem:[#allocation6 + $0xce8] sm:$0xff]
    %v869 = vld [vmem:[#allocation6 + $0xcf0] sm:$0xff]
    %v870 = vld [vmem:[#allocation6 + $0xcf8] sm:$0xff]
    %v871 = vld [vmem:[#allocation6 + $0xd00] sm:$0xff]
    %v872 = vld [vmem:[#allocation6 + $0xd08] sm:$0xff]
    %v873 = vld [vmem:[#allocation6 + $0xd10] sm:$0xff]
    %v874 = vld [vmem:[#allocation6 + $0xd18] sm:$0xff]
    %v875 = vld [vmem:[#allocation6 + $0xd20] sm:$0xff]
    %v876 = vld [vmem:[#allocation6 + $0xd28] sm:$0xff]
    %v877 = vld [vmem:[#allocation6 + $0xd30] sm:$0xff]
    %v878 = vld [vmem:[#allocation6 + $0xd38] sm:$0xff]
    %v879 = vld [vmem:[#allocation6 + $0xd40] sm:$0xff]
    %v880 = vld [vmem:[#allocation6 + $0xd48] sm:$0xff]
    %v881 = vld [vmem:[#allocation6 + $0xd50] sm:$0xff]
    %v882 = vld [vmem:[#allocation6 + $0xd58] sm:$0xff]
    %v883 = vld [vmem:[#allocation6 + $0xd60] sm:$0xff]
    %v884 = vld [vmem:[#allocation6 + $0xd68] sm:$0xff]
    %v885 = vld [vmem:[#allocation6 + $0xd70] sm:$0xff]
    %v886 = vld [vmem:[#allocation6 + $0xd78] sm:$0xff]
    %v887 = vld [vmem:[#allocation6 + $0xd80] sm:$0xff]
    %v888 = vld [vmem:[#allocation6 + $0xd88] sm:$0xff]
    %v889 = vld [vmem:[#allocation6 + $0xd90] sm:$0xff]
    %v890 = vld [vmem:[#allocation6 + $0xd98] sm:$0xff]
    %v891 = vld [vmem:[#allocation6 + $0xda0] sm:$0xff]
    %v892 = vld [vmem:[#allocation6 + $0xda8] sm:$0xff]
    %v893 = vld [vmem:[#allocation6 + $0xdb0] sm:$0xff]
    %v894 = vld [vmem:[#allocation6 + $0xdb8] sm:$0xff]
    %v895 = vld [vmem:[#allocation6 + $0xdc0] sm:$0xff]
    %v896 = vld [vmem:[#allocation6 + $0xdc8] sm:$0xff]
    %v897 = vld [vmem:[#allocation6 + $0xdd0] sm:$0xff]
    %v898 = vld [vmem:[#allocation6 + $0xdd8] sm:$0xff]
    %v899 = vld [vmem:[#allocation6 + $0xde0] sm:$0xff]
    %v900 = vld [vmem:[#allocation6 + $0xde8] sm:$0xff]
    %v901 = vld [vmem:[#allocation6 + $0xdf0] sm:$0xff]
    %v902 = vld [vmem:[#allocation6 + $0xdf8] sm:$0xff]
    %v903 = vld [vmem:[#allocation6 + $0xe00] sm:$0xff]
    %v904 = vld [vmem:[#allocation6 + $0xe08] sm:$0xff]
    %v905 = vld [vmem:[#allocation6 + $0xe10] sm:$0xff]
    %v906 = vld [vmem:[#allocation6 + $0xe18] sm:$0xff]
    %v907 = vld [vmem:[#allocation6 + $0xe20] sm:$0xff]
    %v908 = vld [vmem:[#allocation6 + $0xe28] sm:$0xff]
    %v909 = vld [vmem:[#allocation6 + $0xe30] sm:$0xff]
    %v910 = vld [vmem:[#allocation6 + $0xe38] sm:$0xff]
    %v911 = vld [vmem:[#allocation6 + $0xe40] sm:$0xff]
    %v912 = vld [vmem:[#allocation6 + $0xe48] sm:$0xff]
    %v913 = vld [vmem:[#allocation6 + $0xe50] sm:$0xff]
    %v914 = vld [vmem:[#allocation6 + $0xe58] sm:$0xff]
    %v915 = vld [vmem:[#allocation6 + $0xe60] sm:$0xff]
    %v916 = vld [vmem:[#allocation6 + $0xe68] sm:$0xff]
    %v917 = vld [vmem:[#allocation6 + $0xe70] sm:$0xff]
    %v918 = vld [vmem:[#allocation6 + $0xe78] sm:$0xff]
    %v919 = vld [vmem:[#allocation6 + $0xe80] sm:$0xff]
    %v920 = vld [vmem:[#allocation6 + $0xe88] sm:$0xff]
    %v921 = vld [vmem:[#allocation6 + $0xe90] sm:$0xff]
    %v922 = vld [vmem:[#allocation6 + $0xe98] sm:$0xff]
    %v923 = vld [vmem:[#allocation6 + $0xea0] sm:$0xff]
    %v924 = vld [vmem:[#allocation6 + $0xea8] sm:$0xff]
    %v925 = vld [vmem:[#allocation6 + $0xeb0] sm:$0xff]
    %v926 = vld [vmem:[#allocation6 + $0xeb8] sm:$0xff]
    %v927 = vld [vmem:[#allocation6 + $0xec0] sm:$0xff]
    %v928 = vld [vmem:[#allocation6 + $0xec8] sm:$0xff]
    %v929 = vld [vmem:[#allocation6 + $0xed0] sm:$0xff]
    %v930 = vld [vmem:[#allocation6 + $0xed8] sm:$0xff]
    %v931 = vld [vmem:[#allocation6 + $0xee0] sm:$0xff]
    %v932 = vld [vmem:[#allocation6 + $0xee8] sm:$0xff]
    %v933 = vld [vmem:[#allocation6 + $0xef0] sm:$0xff]
    %v934 = vld [vmem:[#allocation6 + $0xef8] sm:$0xff]
    %v935 = vld [vmem:[#allocation6 + $0xf00] sm:$0xff]
    %v936 = vld [vmem:[#allocation6 + $0xf08] sm:$0xff]
    %v937 = vld [vmem:[#allocation6 + $0xf10] sm:$0xff]
    %v938 = vld [vmem:[#allocation6 + $0xf18] sm:$0xff]
    %v939 = vld [vmem:[#allocation6 + $0xf20] sm:$0xff]
    %v940 = vld [vmem:[#allocation6 + $0xf28] sm:$0xff]
    %v941 = vld [vmem:[#allocation6 + $0xf30] sm:$0xff]
    %v942 = vld [vmem:[#allocation6 + $0xf38] sm:$0xff]
    %v943 = vld [vmem:[#allocation6 + $0xf40] sm:$0xff]
    %v944 = vld [vmem:[#allocation6 + $0xf48] sm:$0xff]
    %v945 = vld [vmem:[#allocation6 + $0xf50] sm:$0xff]
    %v946 = vld [vmem:[#allocation6 + $0xf58] sm:$0xff]
    %v947 = vld [vmem:[#allocation6 + $0xf60] sm:$0xff]
    %v948 = vld [vmem:[#allocation6 + $0xf68] sm:$0xff]
    %v949 = vld [vmem:[#allocation6 + $0xf70] sm:$0xff]
    %v950 = vld [vmem:[#allocation6 + $0xf78] sm:$0xff]
    %v951 = vld [vmem:[#allocation6 + $0xf80] sm:$0xff]
    %v952 = vld [vmem:[#allocation6 + $0xf88] sm:$0xff]
    %v953 = vld [vmem:[#allocation6 + $0xf90] sm:$0xff]
    %v954 = vld [vmem:[#allocation6 + $0xf98] sm:$0xff]
    %v955 = vld [vmem:[#allocation6 + $0xfa0] sm:$0xff]
    %v956 = vld [vmem:[#allocation6 + $0xfa8] sm:$0xff]
    %v957 = vld [vmem:[#allocation6 + $0xfb0] sm:$0xff]
    %v958 = vld [vmem:[#allocation6 + $0xfb8] sm:$0xff]
    %v959 = vld [vmem:[#allocation6 + $0xfc0] sm:$0xff]
    %v960 = vld [vmem:[#allocation6 + $0xfc8] sm:$0xff]
    %v961 = vld [vmem:[#allocation6 + $0xfd0] sm:$0xff]
    %v962 = vld [vmem:[#allocation6 + $0xfd8] sm:$0xff]
    %v963 = vld [vmem:[#allocation6 + $0xfe0] sm:$0xff]
    %v964 = vld [vmem:[#allocation6 + $0xfe8] sm:$0xff]
    %v965 = vld [vmem:[#allocation6 + $0xff0] sm:$0xff]
    %v966 = vld [vmem:[#allocation6 + $0xff8] sm:$0xff]
    %v967 = vld [vmem:[%s2] sm:$0xf]
    %v968 = vld [vmem:[%s2 + $0x4] sm:$0xf]
    %v969 = vld [vmem:[%s2 + $0x8] sm:$0xf]
    %v970 = vld [vmem:[%s2 + $0xc] sm:$0xf]
    %v971 = vld [vmem:[%s2 + $0x10] sm:$0xf]
    %v972 = vld [vmem:[%s2 + $0x14] sm:$0xf]
    %v973 = vld [vmem:[%s2 + $0x18] sm:$0xf]
    %v974 = vld [vmem:[%s2 + $0x1c] sm:$0xf]
    %v975 = vld [vmem:[%s2 + $0x20] sm:$0xf]
    %v976 = vld [vmem:[%s2 + $0x24] sm:$0xf]
    %v977 = vld [vmem:[%s2 + $0x28] sm:$0xf]
    %v978 = vld [vmem:[%s2 + $0x2c] sm:$0xf]
    %v979 = vld [vmem:[%s2 + $0x30] sm:$0xf]
    %v980 = vld [vmem:[%s2 + $0x34] sm:$0xf]
    %v981 = vld [vmem:[%s2 + $0x38] sm:$0xf]
    %v982 = vld [vmem:[%s2 + $0x3c] sm:$0xf]
    %v983 = vld [vmem:[%s2 + $0x40] sm:$0xf]
    %v984 = vld [vmem:[%s2 + $0x44] sm:$0xf]
    %v985 = vld [vmem:[%s2 + $0x48] sm:$0xf]
    %v986 = vld [vmem:[%s2 + $0x4c] sm:$0xf]
    %v987 = vld [vmem:[%s2 + $0x50] sm:$0xf]
    %v988 = vld [vmem:[%s2 + $0x54] sm:$0xf]
    %v989 = vld [vmem:[%s2 + $0x58] sm:$0xf]
    %v990 = vld [vmem:[%s2 + $0x5c] sm:$0xf]
    %v991 = vld [vmem:[%s2 + $0x60] sm:$0xf]
    %v992 = vld [vmem:[%s2 + $0x64] sm:$0xf]
    %v993 = vld [vmem:[%s2 + $0x68] sm:$0xf]
    %v994 = vld [vmem:[%s2 + $0x6c] sm:$0xf]
    %v995 = vld [vmem:[%s2 + $0x70] sm:$0xf]
    %v996 = vld [vmem:[%s2 + $0x74] sm:$0xf]
    %v997 = vld [vmem:[%s2 + $0x78] sm:$0xf]
    %v998 = vld [vmem:[%s2 + $0x7c] sm:$0xf]
    %v999 = vld [vmem:[%s2 + $0x80] sm:$0xf]
    %v1000 = vld [vmem:[%s2 + $0x84] sm:$0xf]
    %v1001 = vld [vmem:[%s2 + $0x88] sm:$0xf]
    %v1002 = vld [vmem:[%s2 + $0x8c] sm:$0xf]
    %v1003 = vld [vmem:[%s2 + $0x90] sm:$0xf]
    %v1004 = vld [vmem:[%s2 + $0x94] sm:$0xf]
    %v1005 = vld [vmem:[%s2 + $0x98] sm:$0xf]
    %v1006 = vld [vmem:[%s2 + $0x9c] sm:$0xf]
    %v1007 = vld [vmem:[%s2 + $0xa0] sm:$0xf]
    %v1008 = vld [vmem:[%s2 + $0xa4] sm:$0xf]
    %v1009 = vld [vmem:[%s2 + $0xa8] sm:$0xf]
    %v1010 = vld [vmem:[%s2 + $0xac] sm:$0xf]
    %v1011 = vld [vmem:[%s2 + $0xb0] sm:$0xf]
    %v1012 = vld [vmem:[%s2 + $0xb4] sm:$0xf]
    %v1013 = vld [vmem:[%s2 + $0xb8] sm:$0xf]
    %v1014 = vld [vmem:[%s2 + $0xbc] sm:$0xf]
    %v1015 = vld [vmem:[%s2 + $0xc0] sm:$0xf]
    %v1016 = vld [vmem:[%s2 + $0xc4] sm:$0xf]
    %v1017 = vld [vmem:[%s2 + $0xc8] sm:$0xf]
    %v1018 = vld [vmem:[%s2 + $0xcc] sm:$0xf]
    %v1019 = vld [vmem:[%s2 + $0xd0] sm:$0xf]
    %v1020 = vld [vmem:[%s2 + $0xd4] sm:$0xf]
    %v1021 = vld [vmem:[%s2 + $0xd8] sm:$0xf]
    %v1022 = vld [vmem:[%s2 + $0xdc] sm:$0xf]
    %v1023 = vld [vmem:[%s2 + $0xe0] sm:$0xf]
    %v1024 = vld [vmem:[%s2 + $0xe4] sm:$0xf]
    %v1025 = vld [vmem:[%s2 + $0xe8] sm:$0xf]
    %v1026 = vld [vmem:[%s2 + $0xec] sm:$0xf]
    %v1027 = vld [vmem:[%s2 + $0xf0] sm:$0xf]
    %v1028 = vld [vmem:[%s2 + $0xf4] sm:$0xf]
    %v1029 = vld [vmem:[%s2 + $0xf8] sm:$0xf]
    %v1030 = vld [vmem:[%s2 + $0xfc] sm:$0xf]
    %v1031 = vld [vmem:[%s2 + $0x100] sm:$0xf]
    %v1032 = vld [vmem:[%s2 + $0x104] sm:$0xf]
    %v1033 = vld [vmem:[%s2 + $0x108] sm:$0xf]
    %v1034 = vld [vmem:[%s2 + $0x10c] sm:$0xf]
    %v1035 = vld [vmem:[%s2 + $0x110] sm:$0xf]
    %v1036 = vld [vmem:[%s2 + $0x114] sm:$0xf]
    %v1037 = vld [vmem:[%s2 + $0x118] sm:$0xf]
    %v1038 = vld [vmem:[%s2 + $0x11c] sm:$0xf]
    %v1039 = vld [vmem:[%s2 + $0x120] sm:$0xf]
    %v1040 = vld [vmem:[%s2 + $0x124] sm:$0xf]
    %v1041 = vld [vmem:[%s2 + $0x128] sm:$0xf]
    %v1042 = vld [vmem:[%s2 + $0x12c] sm:$0xf]
    %v1043 = vld [vmem:[%s2 + $0x130] sm:$0xf]
    %v1044 = vld [vmem:[%s2 + $0x134] sm:$0xf]
    %v1045 = vld [vmem:[%s2 + $0x138] sm:$0xf]
    %v1046 = vld [vmem:[%s2 + $0x13c] sm:$0xf]
    %v1047 = vld [vmem:[%s2 + $0x140] sm:$0xf]
    %v1048 = vld [vmem:[%s2 + $0x144] sm:$0xf]
    %v1049 = vld [vmem:[%s2 + $0x148] sm:$0xf]
    %v1050 = vld [vmem:[%s2 + $0x14c] sm:$0xf]
    %v1051 = vld [vmem:[%s2 + $0x150] sm:$0xf]
    %v1052 = vld [vmem:[%s2 + $0x154] sm:$0xf]
    %v1053 = vld [vmem:[%s2 + $0x158] sm:$0xf]
    %v1054 = vld [vmem:[%s2 + $0x15c] sm:$0xf]
    %v1055 = vld [vmem:[%s2 + $0x160] sm:$0xf]
    %v1056 = vld [vmem:[%s2 + $0x164] sm:$0xf]
    %v1057 = vld [vmem:[%s2 + $0x168] sm:$0xf]
    %v1058 = vld [vmem:[%s2 + $0x16c] sm:$0xf]
    %v1059 = vld [vmem:[%s2 + $0x170] sm:$0xf]
    %v1060 = vld [vmem:[%s2 + $0x174] sm:$0xf]
    %v1061 = vld [vmem:[%s2 + $0x178] sm:$0xf]
    %v1062 = vld [vmem:[%s2 + $0x17c] sm:$0xf]
    %v1063 = vld [vmem:[%s2 + $0x180] sm:$0xf]
    %v1064 = vld [vmem:[%s2 + $0x184] sm:$0xf]
    %v1065 = vld [vmem:[%s2 + $0x188] sm:$0xf]
    %v1066 = vld [vmem:[%s2 + $0x18c] sm:$0xf]
    %v1067 = vld [vmem:[%s2 + $0x190] sm:$0xf]
    %v1068 = vld [vmem:[%s2 + $0x194] sm:$0xf]
    %v1069 = vld [vmem:[%s2 + $0x198] sm:$0xf]
    %v1070 = vld [vmem:[%s2 + $0x19c] sm:$0xf]
    %v1071 = vld [vmem:[%s2 + $0x1a0] sm:$0xf]
    %v1072 = vld [vmem:[%s2 + $0x1a4] sm:$0xf]
    %v1073 = vld [vmem:[%s2 + $0x1a8] sm:$0xf]
    %v1074 = vld [vmem:[%s2 + $0x1ac] sm:$0xf]
    %v1075 = vld [vmem:[%s2 + $0x1b0] sm:$0xf]
    %v1076 = vld [vmem:[%s2 + $0x1b4] sm:$0xf]
    %v1077 = vld [vmem:[%s2 + $0x1b8] sm:$0xf]
    %v1078 = vld [vmem:[%s2 + $0x1bc] sm:$0xf]
    %v1079 = vld [vmem:[%s2 + $0x1c0] sm:$0xf]
    %v1080 = vld [vmem:[%s2 + $0x1c4] sm:$0xf]
    %v1081 = vld [vmem:[%s2 + $0x1c8] sm:$0xf]
    %v1082 = vld [vmem:[%s2 + $0x1cc] sm:$0xf]
    %v1083 = vld [vmem:[%s2 + $0x1d0] sm:$0xf]
    %v1084 = vld [vmem:[%s2 + $0x1d4] sm:$0xf]
    %v1085 = vld [vmem:[%s2 + $0x1d8] sm:$0xf]
    %v1086 = vld [vmem:[%s2 + $0x1dc] sm:$0xf]
    %v1087 = vld [vmem:[%s2 + $0x1e0] sm:$0xf]
    %v1088 = vld [vmem:[%s2 + $0x1e4] sm:$0xf]
    %v1089 = vld [vmem:[%s2 + $0x1e8] sm:$0xf]
    %v1090 = vld [vmem:[%s2 + $0x1ec] sm:$0xf]
    %v1091 = vld [vmem:[%s2 + $0x1f0] sm:$0xf]
    %v1092 = vld [vmem:[%s2 + $0x1f4] sm:$0xf]
    %v1093 = vld [vmem:[%s2 + $0x1f8] sm:$0xf]
    %v1094 = vld [vmem:[%s2 + $0x1fc] sm:$0xf]
    %v1095 = vld [vmem:[#allocation9] sm:$0xff]
    %v1096 = vld [vmem:[#allocation9 + $0x8] sm:$0xff]
    %v1097 = vld [vmem:[#allocation9 + $0x10] sm:$0xff]
    %v1098 = vld [vmem:[#allocation9 + $0x18] sm:$0xff]
    %v1099 = vld [vmem:[#allocation9 + $0x20] sm:$0xff]
    %v1100 = vld [vmem:[#allocation9 + $0x28] sm:$0xff]
    %v1101 = vld [vmem:[#allocation9 + $0x30] sm:$0xff]
    %v1102 = vld [vmem:[#allocation9 + $0x38] sm:$0xff]
    %v1103 = vld [vmem:[#allocation11] sm:$0x3]
    %v1616 = vunpack.c.l.b16 %v455
    %v1617 = vunpack.c.h.b16 %v455
    %v1618 = vunpack.c.l.b16 %v456
    %v1619 = vunpack.c.h.b16 %v456
    %v1620 = vunpack.c.l.b16 %v457
    %v1621 = vunpack.c.h.b16 %v457
    %v1622 = vunpack.c.l.b16 %v458
    %v1623 = vunpack.c.h.b16 %v458
    %v1624 = vunpack.c.l.b16 %v459
    %v1625 = vunpack.c.h.b16 %v459
    %v1626 = vunpack.c.l.b16 %v460
    %v1627 = vunpack.c.h.b16 %v460
    %v1628 = vunpack.c.l.b16 %v461
    %v1629 = vunpack.c.h.b16 %v461
    %v1630 = vunpack.c.l.b16 %v462
    %v1631 = vunpack.c.h.b16 %v462
    %v1632 = vunpack.c.l.b16 %v463
    %v1633 = vunpack.c.h.b16 %v463
    %v1634 = vunpack.c.l.b16 %v464
    %v1635 = vunpack.c.h.b16 %v464
    %v1636 = vunpack.c.l.b16 %v465
    %v1637 = vunpack.c.h.b16 %v465
    %v1638 = vunpack.c.l.b16 %v466
    %v1639 = vunpack.c.h.b16 %v466
    %v1640 = vunpack.c.l.b16 %v467
    %v1641 = vunpack.c.h.b16 %v467
    %v1642 = vunpack.c.l.b16 %v468
    %v1643 = vunpack.c.h.b16 %v468
    %v1644 = vunpack.c.l.b16 %v469
    %v1645 = vunpack.c.h.b16 %v469
    %v1646 = vunpack.c.l.b16 %v470
    %v1647 = vunpack.c.h.b16 %v470
    %v1648 = vunpack.c.l.b16 %v471
    %v1649 = vunpack.c.h.b16 %v471
    %v1650 = vunpack.c.l.b16 %v472
    %v1651 = vunpack.c.h.b16 %v472
    %v1652 = vunpack.c.l.b16 %v473
    %v1653 = vunpack.c.h.b16 %v473
    %v1654 = vunpack.c.l.b16 %v474
    %v1655 = vunpack.c.h.b16 %v474
    %v1656 = vunpack.c.l.b16 %v475
    %v1657 = vunpack.c.h.b16 %v475
    %v1658 = vunpack.c.l.b16 %v476
    %v1659 = vunpack.c.h.b16 %v476
    %v1660 = vunpack.c.l.b16 %v477
    %v1661 = vunpack.c.h.b16 %v477
    %v1662 = vunpack.c.l.b16 %v478
    %v1663 = vunpack.c.h.b16 %v478
    %v1664 = vunpack.c.l.b16 %v479
    %v1665 = vunpack.c.h.b16 %v479
    %v1666 = vunpack.c.l.b16 %v480
    %v1667 = vunpack.c.h.b16 %v480
    %v1668 = vunpack.c.l.b16 %v481
    %v1669 = vunpack.c.h.b16 %v481
    %v1670 = vunpack.c.l.b16 %v482
    %v1671 = vunpack.c.h.b16 %v482
    %v1672 = vunpack.c.l.b16 %v483
    %v1673 = vunpack.c.h.b16 %v483
    %v1674 = vunpack.c.l.b16 %v484
    %v1675 = vunpack.c.h.b16 %v484
    %v1676 = vunpack.c.l.b16 %v485
    %v1677 = vunpack.c.h.b16 %v485
    %v1678 = vunpack.c.l.b16 %v486
    %v1679 = vunpack.c.h.b16 %v486
    %v1680 = vunpack.c.l.b16 %v487
    %v1681 = vunpack.c.h.b16 %v487
    %v1682 = vunpack.c.l.b16 %v488
    %v1683 = vunpack.c.h.b16 %v488
    %v1684 = vunpack.c.l.b16 %v489
    %v1685 = vunpack.c.h.b16 %v489
    %v1686 = vunpack.c.l.b16 %v490
    %v1687 = vunpack.c.h.b16 %v490
    %v1688 = vunpack.c.l.b16 %v491
    %v1689 = vunpack.c.h.b16 %v491
    %v1690 = vunpack.c.l.b16 %v492
    %v1691 = vunpack.c.h.b16 %v492
    %v1692 = vunpack.c.l.b16 %v493
    %v1693 = vunpack.c.h.b16 %v493
    %v1694 = vunpack.c.l.b16 %v494
    %v1695 = vunpack.c.h.b16 %v494
    %v1696 = vunpack.c.l.b16 %v495
    %v1697 = vunpack.c.h.b16 %v495
    %v1698 = vunpack.c.l.b16 %v496
    %v1699 = vunpack.c.h.b16 %v496
    %v1700 = vunpack.c.l.b16 %v497
    %v1701 = vunpack.c.h.b16 %v497
    %v1702 = vunpack.c.l.b16 %v498
    %v1703 = vunpack.c.h.b16 %v498
    %v1704 = vunpack.c.l.b16 %v499
    %v1705 = vunpack.c.h.b16 %v499
    %v1706 = vunpack.c.l.b16 %v500
    %v1707 = vunpack.c.h.b16 %v500
    %v1708 = vunpack.c.l.b16 %v501
    %v1709 = vunpack.c.h.b16 %v501
    %v1710 = vunpack.c.l.b16 %v502
    %v1711 = vunpack.c.h.b16 %v502
    %v1712 = vunpack.c.l.b16 %v503
    %v1713 = vunpack.c.h.b16 %v503
    %v1714 = vunpack.c.l.b16 %v504
    %v1715 = vunpack.c.h.b16 %v504
    %v1716 = vunpack.c.l.b16 %v505
    %v1717 = vunpack.c.h.b16 %v505
    %v1718 = vunpack.c.l.b16 %v506
    %v1719 = vunpack.c.h.b16 %v506
    %v1720 = vunpack.c.l.b16 %v507
    %v1721 = vunpack.c.h.b16 %v507
    %v1722 = vunpack.c.l.b16 %v508
    %v1723 = vunpack.c.h.b16 %v508
    %v1724 = vunpack.c.l.b16 %v509
    %v1725 = vunpack.c.h.b16 %v509
    %v1726 = vunpack.c.l.b16 %v510
    %v1727 = vunpack.c.h.b16 %v510
    %v1728 = vunpack.c.l.b16 %v511
    %v1729 = vunpack.c.h.b16 %v511
    %v1730 = vunpack.c.l.b16 %v512
    %v1731 = vunpack.c.h.b16 %v512
    %v1732 = vunpack.c.l.b16 %v513
    %v1733 = vunpack.c.h.b16 %v513
    %v1734 = vunpack.c.l.b16 %v514
    %v1735 = vunpack.c.h.b16 %v514
    %v1736 = vunpack.c.l.b16 %v515
    %v1737 = vunpack.c.h.b16 %v515
    %v1738 = vunpack.c.l.b16 %v516
    %v1739 = vunpack.c.h.b16 %v516
    %v1740 = vunpack.c.l.b16 %v517
    %v1741 = vunpack.c.h.b16 %v517
    %v1742 = vunpack.c.l.b16 %v518
    %v1743 = vunpack.c.h.b16 %v518
    %v1744 = vunpack.c.l.b16 %v519
    %v1745 = vunpack.c.h.b16 %v519
    %v1746 = vunpack.c.l.b16 %v520
    %v1747 = vunpack.c.h.b16 %v520
    %v1748 = vunpack.c.l.b16 %v521
    %v1749 = vunpack.c.h.b16 %v521
    %v1750 = vunpack.c.l.b16 %v522
    %v1751 = vunpack.c.h.b16 %v522
    %v1752 = vunpack.c.l.b16 %v523
    %v1753 = vunpack.c.h.b16 %v523
    %v1754 = vunpack.c.l.b16 %v524
    %v1755 = vunpack.c.h.b16 %v524
    %v1756 = vunpack.c.l.b16 %v525
    %v1757 = vunpack.c.h.b16 %v525
    %v1758 = vunpack.c.l.b16 %v526
    %v1759 = vunpack.c.h.b16 %v526
    %v1760 = vunpack.c.l.b16 %v527
    %v1761 = vunpack.c.h.b16 %v527
    %v1762 = vunpack.c.l.b16 %v528
    %v1763 = vunpack.c.h.b16 %v528
    %v1764 = vunpack.c.l.b16 %v529
    %v1765 = vunpack.c.h.b16 %v529
    %v1766 = vunpack.c.l.b16 %v530
    %v1767 = vunpack.c.h.b16 %v530
    %v1768 = vunpack.c.l.b16 %v531
    %v1769 = vunpack.c.h.b16 %v531
    %v1770 = vunpack.c.l.b16 %v532
    %v1771 = vunpack.c.h.b16 %v532
    %v1772 = vunpack.c.l.b16 %v533
    %v1773 = vunpack.c.h.b16 %v533
    %v1774 = vunpack.c.l.b16 %v534
    %v1775 = vunpack.c.h.b16 %v534
    %v1776 = vunpack.c.l.b16 %v535
    %v1777 = vunpack.c.h.b16 %v535
    %v1778 = vunpack.c.l.b16 %v536
    %v1779 = vunpack.c.h.b16 %v536
    %v1780 = vunpack.c.l.b16 %v537
    %v1781 = vunpack.c.h.b16 %v537
    %v1782 = vunpack.c.l.b16 %v538
    %v1783 = vunpack.c.h.b16 %v538
    %v1784 = vunpack.c.l.b16 %v539
    %v1785 = vunpack.c.h.b16 %v539
    %v1786 = vunpack.c.l.b16 %v540
    %v1787 = vunpack.c.h.b16 %v540
    %v1788 = vunpack.c.l.b16 %v541
    %v1789 = vunpack.c.h.b16 %v541
    %v1790 = vunpack.c.l.b16 %v542
    %v1791 = vunpack.c.h.b16 %v542
    %v1792 = vunpack.c.l.b16 %v543
    %v1793 = vunpack.c.h.b16 %v543
    %v1794 = vunpack.c.l.b16 %v544
    %v1795 = vunpack.c.h.b16 %v544
    %v1796 = vunpack.c.l.b16 %v545
    %v1797 = vunpack.c.h.b16 %v545
    %v1798 = vunpack.c.l.b16 %v546
    %v1799 = vunpack.c.h.b16 %v546
    %v1800 = vunpack.c.l.b16 %v547
    %v1801 = vunpack.c.h.b16 %v547
    %v1802 = vunpack.c.l.b16 %v548
    %v1803 = vunpack.c.h.b16 %v548
    %v1804 = vunpack.c.l.b16 %v549
    %v1805 = vunpack.c.h.b16 %v549
    %v1806 = vunpack.c.l.b16 %v550
    %v1807 = vunpack.c.h.b16 %v550
    %v1808 = vunpack.c.l.b16 %v551
    %v1809 = vunpack.c.h.b16 %v551
    %v1810 = vunpack.c.l.b16 %v552
    %v1811 = vunpack.c.h.b16 %v552
    %v1812 = vunpack.c.l.b16 %v553
    %v1813 = vunpack.c.h.b16 %v553
    %v1814 = vunpack.c.l.b16 %v554
    %v1815 = vunpack.c.h.b16 %v554
    %v1816 = vunpack.c.l.b16 %v555
    %v1817 = vunpack.c.h.b16 %v555
    %v1818 = vunpack.c.l.b16 %v556
    %v1819 = vunpack.c.h.b16 %v556
    %v1820 = vunpack.c.l.b16 %v557
    %v1821 = vunpack.c.h.b16 %v557
    %v1822 = vunpack.c.l.b16 %v558
    %v1823 = vunpack.c.h.b16 %v558
    %v1824 = vunpack.c.l.b16 %v559
    %v1825 = vunpack.c.h.b16 %v559
    %v1826 = vunpack.c.l.b16 %v560
    %v1827 = vunpack.c.h.b16 %v560
    %v1828 = vunpack.c.l.b16 %v561
    %v1829 = vunpack.c.h.b16 %v561
    %v1830 = vunpack.c.l.b16 %v562
    %v1831 = vunpack.c.h.b16 %v562
    %v1832 = vunpack.c.l.b16 %v563
    %v1833 = vunpack.c.h.b16 %v563
    %v1834 = vunpack.c.l.b16 %v564
    %v1835 = vunpack.c.h.b16 %v564
    %v1836 = vunpack.c.l.b16 %v565
    %v1837 = vunpack.c.h.b16 %v565
    %v1838 = vunpack.c.l.b16 %v566
    %v1839 = vunpack.c.h.b16 %v566
    %v1840 = vunpack.c.l.b16 %v567
    %v1841 = vunpack.c.h.b16 %v567
    %v1842 = vunpack.c.l.b16 %v568
    %v1843 = vunpack.c.h.b16 %v568
    %v1844 = vunpack.c.l.b16 %v569
    %v1845 = vunpack.c.h.b16 %v569
    %v1846 = vunpack.c.l.b16 %v570
    %v1847 = vunpack.c.h.b16 %v570
    %v1848 = vunpack.c.l.b16 %v571
    %v1849 = vunpack.c.h.b16 %v571
    %v1850 = vunpack.c.l.b16 %v572
    %v1851 = vunpack.c.h.b16 %v572
    %v1852 = vunpack.c.l.b16 %v573
    %v1853 = vunpack.c.h.b16 %v573
    %v1854 = vunpack.c.l.b16 %v574
    %v1855 = vunpack.c.h.b16 %v574
    %v1856 = vunpack.c.l.b16 %v575
    %v1857 = vunpack.c.h.b16 %v575
    %v1858 = vunpack.c.l.b16 %v576
    %v1859 = vunpack.c.h.b16 %v576
    %v1860 = vunpack.c.l.b16 %v577
    %v1861 = vunpack.c.h.b16 %v577
    %v1862 = vunpack.c.l.b16 %v578
    %v1863 = vunpack.c.h.b16 %v578
    %v1864 = vunpack.c.l.b16 %v579
    %v1865 = vunpack.c.h.b16 %v579
    %v1866 = vunpack.c.l.b16 %v580
    %v1867 = vunpack.c.h.b16 %v580
    %v1868 = vunpack.c.l.b16 %v581
    %v1869 = vunpack.c.h.b16 %v581
    %v1870 = vunpack.c.l.b16 %v582
    %v1871 = vunpack.c.h.b16 %v582
    %v1872 = vunpack.c.l.b16 %v583
    %v1873 = vunpack.c.h.b16 %v583
    %v1874 = vunpack.c.l.b16 %v584
    %v1875 = vunpack.c.h.b16 %v584
    %v1876 = vunpack.c.l.b16 %v585
    %v1877 = vunpack.c.h.b16 %v585
    %v1878 = vunpack.c.l.b16 %v586
    %v1879 = vunpack.c.h.b16 %v586
    %v1880 = vunpack.c.l.b16 %v587
    %v1881 = vunpack.c.h.b16 %v587
    %v1882 = vunpack.c.l.b16 %v588
    %v1883 = vunpack.c.h.b16 %v588
    %v1884 = vunpack.c.l.b16 %v589
    %v1885 = vunpack.c.h.b16 %v589
    %v1886 = vunpack.c.l.b16 %v590
    %v1887 = vunpack.c.h.b16 %v590
    %v1888 = vunpack.c.l.b16 %v591
    %v1889 = vunpack.c.h.b16 %v591
    %v1890 = vunpack.c.l.b16 %v592
    %v1891 = vunpack.c.h.b16 %v592
    %v1892 = vunpack.c.l.b16 %v593
    %v1893 = vunpack.c.h.b16 %v593
    %v1894 = vunpack.c.l.b16 %v594
    %v1895 = vunpack.c.h.b16 %v594
    %v1896 = vunpack.c.l.b16 %v595
    %v1897 = vunpack.c.h.b16 %v595
    %v1898 = vunpack.c.l.b16 %v596
    %v1899 = vunpack.c.h.b16 %v596
    %v1900 = vunpack.c.l.b16 %v597
    %v1901 = vunpack.c.h.b16 %v597
    %v1902 = vunpack.c.l.b16 %v598
    %v1903 = vunpack.c.h.b16 %v598
    %v1904 = vunpack.c.l.b16 %v599
    %v1905 = vunpack.c.h.b16 %v599
    %v1906 = vunpack.c.l.b16 %v600
    %v1907 = vunpack.c.h.b16 %v600
    %v1908 = vunpack.c.l.b16 %v601
    %v1909 = vunpack.c.h.b16 %v601
    %v1910 = vunpack.c.l.b16 %v602
    %v1911 = vunpack.c.h.b16 %v602
    %v1912 = vunpack.c.l.b16 %v603
    %v1913 = vunpack.c.h.b16 %v603
    %v1914 = vunpack.c.l.b16 %v604
    %v1915 = vunpack.c.h.b16 %v604
    %v1916 = vunpack.c.l.b16 %v605
    %v1917 = vunpack.c.h.b16 %v605
    %v1918 = vunpack.c.l.b16 %v606
    %v1919 = vunpack.c.h.b16 %v606
    %v1920 = vunpack.c.l.b16 %v607
    %v1921 = vunpack.c.h.b16 %v607
    %v1922 = vunpack.c.l.b16 %v608
    %v1923 = vunpack.c.h.b16 %v608
    %v1924 = vunpack.c.l.b16 %v609
    %v1925 = vunpack.c.h.b16 %v609
    %v1926 = vunpack.c.l.b16 %v610
    %v1927 = vunpack.c.h.b16 %v610
    %v1928 = vunpack.c.l.b16 %v611
    %v1929 = vunpack.c.h.b16 %v611
    %v1930 = vunpack.c.l.b16 %v612
    %v1931 = vunpack.c.h.b16 %v612
    %v1932 = vunpack.c.l.b16 %v613
    %v1933 = vunpack.c.h.b16 %v613
    %v1934 = vunpack.c.l.b16 %v614
    %v1935 = vunpack.c.h.b16 %v614
    %v1936 = vunpack.c.l.b16 %v615
    %v1937 = vunpack.c.h.b16 %v615
    %v1938 = vunpack.c.l.b16 %v616
    %v1939 = vunpack.c.h.b16 %v616
    %v1940 = vunpack.c.l.b16 %v617
    %v1941 = vunpack.c.h.b16 %v617
    %v1942 = vunpack.c.l.b16 %v618
    %v1943 = vunpack.c.h.b16 %v618
    %v1944 = vunpack.c.l.b16 %v619
    %v1945 = vunpack.c.h.b16 %v619
    %v1946 = vunpack.c.l.b16 %v620
    %v1947 = vunpack.c.h.b16 %v620
    %v1948 = vunpack.c.l.b16 %v621
    %v1949 = vunpack.c.h.b16 %v621
    %v1950 = vunpack.c.l.b16 %v622
    %v1951 = vunpack.c.h.b16 %v622
    %v1952 = vunpack.c.l.b16 %v623
    %v1953 = vunpack.c.h.b16 %v623
    %v1954 = vunpack.c.l.b16 %v624
    %v1955 = vunpack.c.h.b16 %v624
    %v1956 = vunpack.c.l.b16 %v625
    %v1957 = vunpack.c.h.b16 %v625
    %v1958 = vunpack.c.l.b16 %v626
    %v1959 = vunpack.c.h.b16 %v626
    %v1960 = vunpack.c.l.b16 %v627
    %v1961 = vunpack.c.h.b16 %v627
    %v1962 = vunpack.c.l.b16 %v628
    %v1963 = vunpack.c.h.b16 %v628
    %v1964 = vunpack.c.l.b16 %v629
    %v1965 = vunpack.c.h.b16 %v629
    %v1966 = vunpack.c.l.b16 %v630
    %v1967 = vunpack.c.h.b16 %v630
    %v1968 = vunpack.c.l.b16 %v631
    %v1969 = vunpack.c.h.b16 %v631
    %v1970 = vunpack.c.l.b16 %v632
    %v1971 = vunpack.c.h.b16 %v632
    %v1972 = vunpack.c.l.b16 %v633
    %v1973 = vunpack.c.h.b16 %v633
    %v1974 = vunpack.c.l.b16 %v634
    %v1975 = vunpack.c.h.b16 %v634
    %v1976 = vunpack.c.l.b16 %v635
    %v1977 = vunpack.c.h.b16 %v635
    %v1978 = vunpack.c.l.b16 %v636
    %v1979 = vunpack.c.h.b16 %v636
    %v1980 = vunpack.c.l.b16 %v637
    %v1981 = vunpack.c.h.b16 %v637
    %v1982 = vunpack.c.l.b16 %v638
    %v1983 = vunpack.c.h.b16 %v638
    %v1984 = vunpack.c.l.b16 %v639
    %v1985 = vunpack.c.h.b16 %v639
    %v1986 = vunpack.c.l.b16 %v640
    %v1987 = vunpack.c.h.b16 %v640
    %v1988 = vunpack.c.l.b16 %v641
    %v1989 = vunpack.c.h.b16 %v641
    %v1990 = vunpack.c.l.b16 %v642
    %v1991 = vunpack.c.h.b16 %v642
    %v1992 = vunpack.c.l.b16 %v643
    %v1993 = vunpack.c.h.b16 %v643
    %v1994 = vunpack.c.l.b16 %v644
    %v1995 = vunpack.c.h.b16 %v644
    %v1996 = vunpack.c.l.b16 %v645
    %v1997 = vunpack.c.h.b16 %v645
    %v1998 = vunpack.c.l.b16 %v646
    %v1999 = vunpack.c.h.b16 %v646
    %v2000 = vunpack.c.l.b16 %v647
    %v2001 = vunpack.c.h.b16 %v647
    %v2002 = vunpack.c.l.b16 %v648
    %v2003 = vunpack.c.h.b16 %v648
    %v2004 = vunpack.c.l.b16 %v649
    %v2005 = vunpack.c.h.b16 %v649
    %v2006 = vunpack.c.l.b16 %v650
    %v2007 = vunpack.c.h.b16 %v650
    %v2008 = vunpack.c.l.b16 %v651
    %v2009 = vunpack.c.h.b16 %v651
    %v2010 = vunpack.c.l.b16 %v652
    %v2011 = vunpack.c.h.b16 %v652
    %v2012 = vunpack.c.l.b16 %v653
    %v2013 = vunpack.c.h.b16 %v653
    %v2014 = vunpack.c.l.b16 %v654
    %v2015 = vunpack.c.h.b16 %v654
    %v2016 = vunpack.c.l.b16 %v655
    %v2017 = vunpack.c.h.b16 %v655
    %v2018 = vunpack.c.l.b16 %v656
    %v2019 = vunpack.c.h.b16 %v656
    %v2020 = vunpack.c.l.b16 %v657
    %v2021 = vunpack.c.h.b16 %v657
    %v2022 = vunpack.c.l.b16 %v658
    %v2023 = vunpack.c.h.b16 %v658
    %v2024 = vunpack.c.l.b16 %v659
    %v2025 = vunpack.c.h.b16 %v659
    %v2026 = vunpack.c.l.b16 %v660
    %v2027 = vunpack.c.h.b16 %v660
    %v2028 = vunpack.c.l.b16 %v661
    %v2029 = vunpack.c.h.b16 %v661
    %v2030 = vunpack.c.l.b16 %v662
    %v2031 = vunpack.c.h.b16 %v662
    %v2032 = vunpack.c.l.b16 %v663
    %v2033 = vunpack.c.h.b16 %v663
    %v2034 = vunpack.c.l.b16 %v664
    %v2035 = vunpack.c.h.b16 %v664
    %v2036 = vunpack.c.l.b16 %v665
    %v2037 = vunpack.c.h.b16 %v665
    %v2038 = vunpack.c.l.b16 %v666
    %v2039 = vunpack.c.h.b16 %v666
    %v2040 = vunpack.c.l.b16 %v667
    %v2041 = vunpack.c.h.b16 %v667
    %v2042 = vunpack.c.l.b16 %v668
    %v2043 = vunpack.c.h.b16 %v668
    %v2044 = vunpack.c.l.b16 %v669
    %v2045 = vunpack.c.h.b16 %v669
    %v2046 = vunpack.c.l.b16 %v670
    %v2047 = vunpack.c.h.b16 %v670
    %v2048 = vunpack.c.l.b16 %v671
    %v2049 = vunpack.c.h.b16 %v671
    %v2050 = vunpack.c.l.b16 %v672
    %v2051 = vunpack.c.h.b16 %v672
    %v2052 = vunpack.c.l.b16 %v673
    %v2053 = vunpack.c.h.b16 %v673
    %v2054 = vunpack.c.l.b16 %v674
    %v2055 = vunpack.c.h.b16 %v674
    %v2056 = vunpack.c.l.b16 %v675
    %v2057 = vunpack.c.h.b16 %v675
    %v2058 = vunpack.c.l.b16 %v676
    %v2059 = vunpack.c.h.b16 %v676
    %v2060 = vunpack.c.l.b16 %v677
    %v2061 = vunpack.c.h.b16 %v677
    %v2062 = vunpack.c.l.b16 %v678
    %v2063 = vunpack.c.h.b16 %v678
    %v2064 = vunpack.c.l.b16 %v679
    %v2065 = vunpack.c.h.b16 %v679
    %v2066 = vunpack.c.l.b16 %v680
    %v2067 = vunpack.c.h.b16 %v680
    %v2068 = vunpack.c.l.b16 %v681
    %v2069 = vunpack.c.h.b16 %v681
    %v2070 = vunpack.c.l.b16 %v682
    %v2071 = vunpack.c.h.b16 %v682
    %v2072 = vunpack.c.l.b16 %v683
    %v2073 = vunpack.c.h.b16 %v683
    %v2074 = vunpack.c.l.b16 %v684
    %v2075 = vunpack.c.h.b16 %v684
    %v2076 = vunpack.c.l.b16 %v685
    %v2077 = vunpack.c.h.b16 %v685
    %v2078 = vunpack.c.l.b16 %v686
    %v2079 = vunpack.c.h.b16 %v686
    %v2080 = vunpack.c.l.b16 %v687
    %v2081 = vunpack.c.h.b16 %v687
    %v2082 = vunpack.c.l.b16 %v688
    %v2083 = vunpack.c.h.b16 %v688
    %v2084 = vunpack.c.l.b16 %v689
    %v2085 = vunpack.c.h.b16 %v689
    %v2086 = vunpack.c.l.b16 %v690
    %v2087 = vunpack.c.h.b16 %v690
    %v2088 = vunpack.c.l.b16 %v691
    %v2089 = vunpack.c.h.b16 %v691
    %v2090 = vunpack.c.l.b16 %v692
    %v2091 = vunpack.c.h.b16 %v692
    %v2092 = vunpack.c.l.b16 %v693
    %v2093 = vunpack.c.h.b16 %v693
    %v2094 = vunpack.c.l.b16 %v694
    %v2095 = vunpack.c.h.b16 %v694
    %v2096 = vunpack.c.l.b16 %v695
    %v2097 = vunpack.c.h.b16 %v695
    %v2098 = vunpack.c.l.b16 %v696
    %v2099 = vunpack.c.h.b16 %v696
    %v2100 = vunpack.c.l.b16 %v697
    %v2101 = vunpack.c.h.b16 %v697
    %v2102 = vunpack.c.l.b16 %v698
    %v2103 = vunpack.c.h.b16 %v698
    %v2104 = vunpack.c.l.b16 %v699
    %v2105 = vunpack.c.h.b16 %v699
    %v2106 = vunpack.c.l.b16 %v700
    %v2107 = vunpack.c.h.b16 %v700
    %v2108 = vunpack.c.l.b16 %v701
    %v2109 = vunpack.c.h.b16 %v701
    %v2110 = vunpack.c.l.b16 %v702
    %v2111 = vunpack.c.h.b16 %v702
    %v2112 = vunpack.c.l.b16 %v703
    %v2113 = vunpack.c.h.b16 %v703
    %v2114 = vunpack.c.l.b16 %v704
    %v2115 = vunpack.c.h.b16 %v704
    %v2116 = vunpack.c.l.b16 %v705
    %v2117 = vunpack.c.h.b16 %v705
    %v2118 = vunpack.c.l.b16 %v706
    %v2119 = vunpack.c.h.b16 %v706
    %v2120 = vunpack.c.l.b16 %v707
    %v2121 = vunpack.c.h.b16 %v707
    %v2122 = vunpack.c.l.b16 %v708
    %v2123 = vunpack.c.h.b16 %v708
    %v2124 = vunpack.c.l.b16 %v709
    %v2125 = vunpack.c.h.b16 %v709
    %v2126 = vunpack.c.l.b16 %v710
    %v2127 = vunpack.c.h.b16 %v710
    %v2128 = vunpack.c.l.b16 %v711
    %v2129 = vunpack.c.h.b16 %v711
    %v2130 = vunpack.c.l.b16 %v712
    %v2131 = vunpack.c.h.b16 %v712
    %v2132 = vunpack.c.l.b16 %v713
    %v2133 = vunpack.c.h.b16 %v713
    %v2134 = vunpack.c.l.b16 %v714
    %v2135 = vunpack.c.h.b16 %v714
    %v2136 = vunpack.c.l.b16 %v715
    %v2137 = vunpack.c.h.b16 %v715
    %v2138 = vunpack.c.l.b16 %v716
    %v2139 = vunpack.c.h.b16 %v716
    %v2140 = vunpack.c.l.b16 %v717
    %v2141 = vunpack.c.h.b16 %v717
    %v2142 = vunpack.c.l.b16 %v718
    %v2143 = vunpack.c.h.b16 %v718
    %v2144 = vunpack.c.l.b16 %v719
    %v2145 = vunpack.c.h.b16 %v719
    %v2146 = vunpack.c.l.b16 %v720
    %v2147 = vunpack.c.h.b16 %v720
    %v2148 = vunpack.c.l.b16 %v721
    %v2149 = vunpack.c.h.b16 %v721
    %v2150 = vunpack.c.l.b16 %v722
    %v2151 = vunpack.c.h.b16 %v722
    %v2152 = vunpack.c.l.b16 %v723
    %v2153 = vunpack.c.h.b16 %v723
    %v2154 = vunpack.c.l.b16 %v724
    %v2155 = vunpack.c.h.b16 %v724
    %v2156 = vunpack.c.l.b16 %v725
    %v2157 = vunpack.c.h.b16 %v725
    %v2158 = vunpack.c.l.b16 %v726
    %v2159 = vunpack.c.h.b16 %v726
    %v2160 = vunpack.c.l.b16 %v727
    %v2161 = vunpack.c.h.b16 %v727
    %v2162 = vunpack.c.l.b16 %v728
    %v2163 = vunpack.c.h.b16 %v728
    %v2164 = vunpack.c.l.b16 %v729
    %v2165 = vunpack.c.h.b16 %v729
    %v2166 = vunpack.c.l.b16 %v730
    %v2167 = vunpack.c.h.b16 %v730
    %v2168 = vunpack.c.l.b16 %v731
    %v2169 = vunpack.c.h.b16 %v731
    %v2170 = vunpack.c.l.b16 %v732
    %v2171 = vunpack.c.h.b16 %v732
    %v2172 = vunpack.c.l.b16 %v733
    %v2173 = vunpack.c.h.b16 %v733
    %v2174 = vunpack.c.l.b16 %v734
    %v2175 = vunpack.c.h.b16 %v734
    %v2176 = vunpack.c.l.b16 %v735
    %v2177 = vunpack.c.h.b16 %v735
    %v2178 = vunpack.c.l.b16 %v736
    %v2179 = vunpack.c.h.b16 %v736
    %v2180 = vunpack.c.l.b16 %v737
    %v2181 = vunpack.c.h.b16 %v737
    %v2182 = vunpack.c.l.b16 %v738
    %v2183 = vunpack.c.h.b16 %v738
    %v2184 = vunpack.c.l.b16 %v739
    %v2185 = vunpack.c.h.b16 %v739
    %v2186 = vunpack.c.l.b16 %v740
    %v2187 = vunpack.c.h.b16 %v740
    %v2188 = vunpack.c.l.b16 %v741
    %v2189 = vunpack.c.h.b16 %v741
    %v2190 = vunpack.c.l.b16 %v742
    %v2191 = vunpack.c.h.b16 %v742
    %v2192 = vunpack.c.l.b16 %v743
    %v2193 = vunpack.c.h.b16 %v743
    %v2194 = vunpack.c.l.b16 %v744
    %v2195 = vunpack.c.h.b16 %v744
    %v2196 = vunpack.c.l.b16 %v745
    %v2197 = vunpack.c.h.b16 %v745
    %v2198 = vunpack.c.l.b16 %v746
    %v2199 = vunpack.c.h.b16 %v746
    %v2200 = vunpack.c.l.b16 %v747
    %v2201 = vunpack.c.h.b16 %v747
    %v2202 = vunpack.c.l.b16 %v748
    %v2203 = vunpack.c.h.b16 %v748
    %v2204 = vunpack.c.l.b16 %v749
    %v2205 = vunpack.c.h.b16 %v749
    %v2206 = vunpack.c.l.b16 %v750
    %v2207 = vunpack.c.h.b16 %v750
    %v2208 = vunpack.c.l.b16 %v751
    %v2209 = vunpack.c.h.b16 %v751
    %v2210 = vunpack.c.l.b16 %v752
    %v2211 = vunpack.c.h.b16 %v752
    %v2212 = vunpack.c.l.b16 %v753
    %v2213 = vunpack.c.h.b16 %v753
    %v2214 = vunpack.c.l.b16 %v754
    %v2215 = vunpack.c.h.b16 %v754
    %v2216 = vunpack.c.l.b16 %v755
    %v2217 = vunpack.c.h.b16 %v755
    %v2218 = vunpack.c.l.b16 %v756
    %v2219 = vunpack.c.h.b16 %v756
    %v2220 = vunpack.c.l.b16 %v757
    %v2221 = vunpack.c.h.b16 %v757
    %v2222 = vunpack.c.l.b16 %v758
    %v2223 = vunpack.c.h.b16 %v758
    %v2224 = vunpack.c.l.b16 %v759
    %v2225 = vunpack.c.h.b16 %v759
    %v2226 = vunpack.c.l.b16 %v760
    %v2227 = vunpack.c.h.b16 %v760
    %v2228 = vunpack.c.l.b16 %v761
    %v2229 = vunpack.c.h.b16 %v761
    %v2230 = vunpack.c.l.b16 %v762
    %v2231 = vunpack.c.h.b16 %v762
    %v2232 = vunpack.c.l.b16 %v763
    %v2233 = vunpack.c.h.b16 %v763
    %v2234 = vunpack.c.l.b16 %v764
    %v2235 = vunpack.c.h.b16 %v764
    %v2236 = vunpack.c.l.b16 %v765
    %v2237 = vunpack.c.h.b16 %v765
    %v2238 = vunpack.c.l.b16 %v766
    %v2239 = vunpack.c.h.b16 %v766
    %v2240 = vunpack.c.l.b16 %v767
    %v2241 = vunpack.c.h.b16 %v767
    %v2242 = vunpack.c.l.b16 %v768
    %v2243 = vunpack.c.h.b16 %v768
    %v2244 = vunpack.c.l.b16 %v769
    %v2245 = vunpack.c.h.b16 %v769
    %v2246 = vunpack.c.l.b16 %v770
    %v2247 = vunpack.c.h.b16 %v770
    %v2248 = vunpack.c.l.b16 %v771
    %v2249 = vunpack.c.h.b16 %v771
    %v2250 = vunpack.c.l.b16 %v772
    %v2251 = vunpack.c.h.b16 %v772
    %v2252 = vunpack.c.l.b16 %v773
    %v2253 = vunpack.c.h.b16 %v773
    %v2254 = vunpack.c.l.b16 %v774
    %v2255 = vunpack.c.h.b16 %v774
    %v2256 = vunpack.c.l.b16 %v775
    %v2257 = vunpack.c.h.b16 %v775
    %v2258 = vunpack.c.l.b16 %v776
    %v2259 = vunpack.c.h.b16 %v776
    %v2260 = vunpack.c.l.b16 %v777
    %v2261 = vunpack.c.h.b16 %v777
    %v2262 = vunpack.c.l.b16 %v778
    %v2263 = vunpack.c.h.b16 %v778
    %v2264 = vunpack.c.l.b16 %v779
    %v2265 = vunpack.c.h.b16 %v779
    %v2266 = vunpack.c.l.b16 %v780
    %v2267 = vunpack.c.h.b16 %v780
    %v2268 = vunpack.c.l.b16 %v781
    %v2269 = vunpack.c.h.b16 %v781
    %v2270 = vunpack.c.l.b16 %v782
    %v2271 = vunpack.c.h.b16 %v782
    %v2272 = vunpack.c.l.b16 %v783
    %v2273 = vunpack.c.h.b16 %v783
    %v2274 = vunpack.c.l.b16 %v784
    %v2275 = vunpack.c.h.b16 %v784
    %v2276 = vunpack.c.l.b16 %v785
    %v2277 = vunpack.c.h.b16 %v785
    %v2278 = vunpack.c.l.b16 %v786
    %v2279 = vunpack.c.h.b16 %v786
    %v2280 = vunpack.c.l.b16 %v787
    %v2281 = vunpack.c.h.b16 %v787
    %v2282 = vunpack.c.l.b16 %v788
    %v2283 = vunpack.c.h.b16 %v788
    %v2284 = vunpack.c.l.b16 %v789
    %v2285 = vunpack.c.h.b16 %v789
    %v2286 = vunpack.c.l.b16 %v790
    %v2287 = vunpack.c.h.b16 %v790
    %v2288 = vunpack.c.l.b16 %v791
    %v2289 = vunpack.c.h.b16 %v791
    %v2290 = vunpack.c.l.b16 %v792
    %v2291 = vunpack.c.h.b16 %v792
    %v2292 = vunpack.c.l.b16 %v793
    %v2293 = vunpack.c.h.b16 %v793
    %v2294 = vunpack.c.l.b16 %v794
    %v2295 = vunpack.c.h.b16 %v794
    %v2296 = vunpack.c.l.b16 %v795
    %v2297 = vunpack.c.h.b16 %v795
    %v2298 = vunpack.c.l.b16 %v796
    %v2299 = vunpack.c.h.b16 %v796
    %v2300 = vunpack.c.l.b16 %v797
    %v2301 = vunpack.c.h.b16 %v797
    %v2302 = vunpack.c.l.b16 %v798
    %v2303 = vunpack.c.h.b16 %v798
    %v2304 = vunpack.c.l.b16 %v799
    %v2305 = vunpack.c.h.b16 %v799
    %v2306 = vunpack.c.l.b16 %v800
    %v2307 = vunpack.c.h.b16 %v800
    %v2308 = vunpack.c.l.b16 %v801
    %v2309 = vunpack.c.h.b16 %v801
    %v2310 = vunpack.c.l.b16 %v802
    %v2311 = vunpack.c.h.b16 %v802
    %v2312 = vunpack.c.l.b16 %v803
    %v2313 = vunpack.c.h.b16 %v803
    %v2314 = vunpack.c.l.b16 %v804
    %v2315 = vunpack.c.h.b16 %v804
    %v2316 = vunpack.c.l.b16 %v805
    %v2317 = vunpack.c.h.b16 %v805
    %v2318 = vunpack.c.l.b16 %v806
    %v2319 = vunpack.c.h.b16 %v806
    %v2320 = vunpack.c.l.b16 %v807
    %v2321 = vunpack.c.h.b16 %v807
    %v2322 = vunpack.c.l.b16 %v808
    %v2323 = vunpack.c.h.b16 %v808
    %v2324 = vunpack.c.l.b16 %v809
    %v2325 = vunpack.c.h.b16 %v809
    %v2326 = vunpack.c.l.b16 %v810
    %v2327 = vunpack.c.h.b16 %v810
    %v2328 = vunpack.c.l.b16 %v811
    %v2329 = vunpack.c.h.b16 %v811
    %v2330 = vunpack.c.l.b16 %v812
    %v2331 = vunpack.c.h.b16 %v812
    %v2332 = vunpack.c.l.b16 %v813
    %v2333 = vunpack.c.h.b16 %v813
    %v2334 = vunpack.c.l.b16 %v814
    %v2335 = vunpack.c.h.b16 %v814
    %v2336 = vunpack.c.l.b16 %v815
    %v2337 = vunpack.c.h.b16 %v815
    %v2338 = vunpack.c.l.b16 %v816
    %v2339 = vunpack.c.h.b16 %v816
    %v2340 = vunpack.c.l.b16 %v817
    %v2341 = vunpack.c.h.b16 %v817
    %v2342 = vunpack.c.l.b16 %v818
    %v2343 = vunpack.c.h.b16 %v818
    %v2344 = vunpack.c.l.b16 %v819
    %v2345 = vunpack.c.h.b16 %v819
    %v2346 = vunpack.c.l.b16 %v820
    %v2347 = vunpack.c.h.b16 %v820
    %v2348 = vunpack.c.l.b16 %v821
    %v2349 = vunpack.c.h.b16 %v821
    %v2350 = vunpack.c.l.b16 %v822
    %v2351 = vunpack.c.h.b16 %v822
    %v2352 = vunpack.c.l.b16 %v823
    %v2353 = vunpack.c.h.b16 %v823
    %v2354 = vunpack.c.l.b16 %v824
    %v2355 = vunpack.c.h.b16 %v824
    %v2356 = vunpack.c.l.b16 %v825
    %v2357 = vunpack.c.h.b16 %v825
    %v2358 = vunpack.c.l.b16 %v826
    %v2359 = vunpack.c.h.b16 %v826
    %v2360 = vunpack.c.l.b16 %v827
    %v2361 = vunpack.c.h.b16 %v827
    %v2362 = vunpack.c.l.b16 %v828
    %v2363 = vunpack.c.h.b16 %v828
    %v2364 = vunpack.c.l.b16 %v829
    %v2365 = vunpack.c.h.b16 %v829
    %v2366 = vunpack.c.l.b16 %v830
    %v2367 = vunpack.c.h.b16 %v830
    %v2368 = vunpack.c.l.b16 %v831
    %v2369 = vunpack.c.h.b16 %v831
    %v2370 = vunpack.c.l.b16 %v832
    %v2371 = vunpack.c.h.b16 %v832
    %v2372 = vunpack.c.l.b16 %v833
    %v2373 = vunpack.c.h.b16 %v833
    %v2374 = vunpack.c.l.b16 %v834
    %v2375 = vunpack.c.h.b16 %v834
    %v2376 = vunpack.c.l.b16 %v835
    %v2377 = vunpack.c.h.b16 %v835
    %v2378 = vunpack.c.l.b16 %v836
    %v2379 = vunpack.c.h.b16 %v836
    %v2380 = vunpack.c.l.b16 %v837
    %v2381 = vunpack.c.h.b16 %v837
    %v2382 = vunpack.c.l.b16 %v838
    %v2383 = vunpack.c.h.b16 %v838
    %v2384 = vunpack.c.l.b16 %v839
    %v2385 = vunpack.c.h.b16 %v839
    %v2386 = vunpack.c.l.b16 %v840
    %v2387 = vunpack.c.h.b16 %v840
    %v2388 = vunpack.c.l.b16 %v841
    %v2389 = vunpack.c.h.b16 %v841
    %v2390 = vunpack.c.l.b16 %v842
    %v2391 = vunpack.c.h.b16 %v842
    %v2392 = vunpack.c.l.b16 %v843
    %v2393 = vunpack.c.h.b16 %v843
    %v2394 = vunpack.c.l.b16 %v844
    %v2395 = vunpack.c.h.b16 %v844
    %v2396 = vunpack.c.l.b16 %v845
    %v2397 = vunpack.c.h.b16 %v845
    %v2398 = vunpack.c.l.b16 %v846
    %v2399 = vunpack.c.h.b16 %v846
    %v2400 = vunpack.c.l.b16 %v847
    %v2401 = vunpack.c.h.b16 %v847
    %v2402 = vunpack.c.l.b16 %v848
    %v2403 = vunpack.c.h.b16 %v848
    %v2404 = vunpack.c.l.b16 %v849
    %v2405 = vunpack.c.h.b16 %v849
    %v2406 = vunpack.c.l.b16 %v850
    %v2407 = vunpack.c.h.b16 %v850
    %v2408 = vunpack.c.l.b16 %v851
    %v2409 = vunpack.c.h.b16 %v851
    %v2410 = vunpack.c.l.b16 %v852
    %v2411 = vunpack.c.h.b16 %v852
    %v2412 = vunpack.c.l.b16 %v853
    %v2413 = vunpack.c.h.b16 %v853
    %v2414 = vunpack.c.l.b16 %v854
    %v2415 = vunpack.c.h.b16 %v854
    %v2416 = vunpack.c.l.b16 %v855
    %v2417 = vunpack.c.h.b16 %v855
    %v2418 = vunpack.c.l.b16 %v856
    %v2419 = vunpack.c.h.b16 %v856
    %v2420 = vunpack.c.l.b16 %v857
    %v2421 = vunpack.c.h.b16 %v857
    %v2422 = vunpack.c.l.b16 %v858
    %v2423 = vunpack.c.h.b16 %v858
    %v2424 = vunpack.c.l.b16 %v859
    %v2425 = vunpack.c.h.b16 %v859
    %v2426 = vunpack.c.l.b16 %v860
    %v2427 = vunpack.c.h.b16 %v860
    %v2428 = vunpack.c.l.b16 %v861
    %v2429 = vunpack.c.h.b16 %v861
    %v2430 = vunpack.c.l.b16 %v862
    %v2431 = vunpack.c.h.b16 %v862
    %v2432 = vunpack.c.l.b16 %v863
    %v2433 = vunpack.c.h.b16 %v863
    %v2434 = vunpack.c.l.b16 %v864
    %v2435 = vunpack.c.h.b16 %v864
    %v2436 = vunpack.c.l.b16 %v865
    %v2437 = vunpack.c.h.b16 %v865
    %v2438 = vunpack.c.l.b16 %v866
    %v2439 = vunpack.c.h.b16 %v866
    %v2440 = vunpack.c.l.b16 %v867
    %v2441 = vunpack.c.h.b16 %v867
    %v2442 = vunpack.c.l.b16 %v868
    %v2443 = vunpack.c.h.b16 %v868
    %v2444 = vunpack.c.l.b16 %v869
    %v2445 = vunpack.c.h.b16 %v869
    %v2446 = vunpack.c.l.b16 %v870
    %v2447 = vunpack.c.h.b16 %v870
    %v2448 = vunpack.c.l.b16 %v871
    %v2449 = vunpack.c.h.b16 %v871
    %v2450 = vunpack.c.l.b16 %v872
    %v2451 = vunpack.c.h.b16 %v872
    %v2452 = vunpack.c.l.b16 %v873
    %v2453 = vunpack.c.h.b16 %v873
    %v2454 = vunpack.c.l.b16 %v874
    %v2455 = vunpack.c.h.b16 %v874
    %v2456 = vunpack.c.l.b16 %v875
    %v2457 = vunpack.c.h.b16 %v875
    %v2458 = vunpack.c.l.b16 %v876
    %v2459 = vunpack.c.h.b16 %v876
    %v2460 = vunpack.c.l.b16 %v877
    %v2461 = vunpack.c.h.b16 %v877
    %v2462 = vunpack.c.l.b16 %v878
    %v2463 = vunpack.c.h.b16 %v878
    %v2464 = vunpack.c.l.b16 %v879
    %v2465 = vunpack.c.h.b16 %v879
    %v2466 = vunpack.c.l.b16 %v880
    %v2467 = vunpack.c.h.b16 %v880
    %v2468 = vunpack.c.l.b16 %v881
    %v2469 = vunpack.c.h.b16 %v881
    %v2470 = vunpack.c.l.b16 %v882
    %v2471 = vunpack.c.h.b16 %v882
    %v2472 = vunpack.c.l.b16 %v883
    %v2473 = vunpack.c.h.b16 %v883
    %v2474 = vunpack.c.l.b16 %v884
    %v2475 = vunpack.c.h.b16 %v884
    %v2476 = vunpack.c.l.b16 %v885
    %v2477 = vunpack.c.h.b16 %v885
    %v2478 = vunpack.c.l.b16 %v886
    %v2479 = vunpack.c.h.b16 %v886
    %v2480 = vunpack.c.l.b16 %v887
    %v2481 = vunpack.c.h.b16 %v887
    %v2482 = vunpack.c.l.b16 %v888
    %v2483 = vunpack.c.h.b16 %v888
    %v2484 = vunpack.c.l.b16 %v889
    %v2485 = vunpack.c.h.b16 %v889
    %v2486 = vunpack.c.l.b16 %v890
    %v2487 = vunpack.c.h.b16 %v890
    %v2488 = vunpack.c.l.b16 %v891
    %v2489 = vunpack.c.h.b16 %v891
    %v2490 = vunpack.c.l.b16 %v892
    %v2491 = vunpack.c.h.b16 %v892
    %v2492 = vunpack.c.l.b16 %v893
    %v2493 = vunpack.c.h.b16 %v893
    %v2494 = vunpack.c.l.b16 %v894
    %v2495 = vunpack.c.h.b16 %v894
    %v2496 = vunpack.c.l.b16 %v895
    %v2497 = vunpack.c.h.b16 %v895
    %v2498 = vunpack.c.l.b16 %v896
    %v2499 = vunpack.c.h.b16 %v896
    %v2500 = vunpack.c.l.b16 %v897
    %v2501 = vunpack.c.h.b16 %v897
    %v2502 = vunpack.c.l.b16 %v898
    %v2503 = vunpack.c.h.b16 %v898
    %v2504 = vunpack.c.l.b16 %v899
    %v2505 = vunpack.c.h.b16 %v899
    %v2506 = vunpack.c.l.b16 %v900
    %v2507 = vunpack.c.h.b16 %v900
    %v2508 = vunpack.c.l.b16 %v901
    %v2509 = vunpack.c.h.b16 %v901
    %v2510 = vunpack.c.l.b16 %v902
    %v2511 = vunpack.c.h.b16 %v902
    %v2512 = vunpack.c.l.b16 %v903
    %v2513 = vunpack.c.h.b16 %v903
    %v2514 = vunpack.c.l.b16 %v904
    %v2515 = vunpack.c.h.b16 %v904
    %v2516 = vunpack.c.l.b16 %v905
    %v2517 = vunpack.c.h.b16 %v905
    %v2518 = vunpack.c.l.b16 %v906
    %v2519 = vunpack.c.h.b16 %v906
    %v2520 = vunpack.c.l.b16 %v907
    %v2521 = vunpack.c.h.b16 %v907
    %v2522 = vunpack.c.l.b16 %v908
    %v2523 = vunpack.c.h.b16 %v908
    %v2524 = vunpack.c.l.b16 %v909
    %v2525 = vunpack.c.h.b16 %v909
    %v2526 = vunpack.c.l.b16 %v910
    %v2527 = vunpack.c.h.b16 %v910
    %v2528 = vunpack.c.l.b16 %v911
    %v2529 = vunpack.c.h.b16 %v911
    %v2530 = vunpack.c.l.b16 %v912
    %v2531 = vunpack.c.h.b16 %v912
    %v2532 = vunpack.c.l.b16 %v913
    %v2533 = vunpack.c.h.b16 %v913
    %v2534 = vunpack.c.l.b16 %v914
    %v2535 = vunpack.c.h.b16 %v914
    %v2536 = vunpack.c.l.b16 %v915
    %v2537 = vunpack.c.h.b16 %v915
    %v2538 = vunpack.c.l.b16 %v916
    %v2539 = vunpack.c.h.b16 %v916
    %v2540 = vunpack.c.l.b16 %v917
    %v2541 = vunpack.c.h.b16 %v917
    %v2542 = vunpack.c.l.b16 %v918
    %v2543 = vunpack.c.h.b16 %v918
    %v2544 = vunpack.c.l.b16 %v919
    %v2545 = vunpack.c.h.b16 %v919
    %v2546 = vunpack.c.l.b16 %v920
    %v2547 = vunpack.c.h.b16 %v920
    %v2548 = vunpack.c.l.b16 %v921
    %v2549 = vunpack.c.h.b16 %v921
    %v2550 = vunpack.c.l.b16 %v922
    %v2551 = vunpack.c.h.b16 %v922
    %v2552 = vunpack.c.l.b16 %v923
    %v2553 = vunpack.c.h.b16 %v923
    %v2554 = vunpack.c.l.b16 %v924
    %v2555 = vunpack.c.h.b16 %v924
    %v2556 = vunpack.c.l.b16 %v925
    %v2557 = vunpack.c.h.b16 %v925
    %v2558 = vunpack.c.l.b16 %v926
    %v2559 = vunpack.c.h.b16 %v926
    %v2560 = vunpack.c.l.b16 %v927
    %v2561 = vunpack.c.h.b16 %v927
    %v2562 = vunpack.c.l.b16 %v928
    %v2563 = vunpack.c.h.b16 %v928
    %v2564 = vunpack.c.l.b16 %v929
    %v2565 = vunpack.c.h.b16 %v929
    %v2566 = vunpack.c.l.b16 %v930
    %v2567 = vunpack.c.h.b16 %v930
    %v2568 = vunpack.c.l.b16 %v931
    %v2569 = vunpack.c.h.b16 %v931
    %v2570 = vunpack.c.l.b16 %v932
    %v2571 = vunpack.c.h.b16 %v932
    %v2572 = vunpack.c.l.b16 %v933
    %v2573 = vunpack.c.h.b16 %v933
    %v2574 = vunpack.c.l.b16 %v934
    %v2575 = vunpack.c.h.b16 %v934
    %v2576 = vunpack.c.l.b16 %v935
    %v2577 = vunpack.c.h.b16 %v935
    %v2578 = vunpack.c.l.b16 %v936
    %v2579 = vunpack.c.h.b16 %v936
    %v2580 = vunpack.c.l.b16 %v937
    %v2581 = vunpack.c.h.b16 %v937
    %v2582 = vunpack.c.l.b16 %v938
    %v2583 = vunpack.c.h.b16 %v938
    %v2584 = vunpack.c.l.b16 %v939
    %v2585 = vunpack.c.h.b16 %v939
    %v2586 = vunpack.c.l.b16 %v940
    %v2587 = vunpack.c.h.b16 %v940
    %v2588 = vunpack.c.l.b16 %v941
    %v2589 = vunpack.c.h.b16 %v941
    %v2590 = vunpack.c.l.b16 %v942
    %v2591 = vunpack.c.h.b16 %v942
    %v2592 = vunpack.c.l.b16 %v943
    %v2593 = vunpack.c.h.b16 %v943
    %v2594 = vunpack.c.l.b16 %v944
    %v2595 = vunpack.c.h.b16 %v944
    %v2596 = vunpack.c.l.b16 %v945
    %v2597 = vunpack.c.h.b16 %v945
    %v2598 = vunpack.c.l.b16 %v946
    %v2599 = vunpack.c.h.b16 %v946
    %v2600 = vunpack.c.l.b16 %v947
    %v2601 = vunpack.c.h.b16 %v947
    %v2602 = vunpack.c.l.b16 %v948
    %v2603 = vunpack.c.h.b16 %v948
    %v2604 = vunpack.c.l.b16 %v949
    %v2605 = vunpack.c.h.b16 %v949
    %v2606 = vunpack.c.l.b16 %v950
    %v2607 = vunpack.c.h.b16 %v950
    %v2608 = vunpack.c.l.b16 %v951
    %v2609 = vunpack.c.h.b16 %v951
    %v2610 = vunpack.c.l.b16 %v952
    %v2611 = vunpack.c.h.b16 %v952
    %v2612 = vunpack.c.l.b16 %v953
    %v2613 = vunpack.c.h.b16 %v953
    %v2614 = vunpack.c.l.b16 %v954
    %v2615 = vunpack.c.h.b16 %v954
    %v2616 = vunpack.c.l.b16 %v955
    %v2617 = vunpack.c.h.b16 %v955
    %v2618 = vunpack.c.l.b16 %v956
    %v2619 = vunpack.c.h.b16 %v956
    %v2620 = vunpack.c.l.b16 %v957
    %v2621 = vunpack.c.h.b16 %v957
    %v2622 = vunpack.c.l.b16 %v958
    %v2623 = vunpack.c.h.b16 %v958
    %v2624 = vunpack.c.l.b16 %v959
    %v2625 = vunpack.c.h.b16 %v959
    %v2626 = vunpack.c.l.b16 %v960
    %v2627 = vunpack.c.h.b16 %v960
    %v2628 = vunpack.c.l.b16 %v961
    %v2629 = vunpack.c.h.b16 %v961
    %v2630 = vunpack.c.l.b16 %v962
    %v2631 = vunpack.c.h.b16 %v962
    %v2632 = vunpack.c.l.b16 %v963
    %v2633 = vunpack.c.h.b16 %v963
    %v2634 = vunpack.c.l.b16 %v964
    %v2635 = vunpack.c.h.b16 %v964
    %v2636 = vunpack.c.l.b16 %v965
    %v2637 = vunpack.c.h.b16 %v965
    %v2638 = vunpack.c.l.b16 %v966
    %v2639 = vunpack.c.h.b16 %v966
    %v2640 = vpack.c.b16 %v1624, %v1616
    %v2641 = vpack.c.b16 %v1625, %v1617
    %v2642 = vpack.c.b16 %v1626, %v1618
    %v2643 = vpack.c.b16 %v1627, %v1619
    %v2644 = vpack.c.b16 %v1628, %v1620
    %v2645 = vpack.c.b16 %v1629, %v1621
    %v2646 = vpack.c.b16 %v1630, %v1622
    %v2647 = vpack.c.b16 %v1631, %v1623
    %v2648 = vpack.c.b16 %v1640, %v1632
    %v2649 = vpack.c.b16 %v1641, %v1633
    %v2650 = vpack.c.b16 %v1642, %v1634
    %v2651 = vpack.c.b16 %v1643, %v1635
    %v2652 = vpack.c.b16 %v1644, %v1636
    %v2653 = vpack.c.b16 %v1645, %v1637
    %v2654 = vpack.c.b16 %v1646, %v1638
    %v2655 = vpack.c.b16 %v1647, %v1639
    %v2656 = vpack.c.b16 %v1656, %v1648
    %v2657 = vpack.c.b16 %v1657, %v1649
    %v2658 = vpack.c.b16 %v1658, %v1650
    %v2659 = vpack.c.b16 %v1659, %v1651
    %v2660 = vpack.c.b16 %v1660, %v1652
    %v2661 = vpack.c.b16 %v1661, %v1653
    %v2662 = vpack.c.b16 %v1662, %v1654
    %v2663 = vpack.c.b16 %v1663, %v1655
    %v2664 = vpack.c.b16 %v1672, %v1664
    %v2665 = vpack.c.b16 %v1673, %v1665
    %v2666 = vpack.c.b16 %v1674, %v1666
    %v2667 = vpack.c.b16 %v1675, %v1667
    %v2668 = vpack.c.b16 %v1676, %v1668
    %v2669 = vpack.c.b16 %v1677, %v1669
    %v2670 = vpack.c.b16 %v1678, %v1670
    %v2671 = vpack.c.b16 %v1679, %v1671
    %v2672 = vpack.c.b16 %v1688, %v1680
    %v2673 = vpack.c.b16 %v1689, %v1681
    %v2674 = vpack.c.b16 %v1690, %v1682
    %v2675 = vpack.c.b16 %v1691, %v1683
    %v2676 = vpack.c.b16 %v1692, %v1684
    %v2677 = vpack.c.b16 %v1693, %v1685
    %v2678 = vpack.c.b16 %v1694, %v1686
    %v2679 = vpack.c.b16 %v1695, %v1687
    %v2680 = vpack.c.b16 %v1704, %v1696
    %v2681 = vpack.c.b16 %v1705, %v1697
    %v2682 = vpack.c.b16 %v1706, %v1698
    %v2683 = vpack.c.b16 %v1707, %v1699
    %v2684 = vpack.c.b16 %v1708, %v1700
    %v2685 = vpack.c.b16 %v1709, %v1701
    %v2686 = vpack.c.b16 %v1710, %v1702
    %v2687 = vpack.c.b16 %v1711, %v1703
    %v2688 = vpack.c.b16 %v1720, %v1712
    %v2689 = vpack.c.b16 %v1721, %v1713
    %v2690 = vpack.c.b16 %v1722, %v1714
    %v2691 = vpack.c.b16 %v1723, %v1715
    %v2692 = vpack.c.b16 %v1724, %v1716
    %v2693 = vpack.c.b16 %v1725, %v1717
    %v2694 = vpack.c.b16 %v1726, %v1718
    %v2695 = vpack.c.b16 %v1727, %v1719
    %v2696 = vpack.c.b16 %v1736, %v1728
    %v2697 = vpack.c.b16 %v1737, %v1729
    %v2698 = vpack.c.b16 %v1738, %v1730
    %v2699 = vpack.c.b16 %v1739, %v1731
    %v2700 = vpack.c.b16 %v1740, %v1732
    %v2701 = vpack.c.b16 %v1741, %v1733
    %v2702 = vpack.c.b16 %v1742, %v1734
    %v2703 = vpack.c.b16 %v1743, %v1735
    %v2704 = vpack.c.b16 %v1752, %v1744
    %v2705 = vpack.c.b16 %v1753, %v1745
    %v2706 = vpack.c.b16 %v1754, %v1746
    %v2707 = vpack.c.b16 %v1755, %v1747
    %v2708 = vpack.c.b16 %v1756, %v1748
    %v2709 = vpack.c.b16 %v1757, %v1749
    %v2710 = vpack.c.b16 %v1758, %v1750
    %v2711 = vpack.c.b16 %v1759, %v1751
    %v2712 = vpack.c.b16 %v1768, %v1760
    %v2713 = vpack.c.b16 %v1769, %v1761
    %v2714 = vpack.c.b16 %v1770, %v1762
    %v2715 = vpack.c.b16 %v1771, %v1763
    %v2716 = vpack.c.b16 %v1772, %v1764
    %v2717 = vpack.c.b16 %v1773, %v1765
    %v2718 = vpack.c.b16 %v1774, %v1766
    %v2719 = vpack.c.b16 %v1775, %v1767
    %v2720 = vpack.c.b16 %v1784, %v1776
    %v2721 = vpack.c.b16 %v1785, %v1777
    %v2722 = vpack.c.b16 %v1786, %v1778
    %v2723 = vpack.c.b16 %v1787, %v1779
    %v2724 = vpack.c.b16 %v1788, %v1780
    %v2725 = vpack.c.b16 %v1789, %v1781
    %v2726 = vpack.c.b16 %v1790, %v1782
    %v2727 = vpack.c.b16 %v1791, %v1783
    %v2728 = vpack.c.b16 %v1800, %v1792
    %v2729 = vpack.c.b16 %v1801, %v1793
    %v2730 = vpack.c.b16 %v1802, %v1794
    %v2731 = vpack.c.b16 %v1803, %v1795
    %v2732 = vpack.c.b16 %v1804, %v1796
    %v2733 = vpack.c.b16 %v1805, %v1797
    %v2734 = vpack.c.b16 %v1806, %v1798
    %v2735 = vpack.c.b16 %v1807, %v1799
    %v2736 = vpack.c.b16 %v1816, %v1808
    %v2737 = vpack.c.b16 %v1817, %v1809
    %v2738 = vpack.c.b16 %v1818, %v1810
    %v2739 = vpack.c.b16 %v1819, %v1811
    %v2740 = vpack.c.b16 %v1820, %v1812
    %v2741 = vpack.c.b16 %v1821, %v1813
    %v2742 = vpack.c.b16 %v1822, %v1814
    %v2743 = vpack.c.b16 %v1823, %v1815
    %v2744 = vpack.c.b16 %v1832, %v1824
    %v2745 = vpack.c.b16 %v1833, %v1825
    %v2746 = vpack.c.b16 %v1834, %v1826
    %v2747 = vpack.c.b16 %v1835, %v1827
    %v2748 = vpack.c.b16 %v1836, %v1828
    %v2749 = vpack.c.b16 %v1837, %v1829
    %v2750 = vpack.c.b16 %v1838, %v1830
    %v2751 = vpack.c.b16 %v1839, %v1831
    %v2752 = vpack.c.b16 %v1848, %v1840
    %v2753 = vpack.c.b16 %v1849, %v1841
    %v2754 = vpack.c.b16 %v1850, %v1842
    %v2755 = vpack.c.b16 %v1851, %v1843
    %v2756 = vpack.c.b16 %v1852, %v1844
    %v2757 = vpack.c.b16 %v1853, %v1845
    %v2758 = vpack.c.b16 %v1854, %v1846
    %v2759 = vpack.c.b16 %v1855, %v1847
    %v2760 = vpack.c.b16 %v1864, %v1856
    %v2761 = vpack.c.b16 %v1865, %v1857
    %v2762 = vpack.c.b16 %v1866, %v1858
    %v2763 = vpack.c.b16 %v1867, %v1859
    %v2764 = vpack.c.b16 %v1868, %v1860
    %v2765 = vpack.c.b16 %v1869, %v1861
    %v2766 = vpack.c.b16 %v1870, %v1862
    %v2767 = vpack.c.b16 %v1871, %v1863
    %v2768 = vpack.c.b16 %v1880, %v1872
    %v2769 = vpack.c.b16 %v1881, %v1873
    %v2770 = vpack.c.b16 %v1882, %v1874
    %v2771 = vpack.c.b16 %v1883, %v1875
    %v2772 = vpack.c.b16 %v1884, %v1876
    %v2773 = vpack.c.b16 %v1885, %v1877
    %v2774 = vpack.c.b16 %v1886, %v1878
    %v2775 = vpack.c.b16 %v1887, %v1879
    %v2776 = vpack.c.b16 %v1896, %v1888
    %v2777 = vpack.c.b16 %v1897, %v1889
    %v2778 = vpack.c.b16 %v1898, %v1890
    %v2779 = vpack.c.b16 %v1899, %v1891
    %v2780 = vpack.c.b16 %v1900, %v1892
    %v2781 = vpack.c.b16 %v1901, %v1893
    %v2782 = vpack.c.b16 %v1902, %v1894
    %v2783 = vpack.c.b16 %v1903, %v1895
    %v2784 = vpack.c.b16 %v1912, %v1904
    %v2785 = vpack.c.b16 %v1913, %v1905
    %v2786 = vpack.c.b16 %v1914, %v1906
    %v2787 = vpack.c.b16 %v1915, %v1907
    %v2788 = vpack.c.b16 %v1916, %v1908
    %v2789 = vpack.c.b16 %v1917, %v1909
    %v2790 = vpack.c.b16 %v1918, %v1910
    %v2791 = vpack.c.b16 %v1919, %v1911
    %v2792 = vpack.c.b16 %v1928, %v1920
    %v2793 = vpack.c.b16 %v1929, %v1921
    %v2794 = vpack.c.b16 %v1930, %v1922
    %v2795 = vpack.c.b16 %v1931, %v1923
    %v2796 = vpack.c.b16 %v1932, %v1924
    %v2797 = vpack.c.b16 %v1933, %v1925
    %v2798 = vpack.c.b16 %v1934, %v1926
    %v2799 = vpack.c.b16 %v1935, %v1927
    %v2800 = vpack.c.b16 %v1944, %v1936
    %v2801 = vpack.c.b16 %v1945, %v1937
    %v2802 = vpack.c.b16 %v1946, %v1938
    %v2803 = vpack.c.b16 %v1947, %v1939
    %v2804 = vpack.c.b16 %v1948, %v1940
    %v2805 = vpack.c.b16 %v1949, %v1941
    %v2806 = vpack.c.b16 %v1950, %v1942
    %v2807 = vpack.c.b16 %v1951, %v1943
    %v2808 = vpack.c.b16 %v1960, %v1952
    %v2809 = vpack.c.b16 %v1961, %v1953
    %v2810 = vpack.c.b16 %v1962, %v1954
    %v2811 = vpack.c.b16 %v1963, %v1955
    %v2812 = vpack.c.b16 %v1964, %v1956
    %v2813 = vpack.c.b16 %v1965, %v1957
    %v2814 = vpack.c.b16 %v1966, %v1958
    %v2815 = vpack.c.b16 %v1967, %v1959
    %v2816 = vpack.c.b16 %v1976, %v1968
    %v2817 = vpack.c.b16 %v1977, %v1969
    %v2818 = vpack.c.b16 %v1978, %v1970
    %v2819 = vpack.c.b16 %v1979, %v1971
    %v2820 = vpack.c.b16 %v1980, %v1972
    %v2821 = vpack.c.b16 %v1981, %v1973
    %v2822 = vpack.c.b16 %v1982, %v1974
    %v2823 = vpack.c.b16 %v1983, %v1975
    %v2824 = vpack.c.b16 %v1992, %v1984
    %v2825 = vpack.c.b16 %v1993, %v1985
    %v2826 = vpack.c.b16 %v1994, %v1986
    %v2827 = vpack.c.b16 %v1995, %v1987
    %v2828 = vpack.c.b16 %v1996, %v1988
    %v2829 = vpack.c.b16 %v1997, %v1989
    %v2830 = vpack.c.b16 %v1998, %v1990
    %v2831 = vpack.c.b16 %v1999, %v1991
    %v2832 = vpack.c.b16 %v2008, %v2000
    %v2833 = vpack.c.b16 %v2009, %v2001
    %v2834 = vpack.c.b16 %v2010, %v2002
    %v2835 = vpack.c.b16 %v2011, %v2003
    %v2836 = vpack.c.b16 %v2012, %v2004
    %v2837 = vpack.c.b16 %v2013, %v2005
    %v2838 = vpack.c.b16 %v2014, %v2006
    %v2839 = vpack.c.b16 %v2015, %v2007
    %v2840 = vpack.c.b16 %v2024, %v2016
    %v2841 = vpack.c.b16 %v2025, %v2017
    %v2842 = vpack.c.b16 %v2026, %v2018
    %v2843 = vpack.c.b16 %v2027, %v2019
    %v2844 = vpack.c.b16 %v2028, %v2020
    %v2845 = vpack.c.b16 %v2029, %v2021
    %v2846 = vpack.c.b16 %v2030, %v2022
    %v2847 = vpack.c.b16 %v2031, %v2023
    %v2848 = vpack.c.b16 %v2040, %v2032
    %v2849 = vpack.c.b16 %v2041, %v2033
    %v2850 = vpack.c.b16 %v2042, %v2034
    %v2851 = vpack.c.b16 %v2043, %v2035
    %v2852 = vpack.c.b16 %v2044, %v2036
    %v2853 = vpack.c.b16 %v2045, %v2037
    %v2854 = vpack.c.b16 %v2046, %v2038
    %v2855 = vpack.c.b16 %v2047, %v2039
    %v2856 = vpack.c.b16 %v2056, %v2048
    %v2857 = vpack.c.b16 %v2057, %v2049
    %v2858 = vpack.c.b16 %v2058, %v2050
    %v2859 = vpack.c.b16 %v2059, %v2051
    %v2860 = vpack.c.b16 %v2060, %v2052
    %v2861 = vpack.c.b16 %v2061, %v2053
    %v2862 = vpack.c.b16 %v2062, %v2054
    %v2863 = vpack.c.b16 %v2063, %v2055
    %v2864 = vpack.c.b16 %v2072, %v2064
    %v2865 = vpack.c.b16 %v2073, %v2065
    %v2866 = vpack.c.b16 %v2074, %v2066
    %v2867 = vpack.c.b16 %v2075, %v2067
    %v2868 = vpack.c.b16 %v2076, %v2068
    %v2869 = vpack.c.b16 %v2077, %v2069
    %v2870 = vpack.c.b16 %v2078, %v2070
    %v2871 = vpack.c.b16 %v2079, %v2071
    %v2872 = vpack.c.b16 %v2088, %v2080
    %v2873 = vpack.c.b16 %v2089, %v2081
    %v2874 = vpack.c.b16 %v2090, %v2082
    %v2875 = vpack.c.b16 %v2091, %v2083
    %v2876 = vpack.c.b16 %v2092, %v2084
    %v2877 = vpack.c.b16 %v2093, %v2085
    %v2878 = vpack.c.b16 %v2094, %v2086
    %v2879 = vpack.c.b16 %v2095, %v2087
    %v2880 = vpack.c.b16 %v2104, %v2096
    %v2881 = vpack.c.b16 %v2105, %v2097
    %v2882 = vpack.c.b16 %v2106, %v2098
    %v2883 = vpack.c.b16 %v2107, %v2099
    %v2884 = vpack.c.b16 %v2108, %v2100
    %v2885 = vpack.c.b16 %v2109, %v2101
    %v2886 = vpack.c.b16 %v2110, %v2102
    %v2887 = vpack.c.b16 %v2111, %v2103
    %v2888 = vpack.c.b16 %v2120, %v2112
    %v2889 = vpack.c.b16 %v2121, %v2113
    %v2890 = vpack.c.b16 %v2122, %v2114
    %v2891 = vpack.c.b16 %v2123, %v2115
    %v2892 = vpack.c.b16 %v2124, %v2116
    %v2893 = vpack.c.b16 %v2125, %v2117
    %v2894 = vpack.c.b16 %v2126, %v2118
    %v2895 = vpack.c.b16 %v2127, %v2119
    %v2896 = vpack.c.b16 %v2136, %v2128
    %v2897 = vpack.c.b16 %v2137, %v2129
    %v2898 = vpack.c.b16 %v2138, %v2130
    %v2899 = vpack.c.b16 %v2139, %v2131
    %v2900 = vpack.c.b16 %v2140, %v2132
    %v2901 = vpack.c.b16 %v2141, %v2133
    %v2902 = vpack.c.b16 %v2142, %v2134
    %v2903 = vpack.c.b16 %v2143, %v2135
    %v2904 = vpack.c.b16 %v2152, %v2144
    %v2905 = vpack.c.b16 %v2153, %v2145
    %v2906 = vpack.c.b16 %v2154, %v2146
    %v2907 = vpack.c.b16 %v2155, %v2147
    %v2908 = vpack.c.b16 %v2156, %v2148
    %v2909 = vpack.c.b16 %v2157, %v2149
    %v2910 = vpack.c.b16 %v2158, %v2150
    %v2911 = vpack.c.b16 %v2159, %v2151
    %v2912 = vpack.c.b16 %v2168, %v2160
    %v2913 = vpack.c.b16 %v2169, %v2161
    %v2914 = vpack.c.b16 %v2170, %v2162
    %v2915 = vpack.c.b16 %v2171, %v2163
    %v2916 = vpack.c.b16 %v2172, %v2164
    %v2917 = vpack.c.b16 %v2173, %v2165
    %v2918 = vpack.c.b16 %v2174, %v2166
    %v2919 = vpack.c.b16 %v2175, %v2167
    %v2920 = vpack.c.b16 %v2184, %v2176
    %v2921 = vpack.c.b16 %v2185, %v2177
    %v2922 = vpack.c.b16 %v2186, %v2178
    %v2923 = vpack.c.b16 %v2187, %v2179
    %v2924 = vpack.c.b16 %v2188, %v2180
    %v2925 = vpack.c.b16 %v2189, %v2181
    %v2926 = vpack.c.b16 %v2190, %v2182
    %v2927 = vpack.c.b16 %v2191, %v2183
    %v2928 = vpack.c.b16 %v2200, %v2192
    %v2929 = vpack.c.b16 %v2201, %v2193
    %v2930 = vpack.c.b16 %v2202, %v2194
    %v2931 = vpack.c.b16 %v2203, %v2195
    %v2932 = vpack.c.b16 %v2204, %v2196
    %v2933 = vpack.c.b16 %v2205, %v2197
    %v2934 = vpack.c.b16 %v2206, %v2198
    %v2935 = vpack.c.b16 %v2207, %v2199
    %v2936 = vpack.c.b16 %v2216, %v2208
    %v2937 = vpack.c.b16 %v2217, %v2209
    %v2938 = vpack.c.b16 %v2218, %v2210
    %v2939 = vpack.c.b16 %v2219, %v2211
    %v2940 = vpack.c.b16 %v2220, %v2212
    %v2941 = vpack.c.b16 %v2221, %v2213
    %v2942 = vpack.c.b16 %v2222, %v2214
    %v2943 = vpack.c.b16 %v2223, %v2215
    %v2944 = vpack.c.b16 %v2232, %v2224
    %v2945 = vpack.c.b16 %v2233, %v2225
    %v2946 = vpack.c.b16 %v2234, %v2226
    %v2947 = vpack.c.b16 %v2235, %v2227
    %v2948 = vpack.c.b16 %v2236, %v2228
    %v2949 = vpack.c.b16 %v2237, %v2229
    %v2950 = vpack.c.b16 %v2238, %v2230
    %v2951 = vpack.c.b16 %v2239, %v2231
    %v2952 = vpack.c.b16 %v2248, %v2240
    %v2953 = vpack.c.b16 %v2249, %v2241
    %v2954 = vpack.c.b16 %v2250, %v2242
    %v2955 = vpack.c.b16 %v2251, %v2243
    %v2956 = vpack.c.b16 %v2252, %v2244
    %v2957 = vpack.c.b16 %v2253, %v2245
    %v2958 = vpack.c.b16 %v2254, %v2246
    %v2959 = vpack.c.b16 %v2255, %v2247
    %v2960 = vpack.c.b16 %v2264, %v2256
    %v2961 = vpack.c.b16 %v2265, %v2257
    %v2962 = vpack.c.b16 %v2266, %v2258
    %v2963 = vpack.c.b16 %v2267, %v2259
    %v2964 = vpack.c.b16 %v2268, %v2260
    %v2965 = vpack.c.b16 %v2269, %v2261
    %v2966 = vpack.c.b16 %v2270, %v2262
    %v2967 = vpack.c.b16 %v2271, %v2263
    %v2968 = vpack.c.b16 %v2280, %v2272
    %v2969 = vpack.c.b16 %v2281, %v2273
    %v2970 = vpack.c.b16 %v2282, %v2274
    %v2971 = vpack.c.b16 %v2283, %v2275
    %v2972 = vpack.c.b16 %v2284, %v2276
    %v2973 = vpack.c.b16 %v2285, %v2277
    %v2974 = vpack.c.b16 %v2286, %v2278
    %v2975 = vpack.c.b16 %v2287, %v2279
    %v2976 = vpack.c.b16 %v2296, %v2288
    %v2977 = vpack.c.b16 %v2297, %v2289
    %v2978 = vpack.c.b16 %v2298, %v2290
    %v2979 = vpack.c.b16 %v2299, %v2291
    %v2980 = vpack.c.b16 %v2300, %v2292
    %v2981 = vpack.c.b16 %v2301, %v2293
    %v2982 = vpack.c.b16 %v2302, %v2294
    %v2983 = vpack.c.b16 %v2303, %v2295
    %v2984 = vpack.c.b16 %v2312, %v2304
    %v2985 = vpack.c.b16 %v2313, %v2305
    %v2986 = vpack.c.b16 %v2314, %v2306
    %v2987 = vpack.c.b16 %v2315, %v2307
    %v2988 = vpack.c.b16 %v2316, %v2308
    %v2989 = vpack.c.b16 %v2317, %v2309
    %v2990 = vpack.c.b16 %v2318, %v2310
    %v2991 = vpack.c.b16 %v2319, %v2311
    %v2992 = vpack.c.b16 %v2328, %v2320
    %v2993 = vpack.c.b16 %v2329, %v2321
    %v2994 = vpack.c.b16 %v2330, %v2322
    %v2995 = vpack.c.b16 %v2331, %v2323
    %v2996 = vpack.c.b16 %v2332, %v2324
    %v2997 = vpack.c.b16 %v2333, %v2325
    %v2998 = vpack.c.b16 %v2334, %v2326
    %v2999 = vpack.c.b16 %v2335, %v2327
    %v3000 = vpack.c.b16 %v2344, %v2336
    %v3001 = vpack.c.b16 %v2345, %v2337
    %v3002 = vpack.c.b16 %v2346, %v2338
    %v3003 = vpack.c.b16 %v2347, %v2339
    %v3004 = vpack.c.b16 %v2348, %v2340
    %v3005 = vpack.c.b16 %v2349, %v2341
    %v3006 = vpack.c.b16 %v2350, %v2342
    %v3007 = vpack.c.b16 %v2351, %v2343
    %v3008 = vpack.c.b16 %v2360, %v2352
    %v3009 = vpack.c.b16 %v2361, %v2353
    %v3010 = vpack.c.b16 %v2362, %v2354
    %v3011 = vpack.c.b16 %v2363, %v2355
    %v3012 = vpack.c.b16 %v2364, %v2356
    %v3013 = vpack.c.b16 %v2365, %v2357
    %v3014 = vpack.c.b16 %v2366, %v2358
    %v3015 = vpack.c.b16 %v2367, %v2359
    %v3016 = vpack.c.b16 %v2376, %v2368
    %v3017 = vpack.c.b16 %v2377, %v2369
    %v3018 = vpack.c.b16 %v2378, %v2370
    %v3019 = vpack.c.b16 %v2379, %v2371
    %v3020 = vpack.c.b16 %v2380, %v2372
    %v3021 = vpack.c.b16 %v2381, %v2373
    %v3022 = vpack.c.b16 %v2382, %v2374
    %v3023 = vpack.c.b16 %v2383, %v2375
    %v3024 = vpack.c.b16 %v2392, %v2384
    %v3025 = vpack.c.b16 %v2393, %v2385
    %v3026 = vpack.c.b16 %v2394, %v2386
    %v3027 = vpack.c.b16 %v2395, %v2387
    %v3028 = vpack.c.b16 %v2396, %v2388
    %v3029 = vpack.c.b16 %v2397, %v2389
    %v3030 = vpack.c.b16 %v2398, %v2390
    %v3031 = vpack.c.b16 %v2399, %v2391
    %v3032 = vpack.c.b16 %v2408, %v2400
    %v3033 = vpack.c.b16 %v2409, %v2401
    %v3034 = vpack.c.b16 %v2410, %v2402
    %v3035 = vpack.c.b16 %v2411, %v2403
    %v3036 = vpack.c.b16 %v2412, %v2404
    %v3037 = vpack.c.b16 %v2413, %v2405
    %v3038 = vpack.c.b16 %v2414, %v2406
    %v3039 = vpack.c.b16 %v2415, %v2407
    %v3040 = vpack.c.b16 %v2424, %v2416
    %v3041 = vpack.c.b16 %v2425, %v2417
    %v3042 = vpack.c.b16 %v2426, %v2418
    %v3043 = vpack.c.b16 %v2427, %v2419
    %v3044 = vpack.c.b16 %v2428, %v2420
    %v3045 = vpack.c.b16 %v2429, %v2421
    %v3046 = vpack.c.b16 %v2430, %v2422
    %v3047 = vpack.c.b16 %v2431, %v2423
    %v3048 = vpack.c.b16 %v2440, %v2432
    %v3049 = vpack.c.b16 %v2441, %v2433
    %v3050 = vpack.c.b16 %v2442, %v2434
    %v3051 = vpack.c.b16 %v2443, %v2435
    %v3052 = vpack.c.b16 %v2444, %v2436
    %v3053 = vpack.c.b16 %v2445, %v2437
    %v3054 = vpack.c.b16 %v2446, %v2438
    %v3055 = vpack.c.b16 %v2447, %v2439
    %v3056 = vpack.c.b16 %v2456, %v2448
    %v3057 = vpack.c.b16 %v2457, %v2449
    %v3058 = vpack.c.b16 %v2458, %v2450
    %v3059 = vpack.c.b16 %v2459, %v2451
    %v3060 = vpack.c.b16 %v2460, %v2452
    %v3061 = vpack.c.b16 %v2461, %v2453
    %v3062 = vpack.c.b16 %v2462, %v2454
    %v3063 = vpack.c.b16 %v2463, %v2455
    %v3064 = vpack.c.b16 %v2472, %v2464
    %v3065 = vpack.c.b16 %v2473, %v2465
    %v3066 = vpack.c.b16 %v2474, %v2466
    %v3067 = vpack.c.b16 %v2475, %v2467
    %v3068 = vpack.c.b16 %v2476, %v2468
    %v3069 = vpack.c.b16 %v2477, %v2469
    %v3070 = vpack.c.b16 %v2478, %v2470
    %v3071 = vpack.c.b16 %v2479, %v2471
    %v3072 = vpack.c.b16 %v2488, %v2480
    %v3073 = vpack.c.b16 %v2489, %v2481
    %v3074 = vpack.c.b16 %v2490, %v2482
    %v3075 = vpack.c.b16 %v2491, %v2483
    %v3076 = vpack.c.b16 %v2492, %v2484
    %v3077 = vpack.c.b16 %v2493, %v2485
    %v3078 = vpack.c.b16 %v2494, %v2486
    %v3079 = vpack.c.b16 %v2495, %v2487
    %v3080 = vpack.c.b16 %v2504, %v2496
    %v3081 = vpack.c.b16 %v2505, %v2497
    %v3082 = vpack.c.b16 %v2506, %v2498
    %v3083 = vpack.c.b16 %v2507, %v2499
    %v3084 = vpack.c.b16 %v2508, %v2500
    %v3085 = vpack.c.b16 %v2509, %v2501
    %v3086 = vpack.c.b16 %v2510, %v2502
    %v3087 = vpack.c.b16 %v2511, %v2503
    %v3088 = vpack.c.b16 %v2520, %v2512
    %v3089 = vpack.c.b16 %v2521, %v2513
    %v3090 = vpack.c.b16 %v2522, %v2514
    %v3091 = vpack.c.b16 %v2523, %v2515
    %v3092 = vpack.c.b16 %v2524, %v2516
    %v3093 = vpack.c.b16 %v2525, %v2517
    %v3094 = vpack.c.b16 %v2526, %v2518
    %v3095 = vpack.c.b16 %v2527, %v2519
    %v3096 = vpack.c.b16 %v2536, %v2528
    %v3097 = vpack.c.b16 %v2537, %v2529
    %v3098 = vpack.c.b16 %v2538, %v2530
    %v3099 = vpack.c.b16 %v2539, %v2531
    %v3100 = vpack.c.b16 %v2540, %v2532
    %v3101 = vpack.c.b16 %v2541, %v2533
    %v3102 = vpack.c.b16 %v2542, %v2534
    %v3103 = vpack.c.b16 %v2543, %v2535
    %v3104 = vpack.c.b16 %v2552, %v2544
    %v3105 = vpack.c.b16 %v2553, %v2545
    %v3106 = vpack.c.b16 %v2554, %v2546
    %v3107 = vpack.c.b16 %v2555, %v2547
    %v3108 = vpack.c.b16 %v2556, %v2548
    %v3109 = vpack.c.b16 %v2557, %v2549
    %v3110 = vpack.c.b16 %v2558, %v2550
    %v3111 = vpack.c.b16 %v2559, %v2551
    %v3112 = vpack.c.b16 %v2568, %v2560
    %v3113 = vpack.c.b16 %v2569, %v2561
    %v3114 = vpack.c.b16 %v2570, %v2562
    %v3115 = vpack.c.b16 %v2571, %v2563
    %v3116 = vpack.c.b16 %v2572, %v2564
    %v3117 = vpack.c.b16 %v2573, %v2565
    %v3118 = vpack.c.b16 %v2574, %v2566
    %v3119 = vpack.c.b16 %v2575, %v2567
    %v3120 = vpack.c.b16 %v2584, %v2576
    %v3121 = vpack.c.b16 %v2585, %v2577
    %v3122 = vpack.c.b16 %v2586, %v2578
    %v3123 = vpack.c.b16 %v2587, %v2579
    %v3124 = vpack.c.b16 %v2588, %v2580
    %v3125 = vpack.c.b16 %v2589, %v2581
    %v3126 = vpack.c.b16 %v2590, %v2582
    %v3127 = vpack.c.b16 %v2591, %v2583
    %v3128 = vpack.c.b16 %v2600, %v2592
    %v3129 = vpack.c.b16 %v2601, %v2593
    %v3130 = vpack.c.b16 %v2602, %v2594
    %v3131 = vpack.c.b16 %v2603, %v2595
    %v3132 = vpack.c.b16 %v2604, %v2596
    %v3133 = vpack.c.b16 %v2605, %v2597
    %v3134 = vpack.c.b16 %v2606, %v2598
    %v3135 = vpack.c.b16 %v2607, %v2599
    %v3136 = vpack.c.b16 %v2616, %v2608
    %v3137 = vpack.c.b16 %v2617, %v2609
    %v3138 = vpack.c.b16 %v2618, %v2610
    %v3139 = vpack.c.b16 %v2619, %v2611
    %v3140 = vpack.c.b16 %v2620, %v2612
    %v3141 = vpack.c.b16 %v2621, %v2613
    %v3142 = vpack.c.b16 %v2622, %v2614
    %v3143 = vpack.c.b16 %v2623, %v2615
    %v3144 = vpack.c.b16 %v2632, %v2624
    %v3145 = vpack.c.b16 %v2633, %v2625
    %v3146 = vpack.c.b16 %v2634, %v2626
    %v3147 = vpack.c.b16 %v2635, %v2627
    %v3148 = vpack.c.b16 %v2636, %v2628
    %v3149 = vpack.c.b16 %v2637, %v2629
    %v3150 = vpack.c.b16 %v2638, %v2630
    %v3151 = vpack.c.b16 %v2639, %v2631
    %3664 = vmatprep.subr.bf16.mxu0 %v2641
    %3665 = vmatpush1.bf16.msra.mxu0 %v2640
    %3666 = vmatprep.subr.bf16.mxu0 %v2649
    %3667 = vmatpush1.bf16.msra.mxu0 %v2648
    %3668 = vmatprep.subr.bf16.mxu0 %v2657
    %3669 = vmatpush1.bf16.msra.mxu0 %v2656
    %3670 = vmatprep.subr.bf16.mxu0 %v2665
    %3671 = vmatpush1.bf16.msra.mxu0 %v2664
    %3672 = vmatprep.subr.bf16.mxu0 %v2673
    %3673 = vmatpush1.bf16.msra.mxu0 %v2672
    %3674 = vmatprep.subr.bf16.mxu0 %v2681
    %3675 = vmatpush1.bf16.msra.mxu0 %v2680
    %3676 = vmatprep.subr.bf16.mxu0 %v2689
    %3677 = vmatpush1.bf16.msra.mxu0 %v2688
    %3678 = vmatprep.subr.bf16.mxu0 %v2697
    %3679 = vmatpush1.bf16.msra.mxu0 %v2696
    %3680 = vmatprep.subr.bf16.mxu0 %v2705
    %3681 = vmatpush1.bf16.msra.mxu0 %v2704
    %3682 = vmatprep.subr.bf16.mxu0 %v2713
    %3683 = vmatpush1.bf16.msra.mxu0 %v2712
    %3684 = vmatprep.subr.bf16.mxu0 %v2721
    %3685 = vmatpush1.bf16.msra.mxu0 %v2720
    %3686 = vmatprep.subr.bf16.mxu0 %v2729
    %3687 = vmatpush1.bf16.msra.mxu0 %v2728
    %3688 = vmatprep.subr.bf16.mxu0 %v2737
    %3689 = vmatpush1.bf16.msra.mxu0 %v2736
    %3690 = vmatprep.subr.bf16.mxu0 %v2745
    %3691 = vmatpush1.bf16.msra.mxu0 %v2744
    %3692 = vmatprep.subr.bf16.mxu0 %v2753
    %3693 = vmatpush1.bf16.msra.mxu0 %v2752
    %3694 = vmatprep.subr.bf16.mxu0 %v2761
    %3695 = vmatpush1.bf16.msra.mxu0 %v2760
    %3696 = vmatprep.mubr.bf16.mxu0 %v448
    %3697 = vmatmul.mubr.bf16.gmra.mrb[0].mxu0 %v447
    %v3698 = vpop.f32.mrb[0].mxu0
    %v3699 = vadd.f32 0.0, %v3698
    %v3700 = vpop.f32.mrb[0].mxu0
    %v3701 = vadd.f32 0.0, %v3700
    %v3702 = vpop.f32.mrb[0].mxu0
    %v3703 = vpop.f32.mrb[0].mxu0
    %3704 = vdwg.mxu0
    %3705 = vmatprep.subr.bf16.mxu0 %v2769
    %3706 = vmatpush1.bf16.msra.mxu0 %v2768
    %3707 = vmatprep.subr.bf16.mxu0 %v2777
    %3708 = vmatpush1.bf16.msra.mxu0 %v2776
    %3709 = vmatprep.subr.bf16.mxu0 %v2785
    %3710 = vmatpush1.bf16.msra.mxu0 %v2784
    %3711 = vmatprep.subr.bf16.mxu0 %v2793
    %3712 = vmatpush1.bf16.msra.mxu0 %v2792
    %3713 = vmatprep.subr.bf16.mxu0 %v2801
    %3714 = vmatpush1.bf16.msra.mxu0 %v2800
    %3715 = vmatprep.subr.bf16.mxu0 %v2809
    %3716 = vmatpush1.bf16.msra.mxu0 %v2808
    %3717 = vmatprep.subr.bf16.mxu0 %v2817
    %3718 = vmatpush1.bf16.msra.mxu0 %v2816
    %3719 = vmatprep.subr.bf16.mxu0 %v2825
    %3720 = vmatpush1.bf16.msra.mxu0 %v2824
    %3721 = vmatprep.subr.bf16.mxu0 %v2833
    %3722 = vmatpush1.bf16.msra.mxu0 %v2832
    %3723 = vmatprep.subr.bf16.mxu0 %v2841
    %3724 = vmatpush1.bf16.msra.mxu0 %v2840
    %3725 = vmatprep.subr.bf16.mxu0 %v2849
    %3726 = vmatpush1.bf16.msra.mxu0 %v2848
    %3727 = vmatprep.subr.bf16.mxu0 %v2857
    %3728 = vmatpush1.bf16.msra.mxu0 %v2856
    %3729 = vmatprep.subr.bf16.mxu0 %v2865
    %3730 = vmatpush1.bf16.msra.mxu0 %v2864
    %3731 = vmatprep.subr.bf16.mxu0 %v2873
    %3732 = vmatpush1.bf16.msra.mxu0 %v2872
    %3733 = vmatprep.subr.bf16.mxu0 %v2881
    %3734 = vmatpush1.bf16.msra.mxu0 %v2880
    %3735 = vmatprep.subr.bf16.mxu0 %v2889
    %3736 = vmatpush1.bf16.msra.mxu0 %v2888
    %3737 = vmatprep.mubr.bf16.mxu0 %v450
    %3738 = vmatmul.mubr.bf16.gmra.mrb[0].mxu0 %v449
    %v3739 = vpop.f32.mrb[0].mxu0
    %v3740 = vadd.f32 %v3699, %v3739
    %v3741 = vpop.f32.mrb[0].mxu0
    %v3742 = vadd.f32 %v3701, %v3741
    %v3743 = vpop.f32.mrb[0].mxu0
    %v3744 = vpop.f32.mrb[0].mxu0
    %3745 = vdwg.mxu0
    %3746 = vmatprep.subr.bf16.mxu0 %v2897
    %3747 = vmatpush1.bf16.msra.mxu0 %v2896
    %3748 = vmatprep.subr.bf16.mxu0 %v2905
    %3749 = vmatpush1.bf16.msra.mxu0 %v2904
    %3750 = vmatprep.subr.bf16.mxu0 %v2913
    %3751 = vmatpush1.bf16.msra.mxu0 %v2912
    %3752 = vmatprep.subr.bf16.mxu0 %v2921
    %3753 = vmatpush1.bf16.msra.mxu0 %v2920
    %3754 = vmatprep.subr.bf16.mxu0 %v2929
    %3755 = vmatpush1.bf16.msra.mxu0 %v2928
    %3756 = vmatprep.subr.bf16.mxu0 %v2937
    %3757 = vmatpush1.bf16.msra.mxu0 %v2936
    %3758 = vmatprep.subr.bf16.mxu0 %v2945
    %3759 = vmatpush1.bf16.msra.mxu0 %v2944
    %3760 = vmatprep.subr.bf16.mxu0 %v2953
    %3761 = vmatpush1.bf16.msra.mxu0 %v2952
    %3762 = vmatprep.subr.bf16.mxu0 %v2961
    %3763 = vmatpush1.bf16.msra.mxu0 %v2960
    %3764 = vmatprep.subr.bf16.mxu0 %v2969
    %3765 = vmatpush1.bf16.msra.mxu0 %v2968
    %3766 = vmatprep.subr.bf16.mxu0 %v2977
    %3767 = vmatpush1.bf16.msra.mxu0 %v2976
    %3768 = vmatprep.subr.bf16.mxu0 %v2985
    %3769 = vmatpush1.bf16.msra.mxu0 %v2984
    %3770 = vmatprep.subr.bf16.mxu0 %v2993
    %3771 = vmatpush1.bf16.msra.mxu0 %v2992
    %3772 = vmatprep.subr.bf16.mxu0 %v3001
    %3773 = vmatpush1.bf16.msra.mxu0 %v3000
    %3774 = vmatprep.subr.bf16.mxu0 %v3009
    %3775 = vmatpush1.bf16.msra.mxu0 %v3008
    %3776 = vmatprep.subr.bf16.mxu0 %v3017
    %3777 = vmatpush1.bf16.msra.mxu0 %v3016
    %3778 = vmatprep.mubr.bf16.mxu0 %v452
    %3779 = vmatmul.mubr.bf16.gmra.mrb[0].mxu0 %v451
    %v3780 = vpop.f32.mrb[0].mxu0
    %v3781 = vadd.f32 %v3740, %v3780
    %v3782 = vpop.f32.mrb[0].mxu0
    %v3783 = vadd.f32 %v3742, %v3782
    %v3784 = vpop.f32.mrb[0].mxu0
    %v3785 = vpop.f32.mrb[0].mxu0
    %3786 = vdwg.mxu0
    %3787 = vmatprep.subr.bf16.mxu0 %v3025
    %3788 = vmatpush1.bf16.msra.mxu0 %v3024
    %3789 = vmatprep.subr.bf16.mxu0 %v3033
    %3790 = vmatpush1.bf16.msra.mxu0 %v3032
    %3791 = vmatprep.subr.bf16.mxu0 %v3041
    %3792 = vmatpush1.bf16.msra.mxu0 %v3040
    %3793 = vmatprep.subr.bf16.mxu0 %v3049
    %3794 = vmatpush1.bf16.msra.mxu0 %v3048
    %3795 = vmatprep.subr.bf16.mxu0 %v3057
    %3796 = vmatpush1.bf16.msra.mxu0 %v3056
    %3797 = vmatprep.subr.bf16.mxu0 %v3065
    %3798 = vmatpush1.bf16.msra.mxu0 %v3064
    %3799 = vmatprep.subr.bf16.mxu0 %v3073
    %3800 = vmatpush1.bf16.msra.mxu0 %v3072
    %3801 = vmatprep.subr.bf16.mxu0 %v3081
    %3802 = vmatpush1.bf16.msra.mxu0 %v3080
    %3803 = vmatprep.subr.bf16.mxu0 %v3089
    %3804 = vmatpush1.bf16.msra.mxu0 %v3088
    %3805 = vmatprep.subr.bf16.mxu0 %v3097
    %3806 = vmatpush1.bf16.msra.mxu0 %v3096
    %3807 = vmatprep.subr.bf16.mxu0 %v3105
    %3808 = vmatpush1.bf16.msra.mxu0 %v3104
    %3809 = vmatprep.subr.bf16.mxu0 %v3113
    %3810 = vmatpush1.bf16.msra.mxu0 %v3112
    %3811 = vmatprep.subr.bf16.mxu0 %v3121
    %3812 = vmatpush1.bf16.msra.mxu0 %v3120
    %3813 = vmatprep.subr.bf16.mxu0 %v3129
    %3814 = vmatpush1.bf16.msra.mxu0 %v3128
    %3815 = vmatprep.subr.bf16.mxu0 %v3137
    %3816 = vmatpush1.bf16.msra.mxu0 %v3136
    %3817 = vmatprep.subr.bf16.mxu0 %v3145
    %3818 = vmatpush1.bf16.msra.mxu0 %v3144
    %3819 = vmatprep.mubr.bf16.mxu0 %v454
    %3820 = vmatmul.mubr.bf16.gmra.mrb[0].mxu0 %v453
    %v3821 = vpop.f32.mrb[0].mxu0
    %v3822 = vadd.f32 %v3781, %v3821
    %v3823 = vpop.f32.mrb[0].mxu0
    %v3824 = vadd.f32 %v3783, %v3823
    %v3825 = vpop.f32.mrb[0].mxu0
    %v3826 = vpop.f32.mrb[0].mxu0
    %3827 = vdwg.mxu0
    %3828 = vmatprep.subr.bf16.mxu0 %v2643
    %3829 = vmatpush1.bf16.msra.mxu0 %v2642
    %3830 = vmatprep.subr.bf16.mxu0 %v2651
    %3831 = vmatpush1.bf16.msra.mxu0 %v2650
    %3832 = vmatprep.subr.bf16.mxu0 %v2659
    %3833 = vmatpush1.bf16.msra.mxu0 %v2658
    %3834 = vmatprep.subr.bf16.mxu0 %v2667
    %3835 = vmatpush1.bf16.msra.mxu0 %v2666
    %3836 = vmatprep.subr.bf16.mxu0 %v2675
    %3837 = vmatpush1.bf16.msra.mxu0 %v2674
    %3838 = vmatprep.subr.bf16.mxu0 %v2683
    %3839 = vmatpush1.bf16.msra.mxu0 %v2682
    %3840 = vmatprep.subr.bf16.mxu0 %v2691
    %3841 = vmatpush1.bf16.msra.mxu0 %v2690
    %3842 = vmatprep.subr.bf16.mxu0 %v2699
    %3843 = vmatpush1.bf16.msra.mxu0 %v2698
    %3844 = vmatprep.subr.bf16.mxu0 %v2707
    %3845 = vmatpush1.bf16.msra.mxu0 %v2706
    %3846 = vmatprep.subr.bf16.mxu0 %v2715
    %3847 = vmatpush1.bf16.msra.mxu0 %v2714
    %3848 = vmatprep.subr.bf16.mxu0 %v2723
    %3849 = vmatpush1.bf16.msra.mxu0 %v2722
    %3850 = vmatprep.subr.bf16.mxu0 %v2731
    %3851 = vmatpush1.bf16.msra.mxu0 %v2730
    %3852 = vmatprep.subr.bf16.mxu0 %v2739
    %3853 = vmatpush1.bf16.msra.mxu0 %v2738
    %3854 = vmatprep.subr.bf16.mxu0 %v2747
    %3855 = vmatpush1.bf16.msra.mxu0 %v2746
    %3856 = vmatprep.subr.bf16.mxu0 %v2755
    %3857 = vmatpush1.bf16.msra.mxu0 %v2754
    %3858 = vmatprep.subr.bf16.mxu0 %v2763
    %3859 = vmatpush1.bf16.msra.mxu0 %v2762
    %3860 = vmatprep.mubr.bf16.mxu0 %v448
    %3861 = vmatmul.mubr.bf16.gmra.mrb[0].mxu0 %v447
    %v3862 = vpop.f32.mrb[0].mxu0
    %v3863 = vadd.f32 0.0, %v3862
    %v3864 = vpop.f32.mrb[0].mxu0
    %v3865 = vadd.f32 0.0, %v3864
    %v3866 = vpop.f32.mrb[0].mxu0
    %v3867 = vpop.f32.mrb[0].mxu0
    %3868 = vdwg.mxu0
    %3869 = vmatprep.subr.bf16.mxu0 %v2771
    %3870 = vmatpush1.bf16.msra.mxu0 %v2770
    %3871 = vmatprep.subr.bf16.mxu0 %v2779
    %3872 = vmatpush1.bf16.msra.mxu0 %v2778
    %3873 = vmatprep.subr.bf16.mxu0 %v2787
    %3874 = vmatpush1.bf16.msra.mxu0 %v2786
    %3875 = vmatprep.subr.bf16.mxu0 %v2795
    %3876 = vmatpush1.bf16.msra.mxu0 %v2794
    %3877 = vmatprep.subr.bf16.mxu0 %v2803
    %3878 = vmatpush1.bf16.msra.mxu0 %v2802
    %3879 = vmatprep.subr.bf16.mxu0 %v2811
    %3880 = vmatpush1.bf16.msra.mxu0 %v2810
    %3881 = vmatprep.subr.bf16.mxu0 %v2819
    %3882 = vmatpush1.bf16.msra.mxu0 %v2818
    %3883 = vmatprep.subr.bf16.mxu0 %v2827
    %3884 = vmatpush1.bf16.msra.mxu0 %v2826
    %3885 = vmatprep.subr.bf16.mxu0 %v2835
    %3886 = vmatpush1.bf16.msra.mxu0 %v2834
    %3887 = vmatprep.subr.bf16.mxu0 %v2843
    %3888 = vmatpush1.bf16.msra.mxu0 %v2842
    %3889 = vmatprep.subr.bf16.mxu0 %v2851
    %3890 = vmatpush1.bf16.msra.mxu0 %v2850
    %3891 = vmatprep.subr.bf16.mxu0 %v2859
    %3892 = vmatpush1.bf16.msra.mxu0 %v2858
    %3893 = vmatprep.subr.bf16.mxu0 %v2867
    %3894 = vmatpush1.bf16.msra.mxu0 %v2866
    %3895 = vmatprep.subr.bf16.mxu0 %v2875
    %3896 = vmatpush1.bf16.msra.mxu0 %v2874
    %3897 = vmatprep.subr.bf16.mxu0 %v2883
    %3898 = vmatpush1.bf16.msra.mxu0 %v2882
    %3899 = vmatprep.subr.bf16.mxu0 %v2891
    %3900 = vmatpush1.bf16.msra.mxu0 %v2890
    %3901 = vmatprep.mubr.bf16.mxu0 %v450
    %3902 = vmatmul.mubr.bf16.gmra.mrb[0].mxu0 %v449
    %v3903 = vpop.f32.mrb[0].mxu0
    %v3904 = vadd.f32 %v3863, %v3903
    %v3905 = vpop.f32.mrb[0].mxu0
    %v3906 = vadd.f32 %v3865, %v3905
    %v3907 = vpop.f32.mrb[0].mxu0
    %v3908 = vpop.f32.mrb[0].mxu0
    %3909 = vdwg.mxu0
    %3910 = vmatprep.subr.bf16.mxu0 %v2899
    %3911 = vmatpush1.bf16.msra.mxu0 %v2898
    %3912 = vmatprep.subr.bf16.mxu0 %v2907
    %3913 = vmatpush1.bf16.msra.mxu0 %v2906
    %3914 = vmatprep.subr.bf16.mxu0 %v2915
    %3915 = vmatpush1.bf16.msra.mxu0 %v2914
    %3916 = vmatprep.subr.bf16.mxu0 %v2923
    %3917 = vmatpush1.bf16.msra.mxu0 %v2922
    %3918 = vmatprep.subr.bf16.mxu0 %v2931
    %3919 = vmatpush1.bf16.msra.mxu0 %v2930
    %3920 = vmatprep.subr.bf16.mxu0 %v2939
    %3921 = vmatpush1.bf16.msra.mxu0 %v2938
    %3922 = vmatprep.subr.bf16.mxu0 %v2947
    %3923 = vmatpush1.bf16.msra.mxu0 %v2946
    %3924 = vmatprep.subr.bf16.mxu0 %v2955
    %3925 = vmatpush1.bf16.msra.mxu0 %v2954
    %3926 = vmatprep.subr.bf16.mxu0 %v2963
    %3927 = vmatpush1.bf16.msra.mxu0 %v2962
    %3928 = vmatprep.subr.bf16.mxu0 %v2971
    %3929 = vmatpush1.bf16.msra.mxu0 %v2970
    %3930 = vmatprep.subr.bf16.mxu0 %v2979
    %3931 = vmatpush1.bf16.msra.mxu0 %v2978
    %3932 = vmatprep.subr.bf16.mxu0 %v2987
    %3933 = vmatpush1.bf16.msra.mxu0 %v2986
    %3934 = vmatprep.subr.bf16.mxu0 %v2995
    %3935 = vmatpush1.bf16.msra.mxu0 %v2994
    %3936 = vmatprep.subr.bf16.mxu0 %v3003
    %3937 = vmatpush1.bf16.msra.mxu0 %v3002
    %3938 = vmatprep.subr.bf16.mxu0 %v3011
    %3939 = vmatpush1.bf16.msra.mxu0 %v3010
    %3940 = vmatprep.subr.bf16.mxu0 %v3019
    %3941 = vmatpush1.bf16.msra.mxu0 %v3018
    %3942 = vmatprep.mubr.bf16.mxu0 %v452
    %3943 = vmatmul.mubr.bf16.gmra.mrb[0].mxu0 %v451
    %v3944 = vpop.f32.mrb[0].mxu0
    %v3945 = vadd.f32 %v3904, %v3944
    %v3946 = vpop.f32.mrb[0].mxu0
    %v3947 = vadd.f32 %v3906, %v3946
    %v3948 = vpop.f32.mrb[0].mxu0
    %v3949 = vpop.f32.mrb[0].mxu0
    %3950 = vdwg.mxu0
    %3951 = vmatprep.subr.bf16.mxu0 %v3027
    %3952 = vmatpush1.bf16.msra.mxu0 %v3026
    %3953 = vmatprep.subr.bf16.mxu0 %v3035
    %3954 = vmatpush1.bf16.msra.mxu0 %v3034
    %3955 = vmatprep.subr.bf16.mxu0 %v3043
    %3956 = vmatpush1.bf16.msra.mxu0 %v3042
    %3957 = vmatprep.subr.bf16.mxu0 %v3051
    %3958 = vmatpush1.bf16.msra.mxu0 %v3050
    %3959 = vmatprep.subr.bf16.mxu0 %v3059
    %3960 = vmatpush1.bf16.msra.mxu0 %v3058
    %3961 = vmatprep.subr.bf16.mxu0 %v3067
    %3962 = vmatpush1.bf16.msra.mxu0 %v3066
    %3963 = vmatprep.subr.bf16.mxu0 %v3075
    %3964 = vmatpush1.bf16.msra.mxu0 %v3074
    %3965 = vmatprep.subr.bf16.mxu0 %v3083
    %3966 = vmatpush1.bf16.msra.mxu0 %v3082
    %3967 = vmatprep.subr.bf16.mxu0 %v3091
    %3968 = vmatpush1.bf16.msra.mxu0 %v3090
    %3969 = vmatprep.subr.bf16.mxu0 %v3099
    %3970 = vmatpush1.bf16.msra.mxu0 %v3098
    %3971 = vmatprep.subr.bf16.mxu0 %v3107
    %3972 = vmatpush1.bf16.msra.mxu0 %v3106
    %3973 = vmatprep.subr.bf16.mxu0 %v3115
    %3974 = vmatpush1.bf16.msra.mxu0 %v3114
    %3975 = vmatprep.subr.bf16.mxu0 %v3123
    %3976 = vmatpush1.bf16.msra.mxu0 %v3122
    %3977 = vmatprep.subr.bf16.mxu0 %v3131
    %3978 = vmatpush1.bf16.msra.mxu0 %v3130
    %3979 = vmatprep.subr.bf16.mxu0 %v3139
    %3980 = vmatpush1.bf16.msra.mxu0 %v3138
    %3981 = vmatprep.subr.bf16.mxu0 %v3147
    %3982 = vmatpush1.bf16.msra.mxu0 %v3146
    %3983 = vmatprep.mubr.bf16.mxu0 %v454
    %3984 = vmatmul.mubr.bf16.gmra.mrb[0].mxu0 %v453
    %v3985 = vpop.f32.mrb[0].mxu0
    %v3986 = vadd.f32 %v3945, %v3985
    %v3987 = vpop.f32.mrb[0].mxu0
    %v3988 = vadd.f32 %v3947, %v3987
    %v3989 = vpop.f32.mrb[0].mxu0
    %v3990 = vpop.f32.mrb[0].mxu0
    %3991 = vdwg.mxu0
    %3992 = vmatprep.subr.bf16.mxu0 %v2645
    %3993 = vmatpush1.bf16.msra.mxu0 %v2644
    %3994 = vmatprep.subr.bf16.mxu0 %v2653
    %3995 = vmatpush1.bf16.msra.mxu0 %v2652
    %3996 = vmatprep.subr.bf16.mxu0 %v2661
    %3997 = vmatpush1.bf16.msra.mxu0 %v2660
    %3998 = vmatprep.subr.bf16.mxu0 %v2669
    %3999 = vmatpush1.bf16.msra.mxu0 %v2668
    %4000 = vmatprep.subr.bf16.mxu0 %v2677
    %4001 = vmatpush1.bf16.msra.mxu0 %v2676
    %4002 = vmatprep.subr.bf16.mxu0 %v2685
    %4003 = vmatpush1.bf16.msra.mxu0 %v2684
    %4004 = vmatprep.subr.bf16.mxu0 %v2693
    %4005 = vmatpush1.bf16.msra.mxu0 %v2692
    %4006 = vmatprep.subr.bf16.mxu0 %v2701
    %4007 = vmatpush1.bf16.msra.mxu0 %v2700
    %4008 = vmatprep.subr.bf16.mxu0 %v2709
    %4009 = vmatpush1.bf16.msra.mxu0 %v2708
    %4010 = vmatprep.subr.bf16.mxu0 %v2717
    %4011 = vmatpush1.bf16.msra.mxu0 %v2716
    %4012 = vmatprep.subr.bf16.mxu0 %v2725
    %4013 = vmatpush1.bf16.msra.mxu0 %v2724
    %4014 = vmatprep.subr.bf16.mxu0 %v2733
    %4015 = vmatpush1.bf16.msra.mxu0 %v2732
    %4016 = vmatprep.subr.bf16.mxu0 %v2741
    %4017 = vmatpush1.bf16.msra.mxu0 %v2740
    %4018 = vmatprep.subr.bf16.mxu0 %v2749
    %4019 = vmatpush1.bf16.msra.mxu0 %v2748
    %4020 = vmatprep.subr.bf16.mxu0 %v2757
    %4021 = vmatpush1.bf16.msra.mxu0 %v2756
    %4022 = vmatprep.subr.bf16.mxu0 %v2765
    %4023 = vmatpush1.bf16.msra.mxu0 %v2764
    %4024 = vmatprep.mubr.bf16.mxu0 %v448
    %4025 = vmatmul.mubr.bf16.gmra.mrb[0].mxu0 %v447
    %v4026 = vpop.f32.mrb[0].mxu0
    %v4027 = vadd.f32 0.0, %v4026
    %v4028 = vpop.f32.mrb[0].mxu0
    %v4029 = vadd.f32 0.0, %v4028
    %v4030 = vpop.f32.mrb[0].mxu0
    %v4031 = vpop.f32.mrb[0].mxu0
    %4032 = vdwg.mxu0
    %4033 = vmatprep.subr.bf16.mxu0 %v2773
    %4034 = vmatpush1.bf16.msra.mxu0 %v2772
    %4035 = vmatprep.subr.bf16.mxu0 %v2781
    %4036 = vmatpush1.bf16.msra.mxu0 %v2780
    %4037 = vmatprep.subr.bf16.mxu0 %v2789
    %4038 = vmatpush1.bf16.msra.mxu0 %v2788
    %4039 = vmatprep.subr.bf16.mxu0 %v2797
    %4040 = vmatpush1.bf16.msra.mxu0 %v2796
    %4041 = vmatprep.subr.bf16.mxu0 %v2805
    %4042 = vmatpush1.bf16.msra.mxu0 %v2804
    %4043 = vmatprep.subr.bf16.mxu0 %v2813
    %4044 = vmatpush1.bf16.msra.mxu0 %v2812
    %4045 = vmatprep.subr.bf16.mxu0 %v2821
    %4046 = vmatpush1.bf16.msra.mxu0 %v2820
    %4047 = vmatprep.subr.bf16.mxu0 %v2829
    %4048 = vmatpush1.bf16.msra.mxu0 %v2828
    %4049 = vmatprep.subr.bf16.mxu0 %v2837
    %4050 = vmatpush1.bf16.msra.mxu0 %v2836
    %4051 = vmatprep.subr.bf16.mxu0 %v2845
    %4052 = vmatpush1.bf16.msra.mxu0 %v2844
    %4053 = vmatprep.subr.bf16.mxu0 %v2853
    %4054 = vmatpush1.bf16.msra.mxu0 %v2852
    %4055 = vmatprep.subr.bf16.mxu0 %v2861
    %4056 = vmatpush1.bf16.msra.mxu0 %v2860
    %4057 = vmatprep.subr.bf16.mxu0 %v2869
    %4058 = vmatpush1.bf16.msra.mxu0 %v2868
    %4059 = vmatprep.subr.bf16.mxu0 %v2877
    %4060 = vmatpush1.bf16.msra.mxu0 %v2876
    %4061 = vmatprep.subr.bf16.mxu0 %v2885
    %4062 = vmatpush1.bf16.msra.mxu0 %v2884
    %4063 = vmatprep.subr.bf16.mxu0 %v2893
    %4064 = vmatpush1.bf16.msra.mxu0 %v2892
    %4065 = vmatprep.mubr.bf16.mxu0 %v450
    %4066 = vmatmul.mubr.bf16.gmra.mrb[0].mxu0 %v449
    %v4067 = vpop.f32.mrb[0].mxu0
    %v4068 = vadd.f32 %v4027, %v4067
    %v4069 = vpop.f32.mrb[0].mxu0
    %v4070 = vadd.f32 %v4029, %v4069
    %v4071 = vpop.f32.mrb[0].mxu0
    %v4072 = vpop.f32.mrb[0].mxu0
    %4073 = vdwg.mxu0
    %4074 = vmatprep.subr.bf16.mxu0 %v2901
    %4075 = vmatpush1.bf16.msra.mxu0 %v2900
    %4076 = vmatprep.subr.bf16.mxu0 %v2909
    %4077 = vmatpush1.bf16.msra.mxu0 %v2908
    %4078 = vmatprep.subr.bf16.mxu0 %v2917
    %4079 = vmatpush1.bf16.msra.mxu0 %v2916
    %4080 = vmatprep.subr.bf16.mxu0 %v2925
    %4081 = vmatpush1.bf16.msra.mxu0 %v2924
    %4082 = vmatprep.subr.bf16.mxu0 %v2933
    %4083 = vmatpush1.bf16.msra.mxu0 %v2932
    %4084 = vmatprep.subr.bf16.mxu0 %v2941
    %4085 = vmatpush1.bf16.msra.mxu0 %v2940
    %4086 = vmatprep.subr.bf16.mxu0 %v2949
    %4087 = vmatpush1.bf16.msra.mxu0 %v2948
    %4088 = vmatprep.subr.bf16.mxu0 %v2957
    %4089 = vmatpush1.bf16.msra.mxu0 %v2956
    %4090 = vmatprep.subr.bf16.mxu0 %v2965
    %4091 = vmatpush1.bf16.msra.mxu0 %v2964
    %4092 = vmatprep.subr.bf16.mxu0 %v2973
    %4093 = vmatpush1.bf16.msra.mxu0 %v2972
    %4094 = vmatprep.subr.bf16.mxu0 %v2981
    %4095 = vmatpush1.bf16.msra.mxu0 %v2980
    %4096 = vmatprep.subr.bf16.mxu0 %v2989
    %4097 = vmatpush1.bf16.msra.mxu0 %v2988
    %4098 = vmatprep.subr.bf16.mxu0 %v2997
    %4099 = vmatpush1.bf16.msra.mxu0 %v2996
    %4100 = vmatprep.subr.bf16.mxu0 %v3005
    %4101 = vmatpush1.bf16.msra.mxu0 %v3004
    %4102 = vmatprep.subr.bf16.mxu0 %v3013
    %4103 = vmatpush1.bf16.msra.mxu0 %v3012
    %4104 = vmatprep.subr.bf16.mxu0 %v3021
    %4105 = vmatpush1.bf16.msra.mxu0 %v3020
    %4106 = vmatprep.mubr.bf16.mxu0 %v452
    %4107 = vmatmul.mubr.bf16.gmra.mrb[0].mxu0 %v451
    %v4108 = vpop.f32.mrb[0].mxu0
    %v4109 = vadd.f32 %v4068, %v4108
    %v4110 = vpop.f32.mrb[0].mxu0
    %v4111 = vadd.f32 %v4070, %v4110
    %v4112 = vpop.f32.mrb[0].mxu0
    %v4113 = vpop.f32.mrb[0].mxu0
    %4114 = vdwg.mxu0
    %4115 = vmatprep.subr.bf16.mxu0 %v3029
    %4116 = vmatpush1.bf16.msra.mxu0 %v3028
    %4117 = vmatprep.subr.bf16.mxu0 %v3037
    %4118 = vmatpush1.bf16.msra.mxu0 %v3036
    %4119 = vmatprep.subr.bf16.mxu0 %v3045
    %4120 = vmatpush1.bf16.msra.mxu0 %v3044
    %4121 = vmatprep.subr.bf16.mxu0 %v3053
    %4122 = vmatpush1.bf16.msra.mxu0 %v3052
    %4123 = vmatprep.subr.bf16.mxu0 %v3061
    %4124 = vmatpush1.bf16.msra.mxu0 %v3060
    %4125 = vmatprep.subr.bf16.mxu0 %v3069
    %4126 = vmatpush1.bf16.msra.mxu0 %v3068
    %4127 = vmatprep.subr.bf16.mxu0 %v3077
    %4128 = vmatpush1.bf16.msra.mxu0 %v3076
    %4129 = vmatprep.subr.bf16.mxu0 %v3085
    %4130 = vmatpush1.bf16.msra.mxu0 %v3084
    %4131 = vmatprep.subr.bf16.mxu0 %v3093
    %4132 = vmatpush1.bf16.msra.mxu0 %v3092
    %4133 = vmatprep.subr.bf16.mxu0 %v3101
    %4134 = vmatpush1.bf16.msra.mxu0 %v3100
    %4135 = vmatprep.subr.bf16.mxu0 %v3109
    %4136 = vmatpush1.bf16.msra.mxu0 %v3108
    %4137 = vmatprep.subr.bf16.mxu0 %v3117
    %4138 = vmatpush1.bf16.msra.mxu0 %v3116
    %4139 = vmatprep.subr.bf16.mxu0 %v3125
    %4140 = vmatpush1.bf16.msra.mxu0 %v3124
    %4141 = vmatprep.subr.bf16.mxu0 %v3133
    %4142 = vmatpush1.bf16.msra.mxu0 %v3132
    %4143 = vmatprep.subr.bf16.mxu0 %v3141
    %4144 = vmatpush1.bf16.msra.mxu0 %v3140
    %4145 = vmatprep.subr.bf16.mxu0 %v3149
    %4146 = vmatpush1.bf16.msra.mxu0 %v3148
    %4147 = vmatprep.mubr.bf16.mxu0 %v454
    %4148 = vmatmul.mubr.bf16.gmra.mrb[0].mxu0 %v453
    %v4149 = vpop.f32.mrb[0].mxu0
    %v4150 = vadd.f32 %v4109, %v4149
    %v4151 = vpop.f32.mrb[0].mxu0
    %v4152 = vadd.f32 %v4111, %v4151
    %v4153 = vpop.f32.mrb[0].mxu0
    %v4154 = vpop.f32.mrb[0].mxu0
    %4155 = vdwg.mxu0
    %4156 = vmatprep.subr.bf16.mxu0 %v2647
    %4157 = vmatpush1.bf16.msra.mxu0 %v2646
    %4158 = vmatprep.subr.bf16.mxu0 %v2655
    %4159 = vmatpush1.bf16.msra.mxu0 %v2654
    %4160 = vmatprep.subr.bf16.mxu0 %v2663
    %4161 = vmatpush1.bf16.msra.mxu0 %v2662
    %4162 = vmatprep.subr.bf16.mxu0 %v2671
    %4163 = vmatpush1.bf16.msra.mxu0 %v2670
    %4164 = vmatprep.subr.bf16.mxu0 %v2679
    %4165 = vmatpush1.bf16.msra.mxu0 %v2678
    %4166 = vmatprep.subr.bf16.mxu0 %v2687
    %4167 = vmatpush1.bf16.msra.mxu0 %v2686
    %4168 = vmatprep.subr.bf16.mxu0 %v2695
    %4169 = vmatpush1.bf16.msra.mxu0 %v2694
    %4170 = vmatprep.subr.bf16.mxu0 %v2703
    %4171 = vmatpush1.bf16.msra.mxu0 %v2702
    %4172 = vmatprep.subr.bf16.mxu0 %v2711
    %4173 = vmatpush1.bf16.msra.mxu0 %v2710
    %4174 = vmatprep.subr.bf16.mxu0 %v2719
    %4175 = vmatpush1.bf16.msra.mxu0 %v2718
    %4176 = vmatprep.subr.bf16.mxu0 %v2727
    %4177 = vmatpush1.bf16.msra.mxu0 %v2726
    %4178 = vmatprep.subr.bf16.mxu0 %v2735
    %4179 = vmatpush1.bf16.msra.mxu0 %v2734
    %4180 = vmatprep.subr.bf16.mxu0 %v2743
    %4181 = vmatpush1.bf16.msra.mxu0 %v2742
    %4182 = vmatprep.subr.bf16.mxu0 %v2751
    %4183 = vmatpush1.bf16.msra.mxu0 %v2750
    %4184 = vmatprep.subr.bf16.mxu0 %v2759
    %4185 = vmatpush1.bf16.msra.mxu0 %v2758
    %4186 = vmatprep.subr.bf16.mxu0 %v2767
    %4187 = vmatpush1.bf16.msra.mxu0 %v2766
    %4188 = vmatprep.mubr.bf16.mxu0 %v448
    %4189 = vmatmul.mubr.bf16.gmra.mrb[0].mxu0 %v447
    %v4190 = vpop.f32.mrb[0].mxu0
    %v4191 = vadd.f32 0.0, %v4190
    %v4192 = vpop.f32.mrb[0].mxu0
    %v4193 = vadd.f32 0.0, %v4192
    %v4194 = vpop.f32.mrb[0].mxu0
    %v4195 = vpop.f32.mrb[0].mxu0
    %4196 = vdwg.mxu0
    %4197 = vmatprep.subr.bf16.mxu0 %v2775
    %4198 = vmatpush1.bf16.msra.mxu0 %v2774
    %4199 = vmatprep.subr.bf16.mxu0 %v2783
    %4200 = vmatpush1.bf16.msra.mxu0 %v2782
    %4201 = vmatprep.subr.bf16.mxu0 %v2791
    %4202 = vmatpush1.bf16.msra.mxu0 %v2790
    %4203 = vmatprep.subr.bf16.mxu0 %v2799
    %4204 = vmatpush1.bf16.msra.mxu0 %v2798
    %4205 = vmatprep.subr.bf16.mxu0 %v2807
    %4206 = vmatpush1.bf16.msra.mxu0 %v2806
    %4207 = vmatprep.subr.bf16.mxu0 %v2815
    %4208 = vmatpush1.bf16.msra.mxu0 %v2814
    %4209 = vmatprep.subr.bf16.mxu0 %v2823
    %4210 = vmatpush1.bf16.msra.mxu0 %v2822
    %4211 = vmatprep.subr.bf16.mxu0 %v2831
    %4212 = vmatpush1.bf16.msra.mxu0 %v2830
    %4213 = vmatprep.subr.bf16.mxu0 %v2839
    %4214 = vmatpush1.bf16.msra.mxu0 %v2838
    %4215 = vmatprep.subr.bf16.mxu0 %v2847
    %4216 = vmatpush1.bf16.msra.mxu0 %v2846
    %4217 = vmatprep.subr.bf16.mxu0 %v2855
    %4218 = vmatpush1.bf16.msra.mxu0 %v2854
    %4219 = vmatprep.subr.bf16.mxu0 %v2863
    %4220 = vmatpush1.bf16.msra.mxu0 %v2862
    %4221 = vmatprep.subr.bf16.mxu0 %v2871
    %4222 = vmatpush1.bf16.msra.mxu0 %v2870
    %4223 = vmatprep.subr.bf16.mxu0 %v2879
    %4224 = vmatpush1.bf16.msra.mxu0 %v2878
    %4225 = vmatprep.subr.bf16.mxu0 %v2887
    %4226 = vmatpush1.bf16.msra.mxu0 %v2886
    %4227 = vmatprep.subr.bf16.mxu0 %v2895
    %4228 = vmatpush1.bf16.msra.mxu0 %v2894
    %4229 = vmatprep.mubr.bf16.mxu0 %v450
    %4230 = vmatmul.mubr.bf16.gmra.mrb[0].mxu0 %v449
    %v4231 = vpop.f32.mrb[0].mxu0
    %v4232 = vadd.f32 %v4191, %v4231
    %v4233 = vpop.f32.mrb[0].mxu0
    %v4234 = vadd.f32 %v4193, %v4233
    %v4235 = vpop.f32.mrb[0].mxu0
    %v4236 = vpop.f32.mrb[0].mxu0
    %4237 = vdwg.mxu0
    %4238 = vmatprep.subr.bf16.mxu0 %v2903
    %4239 = vmatpush1.bf16.msra.mxu0 %v2902
    %4240 = vmatprep.subr.bf16.mxu0 %v2911
    %4241 = vmatpush1.bf16.msra.mxu0 %v2910
    %4242 = vmatprep.subr.bf16.mxu0 %v2919
    %4243 = vmatpush1.bf16.msra.mxu0 %v2918
    %4244 = vmatprep.subr.bf16.mxu0 %v2927
    %4245 = vmatpush1.bf16.msra.mxu0 %v2926
    %4246 = vmatprep.subr.bf16.mxu0 %v2935
    %4247 = vmatpush1.bf16.msra.mxu0 %v2934
    %4248 = vmatprep.subr.bf16.mxu0 %v2943
    %4249 = vmatpush1.bf16.msra.mxu0 %v2942
    %4250 = vmatprep.subr.bf16.mxu0 %v2951
    %4251 = vmatpush1.bf16.msra.mxu0 %v2950
    %4252 = vmatprep.subr.bf16.mxu0 %v2959
    %4253 = vmatpush1.bf16.msra.mxu0 %v2958
    %4254 = vmatprep.subr.bf16.mxu0 %v2967
    %4255 = vmatpush1.bf16.msra.mxu0 %v2966
    %4256 = vmatprep.subr.bf16.mxu0 %v2975
    %4257 = vmatpush1.bf16.msra.mxu0 %v2974
    %4258 = vmatprep.subr.bf16.mxu0 %v2983
    %4259 = vmatpush1.bf16.msra.mxu0 %v2982
    %4260 = vmatprep.subr.bf16.mxu0 %v2991
    %4261 = vmatpush1.bf16.msra.mxu0 %v2990
    %4262 = vmatprep.subr.bf16.mxu0 %v2999
    %4263 = vmatpush1.bf16.msra.mxu0 %v2998
    %4264 = vmatprep.subr.bf16.mxu0 %v3007
    %4265 = vmatpush1.bf16.msra.mxu0 %v3006
    %4266 = vmatprep.subr.bf16.mxu0 %v3015
    %4267 = vmatpush1.bf16.msra.mxu0 %v3014
    %4268 = vmatprep.subr.bf16.mxu0 %v3023
    %4269 = vmatpush1.bf16.msra.mxu0 %v3022
    %4270 = vmatprep.mubr.bf16.mxu0 %v452
    %4271 = vmatmul.mubr.bf16.gmra.mrb[0].mxu0 %v451
    %v4272 = vpop.f32.mrb[0].mxu0
    %v4273 = vadd.f32 %v4232, %v4272
    %v4274 = vpop.f32.mrb[0].mxu0
    %v4275 = vadd.f32 %v4234, %v4274
    %v4276 = vpop.f32.mrb[0].mxu0
    %v4277 = vpop.f32.mrb[0].mxu0
    %4278 = vdwg.mxu0
    %4279 = vmatprep.subr.bf16.mxu0 %v3031
    %4280 = vmatpush1.bf16.msra.mxu0 %v3030
    %4281 = vmatprep.subr.bf16.mxu0 %v3039
    %4282 = vmatpush1.bf16.msra.mxu0 %v3038
    %4283 = vmatprep.subr.bf16.mxu0 %v3047
    %4284 = vmatpush1.bf16.msra.mxu0 %v3046
    %4285 = vmatprep.subr.bf16.mxu0 %v3055
    %4286 = vmatpush1.bf16.msra.mxu0 %v3054
    %4287 = vmatprep.subr.bf16.mxu0 %v3063
    %4288 = vmatpush1.bf16.msra.mxu0 %v3062
    %4289 = vmatprep.subr.bf16.mxu0 %v3071
    %4290 = vmatpush1.bf16.msra.mxu0 %v3070
    %4291 = vmatprep.subr.bf16.mxu0 %v3079
    %4292 = vmatpush1.bf16.msra.mxu0 %v3078
    %4293 = vmatprep.subr.bf16.mxu0 %v3087
    %4294 = vmatpush1.bf16.msra.mxu0 %v3086
    %4295 = vmatprep.subr.bf16.mxu0 %v3095
    %4296 = vmatpush1.bf16.msra.mxu0 %v3094
    %4297 = vmatprep.subr.bf16.mxu0 %v3103
    %4298 = vmatpush1.bf16.msra.mxu0 %v3102
    %4299 = vmatprep.subr.bf16.mxu0 %v3111
    %4300 = vmatpush1.bf16.msra.mxu0 %v3110
    %4301 = vmatprep.subr.bf16.mxu0 %v3119
    %4302 = vmatpush1.bf16.msra.mxu0 %v3118
    %4303 = vmatprep.subr.bf16.mxu0 %v3127
    %4304 = vmatpush1.bf16.msra.mxu0 %v3126
    %4305 = vmatprep.subr.bf16.mxu0 %v3135
    %4306 = vmatpush1.bf16.msra.mxu0 %v3134
    %4307 = vmatprep.subr.bf16.mxu0 %v3143
    %4308 = vmatpush1.bf16.msra.mxu0 %v3142
    %4309 = vmatprep.subr.bf16.mxu0 %v3151
    %4310 = vmatpush1.bf16.msra.mxu0 %v3150
    %4311 = vmatprep.mubr.bf16.mxu0 %v454
    %4312 = vmatmul.mubr.bf16.gmra.mrb[0].mxu0 %v453
    %v4313 = vpop.f32.mrb[0].mxu0
    %v4314 = vadd.f32 %v4273, %v4313
    %v4315 = vpop.f32.mrb[0].mxu0
    %v4316 = vadd.f32 %v4275, %v4315
    %v4317 = vpop.f32.mrb[0].mxu0
    %v4318 = vpop.f32.mrb[0].mxu0
    %4319 = vdwg.mxu0
    %vm4320 = vcmask 1041408
    %v4321 = vsel %vm4320, %v3822, 0.0
    %v4322 = vrot.slane %v4321, 4
    %v4323 = vadd.f32 %v4321, %v4322
    %v4324 = vrot.slane %v4323, 2
    %v4325 = vadd.f32 %v4323, %v4324
    %v4326 = vrot.slane %v4325, 1
    %v4327 = vadd.f32 %v4325, %v4326
    %v4328 = vsel %vm4320, %v3824, 0.0
    %v4329 = vrot.slane %v4328, 4
    %v4330 = vadd.f32 %v4328, %v4329
    %v4331 = vrot.slane %v4330, 2
    %v4332 = vadd.f32 %v4330, %v4331
    %v4333 = vrot.slane %v4332, 1
    %v4334 = vadd.f32 %v4332, %v4333
    %v4335 = vsel %vm4320, %v3986, 0.0
    %v4336 = vrot.slane %v4335, 4
    %v4337 = vadd.f32 %v4335, %v4336
    %v4338 = vrot.slane %v4337, 2
    %v4339 = vadd.f32 %v4337, %v4338
    %v4340 = vrot.slane %v4339, 1
    %v4341 = vadd.f32 %v4339, %v4340
    %v4342 = vsel %vm4320, %v3988, 0.0
    %v4343 = vrot.slane %v4342, 4
    %v4344 = vadd.f32 %v4342, %v4343
    %v4345 = vrot.slane %v4344, 2
    %v4346 = vadd.f32 %v4344, %v4345
    %v4347 = vrot.slane %v4346, 1
    %v4348 = vadd.f32 %v4346, %v4347
    %v4349 = vsel %vm4320, %v4150, 0.0
    %v4350 = vrot.slane %v4349, 4
    %v4351 = vadd.f32 %v4349, %v4350
    %v4352 = vrot.slane %v4351, 2
    %v4353 = vadd.f32 %v4351, %v4352
    %v4354 = vrot.slane %v4353, 1
    %v4355 = vadd.f32 %v4353, %v4354
    %v4356 = vsel %vm4320, %v4152, 0.0
    %v4357 = vrot.slane %v4356, 4
    %v4358 = vadd.f32 %v4356, %v4357
    %v4359 = vrot.slane %v4358, 2
    %v4360 = vadd.f32 %v4358, %v4359
    %v4361 = vrot.slane %v4360, 1
    %v4362 = vadd.f32 %v4360, %v4361
    %v4363 = vsel %vm4320, %v4314, 0.0
    %v4364 = vrot.slane %v4363, 4
    %v4365 = vadd.f32 %v4363, %v4364
    %v4366 = vrot.slane %v4365, 2
    %v4367 = vadd.f32 %v4365, %v4366
    %v4368 = vrot.slane %v4367, 1
    %v4369 = vadd.f32 %v4367, %v4368
    %v4370 = vsel %vm4320, %v4316, 0.0
    %v4371 = vrot.slane %v4370, 4
    %v4372 = vadd.f32 %v4370, %v4371
    %v4373 = vrot.slane %v4372, 2
    %v4374 = vadd.f32 %v4372, %v4373
    %v4375 = vrot.slane %v4374, 1
    %v4376 = vadd.f32 %v4374, %v4375
    %v4377 = vmul.f32 %v3822, %v3822
    %v4378 = vmul.f32 %v3824, %v3824
    %v4379 = vmul.f32 %v3986, %v3986
    %v4380 = vmul.f32 %v3988, %v3988
    %v4381 = vmul.f32 %v4150, %v4150
    %v4382 = vmul.f32 %v4152, %v4152
    %v4383 = vmul.f32 %v4314, %v4314
    %v4384 = vmul.f32 %v4316, %v4316
    %v4385 = vsel %vm4320, %v4377, 0.0
    %v4386 = vrot.slane %v4385, 4
    %v4387 = vadd.f32 %v4385, %v4386
    %v4388 = vrot.slane %v4387, 2
    %v4389 = vadd.f32 %v4387, %v4388
    %v4390 = vrot.slane %v4389, 1
    %v4391 = vadd.f32 %v4389, %v4390
    %v4392 = vsel %vm4320, %v4378, 0.0
    %v4393 = vrot.slane %v4392, 4
    %v4394 = vadd.f32 %v4392, %v4393
    %v4395 = vrot.slane %v4394, 2
    %v4396 = vadd.f32 %v4394, %v4395
    %v4397 = vrot.slane %v4396, 1
    %v4398 = vadd.f32 %v4396, %v4397
    %v4399 = vsel %vm4320, %v4379, 0.0
    %v4400 = vrot.slane %v4399, 4
    %v4401 = vadd.f32 %v4399, %v4400
    %v4402 = vrot.slane %v4401, 2
    %v4403 = vadd.f32 %v4401, %v4402
    %v4404 = vrot.slane %v4403, 1
    %v4405 = vadd.f32 %v4403, %v4404
    %v4406 = vsel %vm4320, %v4380, 0.0
    %v4407 = vrot.slane %v4406, 4
    %v4408 = vadd.f32 %v4406, %v4407
    %v4409 = vrot.slane %v4408, 2
    %v4410 = vadd.f32 %v4408, %v4409
    %v4411 = vrot.slane %v4410, 1
    %v4412 = vadd.f32 %v4410, %v4411
    %v4413 = vsel %vm4320, %v4381, 0.0
    %v4414 = vrot.slane %v4413, 4
    %v4415 = vadd.f32 %v4413, %v4414
    %v4416 = vrot.slane %v4415, 2
    %v4417 = vadd.f32 %v4415, %v4416
    %v4418 = vrot.slane %v4417, 1
    %v4419 = vadd.f32 %v4417, %v4418
    %v4420 = vsel %vm4320, %v4382, 0.0
    %v4421 = vrot.slane %v4420, 4
    %v4422 = vadd.f32 %v4420, %v4421
    %v4423 = vrot.slane %v4422, 2
    %v4424 = vadd.f32 %v4422, %v4423
    %v4425 = vrot.slane %v4424, 1
    %v4426 = vadd.f32 %v4424, %v4425
    %v4427 = vsel %vm4320, %v4383, 0.0
    %v4428 = vrot.slane %v4427, 4
    %v4429 = vadd.f32 %v4427, %v4428
    %v4430 = vrot.slane %v4429, 2
    %v4431 = vadd.f32 %v4429, %v4430
    %v4432 = vrot.slane %v4431, 1
    %v4433 = vadd.f32 %v4431, %v4432
    %v4434 = vsel %vm4320, %v4384, 0.0
    %v4435 = vrot.slane %v4434, 4
    %v4436 = vadd.f32 %v4434, %v4435
    %v4437 = vrot.slane %v4436, 2
    %v4438 = vadd.f32 %v4436, %v4437
    %v4439 = vrot.slane %v4438, 1
    %v4440 = vadd.f32 %v4438, %v4439
    %vm4441 = vcmask 1040384
    %v4442 = vsel %vm4441, %v4327, %v4391
    %v4443 = vsel %vm4441, %v4334, %v4398
    %v4444 = vsel %vm4441, %v4341, %v4405
    %v4445 = vsel %vm4441, %v4348, %v4412
    %v4446 = vsel %vm4441, %v4355, %v4419
    %v4447 = vsel %vm4441, %v4362, %v4426
    %v4448 = vsel %vm4441, %v4369, %v4433
    %v4449 = vsel %vm4441, %v4376, %v4440
    %v4450 = vpack.c.bf16 %v4442, %v4442
    %v4451 = vpack.c.bf16 %v4443, %v4443
    %v4452 = vpack.c.bf16 %v4444, %v4444
    %v4453 = vpack.c.bf16 %v4445, %v4445
    %v4454 = vpack.c.bf16 %v4446, %v4446
    %v4455 = vpack.c.bf16 %v4447, %v4447
    %v4456 = vpack.c.bf16 %v4448, %v4448
    %v4457 = vpack.c.bf16 %v4449, %v4449
    %v4586 = vunpack.c.l.b16 %v967
    %v4587 = vunpack.c.l.b16 %v968
    %v4588 = vunpack.c.l.b16 %v969
    %v4589 = vunpack.c.l.b16 %v970
    %v4590 = vunpack.c.l.b16 %v971
    %v4591 = vunpack.c.l.b16 %v972
    %v4592 = vunpack.c.l.b16 %v973
    %v4593 = vunpack.c.l.b16 %v974
    %v4594 = vunpack.c.l.b16 %v975
    %v4595 = vunpack.c.l.b16 %v976
    %v4596 = vunpack.c.l.b16 %v977
    %v4597 = vunpack.c.l.b16 %v978
    %v4598 = vunpack.c.l.b16 %v979
    %v4599 = vunpack.c.l.b16 %v980
    %v4600 = vunpack.c.l.b16 %v981
    %v4601 = vunpack.c.l.b16 %v982
    %v4602 = vunpack.c.l.b16 %v983
    %v4603 = vunpack.c.l.b16 %v984
    %v4604 = vunpack.c.l.b16 %v985
    %v4605 = vunpack.c.l.b16 %v986
    %v4606 = vunpack.c.l.b16 %v987
    %v4607 = vunpack.c.l.b16 %v988
    %v4608 = vunpack.c.l.b16 %v989
    %v4609 = vunpack.c.l.b16 %v990
    %v4610 = vunpack.c.l.b16 %v991
    %v4611 = vunpack.c.l.b16 %v992
    %v4612 = vunpack.c.l.b16 %v993
    %v4613 = vunpack.c.l.b16 %v994
    %v4614 = vunpack.c.l.b16 %v995
    %v4615 = vunpack.c.l.b16 %v996
    %v4616 = vunpack.c.l.b16 %v997
    %v4617 = vunpack.c.l.b16 %v998
    %v4618 = vunpack.c.l.b16 %v999
    %v4619 = vunpack.c.l.b16 %v1000
    %v4620 = vunpack.c.l.b16 %v1001
    %v4621 = vunpack.c.l.b16 %v1002
    %v4622 = vunpack.c.l.b16 %v1003
    %v4623 = vunpack.c.l.b16 %v1004
    %v4624 = vunpack.c.l.b16 %v1005
    %v4625 = vunpack.c.l.b16 %v1006
    %v4626 = vunpack.c.l.b16 %v1007
    %v4627 = vunpack.c.l.b16 %v1008
    %v4628 = vunpack.c.l.b16 %v1009
    %v4629 = vunpack.c.l.b16 %v1010
    %v4630 = vunpack.c.l.b16 %v1011
    %v4631 = vunpack.c.l.b16 %v1012
    %v4632 = vunpack.c.l.b16 %v1013
    %v4633 = vunpack.c.l.b16 %v1014
    %v4634 = vunpack.c.l.b16 %v1015
    %v4635 = vunpack.c.l.b16 %v1016
    %v4636 = vunpack.c.l.b16 %v1017
    %v4637 = vunpack.c.l.b16 %v1018
    %v4638 = vunpack.c.l.b16 %v1019
    %v4639 = vunpack.c.l.b16 %v1020
    %v4640 = vunpack.c.l.b16 %v1021
    %v4641 = vunpack.c.l.b16 %v1022
    %v4642 = vunpack.c.l.b16 %v1023
    %v4643 = vunpack.c.l.b16 %v1024
    %v4644 = vunpack.c.l.b16 %v1025
    %v4645 = vunpack.c.l.b16 %v1026
    %v4646 = vunpack.c.l.b16 %v1027
    %v4647 = vunpack.c.l.b16 %v1028
    %v4648 = vunpack.c.l.b16 %v1029
    %v4649 = vunpack.c.l.b16 %v1030
    %v4650 = vunpack.c.l.b16 %v1031
    %v4651 = vunpack.c.l.b16 %v1032
    %v4652 = vunpack.c.l.b16 %v1033
    %v4653 = vunpack.c.l.b16 %v1034
    %v4654 = vunpack.c.l.b16 %v1035
    %v4655 = vunpack.c.l.b16 %v1036
    %v4656 = vunpack.c.l.b16 %v1037
    %v4657 = vunpack.c.l.b16 %v1038
    %v4658 = vunpack.c.l.b16 %v1039
    %v4659 = vunpack.c.l.b16 %v1040
    %v4660 = vunpack.c.l.b16 %v1041
    %v4661 = vunpack.c.l.b16 %v1042
    %v4662 = vunpack.c.l.b16 %v1043
    %v4663 = vunpack.c.l.b16 %v1044
    %v4664 = vunpack.c.l.b16 %v1045
    %v4665 = vunpack.c.l.b16 %v1046
    %v4666 = vunpack.c.l.b16 %v1047
    %v4667 = vunpack.c.l.b16 %v1048
    %v4668 = vunpack.c.l.b16 %v1049
    %v4669 = vunpack.c.l.b16 %v1050
    %v4670 = vunpack.c.l.b16 %v1051
    %v4671 = vunpack.c.l.b16 %v1052
    %v4672 = vunpack.c.l.b16 %v1053
    %v4673 = vunpack.c.l.b16 %v1054
    %v4674 = vunpack.c.l.b16 %v1055
    %v4675 = vunpack.c.l.b16 %v1056
    %v4676 = vunpack.c.l.b16 %v1057
    %v4677 = vunpack.c.l.b16 %v1058
    %v4678 = vunpack.c.l.b16 %v1059
    %v4679 = vunpack.c.l.b16 %v1060
    %v4680 = vunpack.c.l.b16 %v1061
    %v4681 = vunpack.c.l.b16 %v1062
    %v4682 = vunpack.c.l.b16 %v1063
    %v4683 = vunpack.c.l.b16 %v1064
    %v4684 = vunpack.c.l.b16 %v1065
    %v4685 = vunpack.c.l.b16 %v1066
    %v4686 = vunpack.c.l.b16 %v1067
    %v4687 = vunpack.c.l.b16 %v1068
    %v4688 = vunpack.c.l.b16 %v1069
    %v4689 = vunpack.c.l.b16 %v1070
    %v4690 = vunpack.c.l.b16 %v1071
    %v4691 = vunpack.c.l.b16 %v1072
    %v4692 = vunpack.c.l.b16 %v1073
    %v4693 = vunpack.c.l.b16 %v1074
    %v4694 = vunpack.c.l.b16 %v1075
    %v4695 = vunpack.c.l.b16 %v1076
    %v4696 = vunpack.c.l.b16 %v1077
    %v4697 = vunpack.c.l.b16 %v1078
    %v4698 = vunpack.c.l.b16 %v1079
    %v4699 = vunpack.c.l.b16 %v1080
    %v4700 = vunpack.c.l.b16 %v1081
    %v4701 = vunpack.c.l.b16 %v1082
    %v4702 = vunpack.c.l.b16 %v1083
    %v4703 = vunpack.c.l.b16 %v1084
    %v4704 = vunpack.c.l.b16 %v1085
    %v4705 = vunpack.c.l.b16 %v1086
    %v4706 = vunpack.c.l.b16 %v1087
    %v4707 = vunpack.c.l.b16 %v1088
    %v4708 = vunpack.c.l.b16 %v1089
    %v4709 = vunpack.c.l.b16 %v1090
    %v4710 = vunpack.c.l.b16 %v1091
    %v4711 = vunpack.c.l.b16 %v1092
    %v4712 = vunpack.c.l.b16 %v1093
    %v4713 = vunpack.c.l.b16 %v1094
    %v4714 = vpack.c.b16 %v4587, %v4586
    %v4715 = vpack.c.b16 %v4589, %v4588
    %v4716 = vpack.c.b16 %v4591, %v4590
    %v4717 = vpack.c.b16 %v4593, %v4592
    %v4718 = vpack.c.b16 %v4595, %v4594
    %v4719 = vpack.c.b16 %v4597, %v4596
    %v4720 = vpack.c.b16 %v4599, %v4598
    %v4721 = vpack.c.b16 %v4601, %v4600
    %v4722 = vpack.c.b16 %v4603, %v4602
    %v4723 = vpack.c.b16 %v4605, %v4604
    %v4724 = vpack.c.b16 %v4607, %v4606
    %v4725 = vpack.c.b16 %v4609, %v4608
    %v4726 = vpack.c.b16 %v4611, %v4610
    %v4727 = vpack.c.b16 %v4613, %v4612
    %v4728 = vpack.c.b16 %v4615, %v4614
    %v4729 = vpack.c.b16 %v4617, %v4616
    %v4730 = vpack.c.b16 %v4619, %v4618
    %v4731 = vpack.c.b16 %v4621, %v4620
    %v4732 = vpack.c.b16 %v4623, %v4622
    %v4733 = vpack.c.b16 %v4625, %v4624
    %v4734 = vpack.c.b16 %v4627, %v4626
    %v4735 = vpack.c.b16 %v4629, %v4628
    %v4736 = vpack.c.b16 %v4631, %v4630
    %v4737 = vpack.c.b16 %v4633, %v4632
    %v4738 = vpack.c.b16 %v4635, %v4634
    %v4739 = vpack.c.b16 %v4637, %v4636
    %v4740 = vpack.c.b16 %v4639, %v4638
    %v4741 = vpack.c.b16 %v4641, %v4640
    %v4742 = vpack.c.b16 %v4643, %v4642
    %v4743 = vpack.c.b16 %v4645, %v4644
    %v4744 = vpack.c.b16 %v4647, %v4646
    %v4745 = vpack.c.b16 %v4649, %v4648
    %v4746 = vpack.c.b16 %v4651, %v4650
    %v4747 = vpack.c.b16 %v4653, %v4652
    %v4748 = vpack.c.b16 %v4655, %v4654
    %v4749 = vpack.c.b16 %v4657, %v4656
    %v4750 = vpack.c.b16 %v4659, %v4658
    %v4751 = vpack.c.b16 %v4661, %v4660
    %v4752 = vpack.c.b16 %v4663, %v4662
    %v4753 = vpack.c.b16 %v4665, %v4664
    %v4754 = vpack.c.b16 %v4667, %v4666
    %v4755 = vpack.c.b16 %v4669, %v4668
    %v4756 = vpack.c.b16 %v4671, %v4670
    %v4757 = vpack.c.b16 %v4673, %v4672
    %v4758 = vpack.c.b16 %v4675, %v4674
    %v4759 = vpack.c.b16 %v4677, %v4676
    %v4760 = vpack.c.b16 %v4679, %v4678
    %v4761 = vpack.c.b16 %v4681, %v4680
    %v4762 = vpack.c.b16 %v4683, %v4682
    %v4763 = vpack.c.b16 %v4685, %v4684
    %v4764 = vpack.c.b16 %v4687, %v4686
    %v4765 = vpack.c.b16 %v4689, %v4688
    %v4766 = vpack.c.b16 %v4691, %v4690
    %v4767 = vpack.c.b16 %v4693, %v4692
    %v4768 = vpack.c.b16 %v4695, %v4694
    %v4769 = vpack.c.b16 %v4697, %v4696
    %v4770 = vpack.c.b16 %v4699, %v4698
    %v4771 = vpack.c.b16 %v4701, %v4700
    %v4772 = vpack.c.b16 %v4703, %v4702
    %v4773 = vpack.c.b16 %v4705, %v4704
    %v4774 = vpack.c.b16 %v4707, %v4706
    %v4775 = vpack.c.b16 %v4709, %v4708
    %v4776 = vpack.c.b16 %v4711, %v4710
    %v4777 = vpack.c.b16 %v4713, %v4712
    %4842 = vmatprep.subr.bf16.mxu0 0
    %4843 = vmatpush1.bf16.msra.mxu0 %v4714
    %4844 = vmatprep.subr.bf16.mxu0 0
    %4845 = vmatpush1.bf16.msra.mxu0 %v4715
    %4846 = vmatprep.subr.bf16.mxu0 0
    %4847 = vmatpush1.bf16.msra.mxu0 %v4716
    %4848 = vmatprep.subr.bf16.mxu0 0
    %4849 = vmatpush1.bf16.msra.mxu0 %v4717
    %4850 = vmatprep.subr.bf16.mxu0 0
    %4851 = vmatpush1.bf16.msra.mxu0 %v4718
    %4852 = vmatprep.subr.bf16.mxu0 0
    %4853 = vmatpush1.bf16.msra.mxu0 %v4719
    %4854 = vmatprep.subr.bf16.mxu0 0
    %4855 = vmatpush1.bf16.msra.mxu0 %v4720
    %4856 = vmatprep.subr.bf16.mxu0 0
    %4857 = vmatpush1.bf16.msra.mxu0 %v4721
    %4858 = vmatprep.subr.bf16.mxu0 0
    %4859 = vmatpush1.bf16.msra.mxu0 %v4722
    %4860 = vmatprep.subr.bf16.mxu0 0
    %4861 = vmatpush1.bf16.msra.mxu0 %v4723
    %4862 = vmatprep.subr.bf16.mxu0 0
    %4863 = vmatpush1.bf16.msra.mxu0 %v4724
    %4864 = vmatprep.subr.bf16.mxu0 0
    %4865 = vmatpush1.bf16.msra.mxu0 %v4725
    %4866 = vmatprep.subr.bf16.mxu0 0
    %4867 = vmatpush1.bf16.msra.mxu0 %v4726
    %4868 = vmatprep.subr.bf16.mxu0 0
    %4869 = vmatpush1.bf16.msra.mxu0 %v4727
    %4870 = vmatprep.subr.bf16.mxu0 0
    %4871 = vmatpush1.bf16.msra.mxu0 %v4728
    %4872 = vmatprep.subr.bf16.mxu0 0
    %4873 = vmatpush1.bf16.msra.mxu0 %v4729
    %4874 = vmatprep.mubr.bf16.mxu0 %v4451
    %4875 = vmatmul.mubr.bf16.gmra.mrb[0].mxu0 %v4450
    %v4876 = vpop.f32.mrb[0].mxu0
    %v4877 = vadd.f32 0.0, %v4876
    %v4878 = vpop.f32.mrb[0].mxu0
    %v4879 = vpop.f32.mrb[0].mxu0
    %v4880 = vpop.f32.mrb[0].mxu0
    %4881 = vdwg.mxu0
    %4882 = vmatprep.subr.bf16.mxu0 0
    %4883 = vmatpush1.bf16.msra.mxu0 %v4730
    %4884 = vmatprep.subr.bf16.mxu0 0
    %4885 = vmatpush1.bf16.msra.mxu0 %v4731
    %4886 = vmatprep.subr.bf16.mxu0 0
    %4887 = vmatpush1.bf16.msra.mxu0 %v4732
    %4888 = vmatprep.subr.bf16.mxu0 0
    %4889 = vmatpush1.bf16.msra.mxu0 %v4733
    %4890 = vmatprep.subr.bf16.mxu0 0
    %4891 = vmatpush1.bf16.msra.mxu0 %v4734
    %4892 = vmatprep.subr.bf16.mxu0 0
    %4893 = vmatpush1.bf16.msra.mxu0 %v4735
    %4894 = vmatprep.subr.bf16.mxu0 0
    %4895 = vmatpush1.bf16.msra.mxu0 %v4736
    %4896 = vmatprep.subr.bf16.mxu0 0
    %4897 = vmatpush1.bf16.msra.mxu0 %v4737
    %4898 = vmatprep.subr.bf16.mxu0 0
    %4899 = vmatpush1.bf16.msra.mxu0 %v4738
    %4900 = vmatprep.subr.bf16.mxu0 0
    %4901 = vmatpush1.bf16.msra.mxu0 %v4739
    %4902 = vmatprep.subr.bf16.mxu0 0
    %4903 = vmatpush1.bf16.msra.mxu0 %v4740
    %4904 = vmatprep.subr.bf16.mxu0 0
    %4905 = vmatpush1.bf16.msra.mxu0 %v4741
    %4906 = vmatprep.subr.bf16.mxu0 0
    %4907 = vmatpush1.bf16.msra.mxu0 %v4742
    %4908 = vmatprep.subr.bf16.mxu0 0
    %4909 = vmatpush1.bf16.msra.mxu0 %v4743
    %4910 = vmatprep.subr.bf16.mxu0 0
    %4911 = vmatpush1.bf16.msra.mxu0 %v4744
    %4912 = vmatprep.subr.bf16.mxu0 0
    %4913 = vmatpush1.bf16.msra.mxu0 %v4745
    %4914 = vmatprep.mubr.bf16.mxu0 %v4453
    %4915 = vmatmul.mubr.bf16.gmra.mrb[0].mxu0 %v4452
    %v4916 = vpop.f32.mrb[0].mxu0
    %v4917 = vadd.f32 %v4877, %v4916
    %v4918 = vpop.f32.mrb[0].mxu0
    %v4919 = vpop.f32.mrb[0].mxu0
    %v4920 = vpop.f32.mrb[0].mxu0
    %4921 = vdwg.mxu0
    %4922 = vmatprep.subr.bf16.mxu0 0
    %4923 = vmatpush1.bf16.msra.mxu0 %v4746
    %4924 = vmatprep.subr.bf16.mxu0 0
    %4925 = vmatpush1.bf16.msra.mxu0 %v4747
    %4926 = vmatprep.subr.bf16.mxu0 0
    %4927 = vmatpush1.bf16.msra.mxu0 %v4748
    %4928 = vmatprep.subr.bf16.mxu0 0
    %4929 = vmatpush1.bf16.msra.mxu0 %v4749
    %4930 = vmatprep.subr.bf16.mxu0 0
    %4931 = vmatpush1.bf16.msra.mxu0 %v4750
    %4932 = vmatprep.subr.bf16.mxu0 0
    %4933 = vmatpush1.bf16.msra.mxu0 %v4751
    %4934 = vmatprep.subr.bf16.mxu0 0
    %4935 = vmatpush1.bf16.msra.mxu0 %v4752
    %4936 = vmatprep.subr.bf16.mxu0 0
    %4937 = vmatpush1.bf16.msra.mxu0 %v4753
    %4938 = vmatprep.subr.bf16.mxu0 0
    %4939 = vmatpush1.bf16.msra.mxu0 %v4754
    %4940 = vmatprep.subr.bf16.mxu0 0
    %4941 = vmatpush1.bf16.msra.mxu0 %v4755
    %4942 = vmatprep.subr.bf16.mxu0 0
    %4943 = vmatpush1.bf16.msra.mxu0 %v4756
    %4944 = vmatprep.subr.bf16.mxu0 0
    %4945 = vmatpush1.bf16.msra.mxu0 %v4757
    %4946 = vmatprep.subr.bf16.mxu0 0
    %4947 = vmatpush1.bf16.msra.mxu0 %v4758
    %4948 = vmatprep.subr.bf16.mxu0 0
    %4949 = vmatpush1.bf16.msra.mxu0 %v4759
    %4950 = vmatprep.subr.bf16.mxu0 0
    %4951 = vmatpush1.bf16.msra.mxu0 %v4760
    %4952 = vmatprep.subr.bf16.mxu0 0
    %4953 = vmatpush1.bf16.msra.mxu0 %v4761
    %4954 = vmatprep.mubr.bf16.mxu0 %v4455
    %4955 = vmatmul.mubr.bf16.gmra.mrb[0].mxu0 %v4454
    %v4956 = vpop.f32.mrb[0].mxu0
    %v4957 = vadd.f32 %v4917, %v4956
    %v4958 = vpop.f32.mrb[0].mxu0
    %v4959 = vpop.f32.mrb[0].mxu0
    %v4960 = vpop.f32.mrb[0].mxu0
    %4961 = vdwg.mxu0
    %4962 = vmatprep.subr.bf16.mxu0 0
    %4963 = vmatpush1.bf16.msra.mxu0 %v4762
    %4964 = vmatprep.subr.bf16.mxu0 0
    %4965 = vmatpush1.bf16.msra.mxu0 %v4763
    %4966 = vmatprep.subr.bf16.mxu0 0
    %4967 = vmatpush1.bf16.msra.mxu0 %v4764
    %4968 = vmatprep.subr.bf16.mxu0 0
    %4969 = vmatpush1.bf16.msra.mxu0 %v4765
    %4970 = vmatprep.subr.bf16.mxu0 0
    %4971 = vmatpush1.bf16.msra.mxu0 %v4766
    %4972 = vmatprep.subr.bf16.mxu0 0
    %4973 = vmatpush1.bf16.msra.mxu0 %v4767
    %4974 = vmatprep.subr.bf16.mxu0 0
    %4975 = vmatpush1.bf16.msra.mxu0 %v4768
    %4976 = vmatprep.subr.bf16.mxu0 0
    %4977 = vmatpush1.bf16.msra.mxu0 %v4769
    %4978 = vmatprep.subr.bf16.mxu0 0
    %4979 = vmatpush1.bf16.msra.mxu0 %v4770
    %4980 = vmatprep.subr.bf16.mxu0 0
    %4981 = vmatpush1.bf16.msra.mxu0 %v4771
    %4982 = vmatprep.subr.bf16.mxu0 0
    %4983 = vmatpush1.bf16.msra.mxu0 %v4772
    %4984 = vmatprep.subr.bf16.mxu0 0
    %4985 = vmatpush1.bf16.msra.mxu0 %v4773
    %4986 = vmatprep.subr.bf16.mxu0 0
    %4987 = vmatpush1.bf16.msra.mxu0 %v4774
    %4988 = vmatprep.subr.bf16.mxu0 0
    %4989 = vmatpush1.bf16.msra.mxu0 %v4775
    %4990 = vmatprep.subr.bf16.mxu0 0
    %4991 = vmatpush1.bf16.msra.mxu0 %v4776
    %4992 = vmatprep.subr.bf16.mxu0 0
    %4993 = vmatpush1.bf16.msra.mxu0 %v4777
    %4994 = vmatprep.mubr.bf16.mxu0 %v4457
    %4995 = vmatmul.mubr.bf16.gmra.mrb[0].mxu0 %v4456
    %v4996 = vpop.f32.mrb[0].mxu0
    %v4997 = vadd.f32 %v4957, %v4996
    %v4998 = vpop.f32.mrb[0].mxu0
    %v4999 = vpop.f32.mrb[0].mxu0
    %v5000 = vpop.f32.mrb[0].mxu0
    %5001 = vdwg.mxu0
    %v5002 = vmul.f32 %v4997, 0.0078125
    %v5003 = vmul.f32 %v5002, %v5002
    %v5005 = vrot.slane %v5003, 7
    %v5007 = vsub.f32 %v5002, %v5005
    %v5008 = vmax.f32 %v5007, 0.0
    %v5009 = vadd.f32 %v5008, 1e-05
    %v5010 = vrsqrt.pop %v5009
    %v5012 = vrot.slane %v5010, 1
    %v5014 = vmul.f32 %v1103, %v5012
    %v5015 = vmul.f32 %v5002, %v5014
    %v5017 = vrot.slane %v5015, 7
    %v5019 = vsub.f32 %v1103, %v5017
    %v5020 = vsel %vm4441, %v5014, %v5019
    %v5021 = vpack.c.bf16 %v5020, %v5020
    %v5030 = vunpack.c.l.b16 %v1095
    %v5031 = vunpack.c.h.b16 %v1095
    %v5032 = vunpack.c.l.b16 %v1096
    %v5033 = vunpack.c.h.b16 %v1096
    %v5034 = vunpack.c.l.b16 %v1097
    %v5035 = vunpack.c.h.b16 %v1097
    %v5036 = vunpack.c.l.b16 %v1098
    %v5037 = vunpack.c.h.b16 %v1098
    %v5038 = vunpack.c.l.b16 %v1099
    %v5039 = vunpack.c.h.b16 %v1099
    %v5040 = vunpack.c.l.b16 %v1100
    %v5041 = vunpack.c.h.b16 %v1100
    %v5042 = vunpack.c.l.b16 %v1101
    %v5043 = vunpack.c.h.b16 %v1101
    %v5044 = vunpack.c.l.b16 %v1102
    %v5045 = vunpack.c.h.b16 %v1102
    %v5046 = vpack.c.b16 %v5038, %v5030
    %v5047 = vpack.c.b16 %v5039, %v5031
    %v5048 = vpack.c.b16 %v5040, %v5032
    %v5049 = vpack.c.b16 %v5041, %v5033
    %v5050 = vpack.c.b16 %v5042, %v5034
    %v5051 = vpack.c.b16 %v5043, %v5035
    %v5052 = vpack.c.b16 %v5044, %v5036
    %v5053 = vpack.c.b16 %v5045, %v5037
    %vm5062 = vcmask 130048
    %v5064 = vsel %vm5062, %v5021, 0
    %5066 = vmatprep.subr.bf16.mxu0 %v5047
    %5067 = vmatpush1.bf16.msra.mxu0 %v5046
    %5068 = vmatprep.subr.bf16.mxu0 0
    %5069 = vmatpush1.bf16.msra.mxu0 0
    %5070 = vmatprep.subr.bf16.mxu0 0
    %5071 = vmatpush1.bf16.msra.mxu0 0
    %5072 = vmatprep.subr.bf16.mxu0 0
    %5073 = vmatpush1.bf16.msra.mxu0 0
    %5074 = vmatprep.subr.bf16.mxu0 0
    %5075 = vmatpush1.bf16.msra.mxu0 0
    %5076 = vmatprep.subr.bf16.mxu0 0
    %5077 = vmatpush1.bf16.msra.mxu0 0
    %5078 = vmatprep.subr.bf16.mxu0 0
    %5079 = vmatpush1.bf16.msra.mxu0 0
    %5080 = vmatprep.subr.bf16.mxu0 0
    %5081 = vmatpush1.bf16.msra.mxu0 0
    %5082 = vmatprep.subr.bf16.mxu0 0
    %5083 = vmatpush1.bf16.msra.mxu0 0
    %5084 = vmatprep.subr.bf16.mxu0 0
    %5085 = vmatpush1.bf16.msra.mxu0 0
    %5086 = vmatprep.subr.bf16.mxu0 0
    %5087 = vmatpush1.bf16.msra.mxu0 0
    %5088 = vmatprep.subr.bf16.mxu0 0
    %5089 = vmatpush1.bf16.msra.mxu0 0
    %5090 = vmatprep.subr.bf16.mxu0 0
    %5091 = vmatpush1.bf16.msra.mxu0 0
    %5092 = vmatprep.subr.bf16.mxu0 0
    %5093 = vmatpush1.bf16.msra.mxu0 0
    %5094 = vmatprep.subr.bf16.mxu0 0
    %5095 = vmatpush1.bf16.msra.mxu0 0
    %5096 = vmatprep.subr.bf16.mxu0 0
    %5097 = vmatpush1.bf16.msra.mxu0 0
    %5098 = vmatprep.mubr.bf16.mxu0 0
    %5099 = vmatmul.mubr.bf16.gmra.mrb[0].mxu0 %v5064
    %v5100 = vpop.f32.mrb[0].mxu0
    %v5101 = vadd.f32 0.0, %v5100
    %v5102 = vpop.f32.mrb[0].mxu0
    %v5103 = vadd.f32 0.0, %v5102
    %v5104 = vpop.f32.mrb[0].mxu0
    %v5105 = vpop.f32.mrb[0].mxu0
    %5106 = vdwg.mxu0
    %5107 = vmatprep.subr.bf16.mxu0 %v5049
    %5108 = vmatpush1.bf16.msra.mxu0 %v5048
    %5109 = vmatprep.subr.bf16.mxu0 0
    %5110 = vmatpush1.bf16.msra.mxu0 0
    %5111 = vmatprep.subr.bf16.mxu0 0
    %5112 = vmatpush1.bf16.msra.mxu0 0
    %5113 = vmatprep.subr.bf16.mxu0 0
    %5114 = vmatpush1.bf16.msra.mxu0 0
    %5115 = vmatprep.subr.bf16.mxu0 0
    %5116 = vmatpush1.bf16.msra.mxu0 0
    %5117 = vmatprep.subr.bf16.mxu0 0
    %5118 = vmatpush1.bf16.msra.mxu0 0
    %5119 = vmatprep.subr.bf16.mxu0 0
    %5120 = vmatpush1.bf16.msra.mxu0 0
    %5121 = vmatprep.subr.bf16.mxu0 0
    %5122 = vmatpush1.bf16.msra.mxu0 0
    %5123 = vmatprep.subr.bf16.mxu0 0
    %5124 = vmatpush1.bf16.msra.mxu0 0
    %5125 = vmatprep.subr.bf16.mxu0 0
    %5126 = vmatpush1.bf16.msra.mxu0 0
    %5127 = vmatprep.subr.bf16.mxu0 0
    %5128 = vmatpush1.bf16.msra.mxu0 0
    %5129 = vmatprep.subr.bf16.mxu0 0
    %5130 = vmatpush1.bf16.msra.mxu0 0
    %5131 = vmatprep.subr.bf16.mxu0 0
    %5132 = vmatpush1.bf16.msra.mxu0 0
    %5133 = vmatprep.subr.bf16.mxu0 0
    %5134 = vmatpush1.bf16.msra.mxu0 0
    %5135 = vmatprep.subr.bf16.mxu0 0
    %5136 = vmatpush1.bf16.msra.mxu0 0
    %5137 = vmatprep.subr.bf16.mxu0 0
    %5138 = vmatpush1.bf16.msra.mxu0 0
    %5139 = vmatprep.mubr.bf16.mxu0 0
    %5140 = vmatmul.mubr.bf16.gmra.mrb[0].mxu0 %v5064
    %v5141 = vpop.f32.mrb[0].mxu0
    %v5142 = vadd.f32 0.0, %v5141
    %v5143 = vpop.f32.mrb[0].mxu0
    %v5144 = vadd.f32 0.0, %v5143
    %v5145 = vpop.f32.mrb[0].mxu0
    %v5146 = vpop.f32.mrb[0].mxu0
    %5147 = vdwg.mxu0
    %5148 = vmatprep.subr.bf16.mxu0 %v5051
    %5149 = vmatpush1.bf16.msra.mxu0 %v5050
    %5150 = vmatprep.subr.bf16.mxu0 0
    %5151 = vmatpush1.bf16.msra.mxu0 0
    %5152 = vmatprep.subr.bf16.mxu0 0
    %5153 = vmatpush1.bf16.msra.mxu0 0
    %5154 = vmatprep.subr.bf16.mxu0 0
    %5155 = vmatpush1.bf16.msra.mxu0 0
    %5156 = vmatprep.subr.bf16.mxu0 0
    %5157 = vmatpush1.bf16.msra.mxu0 0
    %5158 = vmatprep.subr.bf16.mxu0 0
    %5159 = vmatpush1.bf16.msra.mxu0 0
    %5160 = vmatprep.subr.bf16.mxu0 0
    %5161 = vmatpush1.bf16.msra.mxu0 0
    %5162 = vmatprep.subr.bf16.mxu0 0
    %5163 = vmatpush1.bf16.msra.mxu0 0
    %5164 = vmatprep.subr.bf16.mxu0 0
    %5165 = vmatpush1.bf16.msra.mxu0 0
    %5166 = vmatprep.subr.bf16.mxu0 0
    %5167 = vmatpush1.bf16.msra.mxu0 0
    %5168 = vmatprep.subr.bf16.mxu0 0
    %5169 = vmatpush1.bf16.msra.mxu0 0
    %5170 = vmatprep.subr.bf16.mxu0 0
    %5171 = vmatpush1.bf16.msra.mxu0 0
    %5172 = vmatprep.subr.bf16.mxu0 0
    %5173 = vmatpush1.bf16.msra.mxu0 0
    %5174 = vmatprep.subr.bf16.mxu0 0
    %5175 = vmatpush1.bf16.msra.mxu0 0
    %5176 = vmatprep.subr.bf16.mxu0 0
    %5177 = vmatpush1.bf16.msra.mxu0 0
    %5178 = vmatprep.subr.bf16.mxu0 0
    %5179 = vmatpush1.bf16.msra.mxu0 0
    %5180 = vmatprep.mubr.bf16.mxu0 0
    %5181 = vmatmul.mubr.bf16.gmra.mrb[0].mxu0 %v5064
    %v5182 = vpop.f32.mrb[0].mxu0
    %v5183 = vadd.f32 0.0, %v5182
    %v5184 = vpop.f32.mrb[0].mxu0
    %v5185 = vadd.f32 0.0, %v5184
    %v5186 = vpop.f32.mrb[0].mxu0
    %v5187 = vpop.f32.mrb[0].mxu0
    %5188 = vdwg.mxu0
    %5189 = vmatprep.subr.bf16.mxu0 %v5053
    %5190 = vmatpush1.bf16.msra.mxu0 %v5052
    %5191 = vmatprep.subr.bf16.mxu0 0
    %5192 = vmatpush1.bf16.msra.mxu0 0
    %5193 = vmatprep.subr.bf16.mxu0 0
    %5194 = vmatpush1.bf16.msra.mxu0 0
    %5195 = vmatprep.subr.bf16.mxu0 0
    %5196 = vmatpush1.bf16.msra.mxu0 0
    %5197 = vmatprep.subr.bf16.mxu0 0
    %5198 = vmatpush1.bf16.msra.mxu0 0
    %5199 = vmatprep.subr.bf16.mxu0 0
    %5200 = vmatpush1.bf16.msra.mxu0 0
    %5201 = vmatprep.subr.bf16.mxu0 0
    %5202 = vmatpush1.bf16.msra.mxu0 0
    %5203 = vmatprep.subr.bf16.mxu0 0
    %5204 = vmatpush1.bf16.msra.mxu0 0
    %5205 = vmatprep.subr.bf16.mxu0 0
    %5206 = vmatpush1.bf16.msra.mxu0 0
    %5207 = vmatprep.subr.bf16.mxu0 0
    %5208 = vmatpush1.bf16.msra.mxu0 0
    %5209 = vmatprep.subr.bf16.mxu0 0
    %5210 = vmatpush1.bf16.msra.mxu0 0
    %5211 = vmatprep.subr.bf16.mxu0 0
    %5212 = vmatpush1.bf16.msra.mxu0 0
    %5213 = vmatprep.subr.bf16.mxu0 0
    %5214 = vmatpush1.bf16.msra.mxu0 0
    %5215 = vmatprep.subr.bf16.mxu0 0
    %5216 = vmatpush1.bf16.msra.mxu0 0
    %5217 = vmatprep.subr.bf16.mxu0 0
    %5218 = vmatpush1.bf16.msra.mxu0 0
    %5219 = vmatprep.subr.bf16.mxu0 0
    %5220 = vmatpush1.bf16.msra.mxu0 0
    %5221 = vmatprep.mubr.bf16.mxu0 0
    %5222 = vmatmul.mubr.bf16.gmra.mrb[0].mxu0 %v5064
    %v5223 = vpop.f32.mrb[0].mxu0
    %v5224 = vadd.f32 0.0, %v5223
    %v5225 = vpop.f32.mrb[0].mxu0
    %v5226 = vadd.f32 0.0, %v5225
    %v5227 = vpop.f32.mrb[0].mxu0
    %v5228 = vpop.f32.mrb[0].mxu0
    %5229 = vdwg.mxu0
    %v5230 = vlaneseq
    %v5231 = vshrl.u32 %v5230, 7
    %v5232 = vsub.s32 0, %v5231
    %v5233 = vrot.slane %v5101, %v5232
    %v5234 = vlaneseq
    %v5235 = vshrl.u32 %v5234, 7
    %v5236 = vsub.s32 0, %v5235
    %v5237 = vrot.slane %v5103, %v5236
    %v5238 = vlaneseq
    %v5239 = vshrl.u32 %v5238, 7
    %v5240 = vsub.s32 0, %v5239
    %v5241 = vrot.slane %v5142, %v5240
    %v5242 = vlaneseq
    %v5243 = vshrl.u32 %v5242, 7
    %v5244 = vsub.s32 0, %v5243
    %v5245 = vrot.slane %v5144, %v5244
    %v5246 = vlaneseq
    %v5247 = vshrl.u32 %v5246, 7
    %v5248 = vsub.s32 0, %v5247
    %v5249 = vrot.slane %v5183, %v5248
    %v5250 = vlaneseq
    %v5251 = vshrl.u32 %v5250, 7
    %v5252 = vsub.s32 0, %v5251
    %v5253 = vrot.slane %v5185, %v5252
    %v5254 = vlaneseq
    %v5255 = vshrl.u32 %v5254, 7
    %v5256 = vsub.s32 0, %v5255
    %v5257 = vrot.slane %v5224, %v5256
    %v5258 = vlaneseq
    %v5259 = vshrl.u32 %v5258, 7
    %v5260 = vsub.s32 0, %v5259
    %v5261 = vrot.slane %v5226, %v5260
    %v5262 = vmul.f32 %v3822, %v5233
    %v5263 = vmul.f32 %v3824, %v5237
    %v5264 = vmul.f32 %v3986, %v5241
    %v5265 = vmul.f32 %v3988, %v5245
    %v5266 = vmul.f32 %v4150, %v5249
    %v5267 = vmul.f32 %v4152, %v5253
    %v5268 = vmul.f32 %v4314, %v5257
    %v5269 = vmul.f32 %v4316, %v5261
    %v5270 = vlaneseq
    %v5271 = vshrl.u32 %v5270, 7
    %v5272 = vsub.s32 1, %v5271
    %v5273 = vrot.slane %v5101, %v5272
    %v5274 = vlaneseq
    %v5275 = vshrl.u32 %v5274, 7
    %v5276 = vsub.s32 1, %v5275
    %v5277 = vrot.slane %v5103, %v5276
    %v5278 = vlaneseq
    %v5279 = vshrl.u32 %v5278, 7
    %v5280 = vsub.s32 1, %v5279
    %v5281 = vrot.slane %v5142, %v5280
    %v5282 = vlaneseq
    %v5283 = vshrl.u32 %v5282, 7
    %v5284 = vsub.s32 1, %v5283
    %v5285 = vrot.slane %v5144, %v5284
    %v5286 = vlaneseq
    %v5287 = vshrl.u32 %v5286, 7
    %v5288 = vsub.s32 1, %v5287
    %v5289 = vrot.slane %v5183, %v5288
    %v5290 = vlaneseq
    %v5291 = vshrl.u32 %v5290, 7
    %v5292 = vsub.s32 1, %v5291
    %v5293 = vrot.slane %v5185, %v5292
    %v5294 = vlaneseq
    %v5295 = vshrl.u32 %v5294, 7
    %v5296 = vsub.s32 1, %v5295
    %v5297 = vrot.slane %v5224, %v5296
    %v5298 = vlaneseq
    %v5299 = vshrl.u32 %v5298, 7
    %v5300 = vsub.s32 1, %v5299
    %v5301 = vrot.slane %v5226, %v5300
    %v5302 = vadd.f32 %v5262, %v5273
    %v5303 = vadd.f32 %v5263, %v5277
    %v5304 = vadd.f32 %v5264, %v5281
    %v5305 = vadd.f32 %v5265, %v5285
    %v5306 = vadd.f32 %v5266, %v5289
    %v5307 = vadd.f32 %v5267, %v5293
    %v5308 = vadd.f32 %v5268, %v5297
    %v5309 = vadd.f32 %v5269, %v5301
    %vm5310 = vcmp.gt.f32.partialorder %v5302, 0.0
    %vm5311 = vcmp.gt.f32.partialorder %v5303, 0.0
    %vm5312 = vcmp.gt.f32.partialorder %v5304, 0.0
    %vm5313 = vcmp.gt.f32.partialorder %v5305, 0.0
    %vm5314 = vcmp.gt.f32.partialorder %v5306, 0.0
    %vm5315 = vcmp.gt.f32.partialorder %v5307, 0.0
    %vm5316 = vcmp.gt.f32.partialorder %v5308, 0.0
    %vm5317 = vcmp.gt.f32.partialorder %v5309, 0.0
    %v5318 = vmul.f32 %v5302, 0.01
    %v5319 = vmul.f32 %v5303, 0.01
    %v5320 = vmul.f32 %v5304, 0.01
    %v5321 = vmul.f32 %v5305, 0.01
    %v5322 = vmul.f32 %v5306, 0.01
    %v5323 = vmul.f32 %v5307, 0.01
    %v5324 = vmul.f32 %v5308, 0.01
    %v5325 = vmul.f32 %v5309, 0.01
    %v5326 = vsel %vm5310, %v5302, %v5318
    %v5327 = vsel %vm5311, %v5303, %v5319
    %v5328 = vsel %vm5312, %v5304, %v5320
    %v5329 = vsel %vm5313, %v5305, %v5321
    %v5330 = vsel %vm5314, %v5306, %v5322
    %v5331 = vsel %vm5315, %v5307, %v5323
    %v5332 = vsel %vm5316, %v5308, %v5324
    %v5333 = vsel %vm5317, %v5309, %v5325
    %v5334 = vpack.c.bf16 %v5326, %v5326
    %v5335 = vpack.c.bf16 %v5327, %v5327
    %v5336 = vpack.c.bf16 %v5328, %v5328
    %v5337 = vpack.c.bf16 %v5329, %v5329
    %v5338 = vpack.c.bf16 %v5330, %v5330
    %v5339 = vpack.c.bf16 %v5331, %v5331
    %v5340 = vpack.c.bf16 %v5332, %v5332
    %v5341 = vpack.c.bf16 %v5333, %v5333
    %s5342 = smul.u32 4, 128
    %s5343 = smul.u32 %s5342, 4
    %s5344 = sshll.u32 %s5343, 4
    %5345 = dma.done [#allocation5], %s5344
    %v5346 = vld [vmem:[#allocation2] sm:$0xff]
    %v5347 = vld [vmem:[#allocation2 + $0x8] sm:$0xff]
    %v5348 = vld [vmem:[#allocation2 + $0x10] sm:$0xff]
    %v5349 = vld [vmem:[#allocation2 + $0x18] sm:$0xff]
    %v5350 = vld [vmem:[#allocation2 + $0x20] sm:$0xff]
    %v5351 = vld [vmem:[#allocation2 + $0x28] sm:$0xff]
    %v5352 = vld [vmem:[#allocation2 + $0x30] sm:$0xff]
    %v5353 = vld [vmem:[#allocation2 + $0x38] sm:$0xff]
    %v5354 = vld [vmem:[#allocation2 + $0x40] sm:$0xff]
    %v5355 = vld [vmem:[#allocation2 + $0x48] sm:$0xff]
    %v5356 = vld [vmem:[#allocation2 + $0x50] sm:$0xff]
    %v5357 = vld [vmem:[#allocation2 + $0x58] sm:$0xff]
    %v5358 = vld [vmem:[#allocation2 + $0x60] sm:$0xff]
    %v5359 = vld [vmem:[#allocation2 + $0x68] sm:$0xff]
    %v5360 = vld [vmem:[#allocation2 + $0x70] sm:$0xff]
    %v5361 = vld [vmem:[#allocation2 + $0x78] sm:$0xff]
    %v5362 = vld [vmem:[#allocation2 + $0x80] sm:$0xff]
    %v5363 = vld [vmem:[#allocation2 + $0x88] sm:$0xff]
    %v5364 = vld [vmem:[#allocation2 + $0x90] sm:$0xff]
    %v5365 = vld [vmem:[#allocation2 + $0x98] sm:$0xff]
    %v5366 = vld [vmem:[#allocation2 + $0xa0] sm:$0xff]
    %v5367 = vld [vmem:[#allocation2 + $0xa8] sm:$0xff]
    %v5368 = vld [vmem:[#allocation2 + $0xb0] sm:$0xff]
    %v5369 = vld [vmem:[#allocation2 + $0xb8] sm:$0xff]
    %v5370 = vld [vmem:[#allocation2 + $0xc0] sm:$0xff]
    %v5371 = vld [vmem:[#allocation2 + $0xc8] sm:$0xff]
    %v5372 = vld [vmem:[#allocation2 + $0xd0] sm:$0xff]
    %v5373 = vld [vmem:[#allocation2 + $0xd8] sm:$0xff]
    %v5374 = vld [vmem:[#allocation2 + $0xe0] sm:$0xff]
    %v5375 = vld [vmem:[#allocation2 + $0xe8] sm:$0xff]
    %v5376 = vld [vmem:[#allocation2 + $0xf0] sm:$0xff]
    %v5377 = vld [vmem:[#allocation2 + $0xf8] sm:$0xff]
    %v5378 = vld [vmem:[#allocation2 + $0x100] sm:$0xff]
    %v5379 = vld [vmem:[#allocation2 + $0x108] sm:$0xff]
    %v5380 = vld [vmem:[#allocation2 + $0x110] sm:$0xff]
    %v5381 = vld [vmem:[#allocation2 + $0x118] sm:$0xff]
    %v5382 = vld [vmem:[#allocation2 + $0x120] sm:$0xff]
    %v5383 = vld [vmem:[#allocation2 + $0x128] sm:$0xff]
    %v5384 = vld [vmem:[#allocation2 + $0x130] sm:$0xff]
    %v5385 = vld [vmem:[#allocation2 + $0x138] sm:$0xff]
    %v5386 = vld [vmem:[#allocation2 + $0x140] sm:$0xff]
    %v5387 = vld [vmem:[#allocation2 + $0x148] sm:$0xff]
    %v5388 = vld [vmem:[#allocation2 + $0x150] sm:$0xff]
    %v5389 = vld [vmem:[#allocation2 + $0x158] sm:$0xff]
    %v5390 = vld [vmem:[#allocation2 + $0x160] sm:$0xff]
    %v5391 = vld [vmem:[#allocation2 + $0x168] sm:$0xff]
    %v5392 = vld [vmem:[#allocation2 + $0x170] sm:$0xff]
    %v5393 = vld [vmem:[#allocation2 + $0x178] sm:$0xff]
    %v5394 = vld [vmem:[#allocation2 + $0x180] sm:$0xff]
    %v5395 = vld [vmem:[#allocation2 + $0x188] sm:$0xff]
    %v5396 = vld [vmem:[#allocation2 + $0x190] sm:$0xff]
    %v5397 = vld [vmem:[#allocation2 + $0x198] sm:$0xff]
    %v5398 = vld [vmem:[#allocation2 + $0x1a0] sm:$0xff]
    %v5399 = vld [vmem:[#allocation2 + $0x1a8] sm:$0xff]
    %v5400 = vld [vmem:[#allocation2 + $0x1b0] sm:$0xff]
    %v5401 = vld [vmem:[#allocation2 + $0x1b8] sm:$0xff]
    %v5402 = vld [vmem:[#allocation2 + $0x1c0] sm:$0xff]
    %v5403 = vld [vmem:[#allocation2 + $0x1c8] sm:$0xff]
    %v5404 = vld [vmem:[#allocation2 + $0x1d0] sm:$0xff]
    %v5405 = vld [vmem:[#allocation2 + $0x1d8] sm:$0xff]
    %v5406 = vld [vmem:[#allocation2 + $0x1e0] sm:$0xff]
    %v5407 = vld [vmem:[#allocation2 + $0x1e8] sm:$0xff]
    %v5408 = vld [vmem:[#allocation2 + $0x1f0] sm:$0xff]
    %v5409 = vld [vmem:[#allocation2 + $0x1f8] sm:$0xff]
    %v5410 = vld [vmem:[#allocation2 + $0x200] sm:$0xff]
    %v5411 = vld [vmem:[#allocation2 + $0x208] sm:$0xff]
    %v5412 = vld [vmem:[#allocation2 + $0x210] sm:$0xff]
    %v5413 = vld [vmem:[#allocation2 + $0x218] sm:$0xff]
    %v5414 = vld [vmem:[#allocation2 + $0x220] sm:$0xff]
    %v5415 = vld [vmem:[#allocation2 + $0x228] sm:$0xff]
    %v5416 = vld [vmem:[#allocation2 + $0x230] sm:$0xff]
    %v5417 = vld [vmem:[#allocation2 + $0x238] sm:$0xff]
    %v5418 = vld [vmem:[#allocation2 + $0x240] sm:$0xff]
    %v5419 = vld [vmem:[#allocation2 + $0x248] sm:$0xff]
    %v5420 = vld [vmem:[#allocation2 + $0x250] sm:$0xff]
    %v5421 = vld [vmem:[#allocation2 + $0x258] sm:$0xff]
    %v5422 = vld [vmem:[#allocation2 + $0x260] sm:$0xff]
    %v5423 = vld [vmem:[#allocation2 + $0x268] sm:$0xff]
    %v5424 = vld [vmem:[#allocation2 + $0x270] sm:$0xff]
    %v5425 = vld [vmem:[#allocation2 + $0x278] sm:$0xff]
    %v5426 = vld [vmem:[#allocation2 + $0x280] sm:$0xff]
    %v5427 = vld [vmem:[#allocation2 + $0x288] sm:$0xff]
    %v5428 = vld [vmem:[#allocation2 + $0x290] sm:$0xff]
    %v5429 = vld [vmem:[#allocation2 + $0x298] sm:$0xff]
    %v5430 = vld [vmem:[#allocation2 + $0x2a0] sm:$0xff]
    %v5431 = vld [vmem:[#allocation2 + $0x2a8] sm:$0xff]
    %v5432 = vld [vmem:[#allocation2 + $0x2b0] sm:$0xff]
    %v5433 = vld [vmem:[#allocation2 + $0x2b8] sm:$0xff]
    %v5434 = vld [vmem:[#allocation2 + $0x2c0] sm:$0xff]
    %v5435 = vld [vmem:[#allocation2 + $0x2c8] sm:$0xff]
    %v5436 = vld [vmem:[#allocation2 + $0x2d0] sm:$0xff]
    %v5437 = vld [vmem:[#allocation2 + $0x2d8] sm:$0xff]
    %v5438 = vld [vmem:[#allocation2 + $0x2e0] sm:$0xff]
    %v5439 = vld [vmem:[#allocation2 + $0x2e8] sm:$0xff]
    %v5440 = vld [vmem:[#allocation2 + $0x2f0] sm:$0xff]
    %v5441 = vld [vmem:[#allocation2 + $0x2f8] sm:$0xff]
    %v5442 = vld [vmem:[#allocation2 + $0x300] sm:$0xff]
    %v5443 = vld [vmem:[#allocation2 + $0x308] sm:$0xff]
    %v5444 = vld [vmem:[#allocation2 + $0x310] sm:$0xff]
    %v5445 = vld [vmem:[#allocation2 + $0x318] sm:$0xff]
    %v5446 = vld [vmem:[#allocation2 + $0x320] sm:$0xff]
    %v5447 = vld [vmem:[#allocation2 + $0x328] sm:$0xff]
    %v5448 = vld [vmem:[#allocation2 + $0x330] sm:$0xff]
    %v5449 = vld [vmem:[#allocation2 + $0x338] sm:$0xff]
    %v5450 = vld [vmem:[#allocation2 + $0x340] sm:$0xff]
    %v5451 = vld [vmem:[#allocation2 + $0x348] sm:$0xff]
    %v5452 = vld [vmem:[#allocation2 + $0x350] sm:$0xff]
    %v5453 = vld [vmem:[#allocation2 + $0x358] sm:$0xff]
    %v5454 = vld [vmem:[#allocation2 + $0x360] sm:$0xff]
    %v5455 = vld [vmem:[#allocation2 + $0x368] sm:$0xff]
    %v5456 = vld [vmem:[#allocation2 + $0x370] sm:$0xff]
    %v5457 = vld [vmem:[#allocation2 + $0x378] sm:$0xff]
    %v5458 = vld [vmem:[#allocation2 + $0x380] sm:$0xff]
    %v5459 = vld [vmem:[#allocation2 + $0x388] sm:$0xff]
    %v5460 = vld [vmem:[#allocation2 + $0x390] sm:$0xff]
    %v5461 = vld [vmem:[#allocation2 + $0x398] sm:$0xff]
    %v5462 = vld [vmem:[#allocation2 + $0x3a0] sm:$0xff]
    %v5463 = vld [vmem:[#allocation2 + $0x3a8] sm:$0xff]
    %v5464 = vld [vmem:[#allocation2 + $0x3b0] sm:$0xff]
    %v5465 = vld [vmem:[#allocation2 + $0x3b8] sm:$0xff]
    %v5466 = vld [vmem:[#allocation2 + $0x3c0] sm:$0xff]
    %v5467 = vld [vmem:[#allocation2 + $0x3c8] sm:$0xff]
    %v5468 = vld [vmem:[#allocation2 + $0x3d0] sm:$0xff]
    %v5469 = vld [vmem:[#allocation2 + $0x3d8] sm:$0xff]
    %v5470 = vld [vmem:[#allocation2 + $0x3e0] sm:$0xff]
    %v5471 = vld [vmem:[#allocation2 + $0x3e8] sm:$0xff]
    %v5472 = vld [vmem:[#allocation2 + $0x3f0] sm:$0xff]
    %v5473 = vld [vmem:[#allocation2 + $0x3f8] sm:$0xff]
    %v5474 = vld [vmem:[#allocation2 + $0x400] sm:$0xff]
    %v5475 = vld [vmem:[#allocation2 + $0x408] sm:$0xff]
    %v5476 = vld [vmem:[#allocation2 + $0x410] sm:$0xff]
    %v5477 = vld [vmem:[#allocation2 + $0x418] sm:$0xff]
    %v5478 = vld [vmem:[#allocation2 + $0x420] sm:$0xff]
    %v5479 = vld [vmem:[#allocation2 + $0x428] sm:$0xff]
    %v5480 = vld [vmem:[#allocation2 + $0x430] sm:$0xff]
    %v5481 = vld [vmem:[#allocation2 + $0x438] sm:$0xff]
    %v5482 = vld [vmem:[#allocation2 + $0x440] sm:$0xff]
    %v5483 = vld [vmem:[#allocation2 + $0x448] sm:$0xff]
    %v5484 = vld [vmem:[#allocation2 + $0x450] sm:$0xff]
    %v5485 = vld [vmem:[#allocation2 + $0x458] sm:$0xff]
    %v5486 = vld [vmem:[#allocation2 + $0x460] sm:$0xff]
    %v5487 = vld [vmem:[#allocation2 + $0x468] sm:$0xff]
    %v5488 = vld [vmem:[#allocation2 + $0x470] sm:$0xff]
    %v5489 = vld [vmem:[#allocation2 + $0x478] sm:$0xff]
    %v5490 = vld [vmem:[#allocation2 + $0x480] sm:$0xff]
    %v5491 = vld [vmem:[#allocation2 + $0x488] sm:$0xff]
    %v5492 = vld [vmem:[#allocation2 + $0x490] sm:$0xff]
    %v5493 = vld [vmem:[#allocation2 + $0x498] sm:$0xff]
    %v5494 = vld [vmem:[#allocation2 + $0x4a0] sm:$0xff]
    %v5495 = vld [vmem:[#allocation2 + $0x4a8] sm:$0xff]
    %v5496 = vld [vmem:[#allocation2 + $0x4b0] sm:$0xff]
    %v5497 = vld [vmem:[#allocation2 + $0x4b8] sm:$0xff]
    %v5498 = vld [vmem:[#allocation2 + $0x4c0] sm:$0xff]
    %v5499 = vld [vmem:[#allocation2 + $0x4c8] sm:$0xff]
    %v5500 = vld [vmem:[#allocation2 + $0x4d0] sm:$0xff]
    %v5501 = vld [vmem:[#allocation2 + $0x4d8] sm:$0xff]
    %v5502 = vld [vmem:[#allocation2 + $0x4e0] sm:$0xff]
    %v5503 = vld [vmem:[#allocation2 + $0x4e8] sm:$0xff]
    %v5504 = vld [vmem:[#allocation2 + $0x4f0] sm:$0xff]
    %v5505 = vld [vmem:[#allocation2 + $0x4f8] sm:$0xff]
    %v5506 = vld [vmem:[#allocation2 + $0x500] sm:$0xff]
    %v5507 = vld [vmem:[#allocation2 + $0x508] sm:$0xff]
    %v5508 = vld [vmem:[#allocation2 + $0x510] sm:$0xff]
    %v5509 = vld [vmem:[#allocation2 + $0x518] sm:$0xff]
    %v5510 = vld [vmem:[#allocation2 + $0x520] sm:$0xff]
    %v5511 = vld [vmem:[#allocation2 + $0x528] sm:$0xff]
    %v5512 = vld [vmem:[#allocation2 + $0x530] sm:$0xff]
    %v5513 = vld [vmem:[#allocation2 + $0x538] sm:$0xff]
    %v5514 = vld [vmem:[#allocation2 + $0x540] sm:$0xff]
    %v5515 = vld [vmem:[#allocation2 + $0x548] sm:$0xff]
    %v5516 = vld [vmem:[#allocation2 + $0x550] sm:$0xff]
    %v5517 = vld [vmem:[#allocation2 + $0x558] sm:$0xff]
    %v5518 = vld [vmem:[#allocation2 + $0x560] sm:$0xff]
    %v5519 = vld [vmem:[#allocation2 + $0x568] sm:$0xff]
    %v5520 = vld [vmem:[#allocation2 + $0x570] sm:$0xff]
    %v5521 = vld [vmem:[#allocation2 + $0x578] sm:$0xff]
    %v5522 = vld [vmem:[#allocation2 + $0x580] sm:$0xff]
    %v5523 = vld [vmem:[#allocation2 + $0x588] sm:$0xff]
    %v5524 = vld [vmem:[#allocation2 + $0x590] sm:$0xff]
    %v5525 = vld [vmem:[#allocation2 + $0x598] sm:$0xff]
    %v5526 = vld [vmem:[#allocation2 + $0x5a0] sm:$0xff]
    %v5527 = vld [vmem:[#allocation2 + $0x5a8] sm:$0xff]
    %v5528 = vld [vmem:[#allocation2 + $0x5b0] sm:$0xff]
    %v5529 = vld [vmem:[#allocation2 + $0x5b8] sm:$0xff]
    %v5530 = vld [vmem:[#allocation2 + $0x5c0] sm:$0xff]
    %v5531 = vld [vmem:[#allocation2 + $0x5c8] sm:$0xff]
    %v5532 = vld [vmem:[#allocation2 + $0x5d0] sm:$0xff]
    %v5533 = vld [vmem:[#allocation2 + $0x5d8] sm:$0xff]
    %v5534 = vld [vmem:[#allocation2 + $0x5e0] sm:$0xff]
    %v5535 = vld [vmem:[#allocation2 + $0x5e8] sm:$0xff]
    %v5536 = vld [vmem:[#allocation2 + $0x5f0] sm:$0xff]
    %v5537 = vld [vmem:[#allocation2 + $0x5f8] sm:$0xff]
    %v5538 = vld [vmem:[#allocation2 + $0x600] sm:$0xff]
    %v5539 = vld [vmem:[#allocation2 + $0x608] sm:$0xff]
    %v5540 = vld [vmem:[#allocation2 + $0x610] sm:$0xff]
    %v5541 = vld [vmem:[#allocation2 + $0x618] sm:$0xff]
    %v5542 = vld [vmem:[#allocation2 + $0x620] sm:$0xff]
    %v5543 = vld [vmem:[#allocation2 + $0x628] sm:$0xff]
    %v5544 = vld [vmem:[#allocation2 + $0x630] sm:$0xff]
    %v5545 = vld [vmem:[#allocation2 + $0x638] sm:$0xff]
    %v5546 = vld [vmem:[#allocation2 + $0x640] sm:$0xff]
    %v5547 = vld [vmem:[#allocation2 + $0x648] sm:$0xff]
    %v5548 = vld [vmem:[#allocation2 + $0x650] sm:$0xff]
    %v5549 = vld [vmem:[#allocation2 + $0x658] sm:$0xff]
    %v5550 = vld [vmem:[#allocation2 + $0x660] sm:$0xff]
    %v5551 = vld [vmem:[#allocation2 + $0x668] sm:$0xff]
    %v5552 = vld [vmem:[#allocation2 + $0x670] sm:$0xff]
    %v5553 = vld [vmem:[#allocation2 + $0x678] sm:$0xff]
    %v5554 = vld [vmem:[#allocation2 + $0x680] sm:$0xff]
    %v5555 = vld [vmem:[#allocation2 + $0x688] sm:$0xff]
    %v5556 = vld [vmem:[#allocation2 + $0x690] sm:$0xff]
    %v5557 = vld [vmem:[#allocation2 + $0x698] sm:$0xff]
    %v5558 = vld [vmem:[#allocation2 + $0x6a0] sm:$0xff]
    %v5559 = vld [vmem:[#allocation2 + $0x6a8] sm:$0xff]
    %v5560 = vld [vmem:[#allocation2 + $0x6b0] sm:$0xff]
    %v5561 = vld [vmem:[#allocation2 + $0x6b8] sm:$0xff]
    %v5562 = vld [vmem:[#allocation2 + $0x6c0] sm:$0xff]
    %v5563 = vld [vmem:[#allocation2 + $0x6c8] sm:$0xff]
    %v5564 = vld [vmem:[#allocation2 + $0x6d0] sm:$0xff]
    %v5565 = vld [vmem:[#allocation2 + $0x6d8] sm:$0xff]
    %v5566 = vld [vmem:[#allocation2 + $0x6e0] sm:$0xff]
    %v5567 = vld [vmem:[#allocation2 + $0x6e8] sm:$0xff]
    %v5568 = vld [vmem:[#allocation2 + $0x6f0] sm:$0xff]
    %v5569 = vld [vmem:[#allocation2 + $0x6f8] sm:$0xff]
    %v5570 = vld [vmem:[#allocation2 + $0x700] sm:$0xff]
    %v5571 = vld [vmem:[#allocation2 + $0x708] sm:$0xff]
    %v5572 = vld [vmem:[#allocation2 + $0x710] sm:$0xff]
    %v5573 = vld [vmem:[#allocation2 + $0x718] sm:$0xff]
    %v5574 = vld [vmem:[#allocation2 + $0x720] sm:$0xff]
    %v5575 = vld [vmem:[#allocation2 + $0x728] sm:$0xff]
    %v5576 = vld [vmem:[#allocation2 + $0x730] sm:$0xff]
    %v5577 = vld [vmem:[#allocation2 + $0x738] sm:$0xff]
    %v5578 = vld [vmem:[#allocation2 + $0x740] sm:$0xff]
    %v5579 = vld [vmem:[#allocation2 + $0x748] sm:$0xff]
    %v5580 = vld [vmem:[#allocation2 + $0x750] sm:$0xff]
    %v5581 = vld [vmem:[#allocation2 + $0x758] sm:$0xff]
    %v5582 = vld [vmem:[#allocation2 + $0x760] sm:$0xff]
    %v5583 = vld [vmem:[#allocation2 + $0x768] sm:$0xff]
    %v5584 = vld [vmem:[#allocation2 + $0x770] sm:$0xff]
    %v5585 = vld [vmem:[#allocation2 + $0x778] sm:$0xff]
    %v5586 = vld [vmem:[#allocation2 + $0x780] sm:$0xff]
    %v5587 = vld [vmem:[#allocation2 + $0x788] sm:$0xff]
    %v5588 = vld [vmem:[#allocation2 + $0x790] sm:$0xff]
    %v5589 = vld [vmem:[#allocation2 + $0x798] sm:$0xff]
    %v5590 = vld [vmem:[#allocation2 + $0x7a0] sm:$0xff]
    %v5591 = vld [vmem:[#allocation2 + $0x7a8] sm:$0xff]
    %v5592 = vld [vmem:[#allocation2 + $0x7b0] sm:$0xff]
    %v5593 = vld [vmem:[#allocation2 + $0x7b8] sm:$0xff]
    %v5594 = vld [vmem:[#allocation2 + $0x7c0] sm:$0xff]
    %v5595 = vld [vmem:[#allocation2 + $0x7c8] sm:$0xff]
    %v5596 = vld [vmem:[#allocation2 + $0x7d0] sm:$0xff]
    %v5597 = vld [vmem:[#allocation2 + $0x7d8] sm:$0xff]
    %v5598 = vld [vmem:[#allocation2 + $0x7e0] sm:$0xff]
    %v5599 = vld [vmem:[#allocation2 + $0x7e8] sm:$0xff]
    %v5600 = vld [vmem:[#allocation2 + $0x7f0] sm:$0xff]
    %v5601 = vld [vmem:[#allocation2 + $0x7f8] sm:$0xff]
    %v5602 = vld [vmem:[%s6] sm:$0xf]
    %v5603 = vld [vmem:[%s6 + $0x4] sm:$0xf]
    %v5604 = vld [vmem:[%s6 + $0x8] sm:$0xf]
    %v5605 = vld [vmem:[%s6 + $0xc] sm:$0xf]
    %v5606 = vld [vmem:[%s6 + $0x10] sm:$0xf]
    %v5607 = vld [vmem:[%s6 + $0x14] sm:$0xf]
    %v5608 = vld [vmem:[%s6 + $0x18] sm:$0xf]
    %v5609 = vld [vmem:[%s6 + $0x1c] sm:$0xf]
    %v5610 = vld [vmem:[%s6 + $0x20] sm:$0xf]
    %v5611 = vld [vmem:[%s6 + $0x24] sm:$0xf]
    %v5612 = vld [vmem:[%s6 + $0x28] sm:$0xf]
    %v5613 = vld [vmem:[%s6 + $0x2c] sm:$0xf]
    %v5614 = vld [vmem:[%s6 + $0x30] sm:$0xf]
    %v5615 = vld [vmem:[%s6 + $0x34] sm:$0xf]
    %v5616 = vld [vmem:[%s6 + $0x38] sm:$0xf]
    %v5617 = vld [vmem:[%s6 + $0x3c] sm:$0xf]
    %v5618 = vld [vmem:[%s6 + $0x40] sm:$0xf]
    %v5619 = vld [vmem:[%s6 + $0x44] sm:$0xf]
    %v5620 = vld [vmem:[%s6 + $0x48] sm:$0xf]
    %v5621 = vld [vmem:[%s6 + $0x4c] sm:$0xf]
    %v5622 = vld [vmem:[%s6 + $0x50] sm:$0xf]
    %v5623 = vld [vmem:[%s6 + $0x54] sm:$0xf]
    %v5624 = vld [vmem:[%s6 + $0x58] sm:$0xf]
    %v5625 = vld [vmem:[%s6 + $0x5c] sm:$0xf]
    %v5626 = vld [vmem:[%s6 + $0x60] sm:$0xf]
    %v5627 = vld [vmem:[%s6 + $0x64] sm:$0xf]
    %v5628 = vld [vmem:[%s6 + $0x68] sm:$0xf]
    %v5629 = vld [vmem:[%s6 + $0x6c] sm:$0xf]
    %v5630 = vld [vmem:[%s6 + $0x70] sm:$0xf]
    %v5631 = vld [vmem:[%s6 + $0x74] sm:$0xf]
    %v5632 = vld [vmem:[%s6 + $0x78] sm:$0xf]
    %v5633 = vld [vmem:[%s6 + $0x7c] sm:$0xf]
    %v5634 = vld [vmem:[%s6 + $0x80] sm:$0xf]
    %v5635 = vld [vmem:[%s6 + $0x84] sm:$0xf]
    %v5636 = vld [vmem:[%s6 + $0x88] sm:$0xf]
    %v5637 = vld [vmem:[%s6 + $0x8c] sm:$0xf]
    %v5638 = vld [vmem:[%s6 + $0x90] sm:$0xf]
    %v5639 = vld [vmem:[%s6 + $0x94] sm:$0xf]
    %v5640 = vld [vmem:[%s6 + $0x98] sm:$0xf]
    %v5641 = vld [vmem:[%s6 + $0x9c] sm:$0xf]
    %v5642 = vld [vmem:[%s6 + $0xa0] sm:$0xf]
    %v5643 = vld [vmem:[%s6 + $0xa4] sm:$0xf]
    %v5644 = vld [vmem:[%s6 + $0xa8] sm:$0xf]
    %v5645 = vld [vmem:[%s6 + $0xac] sm:$0xf]
    %v5646 = vld [vmem:[%s6 + $0xb0] sm:$0xf]
    %v5647 = vld [vmem:[%s6 + $0xb4] sm:$0xf]
    %v5648 = vld [vmem:[%s6 + $0xb8] sm:$0xf]
    %v5649 = vld [vmem:[%s6 + $0xbc] sm:$0xf]
    %v5650 = vld [vmem:[%s6 + $0xc0] sm:$0xf]
    %v5651 = vld [vmem:[%s6 + $0xc4] sm:$0xf]
    %v5652 = vld [vmem:[%s6 + $0xc8] sm:$0xf]
    %v5653 = vld [vmem:[%s6 + $0xcc] sm:$0xf]
    %v5654 = vld [vmem:[%s6 + $0xd0] sm:$0xf]
    %v5655 = vld [vmem:[%s6 + $0xd4] sm:$0xf]
    %v5656 = vld [vmem:[%s6 + $0xd8] sm:$0xf]
    %v5657 = vld [vmem:[%s6 + $0xdc] sm:$0xf]
    %v5658 = vld [vmem:[%s6 + $0xe0] sm:$0xf]
    %v5659 = vld [vmem:[%s6 + $0xe4] sm:$0xf]
    %v5660 = vld [vmem:[%s6 + $0xe8] sm:$0xf]
    %v5661 = vld [vmem:[%s6 + $0xec] sm:$0xf]
    %v5662 = vld [vmem:[%s6 + $0xf0] sm:$0xf]
    %v5663 = vld [vmem:[%s6 + $0xf4] sm:$0xf]
    %v5664 = vld [vmem:[%s6 + $0xf8] sm:$0xf]
    %v5665 = vld [vmem:[%s6 + $0xfc] sm:$0xf]
    %v5666 = vld [vmem:[#allocation12] sm:$0xff]
    %v5667 = vld [vmem:[#allocation12 + $0x8] sm:$0xff]
    %v5668 = vld [vmem:[#allocation12 + $0x10] sm:$0xff]
    %v5669 = vld [vmem:[#allocation12 + $0x18] sm:$0xff]
    %v5670 = vld [vmem:[#allocation12 + $0x20] sm:$0xff]
    %v5671 = vld [vmem:[#allocation12 + $0x28] sm:$0xff]
    %v5672 = vld [vmem:[#allocation12 + $0x30] sm:$0xff]
    %v5673 = vld [vmem:[#allocation12 + $0x38] sm:$0xff]
    %v5674 = vld [vmem:[#allocation14] sm:$0x3]
    %5675 = vmatprep.subr.bf16.mxu0 %v5347
    %5676 = vmatpush1.bf16.msra.mxu0 %v5346
    %5677 = vmatprep.subr.bf16.mxu0 %v5351
    %5678 = vmatpush1.bf16.msra.mxu0 %v5350
    %5679 = vmatprep.subr.bf16.mxu0 %v5355
    %5680 = vmatpush1.bf16.msra.mxu0 %v5354
    %5681 = vmatprep.subr.bf16.mxu0 %v5359
    %5682 = vmatpush1.bf16.msra.mxu0 %v5358
    %5683 = vmatprep.subr.bf16.mxu0 %v5363
    %5684 = vmatpush1.bf16.msra.mxu0 %v5362
    %5685 = vmatprep.subr.bf16.mxu0 %v5367
    %5686 = vmatpush1.bf16.msra.mxu0 %v5366
    %5687 = vmatprep.subr.bf16.mxu0 %v5371
    %5688 = vmatpush1.bf16.msra.mxu0 %v5370
    %5689 = vmatprep.subr.bf16.mxu0 %v5375
    %5690 = vmatpush1.bf16.msra.mxu0 %v5374
    %5691 = vmatprep.subr.bf16.mxu0 %v5379
    %5692 = vmatpush1.bf16.msra.mxu0 %v5378
    %5693 = vmatprep.subr.bf16.mxu0 %v5383
    %5694 = vmatpush1.bf16.msra.mxu0 %v5382
    %5695 = vmatprep.subr.bf16.mxu0 %v5387
    %5696 = vmatpush1.bf16.msra.mxu0 %v5386
    %5697 = vmatprep.subr.bf16.mxu0 %v5391
    %5698 = vmatpush1.bf16.msra.mxu0 %v5390
    %5699 = vmatprep.subr.bf16.mxu0 %v5395
    %5700 = vmatpush1.bf16.msra.mxu0 %v5394
    %5701 = vmatprep.subr.bf16.mxu0 %v5399
    %5702 = vmatpush1.bf16.msra.mxu0 %v5398
    %5703 = vmatprep.subr.bf16.mxu0 %v5403
    %5704 = vmatpush1.bf16.msra.mxu0 %v5402
    %5705 = vmatprep.subr.bf16.mxu0 %v5407
    %5706 = vmatpush1.bf16.msra.mxu0 %v5406
    %5707 = vmatprep.mubr.bf16.mxu0 %v5335
    %5708 = vmatmul.mubr.bf16.gmra.mrb[0].mxu0 %v5334
    %v5709 = vpop.f32.mrb[0].mxu0
    %v5710 = vadd.f32 0.0, %v5709
    %v5711 = vpop.f32.mrb[0].mxu0
    %v5712 = vadd.f32 0.0, %v5711
    %v5713 = vpop.f32.mrb[0].mxu0
    %v5714 = vpop.f32.mrb[0].mxu0
    %5715 = vdwg.mxu0
    %5716 = vmatprep.subr.bf16.mxu0 %v5411
    %5717 = vmatpush1.bf16.msra.mxu0 %v5410
    %5718 = vmatprep.subr.bf16.mxu0 %v5415
    %5719 = vmatpush1.bf16.msra.mxu0 %v5414
    %5720 = vmatprep.subr.bf16.mxu0 %v5419
    %5721 = vmatpush1.bf16.msra.mxu0 %v5418
    %5722 = vmatprep.subr.bf16.mxu0 %v5423
    %5723 = vmatpush1.bf16.msra.mxu0 %v5422
    %5724 = vmatprep.subr.bf16.mxu0 %v5427
    %5725 = vmatpush1.bf16.msra.mxu0 %v5426
    %5726 = vmatprep.subr.bf16.mxu0 %v5431
    %5727 = vmatpush1.bf16.msra.mxu0 %v5430
    %5728 = vmatprep.subr.bf16.mxu0 %v5435
    %5729 = vmatpush1.bf16.msra.mxu0 %v5434
    %5730 = vmatprep.subr.bf16.mxu0 %v5439
    %5731 = vmatpush1.bf16.msra.mxu0 %v5438
    %5732 = vmatprep.subr.bf16.mxu0 %v5443
    %5733 = vmatpush1.bf16.msra.mxu0 %v5442
    %5734 = vmatprep.subr.bf16.mxu0 %v5447
    %5735 = vmatpush1.bf16.msra.mxu0 %v5446
    %5736 = vmatprep.subr.bf16.mxu0 %v5451
    %5737 = vmatpush1.bf16.msra.mxu0 %v5450
    %5738 = vmatprep.subr.bf16.mxu0 %v5455
    %5739 = vmatpush1.bf16.msra.mxu0 %v5454
    %5740 = vmatprep.subr.bf16.mxu0 %v5459
    %5741 = vmatpush1.bf16.msra.mxu0 %v5458
    %5742 = vmatprep.subr.bf16.mxu0 %v5463
    %5743 = vmatpush1.bf16.msra.mxu0 %v5462
    %5744 = vmatprep.subr.bf16.mxu0 %v5467
    %5745 = vmatpush1.bf16.msra.mxu0 %v5466
    %5746 = vmatprep.subr.bf16.mxu0 %v5471
    %5747 = vmatpush1.bf16.msra.mxu0 %v5470
    %5748 = vmatprep.mubr.bf16.mxu0 %v5337
    %5749 = vmatmul.mubr.bf16.gmra.mrb[0].mxu0 %v5336
    %v5750 = vpop.f32.mrb[0].mxu0
    %v5751 = vadd.f32 %v5710, %v5750
    %v5752 = vpop.f32.mrb[0].mxu0
    %v5753 = vadd.f32 %v5712, %v5752
    %v5754 = vpop.f32.mrb[0].mxu0
    %v5755 = vpop.f32.mrb[0].mxu0
    %5756 = vdwg.mxu0
    %5757 = vmatprep.subr.bf16.mxu0 %v5475
    %5758 = vmatpush1.bf16.msra.mxu0 %v5474
    %5759 = vmatprep.subr.bf16.mxu0 %v5479
    %5760 = vmatpush1.bf16.msra.mxu0 %v5478
    %5761 = vmatprep.subr.bf16.mxu0 %v5483
    %5762 = vmatpush1.bf16.msra.mxu0 %v5482
    %5763 = vmatprep.subr.bf16.mxu0 %v5487
    %5764 = vmatpush1.bf16.msra.mxu0 %v5486
    %5765 = vmatprep.subr.bf16.mxu0 %v5491
    %5766 = vmatpush1.bf16.msra.mxu0 %v5490
    %5767 = vmatprep.subr.bf16.mxu0 %v5495
    %5768 = vmatpush1.bf16.msra.mxu0 %v5494
    %5769 = vmatprep.subr.bf16.mxu0 %v5499
    %5770 = vmatpush1.bf16.msra.mxu0 %v5498
    %5771 = vmatprep.subr.bf16.mxu0 %v5503
    %5772 = vmatpush1.bf16.msra.mxu0 %v5502
    %5773 = vmatprep.subr.bf16.mxu0 %v5507
    %5774 = vmatpush1.bf16.msra.mxu0 %v5506
    %5775 = vmatprep.subr.bf16.mxu0 %v5511
    %5776 = vmatpush1.bf16.msra.mxu0 %v5510
    %5777 = vmatprep.subr.bf16.mxu0 %v5515
    %5778 = vmatpush1.bf16.msra.mxu0 %v5514
    %5779 = vmatprep.subr.bf16.mxu0 %v5519
    %5780 = vmatpush1.bf16.msra.mxu0 %v5518
    %5781 = vmatprep.subr.bf16.mxu0 %v5523
    %5782 = vmatpush1.bf16.msra.mxu0 %v5522
    %5783 = vmatprep.subr.bf16.mxu0 %v5527
    %5784 = vmatpush1.bf16.msra.mxu0 %v5526
    %5785 = vmatprep.subr.bf16.mxu0 %v5531
    %5786 = vmatpush1.bf16.msra.mxu0 %v5530
    %5787 = vmatprep.subr.bf16.mxu0 %v5535
    %5788 = vmatpush1.bf16.msra.mxu0 %v5534
    %5789 = vmatprep.mubr.bf16.mxu0 %v5339
    %5790 = vmatmul.mubr.bf16.gmra.mrb[0].mxu0 %v5338
    %v5791 = vpop.f32.mrb[0].mxu0
    %v5792 = vadd.f32 %v5751, %v5791
    %v5793 = vpop.f32.mrb[0].mxu0
    %v5794 = vadd.f32 %v5753, %v5793
    %v5795 = vpop.f32.mrb[0].mxu0
    %v5796 = vpop.f32.mrb[0].mxu0
    %5797 = vdwg.mxu0
    %5798 = vmatprep.subr.bf16.mxu0 %v5539
    %5799 = vmatpush1.bf16.msra.mxu0 %v5538
    %5800 = vmatprep.subr.bf16.mxu0 %v5543
    %5801 = vmatpush1.bf16.msra.mxu0 %v5542
    %5802 = vmatprep.subr.bf16.mxu0 %v5547
    %5803 = vmatpush1.bf16.msra.mxu0 %v5546
    %5804 = vmatprep.subr.bf16.mxu0 %v5551
    %5805 = vmatpush1.bf16.msra.mxu0 %v5550
    %5806 = vmatprep.subr.bf16.mxu0 %v5555
    %5807 = vmatpush1.bf16.msra.mxu0 %v5554
    %5808 = vmatprep.subr.bf16.mxu0 %v5559
    %5809 = vmatpush1.bf16.msra.mxu0 %v5558
    %5810 = vmatprep.subr.bf16.mxu0 %v5563
    %5811 = vmatpush1.bf16.msra.mxu0 %v5562
    %5812 = vmatprep.subr.bf16.mxu0 %v5567
    %5813 = vmatpush1.bf16.msra.mxu0 %v5566
    %5814 = vmatprep.subr.bf16.mxu0 %v5571
    %5815 = vmatpush1.bf16.msra.mxu0 %v5570
    %5816 = vmatprep.subr.bf16.mxu0 %v5575
    %5817 = vmatpush1.bf16.msra.mxu0 %v5574
    %5818 = vmatprep.subr.bf16.mxu0 %v5579
    %5819 = vmatpush1.bf16.msra.mxu0 %v5578
    %5820 = vmatprep.subr.bf16.mxu0 %v5583
    %5821 = vmatpush1.bf16.msra.mxu0 %v5582
    %5822 = vmatprep.subr.bf16.mxu0 %v5587
    %5823 = vmatpush1.bf16.msra.mxu0 %v5586
    %5824 = vmatprep.subr.bf16.mxu0 %v5591
    %5825 = vmatpush1.bf16.msra.mxu0 %v5590
    %5826 = vmatprep.subr.bf16.mxu0 %v5595
    %5827 = vmatpush1.bf16.msra.mxu0 %v5594
    %5828 = vmatprep.subr.bf16.mxu0 %v5599
    %5829 = vmatpush1.bf16.msra.mxu0 %v5598
    %5830 = vmatprep.mubr.bf16.mxu0 %v5341
    %5831 = vmatmul.mubr.bf16.gmra.mrb[0].mxu0 %v5340
    %v5832 = vpop.f32.mrb[0].mxu0
    %v5833 = vadd.f32 %v5792, %v5832
    %v5834 = vpop.f32.mrb[0].mxu0
    %v5835 = vadd.f32 %v5794, %v5834
    %v5836 = vpop.f32.mrb[0].mxu0
    %v5837 = vpop.f32.mrb[0].mxu0
    %5838 = vdwg.mxu0
    %5839 = vmatprep.subr.bf16.mxu0 %v5349
    %5840 = vmatpush1.bf16.msra.mxu0 %v5348
    %5841 = vmatprep.subr.bf16.mxu0 %v5353
    %5842 = vmatpush1.bf16.msra.mxu0 %v5352
    %5843 = vmatprep.subr.bf16.mxu0 %v5357
    %5844 = vmatpush1.bf16.msra.mxu0 %v5356
    %5845 = vmatprep.subr.bf16.mxu0 %v5361
    %5846 = vmatpush1.bf16.msra.mxu0 %v5360
    %5847 = vmatprep.subr.bf16.mxu0 %v5365
    %5848 = vmatpush1.bf16.msra.mxu0 %v5364
    %5849 = vmatprep.subr.bf16.mxu0 %v5369
    %5850 = vmatpush1.bf16.msra.mxu0 %v5368
    %5851 = vmatprep.subr.bf16.mxu0 %v5373
    %5852 = vmatpush1.bf16.msra.mxu0 %v5372
    %5853 = vmatprep.subr.bf16.mxu0 %v5377
    %5854 = vmatpush1.bf16.msra.mxu0 %v5376
    %5855 = vmatprep.subr.bf16.mxu0 %v5381
    %5856 = vmatpush1.bf16.msra.mxu0 %v5380
    %5857 = vmatprep.subr.bf16.mxu0 %v5385
    %5858 = vmatpush1.bf16.msra.mxu0 %v5384
    %5859 = vmatprep.subr.bf16.mxu0 %v5389
    %5860 = vmatpush1.bf16.msra.mxu0 %v5388
    %5861 = vmatprep.subr.bf16.mxu0 %v5393
    %5862 = vmatpush1.bf16.msra.mxu0 %v5392
    %5863 = vmatprep.subr.bf16.mxu0 %v5397
    %5864 = vmatpush1.bf16.msra.mxu0 %v5396
    %5865 = vmatprep.subr.bf16.mxu0 %v5401
    %5866 = vmatpush1.bf16.msra.mxu0 %v5400
    %5867 = vmatprep.subr.bf16.mxu0 %v5405
    %5868 = vmatpush1.bf16.msra.mxu0 %v5404
    %5869 = vmatprep.subr.bf16.mxu0 %v5409
    %5870 = vmatpush1.bf16.msra.mxu0 %v5408
    %5871 = vmatprep.mubr.bf16.mxu0 %v5335
    %5872 = vmatmul.mubr.bf16.gmra.mrb[0].mxu0 %v5334
    %v5873 = vpop.f32.mrb[0].mxu0
    %v5874 = vadd.f32 0.0, %v5873
    %v5875 = vpop.f32.mrb[0].mxu0
    %v5876 = vadd.f32 0.0, %v5875
    %v5877 = vpop.f32.mrb[0].mxu0
    %v5878 = vpop.f32.mrb[0].mxu0
    %5879 = vdwg.mxu0
    %5880 = vmatprep.subr.bf16.mxu0 %v5413
    %5881 = vmatpush1.bf16.msra.mxu0 %v5412
    %5882 = vmatprep.subr.bf16.mxu0 %v5417
    %5883 = vmatpush1.bf16.msra.mxu0 %v5416
    %5884 = vmatprep.subr.bf16.mxu0 %v5421
    %5885 = vmatpush1.bf16.msra.mxu0 %v5420
    %5886 = vmatprep.subr.bf16.mxu0 %v5425
    %5887 = vmatpush1.bf16.msra.mxu0 %v5424
    %5888 = vmatprep.subr.bf16.mxu0 %v5429
    %5889 = vmatpush1.bf16.msra.mxu0 %v5428
    %5890 = vmatprep.subr.bf16.mxu0 %v5433
    %5891 = vmatpush1.bf16.msra.mxu0 %v5432
    %5892 = vmatprep.subr.bf16.mxu0 %v5437
    %5893 = vmatpush1.bf16.msra.mxu0 %v5436
    %5894 = vmatprep.subr.bf16.mxu0 %v5441
    %5895 = vmatpush1.bf16.msra.mxu0 %v5440
    %5896 = vmatprep.subr.bf16.mxu0 %v5445
    %5897 = vmatpush1.bf16.msra.mxu0 %v5444
    %5898 = vmatprep.subr.bf16.mxu0 %v5449
    %5899 = vmatpush1.bf16.msra.mxu0 %v5448
    %5900 = vmatprep.subr.bf16.mxu0 %v5453
    %5901 = vmatpush1.bf16.msra.mxu0 %v5452
    %5902 = vmatprep.subr.bf16.mxu0 %v5457
    %5903 = vmatpush1.bf16.msra.mxu0 %v5456
    %5904 = vmatprep.subr.bf16.mxu0 %v5461
    %5905 = vmatpush1.bf16.msra.mxu0 %v5460
    %5906 = vmatprep.subr.bf16.mxu0 %v5465
    %5907 = vmatpush1.bf16.msra.mxu0 %v5464
    %5908 = vmatprep.subr.bf16.mxu0 %v5469
    %5909 = vmatpush1.bf16.msra.mxu0 %v5468
    %5910 = vmatprep.subr.bf16.mxu0 %v5473
    %5911 = vmatpush1.bf16.msra.mxu0 %v5472
    %5912 = vmatprep.mubr.bf16.mxu0 %v5337
    %5913 = vmatmul.mubr.bf16.gmra.mrb[0].mxu0 %v5336
    %v5914 = vpop.f32.mrb[0].mxu0
    %v5915 = vadd.f32 %v5874, %v5914
    %v5916 = vpop.f32.mrb[0].mxu0
    %v5917 = vadd.f32 %v5876, %v5916
    %v5918 = vpop.f32.mrb[0].mxu0
    %v5919 = vpop.f32.mrb[0].mxu0
    %5920 = vdwg.mxu0
    %5921 = vmatprep.subr.bf16.mxu0 %v5477
    %5922 = vmatpush1.bf16.msra.mxu0 %v5476
    %5923 = vmatprep.subr.bf16.mxu0 %v5481
    %5924 = vmatpush1.bf16.msra.mxu0 %v5480
    %5925 = vmatprep.subr.bf16.mxu0 %v5485
    %5926 = vmatpush1.bf16.msra.mxu0 %v5484
    %5927 = vmatprep.subr.bf16.mxu0 %v5489
    %5928 = vmatpush1.bf16.msra.mxu0 %v5488
    %5929 = vmatprep.subr.bf16.mxu0 %v5493
    %5930 = vmatpush1.bf16.msra.mxu0 %v5492
    %5931 = vmatprep.subr.bf16.mxu0 %v5497
    %5932 = vmatpush1.bf16.msra.mxu0 %v5496
    %5933 = vmatprep.subr.bf16.mxu0 %v5501
    %5934 = vmatpush1.bf16.msra.mxu0 %v5500
    %5935 = vmatprep.subr.bf16.mxu0 %v5505
    %5936 = vmatpush1.bf16.msra.mxu0 %v5504
    %5937 = vmatprep.subr.bf16.mxu0 %v5509
    %5938 = vmatpush1.bf16.msra.mxu0 %v5508
    %5939 = vmatprep.subr.bf16.mxu0 %v5513
    %5940 = vmatpush1.bf16.msra.mxu0 %v5512
    %5941 = vmatprep.subr.bf16.mxu0 %v5517
    %5942 = vmatpush1.bf16.msra.mxu0 %v5516
    %5943 = vmatprep.subr.bf16.mxu0 %v5521
    %5944 = vmatpush1.bf16.msra.mxu0 %v5520
    %5945 = vmatprep.subr.bf16.mxu0 %v5525
    %5946 = vmatpush1.bf16.msra.mxu0 %v5524
    %5947 = vmatprep.subr.bf16.mxu0 %v5529
    %5948 = vmatpush1.bf16.msra.mxu0 %v5528
    %5949 = vmatprep.subr.bf16.mxu0 %v5533
    %5950 = vmatpush1.bf16.msra.mxu0 %v5532
    %5951 = vmatprep.subr.bf16.mxu0 %v5537
    %5952 = vmatpush1.bf16.msra.mxu0 %v5536
    %5953 = vmatprep.mubr.bf16.mxu0 %v5339
    %5954 = vmatmul.mubr.bf16.gmra.mrb[0].mxu0 %v5338
    %v5955 = vpop.f32.mrb[0].mxu0
    %v5956 = vadd.f32 %v5915, %v5955
    %v5957 = vpop.f32.mrb[0].mxu0
    %v5958 = vadd.f32 %v5917, %v5957
    %v5959 = vpop.f32.mrb[0].mxu0
    %v5960 = vpop.f32.mrb[0].mxu0
    %5961 = vdwg.mxu0
    %5962 = vmatprep.subr.bf16.mxu0 %v5541
    %5963 = vmatpush1.bf16.msra.mxu0 %v5540
    %5964 = vmatprep.subr.bf16.mxu0 %v5545
    %5965 = vmatpush1.bf16.msra.mxu0 %v5544
    %5966 = vmatprep.subr.bf16.mxu0 %v5549
    %5967 = vmatpush1.bf16.msra.mxu0 %v5548
    %5968 = vmatprep.subr.bf16.mxu0 %v5553
    %5969 = vmatpush1.bf16.msra.mxu0 %v5552
    %5970 = vmatprep.subr.bf16.mxu0 %v5557
    %5971 = vmatpush1.bf16.msra.mxu0 %v5556
    %5972 = vmatprep.subr.bf16.mxu0 %v5561
    %5973 = vmatpush1.bf16.msra.mxu0 %v5560
    %5974 = vmatprep.subr.bf16.mxu0 %v5565
    %5975 = vmatpush1.bf16.msra.mxu0 %v5564
    %5976 = vmatprep.subr.bf16.mxu0 %v5569
    %5977 = vmatpush1.bf16.msra.mxu0 %v5568
    %5978 = vmatprep.subr.bf16.mxu0 %v5573
    %5979 = vmatpush1.bf16.msra.mxu0 %v5572
    %5980 = vmatprep.subr.bf16.mxu0 %v5577
    %5981 = vmatpush1.bf16.msra.mxu0 %v5576
    %5982 = vmatprep.subr.bf16.mxu0 %v5581
    %5983 = vmatpush1.bf16.msra.mxu0 %v5580
    %5984 = vmatprep.subr.bf16.mxu0 %v5585
    %5985 = vmatpush1.bf16.msra.mxu0 %v5584
    %5986 = vmatprep.subr.bf16.mxu0 %v5589
    %5987 = vmatpush1.bf16.msra.mxu0 %v5588
    %5988 = vmatprep.subr.bf16.mxu0 %v5593
    %5989 = vmatpush1.bf16.msra.mxu0 %v5592
    %5990 = vmatprep.subr.bf16.mxu0 %v5597
    %5991 = vmatpush1.bf16.msra.mxu0 %v5596
    %5992 = vmatprep.subr.bf16.mxu0 %v5601
    %5993 = vmatpush1.bf16.msra.mxu0 %v5600
    %5994 = vmatprep.mubr.bf16.mxu0 %v5341
    %5995 = vmatmul.mubr.bf16.gmra.mrb[0].mxu0 %v5340
    %v5996 = vpop.f32.mrb[0].mxu0
    %v5997 = vadd.f32 %v5956, %v5996
    %v5998 = vpop.f32.mrb[0].mxu0
    %v5999 = vadd.f32 %v5958, %v5998
    %v6000 = vpop.f32.mrb[0].mxu0
    %v6001 = vpop.f32.mrb[0].mxu0
    %6002 = vdwg.mxu0
    %v6003 = vsel %vm4320, %v5833, 0.0
    %v6004 = vrot.slane %v6003, 4
    %v6005 = vadd.f32 %v6003, %v6004
    %v6006 = vrot.slane %v6005, 2
    %v6007 = vadd.f32 %v6005, %v6006
    %v6008 = vrot.slane %v6007, 1
    %v6009 = vadd.f32 %v6007, %v6008
    %v6010 = vsel %vm4320, %v5835, 0.0
    %v6011 = vrot.slane %v6010, 4
    %v6012 = vadd.f32 %v6010, %v6011
    %v6013 = vrot.slane %v6012, 2
    %v6014 = vadd.f32 %v6012, %v6013
    %v6015 = vrot.slane %v6014, 1
    %v6016 = vadd.f32 %v6014, %v6015
    %v6017 = vsel %vm4320, %v5997, 0.0
    %v6018 = vrot.slane %v6017, 4
    %v6019 = vadd.f32 %v6017, %v6018
    %v6020 = vrot.slane %v6019, 2
    %v6021 = vadd.f32 %v6019, %v6020
    %v6022 = vrot.slane %v6021, 1
    %v6023 = vadd.f32 %v6021, %v6022
    %v6024 = vsel %vm4320, %v5999, 0.0
    %v6025 = vrot.slane %v6024, 4
    %v6026 = vadd.f32 %v6024, %v6025
    %v6027 = vrot.slane %v6026, 2
    %v6028 = vadd.f32 %v6026, %v6027
    %v6029 = vrot.slane %v6028, 1
    %v6030 = vadd.f32 %v6028, %v6029
    %v6031 = vmul.f32 %v5833, %v5833
    %v6032 = vmul.f32 %v5835, %v5835
    %v6033 = vmul.f32 %v5997, %v5997
    %v6034 = vmul.f32 %v5999, %v5999
    %v6035 = vsel %vm4320, %v6031, 0.0
    %v6036 = vrot.slane %v6035, 4
    %v6037 = vadd.f32 %v6035, %v6036
    %v6038 = vrot.slane %v6037, 2
    %v6039 = vadd.f32 %v6037, %v6038
    %v6040 = vrot.slane %v6039, 1
    %v6041 = vadd.f32 %v6039, %v6040
    %v6042 = vsel %vm4320, %v6032, 0.0
    %v6043 = vrot.slane %v6042, 4
    %v6044 = vadd.f32 %v6042, %v6043
    %v6045 = vrot.slane %v6044, 2
    %v6046 = vadd.f32 %v6044, %v6045
    %v6047 = vrot.slane %v6046, 1
    %v6048 = vadd.f32 %v6046, %v6047
    %v6049 = vsel %vm4320, %v6033, 0.0
    %v6050 = vrot.slane %v6049, 4
    %v6051 = vadd.f32 %v6049, %v6050
    %v6052 = vrot.slane %v6051, 2
    %v6053 = vadd.f32 %v6051, %v6052
    %v6054 = vrot.slane %v6053, 1
    %v6055 = vadd.f32 %v6053, %v6054
    %v6056 = vsel %vm4320, %v6034, 0.0
    %v6057 = vrot.slane %v6056, 4
    %v6058 = vadd.f32 %v6056, %v6057
    %v6059 = vrot.slane %v6058, 2
    %v6060 = vadd.f32 %v6058, %v6059
    %v6061 = vrot.slane %v6060, 1
    %v6062 = vadd.f32 %v6060, %v6061
    %v6063 = vsel %vm4441, %v6009, %v6041
    %v6064 = vsel %vm4441, %v6016, %v6048
    %v6065 = vsel %vm4441, %v6023, %v6055
    %v6066 = vsel %vm4441, %v6030, %v6062
    %v6067 = vpack.c.bf16 %v6063, %v6063
    %v6068 = vpack.c.bf16 %v6064, %v6064
    %v6069 = vpack.c.bf16 %v6065, %v6065
    %v6070 = vpack.c.bf16 %v6066, %v6066
    %v6135 = vunpack.c.l.b16 %v5602
    %v6136 = vunpack.c.l.b16 %v5603
    %v6137 = vunpack.c.l.b16 %v5604
    %v6138 = vunpack.c.l.b16 %v5605
    %v6139 = vunpack.c.l.b16 %v5606
    %v6140 = vunpack.c.l.b16 %v5607
    %v6141 = vunpack.c.l.b16 %v5608
    %v6142 = vunpack.c.l.b16 %v5609
    %v6143 = vunpack.c.l.b16 %v5610
    %v6144 = vunpack.c.l.b16 %v5611
    %v6145 = vunpack.c.l.b16 %v5612
    %v6146 = vunpack.c.l.b16 %v5613
    %v6147 = vunpack.c.l.b16 %v5614
    %v6148 = vunpack.c.l.b16 %v5615
    %v6149 = vunpack.c.l.b16 %v5616
    %v6150 = vunpack.c.l.b16 %v5617
    %v6151 = vunpack.c.l.b16 %v5618
    %v6152 = vunpack.c.l.b16 %v5619
    %v6153 = vunpack.c.l.b16 %v5620
    %v6154 = vunpack.c.l.b16 %v5621
    %v6155 = vunpack.c.l.b16 %v5622
    %v6156 = vunpack.c.l.b16 %v5623
    %v6157 = vunpack.c.l.b16 %v5624
    %v6158 = vunpack.c.l.b16 %v5625
    %v6159 = vunpack.c.l.b16 %v5626
    %v6160 = vunpack.c.l.b16 %v5627
    %v6161 = vunpack.c.l.b16 %v5628
    %v6162 = vunpack.c.l.b16 %v5629
    %v6163 = vunpack.c.l.b16 %v5630
    %v6164 = vunpack.c.l.b16 %v5631
    %v6165 = vunpack.c.l.b16 %v5632
    %v6166 = vunpack.c.l.b16 %v5633
    %v6167 = vunpack.c.l.b16 %v5634
    %v6168 = vunpack.c.l.b16 %v5635
    %v6169 = vunpack.c.l.b16 %v5636
    %v6170 = vunpack.c.l.b16 %v5637
    %v6171 = vunpack.c.l.b16 %v5638
    %v6172 = vunpack.c.l.b16 %v5639
    %v6173 = vunpack.c.l.b16 %v5640
    %v6174 = vunpack.c.l.b16 %v5641
    %v6175 = vunpack.c.l.b16 %v5642
    %v6176 = vunpack.c.l.b16 %v5643
    %v6177 = vunpack.c.l.b16 %v5644
    %v6178 = vunpack.c.l.b16 %v5645
    %v6179 = vunpack.c.l.b16 %v5646
    %v6180 = vunpack.c.l.b16 %v5647
    %v6181 = vunpack.c.l.b16 %v5648
    %v6182 = vunpack.c.l.b16 %v5649
    %v6183 = vunpack.c.l.b16 %v5650
    %v6184 = vunpack.c.l.b16 %v5651
    %v6185 = vunpack.c.l.b16 %v5652
    %v6186 = vunpack.c.l.b16 %v5653
    %v6187 = vunpack.c.l.b16 %v5654
    %v6188 = vunpack.c.l.b16 %v5655
    %v6189 = vunpack.c.l.b16 %v5656
    %v6190 = vunpack.c.l.b16 %v5657
    %v6191 = vunpack.c.l.b16 %v5658
    %v6192 = vunpack.c.l.b16 %v5659
    %v6193 = vunpack.c.l.b16 %v5660
    %v6194 = vunpack.c.l.b16 %v5661
    %v6195 = vunpack.c.l.b16 %v5662
    %v6196 = vunpack.c.l.b16 %v5663
    %v6197 = vunpack.c.l.b16 %v5664
    %v6198 = vunpack.c.l.b16 %v5665
    %v6199 = vpack.c.b16 %v6136, %v6135
    %v6200 = vpack.c.b16 %v6138, %v6137
    %v6201 = vpack.c.b16 %v6140, %v6139
    %v6202 = vpack.c.b16 %v6142, %v6141
    %v6203 = vpack.c.b16 %v6144, %v6143
    %v6204 = vpack.c.b16 %v6146, %v6145
    %v6205 = vpack.c.b16 %v6148, %v6147
    %v6206 = vpack.c.b16 %v6150, %v6149
    %v6207 = vpack.c.b16 %v6152, %v6151
    %v6208 = vpack.c.b16 %v6154, %v6153
    %v6209 = vpack.c.b16 %v6156, %v6155
    %v6210 = vpack.c.b16 %v6158, %v6157
    %v6211 = vpack.c.b16 %v6160, %v6159
    %v6212 = vpack.c.b16 %v6162, %v6161
    %v6213 = vpack.c.b16 %v6164, %v6163
    %v6214 = vpack.c.b16 %v6166, %v6165
    %v6215 = vpack.c.b16 %v6168, %v6167
    %v6216 = vpack.c.b16 %v6170, %v6169
    %v6217 = vpack.c.b16 %v6172, %v6171
    %v6218 = vpack.c.b16 %v6174, %v6173
    %v6219 = vpack.c.b16 %v6176, %v6175
    %v6220 = vpack.c.b16 %v6178, %v6177
    %v6221 = vpack.c.b16 %v6180, %v6179
    %v6222 = vpack.c.b16 %v6182, %v6181
    %v6223 = vpack.c.b16 %v6184, %v6183
    %v6224 = vpack.c.b16 %v6186, %v6185
    %v6225 = vpack.c.b16 %v6188, %v6187
    %v6226 = vpack.c.b16 %v6190, %v6189
    %v6227 = vpack.c.b16 %v6192, %v6191
    %v6228 = vpack.c.b16 %v6194, %v6193
    %v6229 = vpack.c.b16 %v6196, %v6195
    %v6230 = vpack.c.b16 %v6198, %v6197
    %6263 = vmatprep.subr.bf16.mxu0 0
    %6264 = vmatpush1.bf16.msra.mxu0 %v6199
    %6265 = vmatprep.subr.bf16.mxu0 0
    %6266 = vmatpush1.bf16.msra.mxu0 %v6200
    %6267 = vmatprep.subr.bf16.mxu0 0
    %6268 = vmatpush1.bf16.msra.mxu0 %v6201
    %6269 = vmatprep.subr.bf16.mxu0 0
    %6270 = vmatpush1.bf16.msra.mxu0 %v6202
    %6271 = vmatprep.subr.bf16.mxu0 0
    %6272 = vmatpush1.bf16.msra.mxu0 %v6203
    %6273 = vmatprep.subr.bf16.mxu0 0
    %6274 = vmatpush1.bf16.msra.mxu0 %v6204
    %6275 = vmatprep.subr.bf16.mxu0 0
    %6276 = vmatpush1.bf16.msra.mxu0 %v6205
    %6277 = vmatprep.subr.bf16.mxu0 0
    %6278 = vmatpush1.bf16.msra.mxu0 %v6206
    %6279 = vmatprep.subr.bf16.mxu0 0
    %6280 = vmatpush1.bf16.msra.mxu0 %v6207
    %6281 = vmatprep.subr.bf16.mxu0 0
    %6282 = vmatpush1.bf16.msra.mxu0 %v6208
    %6283 = vmatprep.subr.bf16.mxu0 0
    %6284 = vmatpush1.bf16.msra.mxu0 %v6209
    %6285 = vmatprep.subr.bf16.mxu0 0
    %6286 = vmatpush1.bf16.msra.mxu0 %v6210
    %6287 = vmatprep.subr.bf16.mxu0 0
    %6288 = vmatpush1.bf16.msra.mxu0 %v6211
    %6289 = vmatprep.subr.bf16.mxu0 0
    %6290 = vmatpush1.bf16.msra.mxu0 %v6212
    %6291 = vmatprep.subr.bf16.mxu0 0
    %6292 = vmatpush1.bf16.msra.mxu0 %v6213
    %6293 = vmatprep.subr.bf16.mxu0 0
    %6294 = vmatpush1.bf16.msra.mxu0 %v6214
    %6295 = vmatprep.mubr.bf16.mxu0 %v6068
    %6296 = vmatmul.mubr.bf16.gmra.mrb[0].mxu0 %v6067
    %v6297 = vpop.f32.mrb[0].mxu0
    %v6298 = vadd.f32 0.0, %v6297
    %v6299 = vpop.f32.mrb[0].mxu0
    %v6300 = vpop.f32.mrb[0].mxu0
    %v6301 = vpop.f32.mrb[0].mxu0
    %6302 = vdwg.mxu0
    %6303 = vmatprep.subr.bf16.mxu0 0
    %6304 = vmatpush1.bf16.msra.mxu0 %v6215
    %6305 = vmatprep.subr.bf16.mxu0 0
    %6306 = vmatpush1.bf16.msra.mxu0 %v6216
    %6307 = vmatprep.subr.bf16.mxu0 0
    %6308 = vmatpush1.bf16.msra.mxu0 %v6217
    %6309 = vmatprep.subr.bf16.mxu0 0
    %6310 = vmatpush1.bf16.msra.mxu0 %v6218
    %6311 = vmatprep.subr.bf16.mxu0 0
    %6312 = vmatpush1.bf16.msra.mxu0 %v6219
    %6313 = vmatprep.subr.bf16.mxu0 0
    %6314 = vmatpush1.bf16.msra.mxu0 %v6220
    %6315 = vmatprep.subr.bf16.mxu0 0
    %6316 = vmatpush1.bf16.msra.mxu0 %v6221
    %6317 = vmatprep.subr.bf16.mxu0 0
    %6318 = vmatpush1.bf16.msra.mxu0 %v6222
    %6319 = vmatprep.subr.bf16.mxu0 0
    %6320 = vmatpush1.bf16.msra.mxu0 %v6223
    %6321 = vmatprep.subr.bf16.mxu0 0
    %6322 = vmatpush1.bf16.msra.mxu0 %v6224
    %6323 = vmatprep.subr.bf16.mxu0 0
    %6324 = vmatpush1.bf16.msra.mxu0 %v6225
    %6325 = vmatprep.subr.bf16.mxu0 0
    %6326 = vmatpush1.bf16.msra.mxu0 %v6226
    %6327 = vmatprep.subr.bf16.mxu0 0
    %6328 = vmatpush1.bf16.msra.mxu0 %v6227
    %6329 = vmatprep.subr.bf16.mxu0 0
    %6330 = vmatpush1.bf16.msra.mxu0 %v6228
    %6331 = vmatprep.subr.bf16.mxu0 0
    %6332 = vmatpush1.bf16.msra.mxu0 %v6229
    %6333 = vmatprep.subr.bf16.mxu0 0
    %6334 = vmatpush1.bf16.msra.mxu0 %v6230
    %6335 = vmatprep.mubr.bf16.mxu0 %v6070
    %6336 = vmatmul.mubr.bf16.gmra.mrb[0].mxu0 %v6069
    %v6337 = vpop.f32.mrb[0].mxu0
    %v6338 = vadd.f32 %v6298, %v6337
    %v6339 = vpop.f32.mrb[0].mxu0
    %v6340 = vpop.f32.mrb[0].mxu0
    %v6341 = vpop.f32.mrb[0].mxu0
    %6342 = vdwg.mxu0
    %v6343 = vmul.f32 %v6338, 0.03125
    %v6344 = vmul.f32 %v6343, %v6343
    %v6346 = vrot.slane %v6344, 7
    %v6348 = vsub.f32 %v6343, %v6346
    %v6349 = vmax.f32 %v6348, 0.0
    %v6350 = vadd.f32 %v6349, 1e-05
    %v6351 = vrsqrt.pop %v6350
    %v6353 = vrot.slane %v6351, 1
    %v6355 = vmul.f32 %v5674, %v6353
    %v6356 = vmul.f32 %v6343, %v6355
    %v6358 = vrot.slane %v6356, 7
    %v6360 = vsub.f32 %v5674, %v6358
    %v6361 = vsel %vm4441, %v6355, %v6360
    %v6362 = vpack.c.bf16 %v6361, %v6361
    %v6371 = vunpack.c.l.b16 %v5666
    %v6372 = vunpack.c.h.b16 %v5666
    %v6373 = vunpack.c.l.b16 %v5667
    %v6374 = vunpack.c.h.b16 %v5667
    %v6375 = vunpack.c.l.b16 %v5668
    %v6376 = vunpack.c.h.b16 %v5668
    %v6377 = vunpack.c.l.b16 %v5669
    %v6378 = vunpack.c.h.b16 %v5669
    %v6379 = vunpack.c.l.b16 %v5670
    %v6380 = vunpack.c.h.b16 %v5670
    %v6381 = vunpack.c.l.b16 %v5671
    %v6382 = vunpack.c.h.b16 %v5671
    %v6383 = vunpack.c.l.b16 %v5672
    %v6384 = vunpack.c.h.b16 %v5672
    %v6385 = vunpack.c.l.b16 %v5673
    %v6386 = vunpack.c.h.b16 %v5673
    %v6387 = vpack.c.b16 %v6375, %v6371
    %v6388 = vpack.c.b16 %v6376, %v6372
    %v6389 = vpack.c.b16 %v6377, %v6373
    %v6390 = vpack.c.b16 %v6378, %v6374
    %v6391 = vpack.c.b16 %v6383, %v6379
    %v6392 = vpack.c.b16 %v6384, %v6380
    %v6393 = vpack.c.b16 %v6385, %v6381
    %v6394 = vpack.c.b16 %v6386, %v6382
    %vm6403 = vcmask 261120
    %v6405 = vsel %vm6403, %v6362, 0
    %6407 = vmatprep.subr.bf16.mxu0 %v6388
    %6408 = vmatpush1.bf16.msra.mxu0 %v6387
    %6409 = vmatprep.subr.bf16.mxu0 %v6392
    %6410 = vmatpush1.bf16.msra.mxu0 %v6391
    %6411 = vmatprep.subr.bf16.mxu0 0
    %6412 = vmatpush1.bf16.msra.mxu0 0
    %6413 = vmatprep.subr.bf16.mxu0 0
    %6414 = vmatpush1.bf16.msra.mxu0 0
    %6415 = vmatprep.subr.bf16.mxu0 0
    %6416 = vmatpush1.bf16.msra.mxu0 0
    %6417 = vmatprep.subr.bf16.mxu0 0
    %6418 = vmatpush1.bf16.msra.mxu0 0
    %6419 = vmatprep.subr.bf16.mxu0 0
    %6420 = vmatpush1.bf16.msra.mxu0 0
    %6421 = vmatprep.subr.bf16.mxu0 0
    %6422 = vmatpush1.bf16.msra.mxu0 0
    %6423 = vmatprep.subr.bf16.mxu0 0
    %6424 = vmatpush1.bf16.msra.mxu0 0
    %6425 = vmatprep.subr.bf16.mxu0 0
    %6426 = vmatpush1.bf16.msra.mxu0 0
    %6427 = vmatprep.subr.bf16.mxu0 0
    %6428 = vmatpush1.bf16.msra.mxu0 0
    %6429 = vmatprep.subr.bf16.mxu0 0
    %6430 = vmatpush1.bf16.msra.mxu0 0
    %6431 = vmatprep.subr.bf16.mxu0 0
    %6432 = vmatpush1.bf16.msra.mxu0 0
    %6433 = vmatprep.subr.bf16.mxu0 0
    %6434 = vmatpush1.bf16.msra.mxu0 0
    %6435 = vmatprep.subr.bf16.mxu0 0
    %6436 = vmatpush1.bf16.msra.mxu0 0
    %6437 = vmatprep.subr.bf16.mxu0 0
    %6438 = vmatpush1.bf16.msra.mxu0 0
    %6439 = vmatprep.mubr.bf16.mxu0 0
    %6440 = vmatmul.mubr.bf16.gmra.mrb[0].mxu0 %v6405
    %v6441 = vpop.f32.mrb[0].mxu0
    %v6442 = vadd.f32 0.0, %v6441
    %v6443 = vpop.f32.mrb[0].mxu0
    %v6444 = vadd.f32 0.0, %v6443
    %v6445 = vpop.f32.mrb[0].mxu0
    %v6446 = vpop.f32.mrb[0].mxu0
    %6447 = vdwg.mxu0
    %6448 = vmatprep.subr.bf16.mxu0 %v6390
    %6449 = vmatpush1.bf16.msra.mxu0 %v6389
    %6450 = vmatprep.subr.bf16.mxu0 %v6394
    %6451 = vmatpush1.bf16.msra.mxu0 %v6393
    %6452 = vmatprep.subr.bf16.mxu0 0
    %6453 = vmatpush1.bf16.msra.mxu0 0
    %6454 = vmatprep.subr.bf16.mxu0 0
    %6455 = vmatpush1.bf16.msra.mxu0 0
    %6456 = vmatprep.subr.bf16.mxu0 0
    %6457 = vmatpush1.bf16.msra.mxu0 0
    %6458 = vmatprep.subr.bf16.mxu0 0
    %6459 = vmatpush1.bf16.msra.mxu0 0
    %6460 = vmatprep.subr.bf16.mxu0 0
    %6461 = vmatpush1.bf16.msra.mxu0 0
    %6462 = vmatprep.subr.bf16.mxu0 0
    %6463 = vmatpush1.bf16.msra.mxu0 0
    %6464 = vmatprep.subr.bf16.mxu0 0
    %6465 = vmatpush1.bf16.msra.mxu0 0
    %6466 = vmatprep.subr.bf16.mxu0 0
    %6467 = vmatpush1.bf16.msra.mxu0 0
    %6468 = vmatprep.subr.bf16.mxu0 0
    %6469 = vmatpush1.bf16.msra.mxu0 0
    %6470 = vmatprep.subr.bf16.mxu0 0
    %6471 = vmatpush1.bf16.msra.mxu0 0
    %6472 = vmatprep.subr.bf16.mxu0 0
    %6473 = vmatpush1.bf16.msra.mxu0 0
    %6474 = vmatprep.subr.bf16.mxu0 0
    %6475 = vmatpush1.bf16.msra.mxu0 0
    %6476 = vmatprep.subr.bf16.mxu0 0
    %6477 = vmatpush1.bf16.msra.mxu0 0
    %6478 = vmatprep.subr.bf16.mxu0 0
    %6479 = vmatpush1.bf16.msra.mxu0 0
    %6480 = vmatprep.mubr.bf16.mxu0 0
    %6481 = vmatmul.mubr.bf16.gmra.mrb[0].mxu0 %v6405
    %v6482 = vpop.f32.mrb[0].mxu0
    %v6483 = vadd.f32 0.0, %v6482
    %v6484 = vpop.f32.mrb[0].mxu0
    %v6485 = vadd.f32 0.0, %v6484
    %v6486 = vpop.f32.mrb[0].mxu0
    %v6487 = vpop.f32.mrb[0].mxu0
    %6488 = vdwg.mxu0
    %v6489 = vlaneseq
    %v6490 = vshrl.u32 %v6489, 7
    %v6491 = vsub.s32 0, %v6490
    %v6492 = vrot.slane %v6442, %v6491
    %v6493 = vlaneseq
    %v6494 = vshrl.u32 %v6493, 7
    %v6495 = vsub.s32 0, %v6494
    %v6496 = vrot.slane %v6444, %v6495
    %v6497 = vlaneseq
    %v6498 = vshrl.u32 %v6497, 7
    %v6499 = vsub.s32 0, %v6498
    %v6500 = vrot.slane %v6483, %v6499
    %v6501 = vlaneseq
    %v6502 = vshrl.u32 %v6501, 7
    %v6503 = vsub.s32 0, %v6502
    %v6504 = vrot.slane %v6485, %v6503
    %v6505 = vmul.f32 %v5833, %v6492
    %v6506 = vmul.f32 %v5835, %v6496
    %v6507 = vmul.f32 %v5997, %v6500
    %v6508 = vmul.f32 %v5999, %v6504
    %v6509 = vlaneseq
    %v6510 = vshrl.u32 %v6509, 7
    %v6511 = vsub.s32 1, %v6510
    %v6512 = vrot.slane %v6442, %v6511
    %v6513 = vlaneseq
    %v6514 = vshrl.u32 %v6513, 7
    %v6515 = vsub.s32 1, %v6514
    %v6516 = vrot.slane %v6444, %v6515
    %v6517 = vlaneseq
    %v6518 = vshrl.u32 %v6517, 7
    %v6519 = vsub.s32 1, %v6518
    %v6520 = vrot.slane %v6483, %v6519
    %v6521 = vlaneseq
    %v6522 = vshrl.u32 %v6521, 7
    %v6523 = vsub.s32 1, %v6522
    %v6524 = vrot.slane %v6485, %v6523
    %v6525 = vadd.f32 %v6505, %v6512
    %v6526 = vadd.f32 %v6506, %v6516
    %v6527 = vadd.f32 %v6507, %v6520
    %v6528 = vadd.f32 %v6508, %v6524
    %vm6529 = vcmp.gt.f32.partialorder %v6525, 0.0
    %vm6530 = vcmp.gt.f32.partialorder %v6526, 0.0
    %vm6531 = vcmp.gt.f32.partialorder %v6527, 0.0
    %vm6532 = vcmp.gt.f32.partialorder %v6528, 0.0
    %v6533 = vmul.f32 %v6525, 0.01
    %v6534 = vmul.f32 %v6526, 0.01
    %v6535 = vmul.f32 %v6527, 0.01
    %v6536 = vmul.f32 %v6528, 0.01
    %v6537 = vsel %vm6529, %v6525, %v6533
    %v6538 = vsel %vm6530, %v6526, %v6534
    %v6539 = vsel %vm6531, %v6527, %v6535
    %v6540 = vsel %vm6532, %v6528, %v6536
    %v6541 = vpack.c.bf16 %v6537, %v6537
    %v6542 = vpack.c.bf16 %v6538, %v6538
    %v6543 = vpack.c.bf16 %v6539, %v6539
    %v6544 = vpack.c.bf16 %v6540, %v6540
    %s6545 = smul.u32 4, 64
    %s6546 = smul.u32 %s6545, 8
    %s6547 = sshll.u32 %s6546, 4
    %6548 = dma.done %s197, %s6547
    %v6549 = vld [vmem:[#allocation3] sm:$0xff]
    %v6550 = vld [vmem:[#allocation3 + $0x8] sm:$0xff]
    %v6551 = vld [vmem:[#allocation3 + $0x10] sm:$0xff]
    %v6552 = vld [vmem:[#allocation3 + $0x18] sm:$0xff]
    %v6553 = vld [vmem:[#allocation3 + $0x20] sm:$0xff]
    %v6554 = vld [vmem:[#allocation3 + $0x28] sm:$0xff]
    %v6555 = vld [vmem:[#allocation3 + $0x30] sm:$0xff]
    %v6556 = vld [vmem:[#allocation3 + $0x38] sm:$0xff]
    %v6557 = vld [vmem:[#allocation3 + $0x40] sm:$0xff]
    %v6558 = vld [vmem:[#allocation3 + $0x48] sm:$0xff]
    %v6559 = vld [vmem:[#allocation3 + $0x50] sm:$0xff]
    %v6560 = vld [vmem:[#allocation3 + $0x58] sm:$0xff]
    %v6561 = vld [vmem:[#allocation3 + $0x60] sm:$0xff]
    %v6562 = vld [vmem:[#allocation3 + $0x68] sm:$0xff]
    %v6563 = vld [vmem:[#allocation3 + $0x70] sm:$0xff]
    %v6564 = vld [vmem:[#allocation3 + $0x78] sm:$0xff]
    %v6565 = vld [vmem:[#allocation3 + $0x80] sm:$0xff]
    %v6566 = vld [vmem:[#allocation3 + $0x88] sm:$0xff]
    %v6567 = vld [vmem:[#allocation3 + $0x90] sm:$0xff]
    %v6568 = vld [vmem:[#allocation3 + $0x98] sm:$0xff]
    %v6569 = vld [vmem:[#allocation3 + $0xa0] sm:$0xff]
    %v6570 = vld [vmem:[#allocation3 + $0xa8] sm:$0xff]
    %v6571 = vld [vmem:[#allocation3 + $0xb0] sm:$0xff]
    %v6572 = vld [vmem:[#allocation3 + $0xb8] sm:$0xff]
    %v6573 = vld [vmem:[#allocation3 + $0xc0] sm:$0xff]
    %v6574 = vld [vmem:[#allocation3 + $0xc8] sm:$0xff]
    %v6575 = vld [vmem:[#allocation3 + $0xd0] sm:$0xff]
    %v6576 = vld [vmem:[#allocation3 + $0xd8] sm:$0xff]
    %v6577 = vld [vmem:[#allocation3 + $0xe0] sm:$0xff]
    %v6578 = vld [vmem:[#allocation3 + $0xe8] sm:$0xff]
    %v6579 = vld [vmem:[#allocation3 + $0xf0] sm:$0xff]
    %v6580 = vld [vmem:[#allocation3 + $0xf8] sm:$0xff]
    %v6581 = vld [vmem:[#allocation3 + $0x100] sm:$0xff]
    %v6582 = vld [vmem:[#allocation3 + $0x108] sm:$0xff]
    %v6583 = vld [vmem:[#allocation3 + $0x110] sm:$0xff]
    %v6584 = vld [vmem:[#allocation3 + $0x118] sm:$0xff]
    %v6585 = vld [vmem:[#allocation3 + $0x120] sm:$0xff]
    %v6586 = vld [vmem:[#allocation3 + $0x128] sm:$0xff]
    %v6587 = vld [vmem:[#allocation3 + $0x130] sm:$0xff]
    %v6588 = vld [vmem:[#allocation3 + $0x138] sm:$0xff]
    %v6589 = vld [vmem:[#allocation3 + $0x140] sm:$0xff]
    %v6590 = vld [vmem:[#allocation3 + $0x148] sm:$0xff]
    %v6591 = vld [vmem:[#allocation3 + $0x150] sm:$0xff]
    %v6592 = vld [vmem:[#allocation3 + $0x158] sm:$0xff]
    %v6593 = vld [vmem:[#allocation3 + $0x160] sm:$0xff]
    %v6594 = vld [vmem:[#allocation3 + $0x168] sm:$0xff]
    %v6595 = vld [vmem:[#allocation3 + $0x170] sm:$0xff]
    %v6596 = vld [vmem:[#allocation3 + $0x178] sm:$0xff]
    %v6597 = vld [vmem:[#allocation3 + $0x180] sm:$0xff]
    %v6598 = vld [vmem:[#allocation3 + $0x188] sm:$0xff]
    %v6599 = vld [vmem:[#allocation3 + $0x190] sm:$0xff]
    %v6600 = vld [vmem:[#allocation3 + $0x198] sm:$0xff]
    %v6601 = vld [vmem:[#allocation3 + $0x1a0] sm:$0xff]
    %v6602 = vld [vmem:[#allocation3 + $0x1a8] sm:$0xff]
    %v6603 = vld [vmem:[#allocation3 + $0x1b0] sm:$0xff]
    %v6604 = vld [vmem:[#allocation3 + $0x1b8] sm:$0xff]
    %v6605 = vld [vmem:[#allocation3 + $0x1c0] sm:$0xff]
    %v6606 = vld [vmem:[#allocation3 + $0x1c8] sm:$0xff]
    %v6607 = vld [vmem:[#allocation3 + $0x1d0] sm:$0xff]
    %v6608 = vld [vmem:[#allocation3 + $0x1d8] sm:$0xff]
    %v6609 = vld [vmem:[#allocation3 + $0x1e0] sm:$0xff]
    %v6610 = vld [vmem:[#allocation3 + $0x1e8] sm:$0xff]
    %v6611 = vld [vmem:[#allocation3 + $0x1f0] sm:$0xff]
    %v6612 = vld [vmem:[#allocation3 + $0x1f8] sm:$0xff]
    %v6613 = vld [vmem:[#allocation3 + $0x200] sm:$0xff]
    %v6614 = vld [vmem:[#allocation3 + $0x208] sm:$0xff]
    %v6615 = vld [vmem:[#allocation3 + $0x210] sm:$0xff]
    %v6616 = vld [vmem:[#allocation3 + $0x218] sm:$0xff]
    %v6617 = vld [vmem:[#allocation3 + $0x220] sm:$0xff]
    %v6618 = vld [vmem:[#allocation3 + $0x228] sm:$0xff]
    %v6619 = vld [vmem:[#allocation3 + $0x230] sm:$0xff]
    %v6620 = vld [vmem:[#allocation3 + $0x238] sm:$0xff]
    %v6621 = vld [vmem:[#allocation3 + $0x240] sm:$0xff]
    %v6622 = vld [vmem:[#allocation3 + $0x248] sm:$0xff]
    %v6623 = vld [vmem:[#allocation3 + $0x250] sm:$0xff]
    %v6624 = vld [vmem:[#allocation3 + $0x258] sm:$0xff]
    %v6625 = vld [vmem:[#allocation3 + $0x260] sm:$0xff]
    %v6626 = vld [vmem:[#allocation3 + $0x268] sm:$0xff]
    %v6627 = vld [vmem:[#allocation3 + $0x270] sm:$0xff]
    %v6628 = vld [vmem:[#allocation3 + $0x278] sm:$0xff]
    %v6629 = vld [vmem:[#allocation3 + $0x280] sm:$0xff]
    %v6630 = vld [vmem:[#allocation3 + $0x288] sm:$0xff]
    %v6631 = vld [vmem:[#allocation3 + $0x290] sm:$0xff]
    %v6632 = vld [vmem:[#allocation3 + $0x298] sm:$0xff]
    %v6633 = vld [vmem:[#allocation3 + $0x2a0] sm:$0xff]
    %v6634 = vld [vmem:[#allocation3 + $0x2a8] sm:$0xff]
    %v6635 = vld [vmem:[#allocation3 + $0x2b0] sm:$0xff]
    %v6636 = vld [vmem:[#allocation3 + $0x2b8] sm:$0xff]
    %v6637 = vld [vmem:[#allocation3 + $0x2c0] sm:$0xff]
    %v6638 = vld [vmem:[#allocation3 + $0x2c8] sm:$0xff]
    %v6639 = vld [vmem:[#allocation3 + $0x2d0] sm:$0xff]
    %v6640 = vld [vmem:[#allocation3 + $0x2d8] sm:$0xff]
    %v6641 = vld [vmem:[#allocation3 + $0x2e0] sm:$0xff]
    %v6642 = vld [vmem:[#allocation3 + $0x2e8] sm:$0xff]
    %v6643 = vld [vmem:[#allocation3 + $0x2f0] sm:$0xff]
    %v6644 = vld [vmem:[#allocation3 + $0x2f8] sm:$0xff]
    %v6645 = vld [vmem:[#allocation3 + $0x300] sm:$0xff]
    %v6646 = vld [vmem:[#allocation3 + $0x308] sm:$0xff]
    %v6647 = vld [vmem:[#allocation3 + $0x310] sm:$0xff]
    %v6648 = vld [vmem:[#allocation3 + $0x318] sm:$0xff]
    %v6649 = vld [vmem:[#allocation3 + $0x320] sm:$0xff]
    %v6650 = vld [vmem:[#allocation3 + $0x328] sm:$0xff]
    %v6651 = vld [vmem:[#allocation3 + $0x330] sm:$0xff]
    %v6652 = vld [vmem:[#allocation3 + $0x338] sm:$0xff]
    %v6653 = vld [vmem:[#allocation3 + $0x340] sm:$0xff]
    %v6654 = vld [vmem:[#allocation3 + $0x348] sm:$0xff]
    %v6655 = vld [vmem:[#allocation3 + $0x350] sm:$0xff]
    %v6656 = vld [vmem:[#allocation3 + $0x358] sm:$0xff]
    %v6657 = vld [vmem:[#allocation3 + $0x360] sm:$0xff]
    %v6658 = vld [vmem:[#allocation3 + $0x368] sm:$0xff]
    %v6659 = vld [vmem:[#allocation3 + $0x370] sm:$0xff]
    %v6660 = vld [vmem:[#allocation3 + $0x378] sm:$0xff]
    %v6661 = vld [vmem:[#allocation3 + $0x380] sm:$0xff]
    %v6662 = vld [vmem:[#allocation3 + $0x388] sm:$0xff]
    %v6663 = vld [vmem:[#allocation3 + $0x390] sm:$0xff]
    %v6664 = vld [vmem:[#allocation3 + $0x398] sm:$0xff]
    %v6665 = vld [vmem:[#allocation3 + $0x3a0] sm:$0xff]
    %v6666 = vld [vmem:[#allocation3 + $0x3a8] sm:$0xff]
    %v6667 = vld [vmem:[#allocation3 + $0x3b0] sm:$0xff]
    %v6668 = vld [vmem:[#allocation3 + $0x3b8] sm:$0xff]
    %v6669 = vld [vmem:[#allocation3 + $0x3c0] sm:$0xff]
    %v6670 = vld [vmem:[#allocation3 + $0x3c8] sm:$0xff]
    %v6671 = vld [vmem:[#allocation3 + $0x3d0] sm:$0xff]
    %v6672 = vld [vmem:[#allocation3 + $0x3d8] sm:$0xff]
    %v6673 = vld [vmem:[#allocation3 + $0x3e0] sm:$0xff]
    %v6674 = vld [vmem:[#allocation3 + $0x3e8] sm:$0xff]
    %v6675 = vld [vmem:[#allocation3 + $0x3f0] sm:$0xff]
    %v6676 = vld [vmem:[#allocation3 + $0x3f8] sm:$0xff]
    %v6677 = vld [vmem:[#allocation3 + $0x400] sm:$0xff]
    %v6678 = vld [vmem:[#allocation3 + $0x408] sm:$0xff]
    %v6679 = vld [vmem:[#allocation3 + $0x410] sm:$0xff]
    %v6680 = vld [vmem:[#allocation3 + $0x418] sm:$0xff]
    %v6681 = vld [vmem:[#allocation3 + $0x420] sm:$0xff]
    %v6682 = vld [vmem:[#allocation3 + $0x428] sm:$0xff]
    %v6683 = vld [vmem:[#allocation3 + $0x430] sm:$0xff]
    %v6684 = vld [vmem:[#allocation3 + $0x438] sm:$0xff]
    %v6685 = vld [vmem:[#allocation3 + $0x440] sm:$0xff]
    %v6686 = vld [vmem:[#allocation3 + $0x448] sm:$0xff]
    %v6687 = vld [vmem:[#allocation3 + $0x450] sm:$0xff]
    %v6688 = vld [vmem:[#allocation3 + $0x458] sm:$0xff]
    %v6689 = vld [vmem:[#allocation3 + $0x460] sm:$0xff]
    %v6690 = vld [vmem:[#allocation3 + $0x468] sm:$0xff]
    %v6691 = vld [vmem:[#allocation3 + $0x470] sm:$0xff]
    %v6692 = vld [vmem:[#allocation3 + $0x478] sm:$0xff]
    %v6693 = vld [vmem:[#allocation3 + $0x480] sm:$0xff]
    %v6694 = vld [vmem:[#allocation3 + $0x488] sm:$0xff]
    %v6695 = vld [vmem:[#allocation3 + $0x490] sm:$0xff]
    %v6696 = vld [vmem:[#allocation3 + $0x498] sm:$0xff]
    %v6697 = vld [vmem:[#allocation3 + $0x4a0] sm:$0xff]
    %v6698 = vld [vmem:[#allocation3 + $0x4a8] sm:$0xff]
    %v6699 = vld [vmem:[#allocation3 + $0x4b0] sm:$0xff]
    %v6700 = vld [vmem:[#allocation3 + $0x4b8] sm:$0xff]
    %v6701 = vld [vmem:[#allocation3 + $0x4c0] sm:$0xff]
    %v6702 = vld [vmem:[#allocation3 + $0x4c8] sm:$0xff]
    %v6703 = vld [vmem:[#allocation3 + $0x4d0] sm:$0xff]
    %v6704 = vld [vmem:[#allocation3 + $0x4d8] sm:$0xff]
    %v6705 = vld [vmem:[#allocation3 + $0x4e0] sm:$0xff]
    %v6706 = vld [vmem:[#allocation3 + $0x4e8] sm:$0xff]
    %v6707 = vld [vmem:[#allocation3 + $0x4f0] sm:$0xff]
    %v6708 = vld [vmem:[#allocation3 + $0x4f8] sm:$0xff]
    %v6709 = vld [vmem:[#allocation3 + $0x500] sm:$0xff]
    %v6710 = vld [vmem:[#allocation3 + $0x508] sm:$0xff]
    %v6711 = vld [vmem:[#allocation3 + $0x510] sm:$0xff]
    %v6712 = vld [vmem:[#allocation3 + $0x518] sm:$0xff]
    %v6713 = vld [vmem:[#allocation3 + $0x520] sm:$0xff]
    %v6714 = vld [vmem:[#allocation3 + $0x528] sm:$0xff]
    %v6715 = vld [vmem:[#allocation3 + $0x530] sm:$0xff]
    %v6716 = vld [vmem:[#allocation3 + $0x538] sm:$0xff]
    %v6717 = vld [vmem:[#allocation3 + $0x540] sm:$0xff]
    %v6718 = vld [vmem:[#allocation3 + $0x548] sm:$0xff]
    %v6719 = vld [vmem:[#allocation3 + $0x550] sm:$0xff]
    %v6720 = vld [vmem:[#allocation3 + $0x558] sm:$0xff]
    %v6721 = vld [vmem:[#allocation3 + $0x560] sm:$0xff]
    %v6722 = vld [vmem:[#allocation3 + $0x568] sm:$0xff]
    %v6723 = vld [vmem:[#allocation3 + $0x570] sm:$0xff]
    %v6724 = vld [vmem:[#allocation3 + $0x578] sm:$0xff]
    %v6725 = vld [vmem:[#allocation3 + $0x580] sm:$0xff]
    %v6726 = vld [vmem:[#allocation3 + $0x588] sm:$0xff]
    %v6727 = vld [vmem:[#allocation3 + $0x590] sm:$0xff]
    %v6728 = vld [vmem:[#allocation3 + $0x598] sm:$0xff]
    %v6729 = vld [vmem:[#allocation3 + $0x5a0] sm:$0xff]
    %v6730 = vld [vmem:[#allocation3 + $0x5a8] sm:$0xff]
    %v6731 = vld [vmem:[#allocation3 + $0x5b0] sm:$0xff]
    %v6732 = vld [vmem:[#allocation3 + $0x5b8] sm:$0xff]
    %v6733 = vld [vmem:[#allocation3 + $0x5c0] sm:$0xff]
    %v6734 = vld [vmem:[#allocation3 + $0x5c8] sm:$0xff]
    %v6735 = vld [vmem:[#allocation3 + $0x5d0] sm:$0xff]
    %v6736 = vld [vmem:[#allocation3 + $0x5d8] sm:$0xff]
    %v6737 = vld [vmem:[#allocation3 + $0x5e0] sm:$0xff]
    %v6738 = vld [vmem:[#allocation3 + $0x5e8] sm:$0xff]
    %v6739 = vld [vmem:[#allocation3 + $0x5f0] sm:$0xff]
    %v6740 = vld [vmem:[#allocation3 + $0x5f8] sm:$0xff]
    %v6741 = vld [vmem:[#allocation3 + $0x600] sm:$0xff]
    %v6742 = vld [vmem:[#allocation3 + $0x608] sm:$0xff]
    %v6743 = vld [vmem:[#allocation3 + $0x610] sm:$0xff]
    %v6744 = vld [vmem:[#allocation3 + $0x618] sm:$0xff]
    %v6745 = vld [vmem:[#allocation3 + $0x620] sm:$0xff]
    %v6746 = vld [vmem:[#allocation3 + $0x628] sm:$0xff]
    %v6747 = vld [vmem:[#allocation3 + $0x630] sm:$0xff]
    %v6748 = vld [vmem:[#allocation3 + $0x638] sm:$0xff]
    %v6749 = vld [vmem:[#allocation3 + $0x640] sm:$0xff]
    %v6750 = vld [vmem:[#allocation3 + $0x648] sm:$0xff]
    %v6751 = vld [vmem:[#allocation3 + $0x650] sm:$0xff]
    %v6752 = vld [vmem:[#allocation3 + $0x658] sm:$0xff]
    %v6753 = vld [vmem:[#allocation3 + $0x660] sm:$0xff]
    %v6754 = vld [vmem:[#allocation3 + $0x668] sm:$0xff]
    %v6755 = vld [vmem:[#allocation3 + $0x670] sm:$0xff]
    %v6756 = vld [vmem:[#allocation3 + $0x678] sm:$0xff]
    %v6757 = vld [vmem:[#allocation3 + $0x680] sm:$0xff]
    %v6758 = vld [vmem:[#allocation3 + $0x688] sm:$0xff]
    %v6759 = vld [vmem:[#allocation3 + $0x690] sm:$0xff]
    %v6760 = vld [vmem:[#allocation3 + $0x698] sm:$0xff]
    %v6761 = vld [vmem:[#allocation3 + $0x6a0] sm:$0xff]
    %v6762 = vld [vmem:[#allocation3 + $0x6a8] sm:$0xff]
    %v6763 = vld [vmem:[#allocation3 + $0x6b0] sm:$0xff]
    %v6764 = vld [vmem:[#allocation3 + $0x6b8] sm:$0xff]
    %v6765 = vld [vmem:[#allocation3 + $0x6c0] sm:$0xff]
    %v6766 = vld [vmem:[#allocation3 + $0x6c8] sm:$0xff]
    %v6767 = vld [vmem:[#allocation3 + $0x6d0] sm:$0xff]
    %v6768 = vld [vmem:[#allocation3 + $0x6d8] sm:$0xff]
    %v6769 = vld [vmem:[#allocation3 + $0x6e0] sm:$0xff]
    %v6770 = vld [vmem:[#allocation3 + $0x6e8] sm:$0xff]
    %v6771 = vld [vmem:[#allocation3 + $0x6f0] sm:$0xff]
    %v6772 = vld [vmem:[#allocation3 + $0x6f8] sm:$0xff]
    %v6773 = vld [vmem:[#allocation3 + $0x700] sm:$0xff]
    %v6774 = vld [vmem:[#allocation3 + $0x708] sm:$0xff]
    %v6775 = vld [vmem:[#allocation3 + $0x710] sm:$0xff]
    %v6776 = vld [vmem:[#allocation3 + $0x718] sm:$0xff]
    %v6777 = vld [vmem:[#allocation3 + $0x720] sm:$0xff]
    %v6778 = vld [vmem:[#allocation3 + $0x728] sm:$0xff]
    %v6779 = vld [vmem:[#allocation3 + $0x730] sm:$0xff]
    %v6780 = vld [vmem:[#allocation3 + $0x738] sm:$0xff]
    %v6781 = vld [vmem:[#allocation3 + $0x740] sm:$0xff]
    %v6782 = vld [vmem:[#allocation3 + $0x748] sm:$0xff]
    %v6783 = vld [vmem:[#allocation3 + $0x750] sm:$0xff]
    %v6784 = vld [vmem:[#allocation3 + $0x758] sm:$0xff]
    %v6785 = vld [vmem:[#allocation3 + $0x760] sm:$0xff]
    %v6786 = vld [vmem:[#allocation3 + $0x768] sm:$0xff]
    %v6787 = vld [vmem:[#allocation3 + $0x770] sm:$0xff]
    %v6788 = vld [vmem:[#allocation3 + $0x778] sm:$0xff]
    %v6789 = vld [vmem:[#allocation3 + $0x780] sm:$0xff]
    %v6790 = vld [vmem:[#allocation3 + $0x788] sm:$0xff]
    %v6791 = vld [vmem:[#allocation3 + $0x790] sm:$0xff]
    %v6792 = vld [vmem:[#allocation3 + $0x798] sm:$0xff]
    %v6793 = vld [vmem:[#allocation3 + $0x7a0] sm:$0xff]
    %v6794 = vld [vmem:[#allocation3 + $0x7a8] sm:$0xff]
    %v6795 = vld [vmem:[#allocation3 + $0x7b0] sm:$0xff]
    %v6796 = vld [vmem:[#allocation3 + $0x7b8] sm:$0xff]
    %v6797 = vld [vmem:[#allocation3 + $0x7c0] sm:$0xff]
    %v6798 = vld [vmem:[#allocation3 + $0x7c8] sm:$0xff]
    %v6799 = vld [vmem:[#allocation3 + $0x7d0] sm:$0xff]
    %v6800 = vld [vmem:[#allocation3 + $0x7d8] sm:$0xff]
    %v6801 = vld [vmem:[#allocation3 + $0x7e0] sm:$0xff]
    %v6802 = vld [vmem:[#allocation3 + $0x7e8] sm:$0xff]
    %v6803 = vld [vmem:[#allocation3 + $0x7f0] sm:$0xff]
    %v6804 = vld [vmem:[#allocation3 + $0x7f8] sm:$0xff]
    %v6805 = vld [vmem:[#allocation15] sm:$0xff]
    %v6807 = vlaneseq
    %v6808 = vshrl.u32 %v6807, 7
    %v6809 = vsub.s32 0, %v6808
    %v6810 = vrot.slane %v6805, %v6809
    %v6811 = vlaneseq
    %v6812 = vshrl.u32 %v6811, 7
    %v6813 = vsub.s32 1, %v6812
    %v6814 = vrot.slane %v6805, %v6813
    %v6815 = vlaneseq
    %v6816 = vshrl.u32 %v6815, 7
    %v6817 = vsub.s32 2, %v6816
    %v6818 = vrot.slane %v6805, %v6817
    %v6819 = vlaneseq
    %v6820 = vshrl.u32 %v6819, 7
    %v6821 = vsub.s32 3, %v6820
    %v6822 = vrot.slane %v6805, %v6821
    %v6823 = vlaneseq
    %v6824 = vshrl.u32 %v6823, 7
    %v6825 = vsub.s32 4, %v6824
    %v6826 = vrot.slane %v6805, %v6825
    %v6827 = vlaneseq
    %v6828 = vshrl.u32 %v6827, 7
    %v6829 = vsub.s32 5, %v6828
    %v6830 = vrot.slane %v6805, %v6829
    %v6831 = vlaneseq
    %v6832 = vshrl.u32 %v6831, 7
    %v6833 = vsub.s32 6, %v6832
    %v6834 = vrot.slane %v6805, %v6833
    %v6835 = vlaneseq
    %v6836 = vshrl.u32 %v6835, 7
    %v6837 = vsub.s32 7, %v6836
    %v6838 = vrot.slane %v6805, %v6837
    %6847 = vmatprep.subr.bf16.mxu0 %v6550
    %6848 = vmatpush1.bf16.msra.mxu0 %v6549
    %6849 = vmatprep.subr.bf16.mxu0 %v6558
    %6850 = vmatpush1.bf16.msra.mxu0 %v6557
    %6851 = vmatprep.subr.bf16.mxu0 %v6566
    %6852 = vmatpush1.bf16.msra.mxu0 %v6565
    %6853 = vmatprep.subr.bf16.mxu0 %v6574
    %6854 = vmatpush1.bf16.msra.mxu0 %v6573
    %6855 = vmatprep.subr.bf16.mxu0 %v6582
    %6856 = vmatpush1.bf16.msra.mxu0 %v6581
    %6857 = vmatprep.subr.bf16.mxu0 %v6590
    %6858 = vmatpush1.bf16.msra.mxu0 %v6589
    %6859 = vmatprep.subr.bf16.mxu0 %v6598
    %6860 = vmatpush1.bf16.msra.mxu0 %v6597
    %6861 = vmatprep.subr.bf16.mxu0 %v6606
    %6862 = vmatpush1.bf16.msra.mxu0 %v6605
    %6863 = vmatprep.subr.bf16.mxu0 %v6614
    %6864 = vmatpush1.bf16.msra.mxu0 %v6613
    %6865 = vmatprep.subr.bf16.mxu0 %v6622
    %6866 = vmatpush1.bf16.msra.mxu0 %v6621
    %6867 = vmatprep.subr.bf16.mxu0 %v6630
    %6868 = vmatpush1.bf16.msra.mxu0 %v6629
    %6869 = vmatprep.subr.bf16.mxu0 %v6638
    %6870 = vmatpush1.bf16.msra.mxu0 %v6637
    %6871 = vmatprep.subr.bf16.mxu0 %v6646
    %6872 = vmatpush1.bf16.msra.mxu0 %v6645
    %6873 = vmatprep.subr.bf16.mxu0 %v6654
    %6874 = vmatpush1.bf16.msra.mxu0 %v6653
    %6875 = vmatprep.subr.bf16.mxu0 %v6662
    %6876 = vmatpush1.bf16.msra.mxu0 %v6661
    %6877 = vmatprep.subr.bf16.mxu0 %v6670
    %6878 = vmatpush1.bf16.msra.mxu0 %v6669
    %6879 = vmatprep.mubr.bf16.mxu0 %v6542
    %6880 = vmatmul.mubr.bf16.gmra.mrb[0].mxu0 %v6541
    %v6881 = vpop.f32.mrb[0].mxu0
    %v6882 = vadd.f32 %v6810, %v6881
    %v6883 = vpop.f32.mrb[0].mxu0
    %v6884 = vadd.f32 %v6814, %v6883
    %v6885 = vpop.f32.mrb[0].mxu0
    %v6886 = vpop.f32.mrb[0].mxu0
    %6887 = vdwg.mxu0
    %6888 = vmatprep.subr.bf16.mxu0 %v6678
    %6889 = vmatpush1.bf16.msra.mxu0 %v6677
    %6890 = vmatprep.subr.bf16.mxu0 %v6686
    %6891 = vmatpush1.bf16.msra.mxu0 %v6685
    %6892 = vmatprep.subr.bf16.mxu0 %v6694
    %6893 = vmatpush1.bf16.msra.mxu0 %v6693
    %6894 = vmatprep.subr.bf16.mxu0 %v6702
    %6895 = vmatpush1.bf16.msra.mxu0 %v6701
    %6896 = vmatprep.subr.bf16.mxu0 %v6710
    %6897 = vmatpush1.bf16.msra.mxu0 %v6709
    %6898 = vmatprep.subr.bf16.mxu0 %v6718
    %6899 = vmatpush1.bf16.msra.mxu0 %v6717
    %6900 = vmatprep.subr.bf16.mxu0 %v6726
    %6901 = vmatpush1.bf16.msra.mxu0 %v6725
    %6902 = vmatprep.subr.bf16.mxu0 %v6734
    %6903 = vmatpush1.bf16.msra.mxu0 %v6733
    %6904 = vmatprep.subr.bf16.mxu0 %v6742
    %6905 = vmatpush1.bf16.msra.mxu0 %v6741
    %6906 = vmatprep.subr.bf16.mxu0 %v6750
    %6907 = vmatpush1.bf16.msra.mxu0 %v6749
    %6908 = vmatprep.subr.bf16.mxu0 %v6758
    %6909 = vmatpush1.bf16.msra.mxu0 %v6757
    %6910 = vmatprep.subr.bf16.mxu0 %v6766
    %6911 = vmatpush1.bf16.msra.mxu0 %v6765
    %6912 = vmatprep.subr.bf16.mxu0 %v6774
    %6913 = vmatpush1.bf16.msra.mxu0 %v6773
    %6914 = vmatprep.subr.bf16.mxu0 %v6782
    %6915 = vmatpush1.bf16.msra.mxu0 %v6781
    %6916 = vmatprep.subr.bf16.mxu0 %v6790
    %6917 = vmatpush1.bf16.msra.mxu0 %v6789
    %6918 = vmatprep.subr.bf16.mxu0 %v6798
    %6919 = vmatpush1.bf16.msra.mxu0 %v6797
    %6920 = vmatprep.mubr.bf16.mxu0 %v6544
    %6921 = vmatmul.mubr.bf16.gmra.mrb[0].mxu0 %v6543
    %v6922 = vpop.f32.mrb[0].mxu0
    %v6923 = vadd.f32 %v6882, %v6922
    %v6924 = vpop.f32.mrb[0].mxu0
    %v6925 = vadd.f32 %v6884, %v6924
    %v6926 = vpop.f32.mrb[0].mxu0
    %v6927 = vpop.f32.mrb[0].mxu0
    %6928 = vdwg.mxu0
    %6929 = vmatprep.subr.bf16.mxu0 %v6552
    %6930 = vmatpush1.bf16.msra.mxu0 %v6551
    %6931 = vmatprep.subr.bf16.mxu0 %v6560
    %6932 = vmatpush1.bf16.msra.mxu0 %v6559
    %6933 = vmatprep.subr.bf16.mxu0 %v6568
    %6934 = vmatpush1.bf16.msra.mxu0 %v6567
    %6935 = vmatprep.subr.bf16.mxu0 %v6576
    %6936 = vmatpush1.bf16.msra.mxu0 %v6575
    %6937 = vmatprep.subr.bf16.mxu0 %v6584
    %6938 = vmatpush1.bf16.msra.mxu0 %v6583
    %6939 = vmatprep.subr.bf16.mxu0 %v6592
    %6940 = vmatpush1.bf16.msra.mxu0 %v6591
    %6941 = vmatprep.subr.bf16.mxu0 %v6600
    %6942 = vmatpush1.bf16.msra.mxu0 %v6599
    %6943 = vmatprep.subr.bf16.mxu0 %v6608
    %6944 = vmatpush1.bf16.msra.mxu0 %v6607
    %6945 = vmatprep.subr.bf16.mxu0 %v6616
    %6946 = vmatpush1.bf16.msra.mxu0 %v6615
    %6947 = vmatprep.subr.bf16.mxu0 %v6624
    %6948 = vmatpush1.bf16.msra.mxu0 %v6623
    %6949 = vmatprep.subr.bf16.mxu0 %v6632
    %6950 = vmatpush1.bf16.msra.mxu0 %v6631
    %6951 = vmatprep.subr.bf16.mxu0 %v6640
    %6952 = vmatpush1.bf16.msra.mxu0 %v6639
    %6953 = vmatprep.subr.bf16.mxu0 %v6648
    %6954 = vmatpush1.bf16.msra.mxu0 %v6647
    %6955 = vmatprep.subr.bf16.mxu0 %v6656
    %6956 = vmatpush1.bf16.msra.mxu0 %v6655
    %6957 = vmatprep.subr.bf16.mxu0 %v6664
    %6958 = vmatpush1.bf16.msra.mxu0 %v6663
    %6959 = vmatprep.subr.bf16.mxu0 %v6672
    %6960 = vmatpush1.bf16.msra.mxu0 %v6671
    %6961 = vmatprep.mubr.bf16.mxu0 %v6542
    %6962 = vmatmul.mubr.bf16.gmra.mrb[0].mxu0 %v6541
    %v6963 = vpop.f32.mrb[0].mxu0
    %v6964 = vadd.f32 %v6818, %v6963
    %v6965 = vpop.f32.mrb[0].mxu0
    %v6966 = vadd.f32 %v6822, %v6965
    %v6967 = vpop.f32.mrb[0].mxu0
    %v6968 = vpop.f32.mrb[0].mxu0
    %6969 = vdwg.mxu0
    %6970 = vmatprep.subr.bf16.mxu0 %v6680
    %6971 = vmatpush1.bf16.msra.mxu0 %v6679
    %6972 = vmatprep.subr.bf16.mxu0 %v6688
    %6973 = vmatpush1.bf16.msra.mxu0 %v6687
    %6974 = vmatprep.subr.bf16.mxu0 %v6696
    %6975 = vmatpush1.bf16.msra.mxu0 %v6695
    %6976 = vmatprep.subr.bf16.mxu0 %v6704
    %6977 = vmatpush1.bf16.msra.mxu0 %v6703
    %6978 = vmatprep.subr.bf16.mxu0 %v6712
    %6979 = vmatpush1.bf16.msra.mxu0 %v6711
    %6980 = vmatprep.subr.bf16.mxu0 %v6720
    %6981 = vmatpush1.bf16.msra.mxu0 %v6719
    %6982 = vmatprep.subr.bf16.mxu0 %v6728
    %6983 = vmatpush1.bf16.msra.mxu0 %v6727
    %6984 = vmatprep.subr.bf16.mxu0 %v6736
    %6985 = vmatpush1.bf16.msra.mxu0 %v6735
    %6986 = vmatprep.subr.bf16.mxu0 %v6744
    %6987 = vmatpush1.bf16.msra.mxu0 %v6743
    %6988 = vmatprep.subr.bf16.mxu0 %v6752
    %6989 = vmatpush1.bf16.msra.mxu0 %v6751
    %6990 = vmatprep.subr.bf16.mxu0 %v6760
    %6991 = vmatpush1.bf16.msra.mxu0 %v6759
    %6992 = vmatprep.subr.bf16.mxu0 %v6768
    %6993 = vmatpush1.bf16.msra.mxu0 %v6767
    %6994 = vmatprep.subr.bf16.mxu0 %v6776
    %6995 = vmatpush1.bf16.msra.mxu0 %v6775
    %6996 = vmatprep.subr.bf16.mxu0 %v6784
    %6997 = vmatpush1.bf16.msra.mxu0 %v6783
    %6998 = vmatprep.subr.bf16.mxu0 %v6792
    %6999 = vmatpush1.bf16.msra.mxu0 %v6791
    %7000 = vmatprep.subr.bf16.mxu0 %v6800
    %7001 = vmatpush1.bf16.msra.mxu0 %v6799
    %7002 = vmatprep.mubr.bf16.mxu0 %v6544
    %7003 = vmatmul.mubr.bf16.gmra.mrb[0].mxu0 %v6543
    %v7004 = vpop.f32.mrb[0].mxu0
    %v7005 = vadd.f32 %v6964, %v7004
    %v7006 = vpop.f32.mrb[0].mxu0
    %v7007 = vadd.f32 %v6966, %v7006
    %v7008 = vpop.f32.mrb[0].mxu0
    %v7009 = vpop.f32.mrb[0].mxu0
    %7010 = vdwg.mxu0
    %7011 = vmatprep.subr.bf16.mxu0 %v6554
    %7012 = vmatpush1.bf16.msra.mxu0 %v6553
    %7013 = vmatprep.subr.bf16.mxu0 %v6562
    %7014 = vmatpush1.bf16.msra.mxu0 %v6561
    %7015 = vmatprep.subr.bf16.mxu0 %v6570
    %7016 = vmatpush1.bf16.msra.mxu0 %v6569
    %7017 = vmatprep.subr.bf16.mxu0 %v6578
    %7018 = vmatpush1.bf16.msra.mxu0 %v6577
    %7019 = vmatprep.subr.bf16.mxu0 %v6586
    %7020 = vmatpush1.bf16.msra.mxu0 %v6585
    %7021 = vmatprep.subr.bf16.mxu0 %v6594
    %7022 = vmatpush1.bf16.msra.mxu0 %v6593
    %7023 = vmatprep.subr.bf16.mxu0 %v6602
    %7024 = vmatpush1.bf16.msra.mxu0 %v6601
    %7025 = vmatprep.subr.bf16.mxu0 %v6610
    %7026 = vmatpush1.bf16.msra.mxu0 %v6609
    %7027 = vmatprep.subr.bf16.mxu0 %v6618
    %7028 = vmatpush1.bf16.msra.mxu0 %v6617
    %7029 = vmatprep.subr.bf16.mxu0 %v6626
    %7030 = vmatpush1.bf16.msra.mxu0 %v6625
    %7031 = vmatprep.subr.bf16.mxu0 %v6634
    %7032 = vmatpush1.bf16.msra.mxu0 %v6633
    %7033 = vmatprep.subr.bf16.mxu0 %v6642
    %7034 = vmatpush1.bf16.msra.mxu0 %v6641
    %7035 = vmatprep.subr.bf16.mxu0 %v6650
    %7036 = vmatpush1.bf16.msra.mxu0 %v6649
    %7037 = vmatprep.subr.bf16.mxu0 %v6658
    %7038 = vmatpush1.bf16.msra.mxu0 %v6657
    %7039 = vmatprep.subr.bf16.mxu0 %v6666
    %7040 = vmatpush1.bf16.msra.mxu0 %v6665
    %7041 = vmatprep.subr.bf16.mxu0 %v6674
    %7042 = vmatpush1.bf16.msra.mxu0 %v6673
    %7043 = vmatprep.mubr.bf16.mxu0 %v6542
    %7044 = vmatmul.mubr.bf16.gmra.mrb[0].mxu0 %v6541
    %v7045 = vpop.f32.mrb[0].mxu0
    %v7046 = vadd.f32 %v6826, %v7045
    %v7047 = vpop.f32.mrb[0].mxu0
    %v7048 = vadd.f32 %v6830, %v7047
    %v7049 = vpop.f32.mrb[0].mxu0
    %v7050 = vpop.f32.mrb[0].mxu0
    %7051 = vdwg.mxu0
    %7052 = vmatprep.subr.bf16.mxu0 %v6682
    %7053 = vmatpush1.bf16.msra.mxu0 %v6681
    %7054 = vmatprep.subr.bf16.mxu0 %v6690
    %7055 = vmatpush1.bf16.msra.mxu0 %v6689
    %7056 = vmatprep.subr.bf16.mxu0 %v6698
    %7057 = vmatpush1.bf16.msra.mxu0 %v6697
    %7058 = vmatprep.subr.bf16.mxu0 %v6706
    %7059 = vmatpush1.bf16.msra.mxu0 %v6705
    %7060 = vmatprep.subr.bf16.mxu0 %v6714
    %7061 = vmatpush1.bf16.msra.mxu0 %v6713
    %7062 = vmatprep.subr.bf16.mxu0 %v6722
    %7063 = vmatpush1.bf16.msra.mxu0 %v6721
    %7064 = vmatprep.subr.bf16.mxu0 %v6730
    %7065 = vmatpush1.bf16.msra.mxu0 %v6729
    %7066 = vmatprep.subr.bf16.mxu0 %v6738
    %7067 = vmatpush1.bf16.msra.mxu0 %v6737
    %7068 = vmatprep.subr.bf16.mxu0 %v6746
    %7069 = vmatpush1.bf16.msra.mxu0 %v6745
    %7070 = vmatprep.subr.bf16.mxu0 %v6754
    %7071 = vmatpush1.bf16.msra.mxu0 %v6753
    %7072 = vmatprep.subr.bf16.mxu0 %v6762
    %7073 = vmatpush1.bf16.msra.mxu0 %v6761
    %7074 = vmatprep.subr.bf16.mxu0 %v6770
    %7075 = vmatpush1.bf16.msra.mxu0 %v6769
    %7076 = vmatprep.subr.bf16.mxu0 %v6778
    %7077 = vmatpush1.bf16.msra.mxu0 %v6777
    %7078 = vmatprep.subr.bf16.mxu0 %v6786
    %7079 = vmatpush1.bf16.msra.mxu0 %v6785
    %7080 = vmatprep.subr.bf16.mxu0 %v6794
    %7081 = vmatpush1.bf16.msra.mxu0 %v6793
    %7082 = vmatprep.subr.bf16.mxu0 %v6802
    %7083 = vmatpush1.bf16.msra.mxu0 %v6801
    %7084 = vmatprep.mubr.bf16.mxu0 %v6544
    %7085 = vmatmul.mubr.bf16.gmra.mrb[0].mxu0 %v6543
    %v7086 = vpop.f32.mrb[0].mxu0
    %v7087 = vadd.f32 %v7046, %v7086
    %v7088 = vpop.f32.mrb[0].mxu0
    %v7089 = vadd.f32 %v7048, %v7088
    %v7090 = vpop.f32.mrb[0].mxu0
    %v7091 = vpop.f32.mrb[0].mxu0
    %7092 = vdwg.mxu0
    %7093 = vmatprep.subr.bf16.mxu0 %v6556
    %7094 = vmatpush1.bf16.msra.mxu0 %v6555
    %7095 = vmatprep.subr.bf16.mxu0 %v6564
    %7096 = vmatpush1.bf16.msra.mxu0 %v6563
    %7097 = vmatprep.subr.bf16.mxu0 %v6572
    %7098 = vmatpush1.bf16.msra.mxu0 %v6571
    %7099 = vmatprep.subr.bf16.mxu0 %v6580
    %7100 = vmatpush1.bf16.msra.mxu0 %v6579
    %7101 = vmatprep.subr.bf16.mxu0 %v6588
    %7102 = vmatpush1.bf16.msra.mxu0 %v6587
    %7103 = vmatprep.subr.bf16.mxu0 %v6596
    %7104 = vmatpush1.bf16.msra.mxu0 %v6595
    %7105 = vmatprep.subr.bf16.mxu0 %v6604
    %7106 = vmatpush1.bf16.msra.mxu0 %v6603
    %7107 = vmatprep.subr.bf16.mxu0 %v6612
    %7108 = vmatpush1.bf16.msra.mxu0 %v6611
    %7109 = vmatprep.subr.bf16.mxu0 %v6620
    %7110 = vmatpush1.bf16.msra.mxu0 %v6619
    %7111 = vmatprep.subr.bf16.mxu0 %v6628
    %7112 = vmatpush1.bf16.msra.mxu0 %v6627
    %7113 = vmatprep.subr.bf16.mxu0 %v6636
    %7114 = vmatpush1.bf16.msra.mxu0 %v6635
    %7115 = vmatprep.subr.bf16.mxu0 %v6644
    %7116 = vmatpush1.bf16.msra.mxu0 %v6643
    %7117 = vmatprep.subr.bf16.mxu0 %v6652
    %7118 = vmatpush1.bf16.msra.mxu0 %v6651
    %7119 = vmatprep.subr.bf16.mxu0 %v6660
    %7120 = vmatpush1.bf16.msra.mxu0 %v6659
    %7121 = vmatprep.subr.bf16.mxu0 %v6668
    %7122 = vmatpush1.bf16.msra.mxu0 %v6667
    %7123 = vmatprep.subr.bf16.mxu0 %v6676
    %7124 = vmatpush1.bf16.msra.mxu0 %v6675
    %7125 = vmatprep.mubr.bf16.mxu0 %v6542
    %7126 = vmatmul.mubr.bf16.gmra.mrb[0].mxu0 %v6541
    %v7127 = vpop.f32.mrb[0].mxu0
    %v7128 = vadd.f32 %v6834, %v7127
    %v7129 = vpop.f32.mrb[0].mxu0
    %v7130 = vadd.f32 %v6838, %v7129
    %v7131 = vpop.f32.mrb[0].mxu0
    %v7132 = vpop.f32.mrb[0].mxu0
    %7133 = vdwg.mxu0
    %7134 = vmatprep.subr.bf16.mxu0 %v6684
    %7135 = vmatpush1.bf16.msra.mxu0 %v6683
    %7136 = vmatprep.subr.bf16.mxu0 %v6692
    %7137 = vmatpush1.bf16.msra.mxu0 %v6691
    %7138 = vmatprep.subr.bf16.mxu0 %v6700
    %7139 = vmatpush1.bf16.msra.mxu0 %v6699
    %7140 = vmatprep.subr.bf16.mxu0 %v6708
    %7141 = vmatpush1.bf16.msra.mxu0 %v6707
    %7142 = vmatprep.subr.bf16.mxu0 %v6716
    %7143 = vmatpush1.bf16.msra.mxu0 %v6715
    %7144 = vmatprep.subr.bf16.mxu0 %v6724
    %7145 = vmatpush1.bf16.msra.mxu0 %v6723
    %7146 = vmatprep.subr.bf16.mxu0 %v6732
    %7147 = vmatpush1.bf16.msra.mxu0 %v6731
    %7148 = vmatprep.subr.bf16.mxu0 %v6740
    %7149 = vmatpush1.bf16.msra.mxu0 %v6739
    %7150 = vmatprep.subr.bf16.mxu0 %v6748
    %7151 = vmatpush1.bf16.msra.mxu0 %v6747
    %7152 = vmatprep.subr.bf16.mxu0 %v6756
    %7153 = vmatpush1.bf16.msra.mxu0 %v6755
    %7154 = vmatprep.subr.bf16.mxu0 %v6764
    %7155 = vmatpush1.bf16.msra.mxu0 %v6763
    %7156 = vmatprep.subr.bf16.mxu0 %v6772
    %7157 = vmatpush1.bf16.msra.mxu0 %v6771
    %7158 = vmatprep.subr.bf16.mxu0 %v6780
    %7159 = vmatpush1.bf16.msra.mxu0 %v6779
    %7160 = vmatprep.subr.bf16.mxu0 %v6788
    %7161 = vmatpush1.bf16.msra.mxu0 %v6787
    %7162 = vmatprep.subr.bf16.mxu0 %v6796
    %7163 = vmatpush1.bf16.msra.mxu0 %v6795
    %7164 = vmatprep.subr.bf16.mxu0 %v6804
    %7165 = vmatpush1.bf16.msra.mxu0 %v6803
    %7166 = vmatprep.mubr.bf16.mxu0 %v6544
    %7167 = vmatmul.mubr.bf16.gmra.mrb[0].mxu0 %v6543
    %v7168 = vpop.f32.mrb[0].mxu0
    %v7169 = vadd.f32 %v7128, %v7168
    %v7170 = vpop.f32.mrb[0].mxu0
    %v7171 = vadd.f32 %v7130, %v7170
    %v7172 = vpop.f32.mrb[0].mxu0
    %v7173 = vpop.f32.mrb[0].mxu0
    %7174 = vdwg.mxu0
    %vm7175 = vcmp.gt.f32.partialorder %v6923, 0.0
    %vm7176 = vcmp.gt.f32.partialorder %v6925, 0.0
    %vm7177 = vcmp.gt.f32.partialorder %v7005, 0.0
    %vm7178 = vcmp.gt.f32.partialorder %v7007, 0.0
    %vm7179 = vcmp.gt.f32.partialorder %v7087, 0.0
    %vm7180 = vcmp.gt.f32.partialorder %v7089, 0.0
    %vm7181 = vcmp.gt.f32.partialorder %v7169, 0.0
    %vm7182 = vcmp.gt.f32.partialorder %v7171, 0.0
    %v7183 = vmul.f32 %v6923, 0.01
    %v7184 = vmul.f32 %v6925, 0.01
    %v7185 = vmul.f32 %v7005, 0.01
    %v7186 = vmul.f32 %v7007, 0.01
    %v7187 = vmul.f32 %v7087, 0.01
    %v7188 = vmul.f32 %v7089, 0.01
    %v7189 = vmul.f32 %v7169, 0.01
    %v7190 = vmul.f32 %v7171, 0.01
    %v7191 = vsel %vm7175, %v6923, %v7183
    %v7192 = vsel %vm7176, %v6925, %v7184
    %v7193 = vsel %vm7177, %v7005, %v7185
    %v7194 = vsel %vm7178, %v7007, %v7186
    %v7195 = vsel %vm7179, %v7087, %v7187
    %v7196 = vsel %vm7180, %v7089, %v7188
    %v7197 = vsel %vm7181, %v7169, %v7189
    %v7198 = vsel %vm7182, %v7171, %v7190
    %v7199 = vpack.c.bf16 %v7191, %v7191
    %v7200 = vpack.c.bf16 %v7192, %v7192
    %v7201 = vpack.c.bf16 %v7193, %v7193
    %v7202 = vpack.c.bf16 %v7194, %v7194
    %v7203 = vpack.c.bf16 %v7195, %v7195
    %v7204 = vpack.c.bf16 %v7196, %v7196
    %v7205 = vpack.c.bf16 %v7197, %v7197
    %v7206 = vpack.c.bf16 %v7198, %v7198
    %s7207 = smul.u32 %s5342, 1
    %s7208 = sshll.u32 %s7207, 4
    %7209 = dma.done %s232, %s7208
    %v7210 = vld [vmem:[#allocation4] sm:$0xff]
    %v7211 = vld [vmem:[#allocation4 + $0x8] sm:$0xff]
    %v7212 = vld [vmem:[#allocation4 + $0x10] sm:$0xff]
    %v7213 = vld [vmem:[#allocation4 + $0x18] sm:$0xff]
    %v7214 = vld [vmem:[#allocation4 + $0x20] sm:$0xff]
    %v7215 = vld [vmem:[#allocation4 + $0x28] sm:$0xff]
    %v7216 = vld [vmem:[#allocation4 + $0x30] sm:$0xff]
    %v7217 = vld [vmem:[#allocation4 + $0x38] sm:$0xff]
    %v7218 = vld [vmem:[#allocation4 + $0x40] sm:$0xff]
    %v7219 = vld [vmem:[#allocation4 + $0x48] sm:$0xff]
    %v7220 = vld [vmem:[#allocation4 + $0x50] sm:$0xff]
    %v7221 = vld [vmem:[#allocation4 + $0x58] sm:$0xff]
    %v7222 = vld [vmem:[#allocation4 + $0x60] sm:$0xff]
    %v7223 = vld [vmem:[#allocation4 + $0x68] sm:$0xff]
    %v7224 = vld [vmem:[#allocation4 + $0x70] sm:$0xff]
    %v7225 = vld [vmem:[#allocation4 + $0x78] sm:$0xff]
    %v7226 = vld [vmem:[#allocation4 + $0x80] sm:$0xff]
    %v7227 = vld [vmem:[#allocation4 + $0x88] sm:$0xff]
    %v7228 = vld [vmem:[#allocation4 + $0x90] sm:$0xff]
    %v7229 = vld [vmem:[#allocation4 + $0x98] sm:$0xff]
    %v7230 = vld [vmem:[#allocation4 + $0xa0] sm:$0xff]
    %v7231 = vld [vmem:[#allocation4 + $0xa8] sm:$0xff]
    %v7232 = vld [vmem:[#allocation4 + $0xb0] sm:$0xff]
    %v7233 = vld [vmem:[#allocation4 + $0xb8] sm:$0xff]
    %v7234 = vld [vmem:[#allocation4 + $0xc0] sm:$0xff]
    %v7235 = vld [vmem:[#allocation4 + $0xc8] sm:$0xff]
    %v7236 = vld [vmem:[#allocation4 + $0xd0] sm:$0xff]
    %v7237 = vld [vmem:[#allocation4 + $0xd8] sm:$0xff]
    %v7238 = vld [vmem:[#allocation4 + $0xe0] sm:$0xff]
    %v7239 = vld [vmem:[#allocation4 + $0xe8] sm:$0xff]
    %v7240 = vld [vmem:[#allocation4 + $0xf0] sm:$0xff]
    %v7241 = vld [vmem:[#allocation4 + $0xf8] sm:$0xff]
    %v7242 = vld [vmem:[#allocation4 + $0x100] sm:$0xff]
    %v7243 = vld [vmem:[#allocation4 + $0x108] sm:$0xff]
    %v7244 = vld [vmem:[#allocation4 + $0x110] sm:$0xff]
    %v7245 = vld [vmem:[#allocation4 + $0x118] sm:$0xff]
    %v7246 = vld [vmem:[#allocation4 + $0x120] sm:$0xff]
    %v7247 = vld [vmem:[#allocation4 + $0x128] sm:$0xff]
    %v7248 = vld [vmem:[#allocation4 + $0x130] sm:$0xff]
    %v7249 = vld [vmem:[#allocation4 + $0x138] sm:$0xff]
    %v7250 = vld [vmem:[#allocation4 + $0x140] sm:$0xff]
    %v7251 = vld [vmem:[#allocation4 + $0x148] sm:$0xff]
    %v7252 = vld [vmem:[#allocation4 + $0x150] sm:$0xff]
    %v7253 = vld [vmem:[#allocation4 + $0x158] sm:$0xff]
    %v7254 = vld [vmem:[#allocation4 + $0x160] sm:$0xff]
    %v7255 = vld [vmem:[#allocation4 + $0x168] sm:$0xff]
    %v7256 = vld [vmem:[#allocation4 + $0x170] sm:$0xff]
    %v7257 = vld [vmem:[#allocation4 + $0x178] sm:$0xff]
    %v7258 = vld [vmem:[#allocation4 + $0x180] sm:$0xff]
    %v7259 = vld [vmem:[#allocation4 + $0x188] sm:$0xff]
    %v7260 = vld [vmem:[#allocation4 + $0x190] sm:$0xff]
    %v7261 = vld [vmem:[#allocation4 + $0x198] sm:$0xff]
    %v7262 = vld [vmem:[#allocation4 + $0x1a0] sm:$0xff]
    %v7263 = vld [vmem:[#allocation4 + $0x1a8] sm:$0xff]
    %v7264 = vld [vmem:[#allocation4 + $0x1b0] sm:$0xff]
    %v7265 = vld [vmem:[#allocation4 + $0x1b8] sm:$0xff]
    %v7266 = vld [vmem:[#allocation4 + $0x1c0] sm:$0xff]
    %v7267 = vld [vmem:[#allocation4 + $0x1c8] sm:$0xff]
    %v7268 = vld [vmem:[#allocation4 + $0x1d0] sm:$0xff]
    %v7269 = vld [vmem:[#allocation4 + $0x1d8] sm:$0xff]
    %v7270 = vld [vmem:[#allocation4 + $0x1e0] sm:$0xff]
    %v7271 = vld [vmem:[#allocation4 + $0x1e8] sm:$0xff]
    %v7272 = vld [vmem:[#allocation4 + $0x1f0] sm:$0xff]
    %v7273 = vld [vmem:[#allocation4 + $0x1f8] sm:$0xff]
    %v7274 = vld [vmem:[#allocation17] sm:$0x1]
    %v7276 = vlaneseq
    %v7277 = vshrl.u32 %v7276, 7
    %v7278 = vsub.s32 0, %v7277
    %v7279 = vrot.slane %v7274, %v7278
    %7281 = vmatprep.subr.bf16.mxu0 0
    %7282 = vmatpush1.bf16.msra.mxu0 %v7210
    %7283 = vmatprep.subr.bf16.mxu0 0
    %7284 = vmatpush1.bf16.msra.mxu0 %v7211
    %7285 = vmatprep.subr.bf16.mxu0 0
    %7286 = vmatpush1.bf16.msra.mxu0 %v7212
    %7287 = vmatprep.subr.bf16.mxu0 0
    %7288 = vmatpush1.bf16.msra.mxu0 %v7213
    %7289 = vmatprep.subr.bf16.mxu0 0
    %7290 = vmatpush1.bf16.msra.mxu0 %v7214
    %7291 = vmatprep.subr.bf16.mxu0 0
    %7292 = vmatpush1.bf16.msra.mxu0 %v7215
    %7293 = vmatprep.subr.bf16.mxu0 0
    %7294 = vmatpush1.bf16.msra.mxu0 %v7216
    %7295 = vmatprep.subr.bf16.mxu0 0
    %7296 = vmatpush1.bf16.msra.mxu0 %v7217
    %7297 = vmatprep.subr.bf16.mxu0 0
    %7298 = vmatpush1.bf16.msra.mxu0 %v7218
    %7299 = vmatprep.subr.bf16.mxu0 0
    %7300 = vmatpush1.bf16.msra.mxu0 %v7219
    %7301 = vmatprep.subr.bf16.mxu0 0
    %7302 = vmatpush1.bf16.msra.mxu0 %v7220
    %7303 = vmatprep.subr.bf16.mxu0 0
    %7304 = vmatpush1.bf16.msra.mxu0 %v7221
    %7305 = vmatprep.subr.bf16.mxu0 0
    %7306 = vmatpush1.bf16.msra.mxu0 %v7222
    %7307 = vmatprep.subr.bf16.mxu0 0
    %7308 = vmatpush1.bf16.msra.mxu0 %v7223
    %7309 = vmatprep.subr.bf16.mxu0 0
    %7310 = vmatpush1.bf16.msra.mxu0 %v7224
    %7311 = vmatprep.subr.bf16.mxu0 0
    %7312 = vmatpush1.bf16.msra.mxu0 %v7225
    %7313 = vmatprep.mubr.bf16.mxu0 %v7200
    %7314 = vmatmul.mubr.bf16.gmra.mrb[0].mxu0 %v7199
    %v7315 = vpop.f32.mrb[0].mxu0
    %v7316 = vadd.f32 %v7279, %v7315
    %v7317 = vpop.f32.mrb[0].mxu0
    %v7318 = vpop.f32.mrb[0].mxu0
    %v7319 = vpop.f32.mrb[0].mxu0
    %7320 = vdwg.mxu0
    %7321 = vmatprep.subr.bf16.mxu0 0
    %7322 = vmatpush1.bf16.msra.mxu0 %v7226
    %7323 = vmatprep.subr.bf16.mxu0 0
    %7324 = vmatpush1.bf16.msra.mxu0 %v7227
    %7325 = vmatprep.subr.bf16.mxu0 0
    %7326 = vmatpush1.bf16.msra.mxu0 %v7228
    %7327 = vmatprep.subr.bf16.mxu0 0
    %7328 = vmatpush1.bf16.msra.mxu0 %v7229
    %7329 = vmatprep.subr.bf16.mxu0 0
    %7330 = vmatpush1.bf16.msra.mxu0 %v7230
    %7331 = vmatprep.subr.bf16.mxu0 0
    %7332 = vmatpush1.bf16.msra.mxu0 %v7231
    %7333 = vmatprep.subr.bf16.mxu0 0
    %7334 = vmatpush1.bf16.msra.mxu0 %v7232
    %7335 = vmatprep.subr.bf16.mxu0 0
    %7336 = vmatpush1.bf16.msra.mxu0 %v7233
    %7337 = vmatprep.subr.bf16.mxu0 0
    %7338 = vmatpush1.bf16.msra.mxu0 %v7234
    %7339 = vmatprep.subr.bf16.mxu0 0
    %7340 = vmatpush1.bf16.msra.mxu0 %v7235
    %7341 = vmatprep.subr.bf16.mxu0 0
    %7342 = vmatpush1.bf16.msra.mxu0 %v7236
    %7343 = vmatprep.subr.bf16.mxu0 0
    %7344 = vmatpush1.bf16.msra.mxu0 %v7237
    %7345 = vmatprep.subr.bf16.mxu0 0
    %7346 = vmatpush1.bf16.msra.mxu0 %v7238
    %7347 = vmatprep.subr.bf16.mxu0 0
    %7348 = vmatpush1.bf16.msra.mxu0 %v7239
    %7349 = vmatprep.subr.bf16.mxu0 0
    %7350 = vmatpush1.bf16.msra.mxu0 %v7240
    %7351 = vmatprep.subr.bf16.mxu0 0
    %7352 = vmatpush1.bf16.msra.mxu0 %v7241
    %7353 = vmatprep.mubr.bf16.mxu0 %v7202
    %7354 = vmatmul.mubr.bf16.gmra.mrb[0].mxu0 %v7201
    %v7355 = vpop.f32.mrb[0].mxu0
    %v7356 = vadd.f32 %v7316, %v7355
    %v7357 = vpop.f32.mrb[0].mxu0
    %v7358 = vpop.f32.mrb[0].mxu0
    %v7359 = vpop.f32.mrb[0].mxu0
    %7360 = vdwg.mxu0
    %7361 = vmatprep.subr.bf16.mxu0 0
    %7362 = vmatpush1.bf16.msra.mxu0 %v7242
    %7363 = vmatprep.subr.bf16.mxu0 0
    %7364 = vmatpush1.bf16.msra.mxu0 %v7243
    %7365 = vmatprep.subr.bf16.mxu0 0
    %7366 = vmatpush1.bf16.msra.mxu0 %v7244
    %7367 = vmatprep.subr.bf16.mxu0 0
    %7368 = vmatpush1.bf16.msra.mxu0 %v7245
    %7369 = vmatprep.subr.bf16.mxu0 0
    %7370 = vmatpush1.bf16.msra.mxu0 %v7246
    %7371 = vmatprep.subr.bf16.mxu0 0
    %7372 = vmatpush1.bf16.msra.mxu0 %v7247
    %7373 = vmatprep.subr.bf16.mxu0 0
    %7374 = vmatpush1.bf16.msra.mxu0 %v7248
    %7375 = vmatprep.subr.bf16.mxu0 0
    %7376 = vmatpush1.bf16.msra.mxu0 %v7249
    %7377 = vmatprep.subr.bf16.mxu0 0
    %7378 = vmatpush1.bf16.msra.mxu0 %v7250
    %7379 = vmatprep.subr.bf16.mxu0 0
    %7380 = vmatpush1.bf16.msra.mxu0 %v7251
    %7381 = vmatprep.subr.bf16.mxu0 0
    %7382 = vmatpush1.bf16.msra.mxu0 %v7252
    %7383 = vmatprep.subr.bf16.mxu0 0
    %7384 = vmatpush1.bf16.msra.mxu0 %v7253
    %7385 = vmatprep.subr.bf16.mxu0 0
    %7386 = vmatpush1.bf16.msra.mxu0 %v7254
    %7387 = vmatprep.subr.bf16.mxu0 0
    %7388 = vmatpush1.bf16.msra.mxu0 %v7255
    %7389 = vmatprep.subr.bf16.mxu0 0
    %7390 = vmatpush1.bf16.msra.mxu0 %v7256
    %7391 = vmatprep.subr.bf16.mxu0 0
    %7392 = vmatpush1.bf16.msra.mxu0 %v7257
    %7393 = vmatprep.mubr.bf16.mxu0 %v7204
    %7394 = vmatmul.mubr.bf16.gmra.mrb[0].mxu0 %v7203
    %v7395 = vpop.f32.mrb[0].mxu0
    %v7396 = vadd.f32 %v7356, %v7395
    %v7397 = vpop.f32.mrb[0].mxu0
    %v7398 = vpop.f32.mrb[0].mxu0
    %v7399 = vpop.f32.mrb[0].mxu0
    %7400 = vdwg.mxu0
    %7401 = vmatprep.subr.bf16.mxu0 0
    %7402 = vmatpush1.bf16.msra.mxu0 %v7258
    %7403 = vmatprep.subr.bf16.mxu0 0
    %7404 = vmatpush1.bf16.msra.mxu0 %v7259
    %7405 = vmatprep.subr.bf16.mxu0 0
    %7406 = vmatpush1.bf16.msra.mxu0 %v7260
    %7407 = vmatprep.subr.bf16.mxu0 0
    %7408 = vmatpush1.bf16.msra.mxu0 %v7261
    %7409 = vmatprep.subr.bf16.mxu0 0
    %7410 = vmatpush1.bf16.msra.mxu0 %v7262
    %7411 = vmatprep.subr.bf16.mxu0 0
    %7412 = vmatpush1.bf16.msra.mxu0 %v7263
    %7413 = vmatprep.subr.bf16.mxu0 0
    %7414 = vmatpush1.bf16.msra.mxu0 %v7264
    %7415 = vmatprep.subr.bf16.mxu0 0
    %7416 = vmatpush1.bf16.msra.mxu0 %v7265
    %7417 = vmatprep.subr.bf16.mxu0 0
    %7418 = vmatpush1.bf16.msra.mxu0 %v7266
    %7419 = vmatprep.subr.bf16.mxu0 0
    %7420 = vmatpush1.bf16.msra.mxu0 %v7267
    %7421 = vmatprep.subr.bf16.mxu0 0
    %7422 = vmatpush1.bf16.msra.mxu0 %v7268
    %7423 = vmatprep.subr.bf16.mxu0 0
    %7424 = vmatpush1.bf16.msra.mxu0 %v7269
    %7425 = vmatprep.subr.bf16.mxu0 0
    %7426 = vmatpush1.bf16.msra.mxu0 %v7270
    %7427 = vmatprep.subr.bf16.mxu0 0
    %7428 = vmatpush1.bf16.msra.mxu0 %v7271
    %7429 = vmatprep.subr.bf16.mxu0 0
    %7430 = vmatpush1.bf16.msra.mxu0 %v7272
    %7431 = vmatprep.subr.bf16.mxu0 0
    %7432 = vmatpush1.bf16.msra.mxu0 %v7273
    %7433 = vmatprep.mubr.bf16.mxu0 %v7206
    %7434 = vmatmul.mubr.bf16.gmra.mrb[0].mxu0 %v7205
    %v7435 = vpop.f32.mrb[0].mxu0
    %v7436 = vadd.f32 %v7396, %v7435
    %v7437 = vpop.f32.mrb[0].mxu0
    %v7438 = vpop.f32.mrb[0].mxu0
    %v7439 = vpop.f32.mrb[0].mxu0
    %7440 = vdwg.mxu0
    %vm7441 = vcmp.gt.f32.partialorder %v7436, 0.0
    %v7442 = vmul.f32 %v7436, 0.01
    %v7443 = vsel %vm7441, %v7436, %v7442
    %v7444 = vpack.c.bf16 %v7443, %v7443
    %v7445 = vld [vmem:[%s13] sm:$0xf]
    %v7446 = vld [vmem:[%s13 + $0x4] sm:$0xf]
    %v7447 = vld [vmem:[%s13 + $0x8] sm:$0xf]
    %v7448 = vld [vmem:[%s13 + $0xc] sm:$0xf]
    %v7449 = vld [vmem:[%s13 + $0x10] sm:$0xf]
    %v7450 = vld [vmem:[%s13 + $0x14] sm:$0xf]
    %v7451 = vld [vmem:[%s13 + $0x18] sm:$0xf]
    %v7452 = vld [vmem:[%s13 + $0x1c] sm:$0xf]
    %v7453 = vld [vmem:[#allocation18] sm:$0x1]
    %v7455 = vlaneseq
    %v7456 = vshrl.u32 %v7455, 7
    %v7457 = vsub.s32 0, %v7456
    %v7458 = vrot.slane %v7453, %v7457
    %v7468 = vunpack.c.l.b16 %v7445
    %v7469 = vunpack.c.l.b16 %v7446
    %v7470 = vunpack.c.l.b16 %v7447
    %v7471 = vunpack.c.l.b16 %v7448
    %v7472 = vunpack.c.l.b16 %v7449
    %v7473 = vunpack.c.l.b16 %v7450
    %v7474 = vunpack.c.l.b16 %v7451
    %v7475 = vunpack.c.l.b16 %v7452
    %v7476 = vpack.c.b16 %v7469, %v7468
    %v7477 = vpack.c.b16 %v7471, %v7470
    %v7478 = vpack.c.b16 %v7473, %v7472
    %v7479 = vpack.c.b16 %v7475, %v7474
    %vm7484 = vcmask 523264
    %v7486 = vsel %vm7484, %v7444, 0
    %7488 = vmatprep.subr.bf16.mxu0 0
    %7489 = vmatpush1.bf16.msra.mxu0 %v7476
    %7490 = vmatprep.subr.bf16.mxu0 0
    %7491 = vmatpush1.bf16.msra.mxu0 %v7477
    %7492 = vmatprep.subr.bf16.mxu0 0
    %7493 = vmatpush1.bf16.msra.mxu0 %v7478
    %7494 = vmatprep.subr.bf16.mxu0 0
    %7495 = vmatpush1.bf16.msra.mxu0 %v7479
    %7496 = vmatprep.subr.bf16.mxu0 0
    %7497 = vmatpush1.bf16.msra.mxu0 0
    %7498 = vmatprep.subr.bf16.mxu0 0
    %7499 = vmatpush1.bf16.msra.mxu0 0
    %7500 = vmatprep.subr.bf16.mxu0 0
    %7501 = vmatpush1.bf16.msra.mxu0 0
    %7502 = vmatprep.subr.bf16.mxu0 0
    %7503 = vmatpush1.bf16.msra.mxu0 0
    %7504 = vmatprep.subr.bf16.mxu0 0
    %7505 = vmatpush1.bf16.msra.mxu0 0
    %7506 = vmatprep.subr.bf16.mxu0 0
    %7507 = vmatpush1.bf16.msra.mxu0 0
    %7508 = vmatprep.subr.bf16.mxu0 0
    %7509 = vmatpush1.bf16.msra.mxu0 0
    %7510 = vmatprep.subr.bf16.mxu0 0
    %7511 = vmatpush1.bf16.msra.mxu0 0
    %7512 = vmatprep.subr.bf16.mxu0 0
    %7513 = vmatpush1.bf16.msra.mxu0 0
    %7514 = vmatprep.subr.bf16.mxu0 0
    %7515 = vmatpush1.bf16.msra.mxu0 0
    %7516 = vmatprep.subr.bf16.mxu0 0
    %7517 = vmatpush1.bf16.msra.mxu0 0
    %7518 = vmatprep.subr.bf16.mxu0 0
    %7519 = vmatpush1.bf16.msra.mxu0 0
    %7520 = vmatprep.mubr.bf16.mxu0 0
    %7521 = vmatmul.mubr.bf16.gmra.mrb[0].mxu0 %v7486
    %v7522 = vpop.f32.mrb[0].mxu0
    %v7523 = vadd.f32 %v7458, %v7522
    %v7524 = vpop.f32.mrb[0].mxu0
    %v7525 = vpop.f32.mrb[0].mxu0
    %v7526 = vpop.f32.mrb[0].mxu0
    %7527 = vdwg.mxu0
    %vm7528 = vcmp.gt.f32.partialorder %v7523, 0.0
    %v7529 = vmul.f32 %v7523, 0.01
    %v7530 = vsel %vm7528, %v7523, %v7529
    %v7531 = vpack.c.bf16 %v7530, %v7530
    %v7532 = vld [vmem:[%s15] sm:$0x3]
    %v7533 = vld [vmem:[#allocation20] sm:$0x1]
    %v7535 = vlaneseq
    %v7536 = vshrl.u32 %v7535, 7
    %v7537 = vsub.s32 0, %v7536
    %v7538 = vrot.slane %v7533, %v7537
    %vm7540 = vcmask 31744
    %v7542 = vsel %vm7540, %v7531, 0
    %v7545 = vsel %vm4320, %v7532, 0
    %7547 = vmatprep.subr.bf16.mxu0 0
    %7548 = vmatpush1.bf16.msra.mxu0 %v7545
    %7549 = vmatprep.subr.bf16.mxu0 0
    %7550 = vmatpush1.bf16.msra.mxu0 0
    %7551 = vmatprep.subr.bf16.mxu0 0
    %7552 = vmatpush1.bf16.msra.mxu0 0
    %7553 = vmatprep.subr.bf16.mxu0 0
    %7554 = vmatpush1.bf16.msra.mxu0 0
    %7555 = vmatprep.subr.bf16.mxu0 0
    %7556 = vmatpush1.bf16.msra.mxu0 0
    %7557 = vmatprep.subr.bf16.mxu0 0
    %7558 = vmatpush1.bf16.msra.mxu0 0
    %7559 = vmatprep.subr.bf16.mxu0 0
    %7560 = vmatpush1.bf16.msra.mxu0 0
    %7561 = vmatprep.subr.bf16.mxu0 0
    %7562 = vmatpush1.bf16.msra.mxu0 0
    %7563 = vmatprep.subr.bf16.mxu0 0
    %7564 = vmatpush1.bf16.msra.mxu0 0
    %7565 = vmatprep.subr.bf16.mxu0 0
    %7566 = vmatpush1.bf16.msra.mxu0 0
    %7567 = vmatprep.subr.bf16.mxu0 0
    %7568 = vmatpush1.bf16.msra.mxu0 0
    %7569 = vmatprep.subr.bf16.mxu0 0
    %7570 = vmatpush1.bf16.msra.mxu0 0
    %7571 = vmatprep.subr.bf16.mxu0 0
    %7572 = vmatpush1.bf16.msra.mxu0 0
    %7573 = vmatprep.subr.bf16.mxu0 0
    %7574 = vmatpush1.bf16.msra.mxu0 0
    %7575 = vmatprep.subr.bf16.mxu0 0
    %7576 = vmatpush1.bf16.msra.mxu0 0
    %7577 = vmatprep.subr.bf16.mxu0 0
    %7578 = vmatpush1.bf16.msra.mxu0 0
    %7579 = vmatprep.mubr.bf16.mxu0 0
    %7580 = vmatmul.mubr.bf16.gmra.mrb[0].mxu0 %v7542
    %v7581 = vpop.f32.mrb[0].mxu0
    %v7582 = vadd.f32 %v7538, %v7581
    %v7583 = vpop.f32.mrb[0].mxu0
    %v7584 = vpop.f32.mrb[0].mxu0
    %v7585 = vpop.f32.mrb[0].mxu0
    %7586 = vdwg.mxu0
    %vm7587 = vcmask 9216
    %v7588 = vsel %vm7587, %v7582, -inf
    %7589 = vmax.xlane.f32.xlu0 %v7588
    %v7590 = vpop.xlane.xlu0 %7589
    %v7591 = vsub.f32 %v7582, %v7590
    %v7592 = vmul.f32 %v7591, 1.442695
    %v7593 = vpow.pop %v7592
    %v7594 = vsel %vm7587, %v7593, 0.0
    %7595 = vadd.xlane.f32.xlu0 %v7594
    %v7596 = vpop.xlane.xlu0 %7595
    %v7597 = vlog2.pop %v7596
    %v7598 = vmul.f32 %v7597, 0.6931472
    %v7599 = vsub.f32 %v7591, %v7598
    %7600 = vst.msk [vmem:[#allocation21] sm:$0x3] %vm7587, %v7599
    // Predicated region
    $region128: #{exo_classifier_forward.1} parent=1 // pred_check
      _
    $region129: #{exo_classifier_forward.1} parent=1 // pred_check_branch
      %7602 = sbr.rel (0) target = $region131
    $region130: #{exo_classifier_forward.1} parent=1 // pred_region
      %s7604 = ssub.s32 32, 32
      %7605 = vsyncadd [#allocation8], %s7604
      %s7607 = sshll.u32 [#allocation21], 4
      %s7608 = int_to_ptr.vmem [resolvable:$true] %s7607
      %7610 = dma.vmem_to_hbm [thread:$0]  %s7608, 32, %s17, [#allocation8]
    $region131: #{exo_classifier_forward.1} parent=1 // pred_fallthru
      _
    // Predicated region
    $region132: #{exo_classifier_forward.1} parent=1 // pred_check
      _
    $region133: #{exo_classifier_forward.1} parent=1 // pred_check_branch
      %7612 = sbr.rel (0) target = $region135
    $region134: #{exo_classifier_forward.1} parent=1 // pred_region
      %7613 = dma.done [#allocation8], 32
    $region135: #{exo_classifier_forward.1} parent=1 // pred_fallthru
      _
    %7614 = vsyncpa [#allocation7], 1
    %7615 = vsyncpa [#allocation10], 1
    %7616 = vsyncpa [#allocation13], 1
    %7617 = vsyncpa [#allocation16], 1
    %7618 = vsyncpa [#allocation19], 1
    %7619 = vsyncpa [#allocation8], 1
  %7620 = vsyncmov [#allocation5]
  %s7621 = vpop.sfrf %7620
  %p7622 = scmp.eq.s32.totalorder %s7621, 0
  %p7623 = pneg %p7622
  %7625 = shalt.err (%p7623)
  %s7626 = scalar_lea.sflag [#allocation5], 1
  %7627 = vsyncmov %s7626
  %s7628 = vpop.sfrf %7627
  %p7629 = scmp.eq.s32.totalorder %s7628, 0
  %p7630 = pneg %p7629
  %7632 = shalt.err (%p7630)
  %s7633 = scalar_lea.sflag [#allocation5], 2
  %7634 = vsyncmov %s7633
  %s7635 = vpop.sfrf %7634
  %p7636 = scmp.eq.s32.totalorder %s7635, 0
  %p7637 = pneg %p7636
  %7639 = shalt.err (%p7637)

</llo_original>
